<compile_context>
chip_gen: v5e
topology: v5e:2x2
jax: 0.10.0
libtpu: 0.0.40
codegen_flags: <defaults>
</compile_context>

<pallas_src>
import numpy as np
import jax
import jax.numpy as jnp
from jax.experimental import pallas as pl
from jax.experimental.pallas import tpu as pltpu


# ---------------------------------------------------------------------------
# Host-side 0/1 routing matrices.  They turn padding / valid-extraction /
# pool-selection / nearest-upsampling into lane-dense MXU matmuls in-kernel.
# ---------------------------------------------------------------------------
def _pad_matrix(H, W, p):
    """(H*W, Hp*Wp + 2p): compact row-major image -> zero-padded flat image.

    The extra 2p tail columns keep every tap slice (length H*Wp, max offset
    2p*Wp + 2p) in bounds; they are always zero."""
    Wp, Hp = W + 2 * p, H + 2 * p
    m = np.zeros((H * W, Hp * Wp + 2 * p), np.float32)
    hh, ww = np.meshgrid(np.arange(H), np.arange(W), indexing="ij")
    m[(hh * W + ww).ravel(), ((hh + p) * Wp + (ww + p)).ravel()] = 1.0
    return m


def _extract_matrix(H, W, p):
    """(H*Wp, H*W): conv accumulator (junk border columns included) -> compact."""
    Wp = W + 2 * p
    m = np.zeros((H * Wp, H * W), np.float32)
    hh, ww = np.meshgrid(np.arange(H), np.arange(W), indexing="ij")
    m[(hh * Wp + ww).ravel(), (hh * W + ww).ravel()] = 1.0
    return m


def _pool_matrix(H, W):
    """(H*W - W - 1, (H//2)*(W//2)): select the top-left position of every
    non-overlapping 2x2 window out of the 4-way shifted max."""
    Ho, Wo = H // 2, W // 2
    m = np.zeros((H * W - W - 1, Ho * Wo), np.float32)
    oh, ow = np.meshgrid(np.arange(Ho), np.arange(Wo), indexing="ij")
    m[((2 * oh) * W + 2 * ow).ravel(), (oh * Wo + ow).ravel()] = 1.0
    return m


def _upsample_matrix(h, w):
    """(h*w, (2h)*(2w)): nearest-neighbour 2x upsample, out[y,x] = in[y//2, x//2]."""
    H, W = 2 * h, 2 * w
    m = np.zeros((h * w, H * W), np.float32)
    hh, ww = np.meshgrid(np.arange(H), np.arange(W), indexing="ij")
    m[((hh // 2) * w + (ww // 2)).ravel(), (hh * W + ww).ravel()] = 1.0
    return m


_CONST_BUILDERS = {"pad": _pad_matrix, "ext": _extract_matrix,
                   "pool": _pool_matrix, "up": _upsample_matrix}


def _rsu_plan(layers, H0, W0, paddings):
    """Ordered list of routing-matrix keys needed by the fused kernel."""
    keys = []

    def add(k):
        if k not in keys:
            keys.append(k)

    H, W = H0, W0
    for i in range(layers):                       # encoder
        if i >= 2:
            add(("pool", H, W))
            H //= 2
            W //= 2
        add(("pad", H, W, paddings[i]))
        add(("ext", H, W, paddings[i]))
    add(("pad", H, W, paddings[layers]))          # center (dilation=2)
    add(("ext", H, W, paddings[layers]))
    for j in range(layers - 1):                   # decoder
        if j > 0:
            add(("up", H, W))
            H *= 2
            W *= 2
        p = paddings[layers + 1 + j]
        add(("pad", H, W, p))
        add(("ext", H, W, p))
    return keys


# ---------------------------------------------------------------------------
# The fused RSU kernel (one grid step == one batch element)
# ---------------------------------------------------------------------------
def _make_rsu_kernel(layers, H0, W0, paddings, const_keys, n_conv):
    def kernel(*refs):
        x_ref = refs[0]
        conv_w = [refs[1 + 2 * i] for i in range(n_conv)]   # (9, Cout, Cin) f32
        conv_b = [refs[2 + 2 * i] for i in range(n_conv)]   # (Cout, 1)      f32
        c_base = 1 + 2 * n_conv
        cm = {k: refs[c_base + i] for i, k in enumerate(const_keys)}
        o_ref = refs[c_base + len(const_keys)]

        def conv(idx, parts, H, W, relu=True):
            """Fused 3x3 'same' conv (+folded BN bias, +ReLU).

            parts: list of (Cin_i, H*W) f32 values; their channel concat (in
            order) is the conv input -- the concat is never materialised."""
            p = paddings[idx]                     # padding == dilation
            Wp = W + 2 * p
            La = H * Wp
            w_ref, b_ref = conv_w[idx], conv_b[idx]
            co = w_ref.shape[1]
            pad_m = cm[("pad", H, W, p)][...]
            ext_m = cm[("ext", H, W, p)][...]

            # Zero-pad each input once via a routing matmul; bf16 MXU operands.
            xps = [jnp.dot(part, pad_m, preferred_element_type=jnp.float32)
                   .astype(jnp.bfloat16) for part in parts]

            # Accumulator initialised with the bias (junk border columns are
            # dropped by the extract matmul below).
            acc = jnp.broadcast_to(b_ref[...], (co, La))
            for ky in range(3):
                for kx in range(3):
                    off = (ky * Wp + kx) * p
                    wt = w_ref[ky * 3 + kx].astype(jnp.bfloat16)   # (Cout, Cin_total)
                    c0 = 0
                    for xp in xps:
                        ci = xp.shape[0]
                        acc = acc + jnp.dot(wt[:, c0:c0 + ci],
                                            xp[:, off:off + La],
                                            preferred_element_type=jnp.float32)
                        c0 += ci
            out = jnp.dot(acc, ext_m, preferred_element_type=jnp.float32)
            return jnp.maximum(out, 0.0) if relu else out

        def maxpool2(x, H, W):
            """nn.MaxPool2d(2, 2) on a compact (C, H*W) slab."""
            L = H * W - W - 1
            m = jnp.maximum(jnp.maximum(x[:, 0:L], x[:, 1:L + 1]),
                            jnp.maximum(x[:, W:W + L], x[:, W + 1:W + 1 + L]))
            return jnp.dot(m, cm[("pool", H, W)][...],
                           preferred_element_type=jnp.float32)

        def upsample2x(x, H, W):
            """F.interpolate(scale_factor=2, mode='nearest')."""
            return jnp.dot(x, cm[("up", H, W)][...],
                           preferred_element_type=jnp.float32)

        # ------------------------- forward pass -------------------------
        cur = x_ref[0].astype(jnp.float32)        # (Cin, H0*W0), lane-dense
        feats = []
        H, W = H0, W0
        for i in range(layers):                   # encoder
            if i >= 2:
                cur = maxpool2(cur, H, W)
                H //= 2
                W //= 2
            cur = conv(i, [cur], H, W)
            feats.append(cur)

        center = conv(layers, [cur], H, W)        # dilation-2 center conv
        parts = [cur, center]                     # torch.cat([inputs, center], dim=1)
        feats.pop()

        for j in range(layers - 1):               # decoder
            if j > 0:
                cur = upsample2x(cur, H, W)
                H *= 2
                W *= 2
                parts = [cur, feats.pop()]        # torch.cat([inputs, skip], dim=1)
            cur = conv(layers + 1 + j, parts, H, W)

        # outputs = features[-1] + inputs  (residual add fused into the epilogue)
        o_ref[0] = (feats[-1] + cur).astype(o_ref.dtype)

    return kernel


# ---------------------------------------------------------------------------
# Wrapper: builds specs / routing matrices and launches the single pallas_call
# ---------------------------------------------------------------------------
def rsu_forward(x_nchw, params):
    """x_nchw: (N, Cin, H, W) f32.  Returns (N, Cout, H, W), matching PyTorch RSU."""
    layers = params["layers"]
    convs = params["convs"]
    n_conv = len(convs)
    paddings = tuple(c["padding"] for c in convs)

    N, cin0, H0, W0 = x_nchw.shape
    div = 1 << max(layers - 2, 0)
    assert H0 % div == 0 and W0 % div == 0, "spatial dims must survive the pools"

    # Free reshape: NCHW is already channel-on-sublane / spatial-on-lane.
    x_flat = x_nchw.reshape(N, cin0, H0 * W0)

    const_keys = tuple(_rsu_plan(layers, H0, W0, paddings))
    const_vals = [jnp.asarray(_CONST_BUILDERS[k[0]](*k[1:])) for k in const_keys]

    inputs = [x_flat]
    in_specs = [pl.BlockSpec((1, cin0, H0 * W0), lambda i: (i, 0, 0))]
    for c in convs:
        inputs += [c["w_packed"], c["b_packed"]]
        in_specs += [pl.BlockSpec(c["w_packed"].shape, lambda i: (0, 0, 0)),
                     pl.BlockSpec(c["b_packed"].shape, lambda i: (0, 0))]
    for v in const_vals:
        inputs.append(v)
        in_specs.append(pl.BlockSpec(v.shape, lambda i: (0, 0)))

    cout = convs[-1]["w_packed"].shape[1]
    kernel = _make_rsu_kernel(layers, H0, W0, paddings, const_keys, n_conv)

    out_flat = pl.pallas_call(
        kernel,
        out_shape=jax.ShapeDtypeStruct((N, cout, H0 * W0), x_nchw.dtype),
        grid=(N,),
        in_specs=in_specs,
        out_specs=pl.BlockSpec((1, cout, H0 * W0), lambda i: (i, 0, 0)),
        compiler_params=pltpu.CompilerParams(
            dimension_semantics=("parallel",),     # batch across TCs (megacore)
            vmem_limit_bytes=32 * 1024 * 1024,     # working set is ~2 MiB, ample headroom
        ),
    )(*inputs)
    return out_flat.reshape(N, cout, H0, W0)


# ---------------------------------------------------------------------------
# Deterministic parameter construction (eval-mode BatchNorm folded into conv)
# ---------------------------------------------------------------------------
def _make_conv_block(key, cin, cout, *, padding=1, dilation=1):
    assert padding == dilation, "RSU only uses 'same' 3x3 convs (pad == dilation)"
    kw, kb, kg, kbeta = jax.random.split(key, 4)
    w = 0.1 * jax.random.normal(kw, (3, 3, cin, cout), jnp.float32)       # HWIO
    b = 0.05 * jax.random.normal(kb, (cout,), jnp.float32)
    gamma = 1.0 + 0.1 * jax.random.normal(kg, (cout,), jnp.float32)
    beta = 0.05 * jax.random.normal(kbeta, (cout,), jnp.float32)
    run_mean = jnp.zeros((cout,), jnp.float32)
    run_var = jnp.ones((cout,), jnp.float32)
    scale = gamma / jnp.sqrt(run_var + 1e-5)
    w_folded = w * scale[None, None, None, :]
    b_folded = (b - run_mean) * scale + beta
    # Pack for the kernel: (3,3,Cin,Cout) -> (9, Cout, Cin) so each tap is a
    # ready-to-use (Cout, Cin) left operand; bias as (Cout, 1) lane-broadcastable.
    w_packed = jnp.transpose(w_folded, (0, 1, 3, 2)).reshape(9, cout, cin)
    return dict(w_packed=w_packed.astype(jnp.float32),
                b_packed=b_folded.reshape(cout, 1).astype(jnp.float32),
                padding=padding, dilation=dilation)


def make_rsu_params(key, in_channel, out_channel, mid_channel, layers, padding=1):
    keys = jax.random.split(key, 2 * layers)
    convs = [_make_conv_block(keys[0], in_channel, out_channel, padding=padding),
             _make_conv_block(keys[1], out_channel, mid_channel, padding=padding)]
    for i in range(2, layers):
        convs.append(_make_conv_block(keys[i], mid_channel, mid_channel,
                                      padding=padding))
    convs.append(_make_conv_block(keys[layers], mid_channel, mid_channel,
                                  padding=2, dilation=2))                 # center
    for i in range(layers - 2):
        convs.append(_make_conv_block(keys[layers + 1 + i], 2 * mid_channel,
                                      mid_channel, padding=padding))
    convs.append(_make_conv_block(keys[2 * layers - 1], 2 * mid_channel,
                                  out_channel, padding=padding))
    return dict(layers=layers, convs=convs)


if __name__ == "__main__":
    key = jax.random.PRNGKey(0)
    kx, kp = jax.random.split(key)
    in_channel, out_channel, mid_channel, layers = 4, 4, 8, 4
    x = jax.random.normal(kx, (2, in_channel, 16, 16), jnp.float32)       # NCHW
    params = make_rsu_params(kp, in_channel, out_channel, mid_channel, layers,
                             padding=1)
    y = jax.block_until_ready(rsu_forward(x, params))
    assert y.shape == (2, out_channel, 16, 16), y.shape
    assert bool(jnp.all(jnp.isfinite(y)))
    print("KERNEL_OK")
</pallas_src>

<mosaic_0001>
module attributes {stable_mosaic.version = 11 : i64} {
  func.func @kernel(%arg0: i32, %arg1: memref<1x4x256xf32, #tpu.memory_space<vmem>>, %arg2: memref<9x4x4xf32, #tpu.memory_space<vmem>>, %arg3: memref<4x1xf32, #tpu.memory_space<vmem>>, %arg4: memref<9x8x4xf32, #tpu.memory_space<vmem>>, %arg5: memref<8x1xf32, #tpu.memory_space<vmem>>, %arg6: memref<9x8x8xf32, #tpu.memory_space<vmem>>, %arg7: memref<8x1xf32, #tpu.memory_space<vmem>>, %arg8: memref<9x8x8xf32, #tpu.memory_space<vmem>>, %arg9: memref<8x1xf32, #tpu.memory_space<vmem>>, %arg10: memref<9x8x8xf32, #tpu.memory_space<vmem>>, %arg11: memref<8x1xf32, #tpu.memory_space<vmem>>, %arg12: memref<9x8x16xf32, #tpu.memory_space<vmem>>, %arg13: memref<8x1xf32, #tpu.memory_space<vmem>>, %arg14: memref<9x8x16xf32, #tpu.memory_space<vmem>>, %arg15: memref<8x1xf32, #tpu.memory_space<vmem>>, %arg16: memref<9x4x16xf32, #tpu.memory_space<vmem>>, %arg17: memref<4x1xf32, #tpu.memory_space<vmem>>, %arg18: memref<256x326xf32, #tpu.memory_space<vmem>>, %arg19: memref<288x256xf32, #tpu.memory_space<vmem>>, %arg20: memref<239x64xf32, #tpu.memory_space<vmem>>, %arg21: memref<64x102xf32, #tpu.memory_space<vmem>>, %arg22: memref<80x64xf32, #tpu.memory_space<vmem>>, %arg23: memref<55x16xf32, #tpu.memory_space<vmem>>, %arg24: memref<16x38xf32, #tpu.memory_space<vmem>>, %arg25: memref<24x16xf32, #tpu.memory_space<vmem>>, %arg26: memref<16x68xf32, #tpu.memory_space<vmem>>, %arg27: memref<32x16xf32, #tpu.memory_space<vmem>>, %arg28: memref<16x64xf32, #tpu.memory_space<vmem>>, %arg29: memref<64x256xf32, #tpu.memory_space<vmem>>, %arg30: memref<1x4x256xf32, #tpu.memory_space<vmem>>) attributes {dimension_semantics = [#tpu.dimension_semantics<parallel>], iteration_bounds = array<i64: 2>, scalar_prefetch = 0 : i64, scratch_operands = 0 : i64, tpu.core_type = #tpu.core_type<tc>, window_params = [{transform_indices = @transform_0, window_bounds = array<i64: 1, 4, 256>}, {pipeline_mode = #tpu.pipeline_mode<synchronous>, transform_indices = @transform_1, window_bounds = array<i64: 9, 4, 4>}, {pipeline_mode = #tpu.pipeline_mode<synchronous>, transform_indices = @transform_2, window_bounds = array<i64: 4, 1>}, {pipeline_mode = #tpu.pipeline_mode<synchronous>, transform_indices = @transform_3, window_bounds = array<i64: 9, 8, 4>}, {pipeline_mode = #tpu.pipeline_mode<synchronous>, transform_indices = @transform_4, window_bounds = array<i64: 8, 1>}, {pipeline_mode = #tpu.pipeline_mode<synchronous>, transform_indices = @transform_5, window_bounds = array<i64: 9, 8, 8>}, {pipeline_mode = #tpu.pipeline_mode<synchronous>, transform_indices = @transform_6, window_bounds = array<i64: 8, 1>}, {pipeline_mode = #tpu.pipeline_mode<synchronous>, transform_indices = @transform_7, window_bounds = array<i64: 9, 8, 8>}, {pipeline_mode = #tpu.pipeline_mode<synchronous>, transform_indices = @transform_8, window_bounds = array<i64: 8, 1>}, {pipeline_mode = #tpu.pipeline_mode<synchronous>, transform_indices = @transform_9, window_bounds = array<i64: 9, 8, 8>}, {pipeline_mode = #tpu.pipeline_mode<synchronous>, transform_indices = @transform_10, window_bounds = array<i64: 8, 1>}, {pipeline_mode = #tpu.pipeline_mode<synchronous>, transform_indices = @transform_11, window_bounds = array<i64: 9, 8, 16>}, {pipeline_mode = #tpu.pipeline_mode<synchronous>, transform_indices = @transform_12, window_bounds = array<i64: 8, 1>}, {pipeline_mode = #tpu.pipeline_mode<synchronous>, transform_indices = @transform_13, window_bounds = array<i64: 9, 8, 16>}, {pipeline_mode = #tpu.pipeline_mode<synchronous>, transform_indices = @transform_14, window_bounds = array<i64: 8, 1>}, {pipeline_mode = #tpu.pipeline_mode<synchronous>, transform_indices = @transform_15, window_bounds = array<i64: 9, 4, 16>}, {pipeline_mode = #tpu.pipeline_mode<synchronous>, transform_indices = @transform_16, window_bounds = array<i64: 4, 1>}, {pipeline_mode = #tpu.pipeline_mode<synchronous>, transform_indices = @transform_17, window_bounds = array<i64: 256, 326>}, {pipeline_mode = #tpu.pipeline_mode<synchronous>, transform_indices = @transform_18, window_bounds = array<i64: 288, 256>}, {pipeline_mode = #tpu.pipeline_mode<synchronous>, transform_indices = @transform_19, window_bounds = array<i64: 239, 64>}, {pipeline_mode = #tpu.pipeline_mode<synchronous>, transform_indices = @transform_20, window_bounds = array<i64: 64, 102>}, {pipeline_mode = #tpu.pipeline_mode<synchronous>, transform_indices = @transform_21, window_bounds = array<i64: 80, 64>}, {pipeline_mode = #tpu.pipeline_mode<synchronous>, transform_indices = @transform_22, window_bounds = array<i64: 55, 16>}, {pipeline_mode = #tpu.pipeline_mode<synchronous>, transform_indices = @transform_23, window_bounds = array<i64: 16, 38>}, {pipeline_mode = #tpu.pipeline_mode<synchronous>, transform_indices = @transform_24, window_bounds = array<i64: 24, 16>}, {pipeline_mode = #tpu.pipeline_mode<synchronous>, transform_indices = @transform_25, window_bounds = array<i64: 16, 68>}, {pipeline_mode = #tpu.pipeline_mode<synchronous>, transform_indices = @transform_26, window_bounds = array<i64: 32, 16>}, {pipeline_mode = #tpu.pipeline_mode<synchronous>, transform_indices = @transform_27, window_bounds = array<i64: 16, 64>}, {pipeline_mode = #tpu.pipeline_mode<synchronous>, transform_indices = @transform_28, window_bounds = array<i64: 64, 256>}, {transform_indices = @transform_29, window_bounds = array<i64: 1, 4, 256>}]} {
    %c0 = arith.constant 0 : index
    %c0_0 = arith.constant 0 : index
    %c0_1 = arith.constant 0 : index
    %0 = vector.load %arg1[%c0, %c0_0, %c0_1] : memref<1x4x256xf32, #tpu.memory_space<vmem>>, vector<1x4x256xf32>
    %1 = vector.shape_cast %0 : vector<1x4x256xf32> to vector<4x256xf32>
    %c0_2 = arith.constant 0 : index
    %c0_3 = arith.constant 0 : index
    %2 = vector.load %arg18[%c0_2, %c0_3] : memref<256x326xf32, #tpu.memory_space<vmem>>, vector<256x326xf32>
    %c0_4 = arith.constant 0 : index
    %c0_5 = arith.constant 0 : index
    %3 = vector.load %arg19[%c0_4, %c0_5] : memref<288x256xf32, #tpu.memory_space<vmem>>, vector<288x256xf32>
    %cst = arith.constant dense<0.000000e+00> : vector<4x326xf32>
    %4 = tpu.matmul %1, %2, %cst {dimension_numbers = #tpu.dot_dimension_numbers<[1], [0], [0], [1], [0, 0, 1, 1], [], []>} : vector<4x256xf32>, vector<256x326xf32>, vector<4x326xf32> -> vector<4x326xf32>
    %5 = arith.truncf %4 : vector<4x326xf32> to vector<4x326xbf16>
    %c0_6 = arith.constant 0 : index
    %c0_7 = arith.constant 0 : index
    %6 = vector.load %arg3[%c0_6, %c0_7] : memref<4x1xf32, #tpu.memory_space<vmem>>, vector<4x1xf32>
    %7 = vector.shape_cast %6 : vector<4x1xf32> to vector<4x1xf32>
    %8 = vector.broadcast %7 : vector<4x1xf32> to vector<4x288xf32>
    %c0_8 = arith.constant 0 : index
    %c0_9 = arith.constant 0 : index
    %c0_10 = arith.constant 0 : index
    %9 = vector.load %arg2[%c0_8, %c0_9, %c0_10] : memref<9x4x4xf32, #tpu.memory_space<vmem>>, vector<1x4x4xf32>
    %10 = vector.shape_cast %9 : vector<1x4x4xf32> to vector<4x4xf32>
    %11 = arith.truncf %10 : vector<4x4xf32> to vector<4x4xbf16>
    %12 = vector.extract_strided_slice %5 {offsets = [0, 0], sizes = [4, 288], strides = [1, 1]} : vector<4x326xbf16> to vector<4x288xbf16>
    %cst_11 = arith.constant dense<0.000000e+00> : vector<4x288xf32>
    %13 = tpu.matmul %11, %12, %cst_11 {dimension_numbers = #tpu.dot_dimension_numbers<[1], [0], [0], [1], [0, 0, 1, 1], [], []>} : vector<4x4xbf16>, vector<4x288xbf16>, vector<4x288xf32> -> vector<4x288xf32>
    %14 = arith.addf %8, %13 : vector<4x288xf32>
    %c1 = arith.constant 1 : index
    %c0_12 = arith.constant 0 : index
    %c0_13 = arith.constant 0 : index
    %15 = vector.load %arg2[%c1, %c0_12, %c0_13] : memref<9x4x4xf32, #tpu.memory_space<vmem>>, vector<1x4x4xf32>
    %16 = vector.shape_cast %15 : vector<1x4x4xf32> to vector<4x4xf32>
    %17 = arith.truncf %16 : vector<4x4xf32> to vector<4x4xbf16>
    %18 = vector.extract_strided_slice %5 {offsets = [0, 1], sizes = [4, 288], strides = [1, 1]} : vector<4x326xbf16> to vector<4x288xbf16>
    %cst_14 = arith.constant dense<0.000000e+00> : vector<4x288xf32>
    %19 = tpu.matmul %17, %18, %cst_14 {dimension_numbers = #tpu.dot_dimension_numbers<[1], [0], [0], [1], [0, 0, 1, 1], [], []>} : vector<4x4xbf16>, vector<4x288xbf16>, vector<4x288xf32> -> vector<4x288xf32>
    %20 = arith.addf %14, %19 : vector<4x288xf32>
    %c2 = arith.constant 2 : index
    %c0_15 = arith.constant 0 : index
    %c0_16 = arith.constant 0 : index
    %21 = vector.load %arg2[%c2, %c0_15, %c0_16] : memref<9x4x4xf32, #tpu.memory_space<vmem>>, vector<1x4x4xf32>
    %22 = vector.shape_cast %21 : vector<1x4x4xf32> to vector<4x4xf32>
    %23 = arith.truncf %22 : vector<4x4xf32> to vector<4x4xbf16>
    %24 = vector.extract_strided_slice %5 {offsets = [0, 2], sizes = [4, 288], strides = [1, 1]} : vector<4x326xbf16> to vector<4x288xbf16>
    %cst_17 = arith.constant dense<0.000000e+00> : vector<4x288xf32>
    %25 = tpu.matmul %23, %24, %cst_17 {dimension_numbers = #tpu.dot_dimension_numbers<[1], [0], [0], [1], [0, 0, 1, 1], [], []>} : vector<4x4xbf16>, vector<4x288xbf16>, vector<4x288xf32> -> vector<4x288xf32>
    %26 = arith.addf %20, %25 : vector<4x288xf32>
    %c3 = arith.constant 3 : index
    %c0_18 = arith.constant 0 : index
    %c0_19 = arith.constant 0 : index
    %27 = vector.load %arg2[%c3, %c0_18, %c0_19] : memref<9x4x4xf32, #tpu.memory_space<vmem>>, vector<1x4x4xf32>
    %28 = vector.shape_cast %27 : vector<1x4x4xf32> to vector<4x4xf32>
    %29 = arith.truncf %28 : vector<4x4xf32> to vector<4x4xbf16>
    %30 = vector.extract_strided_slice %5 {offsets = [0, 18], sizes = [4, 288], strides = [1, 1]} : vector<4x326xbf16> to vector<4x288xbf16>
    %cst_20 = arith.constant dense<0.000000e+00> : vector<4x288xf32>
    %31 = tpu.matmul %29, %30, %cst_20 {dimension_numbers = #tpu.dot_dimension_numbers<[1], [0], [0], [1], [0, 0, 1, 1], [], []>} : vector<4x4xbf16>, vector<4x288xbf16>, vector<4x288xf32> -> vector<4x288xf32>
    %32 = arith.addf %26, %31 : vector<4x288xf32>
    %c4 = arith.constant 4 : index
    %c0_21 = arith.constant 0 : index
    %c0_22 = arith.constant 0 : index
    %33 = vector.load %arg2[%c4, %c0_21, %c0_22] : memref<9x4x4xf32, #tpu.memory_space<vmem>>, vector<1x4x4xf32>
    %34 = vector.shape_cast %33 : vector<1x4x4xf32> to vector<4x4xf32>
    %35 = arith.truncf %34 : vector<4x4xf32> to vector<4x4xbf16>
    %36 = vector.extract_strided_slice %5 {offsets = [0, 19], sizes = [4, 288], strides = [1, 1]} : vector<4x326xbf16> to vector<4x288xbf16>
    %cst_23 = arith.constant dense<0.000000e+00> : vector<4x288xf32>
    %37 = tpu.matmul %35, %36, %cst_23 {dimension_numbers = #tpu.dot_dimension_numbers<[1], [0], [0], [1], [0, 0, 1, 1], [], []>} : vector<4x4xbf16>, vector<4x288xbf16>, vector<4x288xf32> -> vector<4x288xf32>
    %38 = arith.addf %32, %37 : vector<4x288xf32>
    %c5 = arith.constant 5 : index
    %c0_24 = arith.constant 0 : index
    %c0_25 = arith.constant 0 : index
    %39 = vector.load %arg2[%c5, %c0_24, %c0_25] : memref<9x4x4xf32, #tpu.memory_space<vmem>>, vector<1x4x4xf32>
    %40 = vector.shape_cast %39 : vector<1x4x4xf32> to vector<4x4xf32>
    %41 = arith.truncf %40 : vector<4x4xf32> to vector<4x4xbf16>
    %42 = vector.extract_strided_slice %5 {offsets = [0, 20], sizes = [4, 288], strides = [1, 1]} : vector<4x326xbf16> to vector<4x288xbf16>
    %cst_26 = arith.constant dense<0.000000e+00> : vector<4x288xf32>
    %43 = tpu.matmul %41, %42, %cst_26 {dimension_numbers = #tpu.dot_dimension_numbers<[1], [0], [0], [1], [0, 0, 1, 1], [], []>} : vector<4x4xbf16>, vector<4x288xbf16>, vector<4x288xf32> -> vector<4x288xf32>
    %44 = arith.addf %38, %43 : vector<4x288xf32>
    %c6 = arith.constant 6 : index
    %c0_27 = arith.constant 0 : index
    %c0_28 = arith.constant 0 : index
    %45 = vector.load %arg2[%c6, %c0_27, %c0_28] : memref<9x4x4xf32, #tpu.memory_space<vmem>>, vector<1x4x4xf32>
    %46 = vector.shape_cast %45 : vector<1x4x4xf32> to vector<4x4xf32>
    %47 = arith.truncf %46 : vector<4x4xf32> to vector<4x4xbf16>
    %48 = vector.extract_strided_slice %5 {offsets = [0, 36], sizes = [4, 288], strides = [1, 1]} : vector<4x326xbf16> to vector<4x288xbf16>
    %cst_29 = arith.constant dense<0.000000e+00> : vector<4x288xf32>
    %49 = tpu.matmul %47, %48, %cst_29 {dimension_numbers = #tpu.dot_dimension_numbers<[1], [0], [0], [1], [0, 0, 1, 1], [], []>} : vector<4x4xbf16>, vector<4x288xbf16>, vector<4x288xf32> -> vector<4x288xf32>
    %50 = arith.addf %44, %49 : vector<4x288xf32>
    %c7 = arith.constant 7 : index
    %c0_30 = arith.constant 0 : index
    %c0_31 = arith.constant 0 : index
    %51 = vector.load %arg2[%c7, %c0_30, %c0_31] : memref<9x4x4xf32, #tpu.memory_space<vmem>>, vector<1x4x4xf32>
    %52 = vector.shape_cast %51 : vector<1x4x4xf32> to vector<4x4xf32>
    %53 = arith.truncf %52 : vector<4x4xf32> to vector<4x4xbf16>
    %54 = vector.extract_strided_slice %5 {offsets = [0, 37], sizes = [4, 288], strides = [1, 1]} : vector<4x326xbf16> to vector<4x288xbf16>
    %cst_32 = arith.constant dense<0.000000e+00> : vector<4x288xf32>
    %55 = tpu.matmul %53, %54, %cst_32 {dimension_numbers = #tpu.dot_dimension_numbers<[1], [0], [0], [1], [0, 0, 1, 1], [], []>} : vector<4x4xbf16>, vector<4x288xbf16>, vector<4x288xf32> -> vector<4x288xf32>
    %56 = arith.addf %50, %55 : vector<4x288xf32>
    %c8 = arith.constant 8 : index
    %c0_33 = arith.constant 0 : index
    %c0_34 = arith.constant 0 : index
    %57 = vector.load %arg2[%c8, %c0_33, %c0_34] : memref<9x4x4xf32, #tpu.memory_space<vmem>>, vector<1x4x4xf32>
    %58 = vector.shape_cast %57 : vector<1x4x4xf32> to vector<4x4xf32>
    %59 = arith.truncf %58 : vector<4x4xf32> to vector<4x4xbf16>
    %60 = vector.extract_strided_slice %5 {offsets = [0, 38], sizes = [4, 288], strides = [1, 1]} : vector<4x326xbf16> to vector<4x288xbf16>
    %cst_35 = arith.constant dense<0.000000e+00> : vector<4x288xf32>
    %61 = tpu.matmul %59, %60, %cst_35 {dimension_numbers = #tpu.dot_dimension_numbers<[1], [0], [0], [1], [0, 0, 1, 1], [], []>} : vector<4x4xbf16>, vector<4x288xbf16>, vector<4x288xf32> -> vector<4x288xf32>
    %62 = arith.addf %56, %61 : vector<4x288xf32>
    %cst_36 = arith.constant dense<0.000000e+00> : vector<4x256xf32>
    %63 = tpu.matmul %62, %3, %cst_36 {dimension_numbers = #tpu.dot_dimension_numbers<[1], [0], [0], [1], [0, 0, 1, 1], [], []>} : vector<4x288xf32>, vector<288x256xf32>, vector<4x256xf32> -> vector<4x256xf32>
    %cst_37 = arith.constant 0.000000e+00 : f32
    %64 = vector.broadcast %cst_37 : f32 to vector<4x256xf32>
    %65 = arith.maximumf %63, %64 : vector<4x256xf32>
    %c0_38 = arith.constant 0 : index
    %c0_39 = arith.constant 0 : index
    %66 = vector.load %arg18[%c0_38, %c0_39] : memref<256x326xf32, #tpu.memory_space<vmem>>, vector<256x326xf32>
    %c0_40 = arith.constant 0 : index
    %c0_41 = arith.constant 0 : index
    %67 = vector.load %arg19[%c0_40, %c0_41] : memref<288x256xf32, #tpu.memory_space<vmem>>, vector<288x256xf32>
    %cst_42 = arith.constant dense<0.000000e+00> : vector<4x326xf32>
    %68 = tpu.matmul %65, %66, %cst_42 {dimension_numbers = #tpu.dot_dimension_numbers<[1], [0], [0], [1], [0, 0, 1, 1], [], []>} : vector<4x256xf32>, vector<256x326xf32>, vector<4x326xf32> -> vector<4x326xf32>
    %69 = arith.truncf %68 : vector<4x326xf32> to vector<4x326xbf16>
    %c0_43 = arith.constant 0 : index
    %c0_44 = arith.constant 0 : index
    %70 = vector.load %arg5[%c0_43, %c0_44] : memref<8x1xf32, #tpu.memory_space<vmem>>, vector<8x1xf32>
    %71 = vector.shape_cast %70 : vector<8x1xf32> to vector<8x1xf32>
    %72 = vector.broadcast %71 : vector<8x1xf32> to vector<8x288xf32>
    %c0_45 = arith.constant 0 : index
    %c0_46 = arith.constant 0 : index
    %c0_47 = arith.constant 0 : index
    %73 = vector.load %arg4[%c0_45, %c0_46, %c0_47] : memref<9x8x4xf32, #tpu.memory_space<vmem>>, vector<1x8x4xf32>
    %74 = vector.shape_cast %73 : vector<1x8x4xf32> to vector<8x4xf32>
    %75 = arith.truncf %74 : vector<8x4xf32> to vector<8x4xbf16>
    %76 = vector.extract_strided_slice %69 {offsets = [0, 0], sizes = [4, 288], strides = [1, 1]} : vector<4x326xbf16> to vector<4x288xbf16>
    %cst_48 = arith.constant dense<0.000000e+00> : vector<8x288xf32>
    %77 = tpu.matmul %75, %76, %cst_48 {dimension_numbers = #tpu.dot_dimension_numbers<[1], [0], [0], [1], [0, 0, 1, 1], [], []>} : vector<8x4xbf16>, vector<4x288xbf16>, vector<8x288xf32> -> vector<8x288xf32>
    %78 = arith.addf %72, %77 : vector<8x288xf32>
    %c1_49 = arith.constant 1 : index
    %c0_50 = arith.constant 0 : index
    %c0_51 = arith.constant 0 : index
    %79 = vector.load %arg4[%c1_49, %c0_50, %c0_51] : memref<9x8x4xf32, #tpu.memory_space<vmem>>, vector<1x8x4xf32>
    %80 = vector.shape_cast %79 : vector<1x8x4xf32> to vector<8x4xf32>
    %81 = arith.truncf %80 : vector<8x4xf32> to vector<8x4xbf16>
    %82 = vector.extract_strided_slice %69 {offsets = [0, 1], sizes = [4, 288], strides = [1, 1]} : vector<4x326xbf16> to vector<4x288xbf16>
    %cst_52 = arith.constant dense<0.000000e+00> : vector<8x288xf32>
    %83 = tpu.matmul %81, %82, %cst_52 {dimension_numbers = #tpu.dot_dimension_numbers<[1], [0], [0], [1], [0, 0, 1, 1], [], []>} : vector<8x4xbf16>, vector<4x288xbf16>, vector<8x288xf32> -> vector<8x288xf32>
    %84 = arith.addf %78, %83 : vector<8x288xf32>
    %c2_53 = arith.constant 2 : index
    %c0_54 = arith.constant 0 : index
    %c0_55 = arith.constant 0 : index
    %85 = vector.load %arg4[%c2_53, %c0_54, %c0_55] : memref<9x8x4xf32, #tpu.memory_space<vmem>>, vector<1x8x4xf32>
    %86 = vector.shape_cast %85 : vector<1x8x4xf32> to vector<8x4xf32>
    %87 = arith.truncf %86 : vector<8x4xf32> to vector<8x4xbf16>
    %88 = vector.extract_strided_slice %69 {offsets = [0, 2], sizes = [4, 288], strides = [1, 1]} : vector<4x326xbf16> to vector<4x288xbf16>
    %cst_56 = arith.constant dense<0.000000e+00> : vector<8x288xf32>
    %89 = tpu.matmul %87, %88, %cst_56 {dimension_numbers = #tpu.dot_dimension_numbers<[1], [0], [0], [1], [0, 0, 1, 1], [], []>} : vector<8x4xbf16>, vector<4x288xbf16>, vector<8x288xf32> -> vector<8x288xf32>
    %90 = arith.addf %84, %89 : vector<8x288xf32>
    %c3_57 = arith.constant 3 : index
    %c0_58 = arith.constant 0 : index
    %c0_59 = arith.constant 0 : index
    %91 = vector.load %arg4[%c3_57, %c0_58, %c0_59] : memref<9x8x4xf32, #tpu.memory_space<vmem>>, vector<1x8x4xf32>
    %92 = vector.shape_cast %91 : vector<1x8x4xf32> to vector<8x4xf32>
    %93 = arith.truncf %92 : vector<8x4xf32> to vector<8x4xbf16>
    %94 = vector.extract_strided_slice %69 {offsets = [0, 18], sizes = [4, 288], strides = [1, 1]} : vector<4x326xbf16> to vector<4x288xbf16>
    %cst_60 = arith.constant dense<0.000000e+00> : vector<8x288xf32>
    %95 = tpu.matmul %93, %94, %cst_60 {dimension_numbers = #tpu.dot_dimension_numbers<[1], [0], [0], [1], [0, 0, 1, 1], [], []>} : vector<8x4xbf16>, vector<4x288xbf16>, vector<8x288xf32> -> vector<8x288xf32>
    %96 = arith.addf %90, %95 : vector<8x288xf32>
    %c4_61 = arith.constant 4 : index
    %c0_62 = arith.constant 0 : index
    %c0_63 = arith.constant 0 : index
    %97 = vector.load %arg4[%c4_61, %c0_62, %c0_63] : memref<9x8x4xf32, #tpu.memory_space<vmem>>, vector<1x8x4xf32>
    %98 = vector.shape_cast %97 : vector<1x8x4xf32> to vector<8x4xf32>
    %99 = arith.truncf %98 : vector<8x4xf32> to vector<8x4xbf16>
    %100 = vector.extract_strided_slice %69 {offsets = [0, 19], sizes = [4, 288], strides = [1, 1]} : vector<4x326xbf16> to vector<4x288xbf16>
    %cst_64 = arith.constant dense<0.000000e+00> : vector<8x288xf32>
    %101 = tpu.matmul %99, %100, %cst_64 {dimension_numbers = #tpu.dot_dimension_numbers<[1], [0], [0], [1], [0, 0, 1, 1], [], []>} : vector<8x4xbf16>, vector<4x288xbf16>, vector<8x288xf32> -> vector<8x288xf32>
    %102 = arith.addf %96, %101 : vector<8x288xf32>
    %c5_65 = arith.constant 5 : index
    %c0_66 = arith.constant 0 : index
    %c0_67 = arith.constant 0 : index
    %103 = vector.load %arg4[%c5_65, %c0_66, %c0_67] : memref<9x8x4xf32, #tpu.memory_space<vmem>>, vector<1x8x4xf32>
    %104 = vector.shape_cast %103 : vector<1x8x4xf32> to vector<8x4xf32>
    %105 = arith.truncf %104 : vector<8x4xf32> to vector<8x4xbf16>
    %106 = vector.extract_strided_slice %69 {offsets = [0, 20], sizes = [4, 288], strides = [1, 1]} : vector<4x326xbf16> to vector<4x288xbf16>
    %cst_68 = arith.constant dense<0.000000e+00> : vector<8x288xf32>
    %107 = tpu.matmul %105, %106, %cst_68 {dimension_numbers = #tpu.dot_dimension_numbers<[1], [0], [0], [1], [0, 0, 1, 1], [], []>} : vector<8x4xbf16>, vector<4x288xbf16>, vector<8x288xf32> -> vector<8x288xf32>
    %108 = arith.addf %102, %107 : vector<8x288xf32>
    %c6_69 = arith.constant 6 : index
    %c0_70 = arith.constant 0 : index
    %c0_71 = arith.constant 0 : index
    %109 = vector.load %arg4[%c6_69, %c0_70, %c0_71] : memref<9x8x4xf32, #tpu.memory_space<vmem>>, vector<1x8x4xf32>
    %110 = vector.shape_cast %109 : vector<1x8x4xf32> to vector<8x4xf32>
    %111 = arith.truncf %110 : vector<8x4xf32> to vector<8x4xbf16>
    %112 = vector.extract_strided_slice %69 {offsets = [0, 36], sizes = [4, 288], strides = [1, 1]} : vector<4x326xbf16> to vector<4x288xbf16>
    %cst_72 = arith.constant dense<0.000000e+00> : vector<8x288xf32>
    %113 = tpu.matmul %111, %112, %cst_72 {dimension_numbers = #tpu.dot_dimension_numbers<[1], [0], [0], [1], [0, 0, 1, 1], [], []>} : vector<8x4xbf16>, vector<4x288xbf16>, vector<8x288xf32> -> vector<8x288xf32>
    %114 = arith.addf %108, %113 : vector<8x288xf32>
    %c7_73 = arith.constant 7 : index
    %c0_74 = arith.constant 0 : index
    %c0_75 = arith.constant 0 : index
    %115 = vector.load %arg4[%c7_73, %c0_74, %c0_75] : memref<9x8x4xf32, #tpu.memory_space<vmem>>, vector<1x8x4xf32>
    %116 = vector.shape_cast %115 : vector<1x8x4xf32> to vector<8x4xf32>
    %117 = arith.truncf %116 : vector<8x4xf32> to vector<8x4xbf16>
    %118 = vector.extract_strided_slice %69 {offsets = [0, 37], sizes = [4, 288], strides = [1, 1]} : vector<4x326xbf16> to vector<4x288xbf16>
    %cst_76 = arith.constant dense<0.000000e+00> : vector<8x288xf32>
    %119 = tpu.matmul %117, %118, %cst_76 {dimension_numbers = #tpu.dot_dimension_numbers<[1], [0], [0], [1], [0, 0, 1, 1], [], []>} : vector<8x4xbf16>, vector<4x288xbf16>, vector<8x288xf32> -> vector<8x288xf32>
    %120 = arith.addf %114, %119 : vector<8x288xf32>
    %c8_77 = arith.constant 8 : index
    %c0_78 = arith.constant 0 : index
    %c0_79 = arith.constant 0 : index
    %121 = vector.load %arg4[%c8_77, %c0_78, %c0_79] : memref<9x8x4xf32, #tpu.memory_space<vmem>>, vector<1x8x4xf32>
    %122 = vector.shape_cast %121 : vector<1x8x4xf32> to vector<8x4xf32>
    %123 = arith.truncf %122 : vector<8x4xf32> to vector<8x4xbf16>
    %124 = vector.extract_strided_slice %69 {offsets = [0, 38], sizes = [4, 288], strides = [1, 1]} : vector<4x326xbf16> to vector<4x288xbf16>
    %cst_80 = arith.constant dense<0.000000e+00> : vector<8x288xf32>
    %125 = tpu.matmul %123, %124, %cst_80 {dimension_numbers = #tpu.dot_dimension_numbers<[1], [0], [0], [1], [0, 0, 1, 1], [], []>} : vector<8x4xbf16>, vector<4x288xbf16>, vector<8x288xf32> -> vector<8x288xf32>
    %126 = arith.addf %120, %125 : vector<8x288xf32>
    %cst_81 = arith.constant dense<0.000000e+00> : vector<8x256xf32>
    %127 = tpu.matmul %126, %67, %cst_81 {dimension_numbers = #tpu.dot_dimension_numbers<[1], [0], [0], [1], [0, 0, 1, 1], [], []>} : vector<8x288xf32>, vector<288x256xf32>, vector<8x256xf32> -> vector<8x256xf32>
    %cst_82 = arith.constant 0.000000e+00 : f32
    %128 = vector.broadcast %cst_82 : f32 to vector<8x256xf32>
    %129 = arith.maximumf %127, %128 : vector<8x256xf32>
    %130 = vector.extract_strided_slice %129 {offsets = [0, 0], sizes = [8, 239], strides = [1, 1]} : vector<8x256xf32> to vector<8x239xf32>
    %131 = vector.extract_strided_slice %129 {offsets = [0, 1], sizes = [8, 239], strides = [1, 1]} : vector<8x256xf32> to vector<8x239xf32>
    %132 = arith.maximumf %130, %131 : vector<8x239xf32>
    %133 = vector.extract_strided_slice %129 {offsets = [0, 16], sizes = [8, 239], strides = [1, 1]} : vector<8x256xf32> to vector<8x239xf32>
    %134 = vector.extract_strided_slice %129 {offsets = [0, 17], sizes = [8, 239], strides = [1, 1]} : vector<8x256xf32> to vector<8x239xf32>
    %135 = arith.maximumf %133, %134 : vector<8x239xf32>
    %136 = arith.maximumf %132, %135 : vector<8x239xf32>
    %c0_83 = arith.constant 0 : index
    %c0_84 = arith.constant 0 : index
    %137 = vector.load %arg20[%c0_83, %c0_84] : memref<239x64xf32, #tpu.memory_space<vmem>>, vector<239x64xf32>
    %cst_85 = arith.constant dense<0.000000e+00> : vector<8x64xf32>
    %138 = tpu.matmul %136, %137, %cst_85 {dimension_numbers = #tpu.dot_dimension_numbers<[1], [0], [0], [1], [0, 0, 1, 1], [], []>} : vector<8x239xf32>, vector<239x64xf32>, vector<8x64xf32> -> vector<8x64xf32>
    %c0_86 = arith.constant 0 : index
    %c0_87 = arith.constant 0 : index
    %139 = vector.load %arg21[%c0_86, %c0_87] : memref<64x102xf32, #tpu.memory_space<vmem>>, vector<64x102xf32>
    %c0_88 = arith.constant 0 : index
    %c0_89 = arith.constant 0 : index
    %140 = vector.load %arg22[%c0_88, %c0_89] : memref<80x64xf32, #tpu.memory_space<vmem>>, vector<80x64xf32>
    %cst_90 = arith.constant dense<0.000000e+00> : vector<8x102xf32>
    %141 = tpu.matmul %138, %139, %cst_90 {dimension_numbers = #tpu.dot_dimension_numbers<[1], [0], [0], [1], [0, 0, 1, 1], [], []>} : vector<8x64xf32>, vector<64x102xf32>, vector<8x102xf32> -> vector<8x102xf32>
    %142 = arith.truncf %141 : vector<8x102xf32> to vector<8x102xbf16>
    %c0_91 = arith.constant 0 : index
    %c0_92 = arith.constant 0 : index
    %143 = vector.load %arg7[%c0_91, %c0_92] : memref<8x1xf32, #tpu.memory_space<vmem>>, vector<8x1xf32>
    %144 = vector.shape_cast %143 : vector<8x1xf32> to vector<8x1xf32>
    %145 = vector.broadcast %144 : vector<8x1xf32> to vector<8x80xf32>
    %c0_93 = arith.constant 0 : index
    %c0_94 = arith.constant 0 : index
    %c0_95 = arith.constant 0 : index
    %146 = vector.load %arg6[%c0_93, %c0_94, %c0_95] : memref<9x8x8xf32, #tpu.memory_space<vmem>>, vector<1x8x8xf32>
    %147 = vector.shape_cast %146 : vector<1x8x8xf32> to vector<8x8xf32>
    %148 = arith.truncf %147 : vector<8x8xf32> to vector<8x8xbf16>
    %149 = vector.extract_strided_slice %142 {offsets = [0, 0], sizes = [8, 80], strides = [1, 1]} : vector<8x102xbf16> to vector<8x80xbf16>
    %cst_96 = arith.constant dense<0.000000e+00> : vector<8x80xf32>
    %150 = tpu.matmul %148, %149, %cst_96 {dimension_numbers = #tpu.dot_dimension_numbers<[1], [0], [0], [1], [0, 0, 1, 1], [], []>} : vector<8x8xbf16>, vector<8x80xbf16>, vector<8x80xf32> -> vector<8x80xf32>
    %151 = arith.addf %145, %150 : vector<8x80xf32>
    %c1_97 = arith.constant 1 : index
    %c0_98 = arith.constant 0 : index
    %c0_99 = arith.constant 0 : index
    %152 = vector.load %arg6[%c1_97, %c0_98, %c0_99] : memref<9x8x8xf32, #tpu.memory_space<vmem>>, vector<1x8x8xf32>
    %153 = vector.shape_cast %152 : vector<1x8x8xf32> to vector<8x8xf32>
    %154 = arith.truncf %153 : vector<8x8xf32> to vector<8x8xbf16>
    %155 = vector.extract_strided_slice %142 {offsets = [0, 1], sizes = [8, 80], strides = [1, 1]} : vector<8x102xbf16> to vector<8x80xbf16>
    %cst_100 = arith.constant dense<0.000000e+00> : vector<8x80xf32>
    %156 = tpu.matmul %154, %155, %cst_100 {dimension_numbers = #tpu.dot_dimension_numbers<[1], [0], [0], [1], [0, 0, 1, 1], [], []>} : vector<8x8xbf16>, vector<8x80xbf16>, vector<8x80xf32> -> vector<8x80xf32>
    %157 = arith.addf %151, %156 : vector<8x80xf32>
    %c2_101 = arith.constant 2 : index
    %c0_102 = arith.constant 0 : index
    %c0_103 = arith.constant 0 : index
    %158 = vector.load %arg6[%c2_101, %c0_102, %c0_103] : memref<9x8x8xf32, #tpu.memory_space<vmem>>, vector<1x8x8xf32>
    %159 = vector.shape_cast %158 : vector<1x8x8xf32> to vector<8x8xf32>
    %160 = arith.truncf %159 : vector<8x8xf32> to vector<8x8xbf16>
    %161 = vector.extract_strided_slice %142 {offsets = [0, 2], sizes = [8, 80], strides = [1, 1]} : vector<8x102xbf16> to vector<8x80xbf16>
    %cst_104 = arith.constant dense<0.000000e+00> : vector<8x80xf32>
    %162 = tpu.matmul %160, %161, %cst_104 {dimension_numbers = #tpu.dot_dimension_numbers<[1], [0], [0], [1], [0, 0, 1, 1], [], []>} : vector<8x8xbf16>, vector<8x80xbf16>, vector<8x80xf32> -> vector<8x80xf32>
    %163 = arith.addf %157, %162 : vector<8x80xf32>
    %c3_105 = arith.constant 3 : index
    %c0_106 = arith.constant 0 : index
    %c0_107 = arith.constant 0 : index
    %164 = vector.load %arg6[%c3_105, %c0_106, %c0_107] : memref<9x8x8xf32, #tpu.memory_space<vmem>>, vector<1x8x8xf32>
    %165 = vector.shape_cast %164 : vector<1x8x8xf32> to vector<8x8xf32>
    %166 = arith.truncf %165 : vector<8x8xf32> to vector<8x8xbf16>
    %167 = vector.extract_strided_slice %142 {offsets = [0, 10], sizes = [8, 80], strides = [1, 1]} : vector<8x102xbf16> to vector<8x80xbf16>
    %cst_108 = arith.constant dense<0.000000e+00> : vector<8x80xf32>
    %168 = tpu.matmul %166, %167, %cst_108 {dimension_numbers = #tpu.dot_dimension_numbers<[1], [0], [0], [1], [0, 0, 1, 1], [], []>} : vector<8x8xbf16>, vector<8x80xbf16>, vector<8x80xf32> -> vector<8x80xf32>
    %169 = arith.addf %163, %168 : vector<8x80xf32>
    %c4_109 = arith.constant 4 : index
    %c0_110 = arith.constant 0 : index
    %c0_111 = arith.constant 0 : index
    %170 = vector.load %arg6[%c4_109, %c0_110, %c0_111] : memref<9x8x8xf32, #tpu.memory_space<vmem>>, vector<1x8x8xf32>
    %171 = vector.shape_cast %170 : vector<1x8x8xf32> to vector<8x8xf32>
    %172 = arith.truncf %171 : vector<8x8xf32> to vector<8x8xbf16>
    %173 = vector.extract_strided_slice %142 {offsets = [0, 11], sizes = [8, 80], strides = [1, 1]} : vector<8x102xbf16> to vector<8x80xbf16>
    %cst_112 = arith.constant dense<0.000000e+00> : vector<8x80xf32>
    %174 = tpu.matmul %172, %173, %cst_112 {dimension_numbers = #tpu.dot_dimension_numbers<[1], [0], [0], [1], [0, 0, 1, 1], [], []>} : vector<8x8xbf16>, vector<8x80xbf16>, vector<8x80xf32> -> vector<8x80xf32>
    %175 = arith.addf %169, %174 : vector<8x80xf32>
    %c5_113 = arith.constant 5 : index
    %c0_114 = arith.constant 0 : index
    %c0_115 = arith.constant 0 : index
    %176 = vector.load %arg6[%c5_113, %c0_114, %c0_115] : memref<9x8x8xf32, #tpu.memory_space<vmem>>, vector<1x8x8xf32>
    %177 = vector.shape_cast %176 : vector<1x8x8xf32> to vector<8x8xf32>
    %178 = arith.truncf %177 : vector<8x8xf32> to vector<8x8xbf16>
    %179 = vector.extract_strided_slice %142 {offsets = [0, 12], sizes = [8, 80], strides = [1, 1]} : vector<8x102xbf16> to vector<8x80xbf16>
    %cst_116 = arith.constant dense<0.000000e+00> : vector<8x80xf32>
    %180 = tpu.matmul %178, %179, %cst_116 {dimension_numbers = #tpu.dot_dimension_numbers<[1], [0], [0], [1], [0, 0, 1, 1], [], []>} : vector<8x8xbf16>, vector<8x80xbf16>, vector<8x80xf32> -> vector<8x80xf32>
    %181 = arith.addf %175, %180 : vector<8x80xf32>
    %c6_117 = arith.constant 6 : index
    %c0_118 = arith.constant 0 : index
    %c0_119 = arith.constant 0 : index
    %182 = vector.load %arg6[%c6_117, %c0_118, %c0_119] : memref<9x8x8xf32, #tpu.memory_space<vmem>>, vector<1x8x8xf32>
    %183 = vector.shape_cast %182 : vector<1x8x8xf32> to vector<8x8xf32>
    %184 = arith.truncf %183 : vector<8x8xf32> to vector<8x8xbf16>
    %185 = vector.extract_strided_slice %142 {offsets = [0, 20], sizes = [8, 80], strides = [1, 1]} : vector<8x102xbf16> to vector<8x80xbf16>
    %cst_120 = arith.constant dense<0.000000e+00> : vector<8x80xf32>
    %186 = tpu.matmul %184, %185, %cst_120 {dimension_numbers = #tpu.dot_dimension_numbers<[1], [0], [0], [1], [0, 0, 1, 1], [], []>} : vector<8x8xbf16>, vector<8x80xbf16>, vector<8x80xf32> -> vector<8x80xf32>
    %187 = arith.addf %181, %186 : vector<8x80xf32>
    %c7_121 = arith.constant 7 : index
    %c0_122 = arith.constant 0 : index
    %c0_123 = arith.constant 0 : index
    %188 = vector.load %arg6[%c7_121, %c0_122, %c0_123] : memref<9x8x8xf32, #tpu.memory_space<vmem>>, vector<1x8x8xf32>
    %189 = vector.shape_cast %188 : vector<1x8x8xf32> to vector<8x8xf32>
    %190 = arith.truncf %189 : vector<8x8xf32> to vector<8x8xbf16>
    %191 = vector.extract_strided_slice %142 {offsets = [0, 21], sizes = [8, 80], strides = [1, 1]} : vector<8x102xbf16> to vector<8x80xbf16>
    %cst_124 = arith.constant dense<0.000000e+00> : vector<8x80xf32>
    %192 = tpu.matmul %190, %191, %cst_124 {dimension_numbers = #tpu.dot_dimension_numbers<[1], [0], [0], [1], [0, 0, 1, 1], [], []>} : vector<8x8xbf16>, vector<8x80xbf16>, vector<8x80xf32> -> vector<8x80xf32>
    %193 = arith.addf %187, %192 : vector<8x80xf32>
    %c8_125 = arith.constant 8 : index
    %c0_126 = arith.constant 0 : index
    %c0_127 = arith.constant 0 : index
    %194 = vector.load %arg6[%c8_125, %c0_126, %c0_127] : memref<9x8x8xf32, #tpu.memory_space<vmem>>, vector<1x8x8xf32>
    %195 = vector.shape_cast %194 : vector<1x8x8xf32> to vector<8x8xf32>
    %196 = arith.truncf %195 : vector<8x8xf32> to vector<8x8xbf16>
    %197 = vector.extract_strided_slice %142 {offsets = [0, 22], sizes = [8, 80], strides = [1, 1]} : vector<8x102xbf16> to vector<8x80xbf16>
    %cst_128 = arith.constant dense<0.000000e+00> : vector<8x80xf32>
    %198 = tpu.matmul %196, %197, %cst_128 {dimension_numbers = #tpu.dot_dimension_numbers<[1], [0], [0], [1], [0, 0, 1, 1], [], []>} : vector<8x8xbf16>, vector<8x80xbf16>, vector<8x80xf32> -> vector<8x80xf32>
    %199 = arith.addf %193, %198 : vector<8x80xf32>
    %cst_129 = arith.constant dense<0.000000e+00> : vector<8x64xf32>
    %200 = tpu.matmul %199, %140, %cst_129 {dimension_numbers = #tpu.dot_dimension_numbers<[1], [0], [0], [1], [0, 0, 1, 1], [], []>} : vector<8x80xf32>, vector<80x64xf32>, vector<8x64xf32> -> vector<8x64xf32>
    %cst_130 = arith.constant 0.000000e+00 : f32
    %201 = vector.broadcast %cst_130 : f32 to vector<8x64xf32>
    %202 = arith.maximumf %200, %201 : vector<8x64xf32>
    %203 = vector.extract_strided_slice %202 {offsets = [0, 0], sizes = [8, 55], strides = [1, 1]} : vector<8x64xf32> to vector<8x55xf32>
    %204 = vector.extract_strided_slice %202 {offsets = [0, 1], sizes = [8, 55], strides = [1, 1]} : vector<8x64xf32> to vector<8x55xf32>
    %205 = arith.maximumf %203, %204 : vector<8x55xf32>
    %206 = vector.extract_strided_slice %202 {offsets = [0, 8], sizes = [8, 55], strides = [1, 1]} : vector<8x64xf32> to vector<8x55xf32>
    %207 = vector.extract_strided_slice %202 {offsets = [0, 9], sizes = [8, 55], strides = [1, 1]} : vector<8x64xf32> to vector<8x55xf32>
    %208 = arith.maximumf %206, %207 : vector<8x55xf32>
    %209 = arith.maximumf %205, %208 : vector<8x55xf32>
    %c0_131 = arith.constant 0 : index
    %c0_132 = arith.constant 0 : index
    %210 = vector.load %arg23[%c0_131, %c0_132] : memref<55x16xf32, #tpu.memory_space<vmem>>, vector<55x16xf32>
    %cst_133 = arith.constant dense<0.000000e+00> : vector<8x16xf32>
    %211 = tpu.matmul %209, %210, %cst_133 {dimension_numbers = #tpu.dot_dimension_numbers<[1], [0], [0], [1], [0, 0, 1, 1], [], []>} : vector<8x55xf32>, vector<55x16xf32>, vector<8x16xf32> -> vector<8x16xf32>
    %c0_134 = arith.constant 0 : index
    %c0_135 = arith.constant 0 : index
    %212 = vector.load %arg24[%c0_134, %c0_135] : memref<16x38xf32, #tpu.memory_space<vmem>>, vector<16x38xf32>
    %c0_136 = arith.constant 0 : index
    %c0_137 = arith.constant 0 : index
    %213 = vector.load %arg25[%c0_136, %c0_137] : memref<24x16xf32, #tpu.memory_space<vmem>>, vector<24x16xf32>
    %cst_138 = arith.constant dense<0.000000e+00> : vector<8x38xf32>
    %214 = tpu.matmul %211, %212, %cst_138 {dimension_numbers = #tpu.dot_dimension_numbers<[1], [0], [0], [1], [0, 0, 1, 1], [], []>} : vector<8x16xf32>, vector<16x38xf32>, vector<8x38xf32> -> vector<8x38xf32>
    %215 = arith.truncf %214 : vector<8x38xf32> to vector<8x38xbf16>
    %c0_139 = arith.constant 0 : index
    %c0_140 = arith.constant 0 : index
    %216 = vector.load %arg9[%c0_139, %c0_140] : memref<8x1xf32, #tpu.memory_space<vmem>>, vector<8x1xf32>
    %217 = vector.shape_cast %216 : vector<8x1xf32> to vector<8x1xf32>
    %218 = vector.broadcast %217 : vector<8x1xf32> to vector<8x24xf32>
    %c0_141 = arith.constant 0 : index
    %c0_142 = arith.constant 0 : index
    %c0_143 = arith.constant 0 : index
    %219 = vector.load %arg8[%c0_141, %c0_142, %c0_143] : memref<9x8x8xf32, #tpu.memory_space<vmem>>, vector<1x8x8xf32>
    %220 = vector.shape_cast %219 : vector<1x8x8xf32> to vector<8x8xf32>
    %221 = arith.truncf %220 : vector<8x8xf32> to vector<8x8xbf16>
    %222 = vector.extract_strided_slice %215 {offsets = [0, 0], sizes = [8, 24], strides = [1, 1]} : vector<8x38xbf16> to vector<8x24xbf16>
    %cst_144 = arith.constant dense<0.000000e+00> : vector<8x24xf32>
    %223 = tpu.matmul %221, %222, %cst_144 {dimension_numbers = #tpu.dot_dimension_numbers<[1], [0], [0], [1], [0, 0, 1, 1], [], []>} : vector<8x8xbf16>, vector<8x24xbf16>, vector<8x24xf32> -> vector<8x24xf32>
    %224 = arith.addf %218, %223 : vector<8x24xf32>
    %c1_145 = arith.constant 1 : index
    %c0_146 = arith.constant 0 : index
    %c0_147 = arith.constant 0 : index
    %225 = vector.load %arg8[%c1_145, %c0_146, %c0_147] : memref<9x8x8xf32, #tpu.memory_space<vmem>>, vector<1x8x8xf32>
    %226 = vector.shape_cast %225 : vector<1x8x8xf32> to vector<8x8xf32>
    %227 = arith.truncf %226 : vector<8x8xf32> to vector<8x8xbf16>
    %228 = vector.extract_strided_slice %215 {offsets = [0, 1], sizes = [8, 24], strides = [1, 1]} : vector<8x38xbf16> to vector<8x24xbf16>
    %cst_148 = arith.constant dense<0.000000e+00> : vector<8x24xf32>
    %229 = tpu.matmul %227, %228, %cst_148 {dimension_numbers = #tpu.dot_dimension_numbers<[1], [0], [0], [1], [0, 0, 1, 1], [], []>} : vector<8x8xbf16>, vector<8x24xbf16>, vector<8x24xf32> -> vector<8x24xf32>
    %230 = arith.addf %224, %229 : vector<8x24xf32>
    %c2_149 = arith.constant 2 : index
    %c0_150 = arith.constant 0 : index
    %c0_151 = arith.constant 0 : index
    %231 = vector.load %arg8[%c2_149, %c0_150, %c0_151] : memref<9x8x8xf32, #tpu.memory_space<vmem>>, vector<1x8x8xf32>
    %232 = vector.shape_cast %231 : vector<1x8x8xf32> to vector<8x8xf32>
    %233 = arith.truncf %232 : vector<8x8xf32> to vector<8x8xbf16>
    %234 = vector.extract_strided_slice %215 {offsets = [0, 2], sizes = [8, 24], strides = [1, 1]} : vector<8x38xbf16> to vector<8x24xbf16>
    %cst_152 = arith.constant dense<0.000000e+00> : vector<8x24xf32>
    %235 = tpu.matmul %233, %234, %cst_152 {dimension_numbers = #tpu.dot_dimension_numbers<[1], [0], [0], [1], [0, 0, 1, 1], [], []>} : vector<8x8xbf16>, vector<8x24xbf16>, vector<8x24xf32> -> vector<8x24xf32>
    %236 = arith.addf %230, %235 : vector<8x24xf32>
    %c3_153 = arith.constant 3 : index
    %c0_154 = arith.constant 0 : index
    %c0_155 = arith.constant 0 : index
    %237 = vector.load %arg8[%c3_153, %c0_154, %c0_155] : memref<9x8x8xf32, #tpu.memory_space<vmem>>, vector<1x8x8xf32>
    %238 = vector.shape_cast %237 : vector<1x8x8xf32> to vector<8x8xf32>
    %239 = arith.truncf %238 : vector<8x8xf32> to vector<8x8xbf16>
    %240 = vector.extract_strided_slice %215 {offsets = [0, 6], sizes = [8, 24], strides = [1, 1]} : vector<8x38xbf16> to vector<8x24xbf16>
    %cst_156 = arith.constant dense<0.000000e+00> : vector<8x24xf32>
    %241 = tpu.matmul %239, %240, %cst_156 {dimension_numbers = #tpu.dot_dimension_numbers<[1], [0], [0], [1], [0, 0, 1, 1], [], []>} : vector<8x8xbf16>, vector<8x24xbf16>, vector<8x24xf32> -> vector<8x24xf32>
    %242 = arith.addf %236, %241 : vector<8x24xf32>
    %c4_157 = arith.constant 4 : index
    %c0_158 = arith.constant 0 : index
    %c0_159 = arith.constant 0 : index
    %243 = vector.load %arg8[%c4_157, %c0_158, %c0_159] : memref<9x8x8xf32, #tpu.memory_space<vmem>>, vector<1x8x8xf32>
    %244 = vector.shape_cast %243 : vector<1x8x8xf32> to vector<8x8xf32>
    %245 = arith.truncf %244 : vector<8x8xf32> to vector<8x8xbf16>
    %246 = vector.extract_strided_slice %215 {offsets = [0, 7], sizes = [8, 24], strides = [1, 1]} : vector<8x38xbf16> to vector<8x24xbf16>
    %cst_160 = arith.constant dense<0.000000e+00> : vector<8x24xf32>
    %247 = tpu.matmul %245, %246, %cst_160 {dimension_numbers = #tpu.dot_dimension_numbers<[1], [0], [0], [1], [0, 0, 1, 1], [], []>} : vector<8x8xbf16>, vector<8x24xbf16>, vector<8x24xf32> -> vector<8x24xf32>
    %248 = arith.addf %242, %247 : vector<8x24xf32>
    %c5_161 = arith.constant 5 : index
    %c0_162 = arith.constant 0 : index
    %c0_163 = arith.constant 0 : index
    %249 = vector.load %arg8[%c5_161, %c0_162, %c0_163] : memref<9x8x8xf32, #tpu.memory_space<vmem>>, vector<1x8x8xf32>
    %250 = vector.shape_cast %249 : vector<1x8x8xf32> to vector<8x8xf32>
    %251 = arith.truncf %250 : vector<8x8xf32> to vector<8x8xbf16>
    %252 = vector.extract_strided_slice %215 {offsets = [0, 8], sizes = [8, 24], strides = [1, 1]} : vector<8x38xbf16> to vector<8x24xbf16>
    %cst_164 = arith.constant dense<0.000000e+00> : vector<8x24xf32>
    %253 = tpu.matmul %251, %252, %cst_164 {dimension_numbers = #tpu.dot_dimension_numbers<[1], [0], [0], [1], [0, 0, 1, 1], [], []>} : vector<8x8xbf16>, vector<8x24xbf16>, vector<8x24xf32> -> vector<8x24xf32>
    %254 = arith.addf %248, %253 : vector<8x24xf32>
    %c6_165 = arith.constant 6 : index
    %c0_166 = arith.constant 0 : index
    %c0_167 = arith.constant 0 : index
    %255 = vector.load %arg8[%c6_165, %c0_166, %c0_167] : memref<9x8x8xf32, #tpu.memory_space<vmem>>, vector<1x8x8xf32>
    %256 = vector.shape_cast %255 : vector<1x8x8xf32> to vector<8x8xf32>
    %257 = arith.truncf %256 : vector<8x8xf32> to vector<8x8xbf16>
    %258 = vector.extract_strided_slice %215 {offsets = [0, 12], sizes = [8, 24], strides = [1, 1]} : vector<8x38xbf16> to vector<8x24xbf16>
    %cst_168 = arith.constant dense<0.000000e+00> : vector<8x24xf32>
    %259 = tpu.matmul %257, %258, %cst_168 {dimension_numbers = #tpu.dot_dimension_numbers<[1], [0], [0], [1], [0, 0, 1, 1], [], []>} : vector<8x8xbf16>, vector<8x24xbf16>, vector<8x24xf32> -> vector<8x24xf32>
    %260 = arith.addf %254, %259 : vector<8x24xf32>
    %c7_169 = arith.constant 7 : index
    %c0_170 = arith.constant 0 : index
    %c0_171 = arith.constant 0 : index
    %261 = vector.load %arg8[%c7_169, %c0_170, %c0_171] : memref<9x8x8xf32, #tpu.memory_space<vmem>>, vector<1x8x8xf32>
    %262 = vector.shape_cast %261 : vector<1x8x8xf32> to vector<8x8xf32>
    %263 = arith.truncf %262 : vector<8x8xf32> to vector<8x8xbf16>
    %264 = vector.extract_strided_slice %215 {offsets = [0, 13], sizes = [8, 24], strides = [1, 1]} : vector<8x38xbf16> to vector<8x24xbf16>
    %cst_172 = arith.constant dense<0.000000e+00> : vector<8x24xf32>
    %265 = tpu.matmul %263, %264, %cst_172 {dimension_numbers = #tpu.dot_dimension_numbers<[1], [0], [0], [1], [0, 0, 1, 1], [], []>} : vector<8x8xbf16>, vector<8x24xbf16>, vector<8x24xf32> -> vector<8x24xf32>
    %266 = arith.addf %260, %265 : vector<8x24xf32>
    %c8_173 = arith.constant 8 : index
    %c0_174 = arith.constant 0 : index
    %c0_175 = arith.constant 0 : index
    %267 = vector.load %arg8[%c8_173, %c0_174, %c0_175] : memref<9x8x8xf32, #tpu.memory_space<vmem>>, vector<1x8x8xf32>
    %268 = vector.shape_cast %267 : vector<1x8x8xf32> to vector<8x8xf32>
    %269 = arith.truncf %268 : vector<8x8xf32> to vector<8x8xbf16>
    %270 = vector.extract_strided_slice %215 {offsets = [0, 14], sizes = [8, 24], strides = [1, 1]} : vector<8x38xbf16> to vector<8x24xbf16>
    %cst_176 = arith.constant dense<0.000000e+00> : vector<8x24xf32>
    %271 = tpu.matmul %269, %270, %cst_176 {dimension_numbers = #tpu.dot_dimension_numbers<[1], [0], [0], [1], [0, 0, 1, 1], [], []>} : vector<8x8xbf16>, vector<8x24xbf16>, vector<8x24xf32> -> vector<8x24xf32>
    %272 = arith.addf %266, %271 : vector<8x24xf32>
    %cst_177 = arith.constant dense<0.000000e+00> : vector<8x16xf32>
    %273 = tpu.matmul %272, %213, %cst_177 {dimension_numbers = #tpu.dot_dimension_numbers<[1], [0], [0], [1], [0, 0, 1, 1], [], []>} : vector<8x24xf32>, vector<24x16xf32>, vector<8x16xf32> -> vector<8x16xf32>
    %cst_178 = arith.constant 0.000000e+00 : f32
    %274 = vector.broadcast %cst_178 : f32 to vector<8x16xf32>
    %275 = arith.maximumf %273, %274 : vector<8x16xf32>
    %c0_179 = arith.constant 0 : index
    %c0_180 = arith.constant 0 : index
    %276 = vector.load %arg26[%c0_179, %c0_180] : memref<16x68xf32, #tpu.memory_space<vmem>>, vector<16x68xf32>
    %c0_181 = arith.constant 0 : index
    %c0_182 = arith.constant 0 : index
    %277 = vector.load %arg27[%c0_181, %c0_182] : memref<32x16xf32, #tpu.memory_space<vmem>>, vector<32x16xf32>
    %cst_183 = arith.constant dense<0.000000e+00> : vector<8x68xf32>
    %278 = tpu.matmul %275, %276, %cst_183 {dimension_numbers = #tpu.dot_dimension_numbers<[1], [0], [0], [1], [0, 0, 1, 1], [], []>} : vector<8x16xf32>, vector<16x68xf32>, vector<8x68xf32> -> vector<8x68xf32>
    %279 = arith.truncf %278 : vector<8x68xf32> to vector<8x68xbf16>
    %c0_184 = arith.constant 0 : index
    %c0_185 = arith.constant 0 : index
    %280 = vector.load %arg11[%c0_184, %c0_185] : memref<8x1xf32, #tpu.memory_space<vmem>>, vector<8x1xf32>
    %281 = vector.shape_cast %280 : vector<8x1xf32> to vector<8x1xf32>
    %282 = vector.broadcast %281 : vector<8x1xf32> to vector<8x32xf32>
    %c0_186 = arith.constant 0 : index
    %c0_187 = arith.constant 0 : index
    %c0_188 = arith.constant 0 : index
    %283 = vector.load %arg10[%c0_186, %c0_187, %c0_188] : memref<9x8x8xf32, #tpu.memory_space<vmem>>, vector<1x8x8xf32>
    %284 = vector.shape_cast %283 : vector<1x8x8xf32> to vector<8x8xf32>
    %285 = arith.truncf %284 : vector<8x8xf32> to vector<8x8xbf16>
    %286 = vector.extract_strided_slice %279 {offsets = [0, 0], sizes = [8, 32], strides = [1, 1]} : vector<8x68xbf16> to vector<8x32xbf16>
    %cst_189 = arith.constant dense<0.000000e+00> : vector<8x32xf32>
    %287 = tpu.matmul %285, %286, %cst_189 {dimension_numbers = #tpu.dot_dimension_numbers<[1], [0], [0], [1], [0, 0, 1, 1], [], []>} : vector<8x8xbf16>, vector<8x32xbf16>, vector<8x32xf32> -> vector<8x32xf32>
    %288 = arith.addf %282, %287 : vector<8x32xf32>
    %c1_190 = arith.constant 1 : index
    %c0_191 = arith.constant 0 : index
    %c0_192 = arith.constant 0 : index
    %289 = vector.load %arg10[%c1_190, %c0_191, %c0_192] : memref<9x8x8xf32, #tpu.memory_space<vmem>>, vector<1x8x8xf32>
    %290 = vector.shape_cast %289 : vector<1x8x8xf32> to vector<8x8xf32>
    %291 = arith.truncf %290 : vector<8x8xf32> to vector<8x8xbf16>
    %292 = vector.extract_strided_slice %279 {offsets = [0, 2], sizes = [8, 32], strides = [1, 1]} : vector<8x68xbf16> to vector<8x32xbf16>
    %cst_193 = arith.constant dense<0.000000e+00> : vector<8x32xf32>
    %293 = tpu.matmul %291, %292, %cst_193 {dimension_numbers = #tpu.dot_dimension_numbers<[1], [0], [0], [1], [0, 0, 1, 1], [], []>} : vector<8x8xbf16>, vector<8x32xbf16>, vector<8x32xf32> -> vector<8x32xf32>
    %294 = arith.addf %288, %293 : vector<8x32xf32>
    %c2_194 = arith.constant 2 : index
    %c0_195 = arith.constant 0 : index
    %c0_196 = arith.constant 0 : index
    %295 = vector.load %arg10[%c2_194, %c0_195, %c0_196] : memref<9x8x8xf32, #tpu.memory_space<vmem>>, vector<1x8x8xf32>
    %296 = vector.shape_cast %295 : vector<1x8x8xf32> to vector<8x8xf32>
    %297 = arith.truncf %296 : vector<8x8xf32> to vector<8x8xbf16>
    %298 = vector.extract_strided_slice %279 {offsets = [0, 4], sizes = [8, 32], strides = [1, 1]} : vector<8x68xbf16> to vector<8x32xbf16>
    %cst_197 = arith.constant dense<0.000000e+00> : vector<8x32xf32>
    %299 = tpu.matmul %297, %298, %cst_197 {dimension_numbers = #tpu.dot_dimension_numbers<[1], [0], [0], [1], [0, 0, 1, 1], [], []>} : vector<8x8xbf16>, vector<8x32xbf16>, vector<8x32xf32> -> vector<8x32xf32>
    %300 = arith.addf %294, %299 : vector<8x32xf32>
    %c3_198 = arith.constant 3 : index
    %c0_199 = arith.constant 0 : index
    %c0_200 = arith.constant 0 : index
    %301 = vector.load %arg10[%c3_198, %c0_199, %c0_200] : memref<9x8x8xf32, #tpu.memory_space<vmem>>, vector<1x8x8xf32>
    %302 = vector.shape_cast %301 : vector<1x8x8xf32> to vector<8x8xf32>
    %303 = arith.truncf %302 : vector<8x8xf32> to vector<8x8xbf16>
    %304 = vector.extract_strided_slice %279 {offsets = [0, 16], sizes = [8, 32], strides = [1, 1]} : vector<8x68xbf16> to vector<8x32xbf16>
    %cst_201 = arith.constant dense<0.000000e+00> : vector<8x32xf32>
    %305 = tpu.matmul %303, %304, %cst_201 {dimension_numbers = #tpu.dot_dimension_numbers<[1], [0], [0], [1], [0, 0, 1, 1], [], []>} : vector<8x8xbf16>, vector<8x32xbf16>, vector<8x32xf32> -> vector<8x32xf32>
    %306 = arith.addf %300, %305 : vector<8x32xf32>
    %c4_202 = arith.constant 4 : index
    %c0_203 = arith.constant 0 : index
    %c0_204 = arith.constant 0 : index
    %307 = vector.load %arg10[%c4_202, %c0_203, %c0_204] : memref<9x8x8xf32, #tpu.memory_space<vmem>>, vector<1x8x8xf32>
    %308 = vector.shape_cast %307 : vector<1x8x8xf32> to vector<8x8xf32>
    %309 = arith.truncf %308 : vector<8x8xf32> to vector<8x8xbf16>
    %310 = vector.extract_strided_slice %279 {offsets = [0, 18], sizes = [8, 32], strides = [1, 1]} : vector<8x68xbf16> to vector<8x32xbf16>
    %cst_205 = arith.constant dense<0.000000e+00> : vector<8x32xf32>
    %311 = tpu.matmul %309, %310, %cst_205 {dimension_numbers = #tpu.dot_dimension_numbers<[1], [0], [0], [1], [0, 0, 1, 1], [], []>} : vector<8x8xbf16>, vector<8x32xbf16>, vector<8x32xf32> -> vector<8x32xf32>
    %312 = arith.addf %306, %311 : vector<8x32xf32>
    %c5_206 = arith.constant 5 : index
    %c0_207 = arith.constant 0 : index
    %c0_208 = arith.constant 0 : index
    %313 = vector.load %arg10[%c5_206, %c0_207, %c0_208] : memref<9x8x8xf32, #tpu.memory_space<vmem>>, vector<1x8x8xf32>
    %314 = vector.shape_cast %313 : vector<1x8x8xf32> to vector<8x8xf32>
    %315 = arith.truncf %314 : vector<8x8xf32> to vector<8x8xbf16>
    %316 = vector.extract_strided_slice %279 {offsets = [0, 20], sizes = [8, 32], strides = [1, 1]} : vector<8x68xbf16> to vector<8x32xbf16>
    %cst_209 = arith.constant dense<0.000000e+00> : vector<8x32xf32>
    %317 = tpu.matmul %315, %316, %cst_209 {dimension_numbers = #tpu.dot_dimension_numbers<[1], [0], [0], [1], [0, 0, 1, 1], [], []>} : vector<8x8xbf16>, vector<8x32xbf16>, vector<8x32xf32> -> vector<8x32xf32>
    %318 = arith.addf %312, %317 : vector<8x32xf32>
    %c6_210 = arith.constant 6 : index
    %c0_211 = arith.constant 0 : index
    %c0_212 = arith.constant 0 : index
    %319 = vector.load %arg10[%c6_210, %c0_211, %c0_212] : memref<9x8x8xf32, #tpu.memory_space<vmem>>, vector<1x8x8xf32>
    %320 = vector.shape_cast %319 : vector<1x8x8xf32> to vector<8x8xf32>
    %321 = arith.truncf %320 : vector<8x8xf32> to vector<8x8xbf16>
    %322 = vector.extract_strided_slice %279 {offsets = [0, 32], sizes = [8, 32], strides = [1, 1]} : vector<8x68xbf16> to vector<8x32xbf16>
    %cst_213 = arith.constant dense<0.000000e+00> : vector<8x32xf32>
    %323 = tpu.matmul %321, %322, %cst_213 {dimension_numbers = #tpu.dot_dimension_numbers<[1], [0], [0], [1], [0, 0, 1, 1], [], []>} : vector<8x8xbf16>, vector<8x32xbf16>, vector<8x32xf32> -> vector<8x32xf32>
    %324 = arith.addf %318, %323 : vector<8x32xf32>
    %c7_214 = arith.constant 7 : index
    %c0_215 = arith.constant 0 : index
    %c0_216 = arith.constant 0 : index
    %325 = vector.load %arg10[%c7_214, %c0_215, %c0_216] : memref<9x8x8xf32, #tpu.memory_space<vmem>>, vector<1x8x8xf32>
    %326 = vector.shape_cast %325 : vector<1x8x8xf32> to vector<8x8xf32>
    %327 = arith.truncf %326 : vector<8x8xf32> to vector<8x8xbf16>
    %328 = vector.extract_strided_slice %279 {offsets = [0, 34], sizes = [8, 32], strides = [1, 1]} : vector<8x68xbf16> to vector<8x32xbf16>
    %cst_217 = arith.constant dense<0.000000e+00> : vector<8x32xf32>
    %329 = tpu.matmul %327, %328, %cst_217 {dimension_numbers = #tpu.dot_dimension_numbers<[1], [0], [0], [1], [0, 0, 1, 1], [], []>} : vector<8x8xbf16>, vector<8x32xbf16>, vector<8x32xf32> -> vector<8x32xf32>
    %330 = arith.addf %324, %329 : vector<8x32xf32>
    %c8_218 = arith.constant 8 : index
    %c0_219 = arith.constant 0 : index
    %c0_220 = arith.constant 0 : index
    %331 = vector.load %arg10[%c8_218, %c0_219, %c0_220] : memref<9x8x8xf32, #tpu.memory_space<vmem>>, vector<1x8x8xf32>
    %332 = vector.shape_cast %331 : vector<1x8x8xf32> to vector<8x8xf32>
    %333 = arith.truncf %332 : vector<8x8xf32> to vector<8x8xbf16>
    %334 = vector.extract_strided_slice %279 {offsets = [0, 36], sizes = [8, 32], strides = [1, 1]} : vector<8x68xbf16> to vector<8x32xbf16>
    %cst_221 = arith.constant dense<0.000000e+00> : vector<8x32xf32>
    %335 = tpu.matmul %333, %334, %cst_221 {dimension_numbers = #tpu.dot_dimension_numbers<[1], [0], [0], [1], [0, 0, 1, 1], [], []>} : vector<8x8xbf16>, vector<8x32xbf16>, vector<8x32xf32> -> vector<8x32xf32>
    %336 = arith.addf %330, %335 : vector<8x32xf32>
    %cst_222 = arith.constant dense<0.000000e+00> : vector<8x16xf32>
    %337 = tpu.matmul %336, %277, %cst_222 {dimension_numbers = #tpu.dot_dimension_numbers<[1], [0], [0], [1], [0, 0, 1, 1], [], []>} : vector<8x32xf32>, vector<32x16xf32>, vector<8x16xf32> -> vector<8x16xf32>
    %cst_223 = arith.constant 0.000000e+00 : f32
    %338 = vector.broadcast %cst_223 : f32 to vector<8x16xf32>
    %339 = arith.maximumf %337, %338 : vector<8x16xf32>
    %c0_224 = arith.constant 0 : index
    %c0_225 = arith.constant 0 : index
    %340 = vector.load %arg24[%c0_224, %c0_225] : memref<16x38xf32, #tpu.memory_space<vmem>>, vector<16x38xf32>
    %c0_226 = arith.constant 0 : index
    %c0_227 = arith.constant 0 : index
    %341 = vector.load %arg25[%c0_226, %c0_227] : memref<24x16xf32, #tpu.memory_space<vmem>>, vector<24x16xf32>
    %cst_228 = arith.constant dense<0.000000e+00> : vector<8x38xf32>
    %342 = tpu.matmul %275, %340, %cst_228 {dimension_numbers = #tpu.dot_dimension_numbers<[1], [0], [0], [1], [0, 0, 1, 1], [], []>} : vector<8x16xf32>, vector<16x38xf32>, vector<8x38xf32> -> vector<8x38xf32>
    %343 = arith.truncf %342 : vector<8x38xf32> to vector<8x38xbf16>
    %cst_229 = arith.constant dense<0.000000e+00> : vector<8x38xf32>
    %344 = tpu.matmul %339, %340, %cst_229 {dimension_numbers = #tpu.dot_dimension_numbers<[1], [0], [0], [1], [0, 0, 1, 1], [], []>} : vector<8x16xf32>, vector<16x38xf32>, vector<8x38xf32> -> vector<8x38xf32>
    %345 = arith.truncf %344 : vector<8x38xf32> to vector<8x38xbf16>
    %c0_230 = arith.constant 0 : index
    %c0_231 = arith.constant 0 : index
    %346 = vector.load %arg13[%c0_230, %c0_231] : memref<8x1xf32, #tpu.memory_space<vmem>>, vector<8x1xf32>
    %347 = vector.shape_cast %346 : vector<8x1xf32> to vector<8x1xf32>
    %348 = vector.broadcast %347 : vector<8x1xf32> to vector<8x24xf32>
    %c0_232 = arith.constant 0 : index
    %c0_233 = arith.constant 0 : index
    %c0_234 = arith.constant 0 : index
    %349 = vector.load %arg12[%c0_232, %c0_233, %c0_234] : memref<9x8x16xf32, #tpu.memory_space<vmem>>, vector<1x8x16xf32>
    %350 = vector.shape_cast %349 : vector<1x8x16xf32> to vector<8x16xf32>
    %351 = arith.truncf %350 : vector<8x16xf32> to vector<8x16xbf16>
    %352 = vector.extract_strided_slice %351 {offsets = [0, 0], sizes = [8, 8], strides = [1, 1]} : vector<8x16xbf16> to vector<8x8xbf16>
    %353 = vector.extract_strided_slice %343 {offsets = [0, 0], sizes = [8, 24], strides = [1, 1]} : vector<8x38xbf16> to vector<8x24xbf16>
    %cst_235 = arith.constant dense<0.000000e+00> : vector<8x24xf32>
    %354 = tpu.matmul %352, %353, %cst_235 {dimension_numbers = #tpu.dot_dimension_numbers<[1], [0], [0], [1], [0, 0, 1, 1], [], []>} : vector<8x8xbf16>, vector<8x24xbf16>, vector<8x24xf32> -> vector<8x24xf32>
    %355 = arith.addf %348, %354 : vector<8x24xf32>
    %356 = vector.extract_strided_slice %351 {offsets = [0, 8], sizes = [8, 8], strides = [1, 1]} : vector<8x16xbf16> to vector<8x8xbf16>
    %357 = vector.extract_strided_slice %345 {offsets = [0, 0], sizes = [8, 24], strides = [1, 1]} : vector<8x38xbf16> to vector<8x24xbf16>
    %cst_236 = arith.constant dense<0.000000e+00> : vector<8x24xf32>
    %358 = tpu.matmul %356, %357, %cst_236 {dimension_numbers = #tpu.dot_dimension_numbers<[1], [0], [0], [1], [0, 0, 1, 1], [], []>} : vector<8x8xbf16>, vector<8x24xbf16>, vector<8x24xf32> -> vector<8x24xf32>
    %359 = arith.addf %355, %358 : vector<8x24xf32>
    %c1_237 = arith.constant 1 : index
    %c0_238 = arith.constant 0 : index
    %c0_239 = arith.constant 0 : index
    %360 = vector.load %arg12[%c1_237, %c0_238, %c0_239] : memref<9x8x16xf32, #tpu.memory_space<vmem>>, vector<1x8x16xf32>
    %361 = vector.shape_cast %360 : vector<1x8x16xf32> to vector<8x16xf32>
    %362 = arith.truncf %361 : vector<8x16xf32> to vector<8x16xbf16>
    %363 = vector.extract_strided_slice %362 {offsets = [0, 0], sizes = [8, 8], strides = [1, 1]} : vector<8x16xbf16> to vector<8x8xbf16>
    %364 = vector.extract_strided_slice %343 {offsets = [0, 1], sizes = [8, 24], strides = [1, 1]} : vector<8x38xbf16> to vector<8x24xbf16>
    %cst_240 = arith.constant dense<0.000000e+00> : vector<8x24xf32>
    %365 = tpu.matmul %363, %364, %cst_240 {dimension_numbers = #tpu.dot_dimension_numbers<[1], [0], [0], [1], [0, 0, 1, 1], [], []>} : vector<8x8xbf16>, vector<8x24xbf16>, vector<8x24xf32> -> vector<8x24xf32>
    %366 = arith.addf %359, %365 : vector<8x24xf32>
    %367 = vector.extract_strided_slice %362 {offsets = [0, 8], sizes = [8, 8], strides = [1, 1]} : vector<8x16xbf16> to vector<8x8xbf16>
    %368 = vector.extract_strided_slice %345 {offsets = [0, 1], sizes = [8, 24], strides = [1, 1]} : vector<8x38xbf16> to vector<8x24xbf16>
    %cst_241 = arith.constant dense<0.000000e+00> : vector<8x24xf32>
    %369 = tpu.matmul %367, %368, %cst_241 {dimension_numbers = #tpu.dot_dimension_numbers<[1], [0], [0], [1], [0, 0, 1, 1], [], []>} : vector<8x8xbf16>, vector<8x24xbf16>, vector<8x24xf32> -> vector<8x24xf32>
    %370 = arith.addf %366, %369 : vector<8x24xf32>
    %c2_242 = arith.constant 2 : index
    %c0_243 = arith.constant 0 : index
    %c0_244 = arith.constant 0 : index
    %371 = vector.load %arg12[%c2_242, %c0_243, %c0_244] : memref<9x8x16xf32, #tpu.memory_space<vmem>>, vector<1x8x16xf32>
    %372 = vector.shape_cast %371 : vector<1x8x16xf32> to vector<8x16xf32>
    %373 = arith.truncf %372 : vector<8x16xf32> to vector<8x16xbf16>
    %374 = vector.extract_strided_slice %373 {offsets = [0, 0], sizes = [8, 8], strides = [1, 1]} : vector<8x16xbf16> to vector<8x8xbf16>
    %375 = vector.extract_strided_slice %343 {offsets = [0, 2], sizes = [8, 24], strides = [1, 1]} : vector<8x38xbf16> to vector<8x24xbf16>
    %cst_245 = arith.constant dense<0.000000e+00> : vector<8x24xf32>
    %376 = tpu.matmul %374, %375, %cst_245 {dimension_numbers = #tpu.dot_dimension_numbers<[1], [0], [0], [1], [0, 0, 1, 1], [], []>} : vector<8x8xbf16>, vector<8x24xbf16>, vector<8x24xf32> -> vector<8x24xf32>
    %377 = arith.addf %370, %376 : vector<8x24xf32>
    %378 = vector.extract_strided_slice %373 {offsets = [0, 8], sizes = [8, 8], strides = [1, 1]} : vector<8x16xbf16> to vector<8x8xbf16>
    %379 = vector.extract_strided_slice %345 {offsets = [0, 2], sizes = [8, 24], strides = [1, 1]} : vector<8x38xbf16> to vector<8x24xbf16>
    %cst_246 = arith.constant dense<0.000000e+00> : vector<8x24xf32>
    %380 = tpu.matmul %378, %379, %cst_246 {dimension_numbers = #tpu.dot_dimension_numbers<[1], [0], [0], [1], [0, 0, 1, 1], [], []>} : vector<8x8xbf16>, vector<8x24xbf16>, vector<8x24xf32> -> vector<8x24xf32>
    %381 = arith.addf %377, %380 : vector<8x24xf32>
    %c3_247 = arith.constant 3 : index
    %c0_248 = arith.constant 0 : index
    %c0_249 = arith.constant 0 : index
    %382 = vector.load %arg12[%c3_247, %c0_248, %c0_249] : memref<9x8x16xf32, #tpu.memory_space<vmem>>, vector<1x8x16xf32>
    %383 = vector.shape_cast %382 : vector<1x8x16xf32> to vector<8x16xf32>
    %384 = arith.truncf %383 : vector<8x16xf32> to vector<8x16xbf16>
    %385 = vector.extract_strided_slice %384 {offsets = [0, 0], sizes = [8, 8], strides = [1, 1]} : vector<8x16xbf16> to vector<8x8xbf16>
    %386 = vector.extract_strided_slice %343 {offsets = [0, 6], sizes = [8, 24], strides = [1, 1]} : vector<8x38xbf16> to vector<8x24xbf16>
    %cst_250 = arith.constant dense<0.000000e+00> : vector<8x24xf32>
    %387 = tpu.matmul %385, %386, %cst_250 {dimension_numbers = #tpu.dot_dimension_numbers<[1], [0], [0], [1], [0, 0, 1, 1], [], []>} : vector<8x8xbf16>, vector<8x24xbf16>, vector<8x24xf32> -> vector<8x24xf32>
    %388 = arith.addf %381, %387 : vector<8x24xf32>
    %389 = vector.extract_strided_slice %384 {offsets = [0, 8], sizes = [8, 8], strides = [1, 1]} : vector<8x16xbf16> to vector<8x8xbf16>
    %390 = vector.extract_strided_slice %345 {offsets = [0, 6], sizes = [8, 24], strides = [1, 1]} : vector<8x38xbf16> to vector<8x24xbf16>
    %cst_251 = arith.constant dense<0.000000e+00> : vector<8x24xf32>
    %391 = tpu.matmul %389, %390, %cst_251 {dimension_numbers = #tpu.dot_dimension_numbers<[1], [0], [0], [1], [0, 0, 1, 1], [], []>} : vector<8x8xbf16>, vector<8x24xbf16>, vector<8x24xf32> -> vector<8x24xf32>
    %392 = arith.addf %388, %391 : vector<8x24xf32>
    %c4_252 = arith.constant 4 : index
    %c0_253 = arith.constant 0 : index
    %c0_254 = arith.constant 0 : index
    %393 = vector.load %arg12[%c4_252, %c0_253, %c0_254] : memref<9x8x16xf32, #tpu.memory_space<vmem>>, vector<1x8x16xf32>
    %394 = vector.shape_cast %393 : vector<1x8x16xf32> to vector<8x16xf32>
    %395 = arith.truncf %394 : vector<8x16xf32> to vector<8x16xbf16>
    %396 = vector.extract_strided_slice %395 {offsets = [0, 0], sizes = [8, 8], strides = [1, 1]} : vector<8x16xbf16> to vector<8x8xbf16>
    %397 = vector.extract_strided_slice %343 {offsets = [0, 7], sizes = [8, 24], strides = [1, 1]} : vector<8x38xbf16> to vector<8x24xbf16>
    %cst_255 = arith.constant dense<0.000000e+00> : vector<8x24xf32>
    %398 = tpu.matmul %396, %397, %cst_255 {dimension_numbers = #tpu.dot_dimension_numbers<[1], [0], [0], [1], [0, 0, 1, 1], [], []>} : vector<8x8xbf16>, vector<8x24xbf16>, vector<8x24xf32> -> vector<8x24xf32>
    %399 = arith.addf %392, %398 : vector<8x24xf32>
    %400 = vector.extract_strided_slice %395 {offsets = [0, 8], sizes = [8, 8], strides = [1, 1]} : vector<8x16xbf16> to vector<8x8xbf16>
    %401 = vector.extract_strided_slice %345 {offsets = [0, 7], sizes = [8, 24], strides = [1, 1]} : vector<8x38xbf16> to vector<8x24xbf16>
    %cst_256 = arith.constant dense<0.000000e+00> : vector<8x24xf32>
    %402 = tpu.matmul %400, %401, %cst_256 {dimension_numbers = #tpu.dot_dimension_numbers<[1], [0], [0], [1], [0, 0, 1, 1], [], []>} : vector<8x8xbf16>, vector<8x24xbf16>, vector<8x24xf32> -> vector<8x24xf32>
    %403 = arith.addf %399, %402 : vector<8x24xf32>
    %c5_257 = arith.constant 5 : index
    %c0_258 = arith.constant 0 : index
    %c0_259 = arith.constant 0 : index
    %404 = vector.load %arg12[%c5_257, %c0_258, %c0_259] : memref<9x8x16xf32, #tpu.memory_space<vmem>>, vector<1x8x16xf32>
    %405 = vector.shape_cast %404 : vector<1x8x16xf32> to vector<8x16xf32>
    %406 = arith.truncf %405 : vector<8x16xf32> to vector<8x16xbf16>
    %407 = vector.extract_strided_slice %406 {offsets = [0, 0], sizes = [8, 8], strides = [1, 1]} : vector<8x16xbf16> to vector<8x8xbf16>
    %408 = vector.extract_strided_slice %343 {offsets = [0, 8], sizes = [8, 24], strides = [1, 1]} : vector<8x38xbf16> to vector<8x24xbf16>
    %cst_260 = arith.constant dense<0.000000e+00> : vector<8x24xf32>
    %409 = tpu.matmul %407, %408, %cst_260 {dimension_numbers = #tpu.dot_dimension_numbers<[1], [0], [0], [1], [0, 0, 1, 1], [], []>} : vector<8x8xbf16>, vector<8x24xbf16>, vector<8x24xf32> -> vector<8x24xf32>
    %410 = arith.addf %403, %409 : vector<8x24xf32>
    %411 = vector.extract_strided_slice %406 {offsets = [0, 8], sizes = [8, 8], strides = [1, 1]} : vector<8x16xbf16> to vector<8x8xbf16>
    %412 = vector.extract_strided_slice %345 {offsets = [0, 8], sizes = [8, 24], strides = [1, 1]} : vector<8x38xbf16> to vector<8x24xbf16>
    %cst_261 = arith.constant dense<0.000000e+00> : vector<8x24xf32>
    %413 = tpu.matmul %411, %412, %cst_261 {dimension_numbers = #tpu.dot_dimension_numbers<[1], [0], [0], [1], [0, 0, 1, 1], [], []>} : vector<8x8xbf16>, vector<8x24xbf16>, vector<8x24xf32> -> vector<8x24xf32>
    %414 = arith.addf %410, %413 : vector<8x24xf32>
    %c6_262 = arith.constant 6 : index
    %c0_263 = arith.constant 0 : index
    %c0_264 = arith.constant 0 : index
    %415 = vector.load %arg12[%c6_262, %c0_263, %c0_264] : memref<9x8x16xf32, #tpu.memory_space<vmem>>, vector<1x8x16xf32>
    %416 = vector.shape_cast %415 : vector<1x8x16xf32> to vector<8x16xf32>
    %417 = arith.truncf %416 : vector<8x16xf32> to vector<8x16xbf16>
    %418 = vector.extract_strided_slice %417 {offsets = [0, 0], sizes = [8, 8], strides = [1, 1]} : vector<8x16xbf16> to vector<8x8xbf16>
    %419 = vector.extract_strided_slice %343 {offsets = [0, 12], sizes = [8, 24], strides = [1, 1]} : vector<8x38xbf16> to vector<8x24xbf16>
    %cst_265 = arith.constant dense<0.000000e+00> : vector<8x24xf32>
    %420 = tpu.matmul %418, %419, %cst_265 {dimension_numbers = #tpu.dot_dimension_numbers<[1], [0], [0], [1], [0, 0, 1, 1], [], []>} : vector<8x8xbf16>, vector<8x24xbf16>, vector<8x24xf32> -> vector<8x24xf32>
    %421 = arith.addf %414, %420 : vector<8x24xf32>
    %422 = vector.extract_strided_slice %417 {offsets = [0, 8], sizes = [8, 8], strides = [1, 1]} : vector<8x16xbf16> to vector<8x8xbf16>
    %423 = vector.extract_strided_slice %345 {offsets = [0, 12], sizes = [8, 24], strides = [1, 1]} : vector<8x38xbf16> to vector<8x24xbf16>
    %cst_266 = arith.constant dense<0.000000e+00> : vector<8x24xf32>
    %424 = tpu.matmul %422, %423, %cst_266 {dimension_numbers = #tpu.dot_dimension_numbers<[1], [0], [0], [1], [0, 0, 1, 1], [], []>} : vector<8x8xbf16>, vector<8x24xbf16>, vector<8x24xf32> -> vector<8x24xf32>
    %425 = arith.addf %421, %424 : vector<8x24xf32>
    %c7_267 = arith.constant 7 : index
    %c0_268 = arith.constant 0 : index
    %c0_269 = arith.constant 0 : index
    %426 = vector.load %arg12[%c7_267, %c0_268, %c0_269] : memref<9x8x16xf32, #tpu.memory_space<vmem>>, vector<1x8x16xf32>
    %427 = vector.shape_cast %426 : vector<1x8x16xf32> to vector<8x16xf32>
    %428 = arith.truncf %427 : vector<8x16xf32> to vector<8x16xbf16>
    %429 = vector.extract_strided_slice %428 {offsets = [0, 0], sizes = [8, 8], strides = [1, 1]} : vector<8x16xbf16> to vector<8x8xbf16>
    %430 = vector.extract_strided_slice %343 {offsets = [0, 13], sizes = [8, 24], strides = [1, 1]} : vector<8x38xbf16> to vector<8x24xbf16>
    %cst_270 = arith.constant dense<0.000000e+00> : vector<8x24xf32>
    %431 = tpu.matmul %429, %430, %cst_270 {dimension_numbers = #tpu.dot_dimension_numbers<[1], [0], [0], [1], [0, 0, 1, 1], [], []>} : vector<8x8xbf16>, vector<8x24xbf16>, vector<8x24xf32> -> vector<8x24xf32>
    %432 = arith.addf %425, %431 : vector<8x24xf32>
    %433 = vector.extract_strided_slice %428 {offsets = [0, 8], sizes = [8, 8], strides = [1, 1]} : vector<8x16xbf16> to vector<8x8xbf16>
    %434 = vector.extract_strided_slice %345 {offsets = [0, 13], sizes = [8, 24], strides = [1, 1]} : vector<8x38xbf16> to vector<8x24xbf16>
    %cst_271 = arith.constant dense<0.000000e+00> : vector<8x24xf32>
    %435 = tpu.matmul %433, %434, %cst_271 {dimension_numbers = #tpu.dot_dimension_numbers<[1], [0], [0], [1], [0, 0, 1, 1], [], []>} : vector<8x8xbf16>, vector<8x24xbf16>, vector<8x24xf32> -> vector<8x24xf32>
    %436 = arith.addf %432, %435 : vector<8x24xf32>
    %c8_272 = arith.constant 8 : index
    %c0_273 = arith.constant 0 : index
    %c0_274 = arith.constant 0 : index
    %437 = vector.load %arg12[%c8_272, %c0_273, %c0_274] : memref<9x8x16xf32, #tpu.memory_space<vmem>>, vector<1x8x16xf32>
    %438 = vector.shape_cast %437 : vector<1x8x16xf32> to vector<8x16xf32>
    %439 = arith.truncf %438 : vector<8x16xf32> to vector<8x16xbf16>
    %440 = vector.extract_strided_slice %439 {offsets = [0, 0], sizes = [8, 8], strides = [1, 1]} : vector<8x16xbf16> to vector<8x8xbf16>
    %441 = vector.extract_strided_slice %343 {offsets = [0, 14], sizes = [8, 24], strides = [1, 1]} : vector<8x38xbf16> to vector<8x24xbf16>
    %cst_275 = arith.constant dense<0.000000e+00> : vector<8x24xf32>
    %442 = tpu.matmul %440, %441, %cst_275 {dimension_numbers = #tpu.dot_dimension_numbers<[1], [0], [0], [1], [0, 0, 1, 1], [], []>} : vector<8x8xbf16>, vector<8x24xbf16>, vector<8x24xf32> -> vector<8x24xf32>
    %443 = arith.addf %436, %442 : vector<8x24xf32>
    %444 = vector.extract_strided_slice %439 {offsets = [0, 8], sizes = [8, 8], strides = [1, 1]} : vector<8x16xbf16> to vector<8x8xbf16>
    %445 = vector.extract_strided_slice %345 {offsets = [0, 14], sizes = [8, 24], strides = [1, 1]} : vector<8x38xbf16> to vector<8x24xbf16>
    %cst_276 = arith.constant dense<0.000000e+00> : vector<8x24xf32>
    %446 = tpu.matmul %444, %445, %cst_276 {dimension_numbers = #tpu.dot_dimension_numbers<[1], [0], [0], [1], [0, 0, 1, 1], [], []>} : vector<8x8xbf16>, vector<8x24xbf16>, vector<8x24xf32> -> vector<8x24xf32>
    %447 = arith.addf %443, %446 : vector<8x24xf32>
    %cst_277 = arith.constant dense<0.000000e+00> : vector<8x16xf32>
    %448 = tpu.matmul %447, %341, %cst_277 {dimension_numbers = #tpu.dot_dimension_numbers<[1], [0], [0], [1], [0, 0, 1, 1], [], []>} : vector<8x24xf32>, vector<24x16xf32>, vector<8x16xf32> -> vector<8x16xf32>
    %cst_278 = arith.constant 0.000000e+00 : f32
    %449 = vector.broadcast %cst_278 : f32 to vector<8x16xf32>
    %450 = arith.maximumf %448, %449 : vector<8x16xf32>
    %c0_279 = arith.constant 0 : index
    %c0_280 = arith.constant 0 : index
    %451 = vector.load %arg28[%c0_279, %c0_280] : memref<16x64xf32, #tpu.memory_space<vmem>>, vector<16x64xf32>
    %cst_281 = arith.constant dense<0.000000e+00> : vector<8x64xf32>
    %452 = tpu.matmul %450, %451, %cst_281 {dimension_numbers = #tpu.dot_dimension_numbers<[1], [0], [0], [1], [0, 0, 1, 1], [], []>} : vector<8x16xf32>, vector<16x64xf32>, vector<8x64xf32> -> vector<8x64xf32>
    %c0_282 = arith.constant 0 : index
    %c0_283 = arith.constant 0 : index
    %453 = vector.load %arg21[%c0_282, %c0_283] : memref<64x102xf32, #tpu.memory_space<vmem>>, vector<64x102xf32>
    %c0_284 = arith.constant 0 : index
    %c0_285 = arith.constant 0 : index
    %454 = vector.load %arg22[%c0_284, %c0_285] : memref<80x64xf32, #tpu.memory_space<vmem>>, vector<80x64xf32>
    %cst_286 = arith.constant dense<0.000000e+00> : vector<8x102xf32>
    %455 = tpu.matmul %452, %453, %cst_286 {dimension_numbers = #tpu.dot_dimension_numbers<[1], [0], [0], [1], [0, 0, 1, 1], [], []>} : vector<8x64xf32>, vector<64x102xf32>, vector<8x102xf32> -> vector<8x102xf32>
    %456 = arith.truncf %455 : vector<8x102xf32> to vector<8x102xbf16>
    %cst_287 = arith.constant dense<0.000000e+00> : vector<8x102xf32>
    %457 = tpu.matmul %202, %453, %cst_287 {dimension_numbers = #tpu.dot_dimension_numbers<[1], [0], [0], [1], [0, 0, 1, 1], [], []>} : vector<8x64xf32>, vector<64x102xf32>, vector<8x102xf32> -> vector<8x102xf32>
    %458 = arith.truncf %457 : vector<8x102xf32> to vector<8x102xbf16>
    %c0_288 = arith.constant 0 : index
    %c0_289 = arith.constant 0 : index
    %459 = vector.load %arg15[%c0_288, %c0_289] : memref<8x1xf32, #tpu.memory_space<vmem>>, vector<8x1xf32>
    %460 = vector.shape_cast %459 : vector<8x1xf32> to vector<8x1xf32>
    %461 = vector.broadcast %460 : vector<8x1xf32> to vector<8x80xf32>
    %c0_290 = arith.constant 0 : index
    %c0_291 = arith.constant 0 : index
    %c0_292 = arith.constant 0 : index
    %462 = vector.load %arg14[%c0_290, %c0_291, %c0_292] : memref<9x8x16xf32, #tpu.memory_space<vmem>>, vector<1x8x16xf32>
    %463 = vector.shape_cast %462 : vector<1x8x16xf32> to vector<8x16xf32>
    %464 = arith.truncf %463 : vector<8x16xf32> to vector<8x16xbf16>
    %465 = vector.extract_strided_slice %464 {offsets = [0, 0], sizes = [8, 8], strides = [1, 1]} : vector<8x16xbf16> to vector<8x8xbf16>
    %466 = vector.extract_strided_slice %456 {offsets = [0, 0], sizes = [8, 80], strides = [1, 1]} : vector<8x102xbf16> to vector<8x80xbf16>
    %cst_293 = arith.constant dense<0.000000e+00> : vector<8x80xf32>
    %467 = tpu.matmul %465, %466, %cst_293 {dimension_numbers = #tpu.dot_dimension_numbers<[1], [0], [0], [1], [0, 0, 1, 1], [], []>} : vector<8x8xbf16>, vector<8x80xbf16>, vector<8x80xf32> -> vector<8x80xf32>
    %468 = arith.addf %461, %467 : vector<8x80xf32>
    %469 = vector.extract_strided_slice %464 {offsets = [0, 8], sizes = [8, 8], strides = [1, 1]} : vector<8x16xbf16> to vector<8x8xbf16>
    %470 = vector.extract_strided_slice %458 {offsets = [0, 0], sizes = [8, 80], strides = [1, 1]} : vector<8x102xbf16> to vector<8x80xbf16>
    %cst_294 = arith.constant dense<0.000000e+00> : vector<8x80xf32>
    %471 = tpu.matmul %469, %470, %cst_294 {dimension_numbers = #tpu.dot_dimension_numbers<[1], [0], [0], [1], [0, 0, 1, 1], [], []>} : vector<8x8xbf16>, vector<8x80xbf16>, vector<8x80xf32> -> vector<8x80xf32>
    %472 = arith.addf %468, %471 : vector<8x80xf32>
    %c1_295 = arith.constant 1 : index
    %c0_296 = arith.constant 0 : index
    %c0_297 = arith.constant 0 : index
    %473 = vector.load %arg14[%c1_295, %c0_296, %c0_297] : memref<9x8x16xf32, #tpu.memory_space<vmem>>, vector<1x8x16xf32>
    %474 = vector.shape_cast %473 : vector<1x8x16xf32> to vector<8x16xf32>
    %475 = arith.truncf %474 : vector<8x16xf32> to vector<8x16xbf16>
    %476 = vector.extract_strided_slice %475 {offsets = [0, 0], sizes = [8, 8], strides = [1, 1]} : vector<8x16xbf16> to vector<8x8xbf16>
    %477 = vector.extract_strided_slice %456 {offsets = [0, 1], sizes = [8, 80], strides = [1, 1]} : vector<8x102xbf16> to vector<8x80xbf16>
    %cst_298 = arith.constant dense<0.000000e+00> : vector<8x80xf32>
    %478 = tpu.matmul %476, %477, %cst_298 {dimension_numbers = #tpu.dot_dimension_numbers<[1], [0], [0], [1], [0, 0, 1, 1], [], []>} : vector<8x8xbf16>, vector<8x80xbf16>, vector<8x80xf32> -> vector<8x80xf32>
    %479 = arith.addf %472, %478 : vector<8x80xf32>
    %480 = vector.extract_strided_slice %475 {offsets = [0, 8], sizes = [8, 8], strides = [1, 1]} : vector<8x16xbf16> to vector<8x8xbf16>
    %481 = vector.extract_strided_slice %458 {offsets = [0, 1], sizes = [8, 80], strides = [1, 1]} : vector<8x102xbf16> to vector<8x80xbf16>
    %cst_299 = arith.constant dense<0.000000e+00> : vector<8x80xf32>
    %482 = tpu.matmul %480, %481, %cst_299 {dimension_numbers = #tpu.dot_dimension_numbers<[1], [0], [0], [1], [0, 0, 1, 1], [], []>} : vector<8x8xbf16>, vector<8x80xbf16>, vector<8x80xf32> -> vector<8x80xf32>
    %483 = arith.addf %479, %482 : vector<8x80xf32>
    %c2_300 = arith.constant 2 : index
    %c0_301 = arith.constant 0 : index
    %c0_302 = arith.constant 0 : index
    %484 = vector.load %arg14[%c2_300, %c0_301, %c0_302] : memref<9x8x16xf32, #tpu.memory_space<vmem>>, vector<1x8x16xf32>
    %485 = vector.shape_cast %484 : vector<1x8x16xf32> to vector<8x16xf32>
    %486 = arith.truncf %485 : vector<8x16xf32> to vector<8x16xbf16>
    %487 = vector.extract_strided_slice %486 {offsets = [0, 0], sizes = [8, 8], strides = [1, 1]} : vector<8x16xbf16> to vector<8x8xbf16>
    %488 = vector.extract_strided_slice %456 {offsets = [0, 2], sizes = [8, 80], strides = [1, 1]} : vector<8x102xbf16> to vector<8x80xbf16>
    %cst_303 = arith.constant dense<0.000000e+00> : vector<8x80xf32>
    %489 = tpu.matmul %487, %488, %cst_303 {dimension_numbers = #tpu.dot_dimension_numbers<[1], [0], [0], [1], [0, 0, 1, 1], [], []>} : vector<8x8xbf16>, vector<8x80xbf16>, vector<8x80xf32> -> vector<8x80xf32>
    %490 = arith.addf %483, %489 : vector<8x80xf32>
    %491 = vector.extract_strided_slice %486 {offsets = [0, 8], sizes = [8, 8], strides = [1, 1]} : vector<8x16xbf16> to vector<8x8xbf16>
    %492 = vector.extract_strided_slice %458 {offsets = [0, 2], sizes = [8, 80], strides = [1, 1]} : vector<8x102xbf16> to vector<8x80xbf16>
    %cst_304 = arith.constant dense<0.000000e+00> : vector<8x80xf32>
    %493 = tpu.matmul %491, %492, %cst_304 {dimension_numbers = #tpu.dot_dimension_numbers<[1], [0], [0], [1], [0, 0, 1, 1], [], []>} : vector<8x8xbf16>, vector<8x80xbf16>, vector<8x80xf32> -> vector<8x80xf32>
    %494 = arith.addf %490, %493 : vector<8x80xf32>
    %c3_305 = arith.constant 3 : index
    %c0_306 = arith.constant 0 : index
    %c0_307 = arith.constant 0 : index
    %495 = vector.load %arg14[%c3_305, %c0_306, %c0_307] : memref<9x8x16xf32, #tpu.memory_space<vmem>>, vector<1x8x16xf32>
    %496 = vector.shape_cast %495 : vector<1x8x16xf32> to vector<8x16xf32>
    %497 = arith.truncf %496 : vector<8x16xf32> to vector<8x16xbf16>
    %498 = vector.extract_strided_slice %497 {offsets = [0, 0], sizes = [8, 8], strides = [1, 1]} : vector<8x16xbf16> to vector<8x8xbf16>
    %499 = vector.extract_strided_slice %456 {offsets = [0, 10], sizes = [8, 80], strides = [1, 1]} : vector<8x102xbf16> to vector<8x80xbf16>
    %cst_308 = arith.constant dense<0.000000e+00> : vector<8x80xf32>
    %500 = tpu.matmul %498, %499, %cst_308 {dimension_numbers = #tpu.dot_dimension_numbers<[1], [0], [0], [1], [0, 0, 1, 1], [], []>} : vector<8x8xbf16>, vector<8x80xbf16>, vector<8x80xf32> -> vector<8x80xf32>
    %501 = arith.addf %494, %500 : vector<8x80xf32>
    %502 = vector.extract_strided_slice %497 {offsets = [0, 8], sizes = [8, 8], strides = [1, 1]} : vector<8x16xbf16> to vector<8x8xbf16>
    %503 = vector.extract_strided_slice %458 {offsets = [0, 10], sizes = [8, 80], strides = [1, 1]} : vector<8x102xbf16> to vector<8x80xbf16>
    %cst_309 = arith.constant dense<0.000000e+00> : vector<8x80xf32>
    %504 = tpu.matmul %502, %503, %cst_309 {dimension_numbers = #tpu.dot_dimension_numbers<[1], [0], [0], [1], [0, 0, 1, 1], [], []>} : vector<8x8xbf16>, vector<8x80xbf16>, vector<8x80xf32> -> vector<8x80xf32>
    %505 = arith.addf %501, %504 : vector<8x80xf32>
    %c4_310 = arith.constant 4 : index
    %c0_311 = arith.constant 0 : index
    %c0_312 = arith.constant 0 : index
    %506 = vector.load %arg14[%c4_310, %c0_311, %c0_312] : memref<9x8x16xf32, #tpu.memory_space<vmem>>, vector<1x8x16xf32>
    %507 = vector.shape_cast %506 : vector<1x8x16xf32> to vector<8x16xf32>
    %508 = arith.truncf %507 : vector<8x16xf32> to vector<8x16xbf16>
    %509 = vector.extract_strided_slice %508 {offsets = [0, 0], sizes = [8, 8], strides = [1, 1]} : vector<8x16xbf16> to vector<8x8xbf16>
    %510 = vector.extract_strided_slice %456 {offsets = [0, 11], sizes = [8, 80], strides = [1, 1]} : vector<8x102xbf16> to vector<8x80xbf16>
    %cst_313 = arith.constant dense<0.000000e+00> : vector<8x80xf32>
    %511 = tpu.matmul %509, %510, %cst_313 {dimension_numbers = #tpu.dot_dimension_numbers<[1], [0], [0], [1], [0, 0, 1, 1], [], []>} : vector<8x8xbf16>, vector<8x80xbf16>, vector<8x80xf32> -> vector<8x80xf32>
    %512 = arith.addf %505, %511 : vector<8x80xf32>
    %513 = vector.extract_strided_slice %508 {offsets = [0, 8], sizes = [8, 8], strides = [1, 1]} : vector<8x16xbf16> to vector<8x8xbf16>
    %514 = vector.extract_strided_slice %458 {offsets = [0, 11], sizes = [8, 80], strides = [1, 1]} : vector<8x102xbf16> to vector<8x80xbf16>
    %cst_314 = arith.constant dense<0.000000e+00> : vector<8x80xf32>
    %515 = tpu.matmul %513, %514, %cst_314 {dimension_numbers = #tpu.dot_dimension_numbers<[1], [0], [0], [1], [0, 0, 1, 1], [], []>} : vector<8x8xbf16>, vector<8x80xbf16>, vector<8x80xf32> -> vector<8x80xf32>
    %516 = arith.addf %512, %515 : vector<8x80xf32>
    %c5_315 = arith.constant 5 : index
    %c0_316 = arith.constant 0 : index
    %c0_317 = arith.constant 0 : index
    %517 = vector.load %arg14[%c5_315, %c0_316, %c0_317] : memref<9x8x16xf32, #tpu.memory_space<vmem>>, vector<1x8x16xf32>
    %518 = vector.shape_cast %517 : vector<1x8x16xf32> to vector<8x16xf32>
    %519 = arith.truncf %518 : vector<8x16xf32> to vector<8x16xbf16>
    %520 = vector.extract_strided_slice %519 {offsets = [0, 0], sizes = [8, 8], strides = [1, 1]} : vector<8x16xbf16> to vector<8x8xbf16>
    %521 = vector.extract_strided_slice %456 {offsets = [0, 12], sizes = [8, 80], strides = [1, 1]} : vector<8x102xbf16> to vector<8x80xbf16>
    %cst_318 = arith.constant dense<0.000000e+00> : vector<8x80xf32>
    %522 = tpu.matmul %520, %521, %cst_318 {dimension_numbers = #tpu.dot_dimension_numbers<[1], [0], [0], [1], [0, 0, 1, 1], [], []>} : vector<8x8xbf16>, vector<8x80xbf16>, vector<8x80xf32> -> vector<8x80xf32>
    %523 = arith.addf %516, %522 : vector<8x80xf32>
    %524 = vector.extract_strided_slice %519 {offsets = [0, 8], sizes = [8, 8], strides = [1, 1]} : vector<8x16xbf16> to vector<8x8xbf16>
    %525 = vector.extract_strided_slice %458 {offsets = [0, 12], sizes = [8, 80], strides = [1, 1]} : vector<8x102xbf16> to vector<8x80xbf16>
    %cst_319 = arith.constant dense<0.000000e+00> : vector<8x80xf32>
    %526 = tpu.matmul %524, %525, %cst_319 {dimension_numbers = #tpu.dot_dimension_numbers<[1], [0], [0], [1], [0, 0, 1, 1], [], []>} : vector<8x8xbf16>, vector<8x80xbf16>, vector<8x80xf32> -> vector<8x80xf32>
    %527 = arith.addf %523, %526 : vector<8x80xf32>
    %c6_320 = arith.constant 6 : index
    %c0_321 = arith.constant 0 : index
    %c0_322 = arith.constant 0 : index
    %528 = vector.load %arg14[%c6_320, %c0_321, %c0_322] : memref<9x8x16xf32, #tpu.memory_space<vmem>>, vector<1x8x16xf32>
    %529 = vector.shape_cast %528 : vector<1x8x16xf32> to vector<8x16xf32>
    %530 = arith.truncf %529 : vector<8x16xf32> to vector<8x16xbf16>
    %531 = vector.extract_strided_slice %530 {offsets = [0, 0], sizes = [8, 8], strides = [1, 1]} : vector<8x16xbf16> to vector<8x8xbf16>
    %532 = vector.extract_strided_slice %456 {offsets = [0, 20], sizes = [8, 80], strides = [1, 1]} : vector<8x102xbf16> to vector<8x80xbf16>
    %cst_323 = arith.constant dense<0.000000e+00> : vector<8x80xf32>
    %533 = tpu.matmul %531, %532, %cst_323 {dimension_numbers = #tpu.dot_dimension_numbers<[1], [0], [0], [1], [0, 0, 1, 1], [], []>} : vector<8x8xbf16>, vector<8x80xbf16>, vector<8x80xf32> -> vector<8x80xf32>
    %534 = arith.addf %527, %533 : vector<8x80xf32>
    %535 = vector.extract_strided_slice %530 {offsets = [0, 8], sizes = [8, 8], strides = [1, 1]} : vector<8x16xbf16> to vector<8x8xbf16>
    %536 = vector.extract_strided_slice %458 {offsets = [0, 20], sizes = [8, 80], strides = [1, 1]} : vector<8x102xbf16> to vector<8x80xbf16>
    %cst_324 = arith.constant dense<0.000000e+00> : vector<8x80xf32>
    %537 = tpu.matmul %535, %536, %cst_324 {dimension_numbers = #tpu.dot_dimension_numbers<[1], [0], [0], [1], [0, 0, 1, 1], [], []>} : vector<8x8xbf16>, vector<8x80xbf16>, vector<8x80xf32> -> vector<8x80xf32>
    %538 = arith.addf %534, %537 : vector<8x80xf32>
    %c7_325 = arith.constant 7 : index
    %c0_326 = arith.constant 0 : index
    %c0_327 = arith.constant 0 : index
    %539 = vector.load %arg14[%c7_325, %c0_326, %c0_327] : memref<9x8x16xf32, #tpu.memory_space<vmem>>, vector<1x8x16xf32>
    %540 = vector.shape_cast %539 : vector<1x8x16xf32> to vector<8x16xf32>
    %541 = arith.truncf %540 : vector<8x16xf32> to vector<8x16xbf16>
    %542 = vector.extract_strided_slice %541 {offsets = [0, 0], sizes = [8, 8], strides = [1, 1]} : vector<8x16xbf16> to vector<8x8xbf16>
    %543 = vector.extract_strided_slice %456 {offsets = [0, 21], sizes = [8, 80], strides = [1, 1]} : vector<8x102xbf16> to vector<8x80xbf16>
    %cst_328 = arith.constant dense<0.000000e+00> : vector<8x80xf32>
    %544 = tpu.matmul %542, %543, %cst_328 {dimension_numbers = #tpu.dot_dimension_numbers<[1], [0], [0], [1], [0, 0, 1, 1], [], []>} : vector<8x8xbf16>, vector<8x80xbf16>, vector<8x80xf32> -> vector<8x80xf32>
    %545 = arith.addf %538, %544 : vector<8x80xf32>
    %546 = vector.extract_strided_slice %541 {offsets = [0, 8], sizes = [8, 8], strides = [1, 1]} : vector<8x16xbf16> to vector<8x8xbf16>
    %547 = vector.extract_strided_slice %458 {offsets = [0, 21], sizes = [8, 80], strides = [1, 1]} : vector<8x102xbf16> to vector<8x80xbf16>
    %cst_329 = arith.constant dense<0.000000e+00> : vector<8x80xf32>
    %548 = tpu.matmul %546, %547, %cst_329 {dimension_numbers = #tpu.dot_dimension_numbers<[1], [0], [0], [1], [0, 0, 1, 1], [], []>} : vector<8x8xbf16>, vector<8x80xbf16>, vector<8x80xf32> -> vector<8x80xf32>
    %549 = arith.addf %545, %548 : vector<8x80xf32>
    %c8_330 = arith.constant 8 : index
    %c0_331 = arith.constant 0 : index
    %c0_332 = arith.constant 0 : index
    %550 = vector.load %arg14[%c8_330, %c0_331, %c0_332] : memref<9x8x16xf32, #tpu.memory_space<vmem>>, vector<1x8x16xf32>
    %551 = vector.shape_cast %550 : vector<1x8x16xf32> to vector<8x16xf32>
    %552 = arith.truncf %551 : vector<8x16xf32> to vector<8x16xbf16>
    %553 = vector.extract_strided_slice %552 {offsets = [0, 0], sizes = [8, 8], strides = [1, 1]} : vector<8x16xbf16> to vector<8x8xbf16>
    %554 = vector.extract_strided_slice %456 {offsets = [0, 22], sizes = [8, 80], strides = [1, 1]} : vector<8x102xbf16> to vector<8x80xbf16>
    %cst_333 = arith.constant dense<0.000000e+00> : vector<8x80xf32>
    %555 = tpu.matmul %553, %554, %cst_333 {dimension_numbers = #tpu.dot_dimension_numbers<[1], [0], [0], [1], [0, 0, 1, 1], [], []>} : vector<8x8xbf16>, vector<8x80xbf16>, vector<8x80xf32> -> vector<8x80xf32>
    %556 = arith.addf %549, %555 : vector<8x80xf32>
    %557 = vector.extract_strided_slice %552 {offsets = [0, 8], sizes = [8, 8], strides = [1, 1]} : vector<8x16xbf16> to vector<8x8xbf16>
    %558 = vector.extract_strided_slice %458 {offsets = [0, 22], sizes = [8, 80], strides = [1, 1]} : vector<8x102xbf16> to vector<8x80xbf16>
    %cst_334 = arith.constant dense<0.000000e+00> : vector<8x80xf32>
    %559 = tpu.matmul %557, %558, %cst_334 {dimension_numbers = #tpu.dot_dimension_numbers<[1], [0], [0], [1], [0, 0, 1, 1], [], []>} : vector<8x8xbf16>, vector<8x80xbf16>, vector<8x80xf32> -> vector<8x80xf32>
    %560 = arith.addf %556, %559 : vector<8x80xf32>
    %cst_335 = arith.constant dense<0.000000e+00> : vector<8x64xf32>
    %561 = tpu.matmul %560, %454, %cst_335 {dimension_numbers = #tpu.dot_dimension_numbers<[1], [0], [0], [1], [0, 0, 1, 1], [], []>} : vector<8x80xf32>, vector<80x64xf32>, vector<8x64xf32> -> vector<8x64xf32>
    %cst_336 = arith.constant 0.000000e+00 : f32
    %562 = vector.broadcast %cst_336 : f32 to vector<8x64xf32>
    %563 = arith.maximumf %561, %562 : vector<8x64xf32>
    %c0_337 = arith.constant 0 : index
    %c0_338 = arith.constant 0 : index
    %564 = vector.load %arg29[%c0_337, %c0_338] : memref<64x256xf32, #tpu.memory_space<vmem>>, vector<64x256xf32>
    %cst_339 = arith.constant dense<0.000000e+00> : vector<8x256xf32>
    %565 = tpu.matmul %563, %564, %cst_339 {dimension_numbers = #tpu.dot_dimension_numbers<[1], [0], [0], [1], [0, 0, 1, 1], [], []>} : vector<8x64xf32>, vector<64x256xf32>, vector<8x256xf32> -> vector<8x256xf32>
    %c0_340 = arith.constant 0 : index
    %c0_341 = arith.constant 0 : index
    %566 = vector.load %arg18[%c0_340, %c0_341] : memref<256x326xf32, #tpu.memory_space<vmem>>, vector<256x326xf32>
    %c0_342 = arith.constant 0 : index
    %c0_343 = arith.constant 0 : index
    %567 = vector.load %arg19[%c0_342, %c0_343] : memref<288x256xf32, #tpu.memory_space<vmem>>, vector<288x256xf32>
    %cst_344 = arith.constant dense<0.000000e+00> : vector<8x326xf32>
    %568 = tpu.matmul %565, %566, %cst_344 {dimension_numbers = #tpu.dot_dimension_numbers<[1], [0], [0], [1], [0, 0, 1, 1], [], []>} : vector<8x256xf32>, vector<256x326xf32>, vector<8x326xf32> -> vector<8x326xf32>
    %569 = arith.truncf %568 : vector<8x326xf32> to vector<8x326xbf16>
    %cst_345 = arith.constant dense<0.000000e+00> : vector<8x326xf32>
    %570 = tpu.matmul %129, %566, %cst_345 {dimension_numbers = #tpu.dot_dimension_numbers<[1], [0], [0], [1], [0, 0, 1, 1], [], []>} : vector<8x256xf32>, vector<256x326xf32>, vector<8x326xf32> -> vector<8x326xf32>
    %571 = arith.truncf %570 : vector<8x326xf32> to vector<8x326xbf16>
    %c0_346 = arith.constant 0 : index
    %c0_347 = arith.constant 0 : index
    %572 = vector.load %arg17[%c0_346, %c0_347] : memref<4x1xf32, #tpu.memory_space<vmem>>, vector<4x1xf32>
    %573 = vector.shape_cast %572 : vector<4x1xf32> to vector<4x1xf32>
    %574 = vector.broadcast %573 : vector<4x1xf32> to vector<4x288xf32>
    %c0_348 = arith.constant 0 : index
    %c0_349 = arith.constant 0 : index
    %c0_350 = arith.constant 0 : index
    %575 = vector.load %arg16[%c0_348, %c0_349, %c0_350] : memref<9x4x16xf32, #tpu.memory_space<vmem>>, vector<1x4x16xf32>
    %576 = vector.shape_cast %575 : vector<1x4x16xf32> to vector<4x16xf32>
    %577 = arith.truncf %576 : vector<4x16xf32> to vector<4x16xbf16>
    %578 = vector.extract_strided_slice %577 {offsets = [0, 0], sizes = [4, 8], strides = [1, 1]} : vector<4x16xbf16> to vector<4x8xbf16>
    %579 = vector.extract_strided_slice %569 {offsets = [0, 0], sizes = [8, 288], strides = [1, 1]} : vector<8x326xbf16> to vector<8x288xbf16>
    %cst_351 = arith.constant dense<0.000000e+00> : vector<4x288xf32>
    %580 = tpu.matmul %578, %579, %cst_351 {dimension_numbers = #tpu.dot_dimension_numbers<[1], [0], [0], [1], [0, 0, 1, 1], [], []>} : vector<4x8xbf16>, vector<8x288xbf16>, vector<4x288xf32> -> vector<4x288xf32>
    %581 = arith.addf %574, %580 : vector<4x288xf32>
    %582 = vector.extract_strided_slice %577 {offsets = [0, 8], sizes = [4, 8], strides = [1, 1]} : vector<4x16xbf16> to vector<4x8xbf16>
    %583 = vector.extract_strided_slice %571 {offsets = [0, 0], sizes = [8, 288], strides = [1, 1]} : vector<8x326xbf16> to vector<8x288xbf16>
    %cst_352 = arith.constant dense<0.000000e+00> : vector<4x288xf32>
    %584 = tpu.matmul %582, %583, %cst_352 {dimension_numbers = #tpu.dot_dimension_numbers<[1], [0], [0], [1], [0, 0, 1, 1], [], []>} : vector<4x8xbf16>, vector<8x288xbf16>, vector<4x288xf32> -> vector<4x288xf32>
    %585 = arith.addf %581, %584 : vector<4x288xf32>
    %c1_353 = arith.constant 1 : index
    %c0_354 = arith.constant 0 : index
    %c0_355 = arith.constant 0 : index
    %586 = vector.load %arg16[%c1_353, %c0_354, %c0_355] : memref<9x4x16xf32, #tpu.memory_space<vmem>>, vector<1x4x16xf32>
    %587 = vector.shape_cast %586 : vector<1x4x16xf32> to vector<4x16xf32>
    %588 = arith.truncf %587 : vector<4x16xf32> to vector<4x16xbf16>
    %589 = vector.extract_strided_slice %588 {offsets = [0, 0], sizes = [4, 8], strides = [1, 1]} : vector<4x16xbf16> to vector<4x8xbf16>
    %590 = vector.extract_strided_slice %569 {offsets = [0, 1], sizes = [8, 288], strides = [1, 1]} : vector<8x326xbf16> to vector<8x288xbf16>
    %cst_356 = arith.constant dense<0.000000e+00> : vector<4x288xf32>
    %591 = tpu.matmul %589, %590, %cst_356 {dimension_numbers = #tpu.dot_dimension_numbers<[1], [0], [0], [1], [0, 0, 1, 1], [], []>} : vector<4x8xbf16>, vector<8x288xbf16>, vector<4x288xf32> -> vector<4x288xf32>
    %592 = arith.addf %585, %591 : vector<4x288xf32>
    %593 = vector.extract_strided_slice %588 {offsets = [0, 8], sizes = [4, 8], strides = [1, 1]} : vector<4x16xbf16> to vector<4x8xbf16>
    %594 = vector.extract_strided_slice %571 {offsets = [0, 1], sizes = [8, 288], strides = [1, 1]} : vector<8x326xbf16> to vector<8x288xbf16>
    %cst_357 = arith.constant dense<0.000000e+00> : vector<4x288xf32>
    %595 = tpu.matmul %593, %594, %cst_357 {dimension_numbers = #tpu.dot_dimension_numbers<[1], [0], [0], [1], [0, 0, 1, 1], [], []>} : vector<4x8xbf16>, vector<8x288xbf16>, vector<4x288xf32> -> vector<4x288xf32>
    %596 = arith.addf %592, %595 : vector<4x288xf32>
    %c2_358 = arith.constant 2 : index
    %c0_359 = arith.constant 0 : index
    %c0_360 = arith.constant 0 : index
    %597 = vector.load %arg16[%c2_358, %c0_359, %c0_360] : memref<9x4x16xf32, #tpu.memory_space<vmem>>, vector<1x4x16xf32>
    %598 = vector.shape_cast %597 : vector<1x4x16xf32> to vector<4x16xf32>
    %599 = arith.truncf %598 : vector<4x16xf32> to vector<4x16xbf16>
    %600 = vector.extract_strided_slice %599 {offsets = [0, 0], sizes = [4, 8], strides = [1, 1]} : vector<4x16xbf16> to vector<4x8xbf16>
    %601 = vector.extract_strided_slice %569 {offsets = [0, 2], sizes = [8, 288], strides = [1, 1]} : vector<8x326xbf16> to vector<8x288xbf16>
    %cst_361 = arith.constant dense<0.000000e+00> : vector<4x288xf32>
    %602 = tpu.matmul %600, %601, %cst_361 {dimension_numbers = #tpu.dot_dimension_numbers<[1], [0], [0], [1], [0, 0, 1, 1], [], []>} : vector<4x8xbf16>, vector<8x288xbf16>, vector<4x288xf32> -> vector<4x288xf32>
    %603 = arith.addf %596, %602 : vector<4x288xf32>
    %604 = vector.extract_strided_slice %599 {offsets = [0, 8], sizes = [4, 8], strides = [1, 1]} : vector<4x16xbf16> to vector<4x8xbf16>
    %605 = vector.extract_strided_slice %571 {offsets = [0, 2], sizes = [8, 288], strides = [1, 1]} : vector<8x326xbf16> to vector<8x288xbf16>
    %cst_362 = arith.constant dense<0.000000e+00> : vector<4x288xf32>
    %606 = tpu.matmul %604, %605, %cst_362 {dimension_numbers = #tpu.dot_dimension_numbers<[1], [0], [0], [1], [0, 0, 1, 1], [], []>} : vector<4x8xbf16>, vector<8x288xbf16>, vector<4x288xf32> -> vector<4x288xf32>
    %607 = arith.addf %603, %606 : vector<4x288xf32>
    %c3_363 = arith.constant 3 : index
    %c0_364 = arith.constant 0 : index
    %c0_365 = arith.constant 0 : index
    %608 = vector.load %arg16[%c3_363, %c0_364, %c0_365] : memref<9x4x16xf32, #tpu.memory_space<vmem>>, vector<1x4x16xf32>
    %609 = vector.shape_cast %608 : vector<1x4x16xf32> to vector<4x16xf32>
    %610 = arith.truncf %609 : vector<4x16xf32> to vector<4x16xbf16>
    %611 = vector.extract_strided_slice %610 {offsets = [0, 0], sizes = [4, 8], strides = [1, 1]} : vector<4x16xbf16> to vector<4x8xbf16>
    %612 = vector.extract_strided_slice %569 {offsets = [0, 18], sizes = [8, 288], strides = [1, 1]} : vector<8x326xbf16> to vector<8x288xbf16>
    %cst_366 = arith.constant dense<0.000000e+00> : vector<4x288xf32>
    %613 = tpu.matmul %611, %612, %cst_366 {dimension_numbers = #tpu.dot_dimension_numbers<[1], [0], [0], [1], [0, 0, 1, 1], [], []>} : vector<4x8xbf16>, vector<8x288xbf16>, vector<4x288xf32> -> vector<4x288xf32>
    %614 = arith.addf %607, %613 : vector<4x288xf32>
    %615 = vector.extract_strided_slice %610 {offsets = [0, 8], sizes = [4, 8], strides = [1, 1]} : vector<4x16xbf16> to vector<4x8xbf16>
    %616 = vector.extract_strided_slice %571 {offsets = [0, 18], sizes = [8, 288], strides = [1, 1]} : vector<8x326xbf16> to vector<8x288xbf16>
    %cst_367 = arith.constant dense<0.000000e+00> : vector<4x288xf32>
    %617 = tpu.matmul %615, %616, %cst_367 {dimension_numbers = #tpu.dot_dimension_numbers<[1], [0], [0], [1], [0, 0, 1, 1], [], []>} : vector<4x8xbf16>, vector<8x288xbf16>, vector<4x288xf32> -> vector<4x288xf32>
    %618 = arith.addf %614, %617 : vector<4x288xf32>
    %c4_368 = arith.constant 4 : index
    %c0_369 = arith.constant 0 : index
    %c0_370 = arith.constant 0 : index
    %619 = vector.load %arg16[%c4_368, %c0_369, %c0_370] : memref<9x4x16xf32, #tpu.memory_space<vmem>>, vector<1x4x16xf32>
    %620 = vector.shape_cast %619 : vector<1x4x16xf32> to vector<4x16xf32>
    %621 = arith.truncf %620 : vector<4x16xf32> to vector<4x16xbf16>
    %622 = vector.extract_strided_slice %621 {offsets = [0, 0], sizes = [4, 8], strides = [1, 1]} : vector<4x16xbf16> to vector<4x8xbf16>
    %623 = vector.extract_strided_slice %569 {offsets = [0, 19], sizes = [8, 288], strides = [1, 1]} : vector<8x326xbf16> to vector<8x288xbf16>
    %cst_371 = arith.constant dense<0.000000e+00> : vector<4x288xf32>
    %624 = tpu.matmul %622, %623, %cst_371 {dimension_numbers = #tpu.dot_dimension_numbers<[1], [0], [0], [1], [0, 0, 1, 1], [], []>} : vector<4x8xbf16>, vector<8x288xbf16>, vector<4x288xf32> -> vector<4x288xf32>
    %625 = arith.addf %618, %624 : vector<4x288xf32>
    %626 = vector.extract_strided_slice %621 {offsets = [0, 8], sizes = [4, 8], strides = [1, 1]} : vector<4x16xbf16> to vector<4x8xbf16>
    %627 = vector.extract_strided_slice %571 {offsets = [0, 19], sizes = [8, 288], strides = [1, 1]} : vector<8x326xbf16> to vector<8x288xbf16>
    %cst_372 = arith.constant dense<0.000000e+00> : vector<4x288xf32>
    %628 = tpu.matmul %626, %627, %cst_372 {dimension_numbers = #tpu.dot_dimension_numbers<[1], [0], [0], [1], [0, 0, 1, 1], [], []>} : vector<4x8xbf16>, vector<8x288xbf16>, vector<4x288xf32> -> vector<4x288xf32>
    %629 = arith.addf %625, %628 : vector<4x288xf32>
    %c5_373 = arith.constant 5 : index
    %c0_374 = arith.constant 0 : index
    %c0_375 = arith.constant 0 : index
    %630 = vector.load %arg16[%c5_373, %c0_374, %c0_375] : memref<9x4x16xf32, #tpu.memory_space<vmem>>, vector<1x4x16xf32>
    %631 = vector.shape_cast %630 : vector<1x4x16xf32> to vector<4x16xf32>
    %632 = arith.truncf %631 : vector<4x16xf32> to vector<4x16xbf16>
    %633 = vector.extract_strided_slice %632 {offsets = [0, 0], sizes = [4, 8], strides = [1, 1]} : vector<4x16xbf16> to vector<4x8xbf16>
    %634 = vector.extract_strided_slice %569 {offsets = [0, 20], sizes = [8, 288], strides = [1, 1]} : vector<8x326xbf16> to vector<8x288xbf16>
    %cst_376 = arith.constant dense<0.000000e+00> : vector<4x288xf32>
    %635 = tpu.matmul %633, %634, %cst_376 {dimension_numbers = #tpu.dot_dimension_numbers<[1], [0], [0], [1], [0, 0, 1, 1], [], []>} : vector<4x8xbf16>, vector<8x288xbf16>, vector<4x288xf32> -> vector<4x288xf32>
    %636 = arith.addf %629, %635 : vector<4x288xf32>
    %637 = vector.extract_strided_slice %632 {offsets = [0, 8], sizes = [4, 8], strides = [1, 1]} : vector<4x16xbf16> to vector<4x8xbf16>
    %638 = vector.extract_strided_slice %571 {offsets = [0, 20], sizes = [8, 288], strides = [1, 1]} : vector<8x326xbf16> to vector<8x288xbf16>
    %cst_377 = arith.constant dense<0.000000e+00> : vector<4x288xf32>
    %639 = tpu.matmul %637, %638, %cst_377 {dimension_numbers = #tpu.dot_dimension_numbers<[1], [0], [0], [1], [0, 0, 1, 1], [], []>} : vector<4x8xbf16>, vector<8x288xbf16>, vector<4x288xf32> -> vector<4x288xf32>
    %640 = arith.addf %636, %639 : vector<4x288xf32>
    %c6_378 = arith.constant 6 : index
    %c0_379 = arith.constant 0 : index
    %c0_380 = arith.constant 0 : index
    %641 = vector.load %arg16[%c6_378, %c0_379, %c0_380] : memref<9x4x16xf32, #tpu.memory_space<vmem>>, vector<1x4x16xf32>
    %642 = vector.shape_cast %641 : vector<1x4x16xf32> to vector<4x16xf32>
    %643 = arith.truncf %642 : vector<4x16xf32> to vector<4x16xbf16>
    %644 = vector.extract_strided_slice %643 {offsets = [0, 0], sizes = [4, 8], strides = [1, 1]} : vector<4x16xbf16> to vector<4x8xbf16>
    %645 = vector.extract_strided_slice %569 {offsets = [0, 36], sizes = [8, 288], strides = [1, 1]} : vector<8x326xbf16> to vector<8x288xbf16>
    %cst_381 = arith.constant dense<0.000000e+00> : vector<4x288xf32>
    %646 = tpu.matmul %644, %645, %cst_381 {dimension_numbers = #tpu.dot_dimension_numbers<[1], [0], [0], [1], [0, 0, 1, 1], [], []>} : vector<4x8xbf16>, vector<8x288xbf16>, vector<4x288xf32> -> vector<4x288xf32>
    %647 = arith.addf %640, %646 : vector<4x288xf32>
    %648 = vector.extract_strided_slice %643 {offsets = [0, 8], sizes = [4, 8], strides = [1, 1]} : vector<4x16xbf16> to vector<4x8xbf16>
    %649 = vector.extract_strided_slice %571 {offsets = [0, 36], sizes = [8, 288], strides = [1, 1]} : vector<8x326xbf16> to vector<8x288xbf16>
    %cst_382 = arith.constant dense<0.000000e+00> : vector<4x288xf32>
    %650 = tpu.matmul %648, %649, %cst_382 {dimension_numbers = #tpu.dot_dimension_numbers<[1], [0], [0], [1], [0, 0, 1, 1], [], []>} : vector<4x8xbf16>, vector<8x288xbf16>, vector<4x288xf32> -> vector<4x288xf32>
    %651 = arith.addf %647, %650 : vector<4x288xf32>
    %c7_383 = arith.constant 7 : index
    %c0_384 = arith.constant 0 : index
    %c0_385 = arith.constant 0 : index
    %652 = vector.load %arg16[%c7_383, %c0_384, %c0_385] : memref<9x4x16xf32, #tpu.memory_space<vmem>>, vector<1x4x16xf32>
    %653 = vector.shape_cast %652 : vector<1x4x16xf32> to vector<4x16xf32>
    %654 = arith.truncf %653 : vector<4x16xf32> to vector<4x16xbf16>
    %655 = vector.extract_strided_slice %654 {offsets = [0, 0], sizes = [4, 8], strides = [1, 1]} : vector<4x16xbf16> to vector<4x8xbf16>
    %656 = vector.extract_strided_slice %569 {offsets = [0, 37], sizes = [8, 288], strides = [1, 1]} : vector<8x326xbf16> to vector<8x288xbf16>
    %cst_386 = arith.constant dense<0.000000e+00> : vector<4x288xf32>
    %657 = tpu.matmul %655, %656, %cst_386 {dimension_numbers = #tpu.dot_dimension_numbers<[1], [0], [0], [1], [0, 0, 1, 1], [], []>} : vector<4x8xbf16>, vector<8x288xbf16>, vector<4x288xf32> -> vector<4x288xf32>
    %658 = arith.addf %651, %657 : vector<4x288xf32>
    %659 = vector.extract_strided_slice %654 {offsets = [0, 8], sizes = [4, 8], strides = [1, 1]} : vector<4x16xbf16> to vector<4x8xbf16>
    %660 = vector.extract_strided_slice %571 {offsets = [0, 37], sizes = [8, 288], strides = [1, 1]} : vector<8x326xbf16> to vector<8x288xbf16>
    %cst_387 = arith.constant dense<0.000000e+00> : vector<4x288xf32>
    %661 = tpu.matmul %659, %660, %cst_387 {dimension_numbers = #tpu.dot_dimension_numbers<[1], [0], [0], [1], [0, 0, 1, 1], [], []>} : vector<4x8xbf16>, vector<8x288xbf16>, vector<4x288xf32> -> vector<4x288xf32>
    %662 = arith.addf %658, %661 : vector<4x288xf32>
    %c8_388 = arith.constant 8 : index
    %c0_389 = arith.constant 0 : index
    %c0_390 = arith.constant 0 : index
    %663 = vector.load %arg16[%c8_388, %c0_389, %c0_390] : memref<9x4x16xf32, #tpu.memory_space<vmem>>, vector<1x4x16xf32>
    %664 = vector.shape_cast %663 : vector<1x4x16xf32> to vector<4x16xf32>
    %665 = arith.truncf %664 : vector<4x16xf32> to vector<4x16xbf16>
    %666 = vector.extract_strided_slice %665 {offsets = [0, 0], sizes = [4, 8], strides = [1, 1]} : vector<4x16xbf16> to vector<4x8xbf16>
    %667 = vector.extract_strided_slice %569 {offsets = [0, 38], sizes = [8, 288], strides = [1, 1]} : vector<8x326xbf16> to vector<8x288xbf16>
    %cst_391 = arith.constant dense<0.000000e+00> : vector<4x288xf32>
    %668 = tpu.matmul %666, %667, %cst_391 {dimension_numbers = #tpu.dot_dimension_numbers<[1], [0], [0], [1], [0, 0, 1, 1], [], []>} : vector<4x8xbf16>, vector<8x288xbf16>, vector<4x288xf32> -> vector<4x288xf32>
    %669 = arith.addf %662, %668 : vector<4x288xf32>
    %670 = vector.extract_strided_slice %665 {offsets = [0, 8], sizes = [4, 8], strides = [1, 1]} : vector<4x16xbf16> to vector<4x8xbf16>
    %671 = vector.extract_strided_slice %571 {offsets = [0, 38], sizes = [8, 288], strides = [1, 1]} : vector<8x326xbf16> to vector<8x288xbf16>
    %cst_392 = arith.constant dense<0.000000e+00> : vector<4x288xf32>
    %672 = tpu.matmul %670, %671, %cst_392 {dimension_numbers = #tpu.dot_dimension_numbers<[1], [0], [0], [1], [0, 0, 1, 1], [], []>} : vector<4x8xbf16>, vector<8x288xbf16>, vector<4x288xf32> -> vector<4x288xf32>
    %673 = arith.addf %669, %672 : vector<4x288xf32>
    %cst_393 = arith.constant dense<0.000000e+00> : vector<4x256xf32>
    %674 = tpu.matmul %673, %567, %cst_393 {dimension_numbers = #tpu.dot_dimension_numbers<[1], [0], [0], [1], [0, 0, 1, 1], [], []>} : vector<4x288xf32>, vector<288x256xf32>, vector<4x256xf32> -> vector<4x256xf32>
    %cst_394 = arith.constant 0.000000e+00 : f32
    %675 = vector.broadcast %cst_394 : f32 to vector<4x256xf32>
    %676 = arith.maximumf %674, %675 : vector<4x256xf32>
    %677 = arith.addf %65, %676 : vector<4x256xf32>
    %c0_395 = arith.constant 0 : index
    %c0_396 = arith.constant 0 : index
    %c0_397 = arith.constant 0 : index
    %678 = vector.load %arg30[%c0_395, %c0_396, %c0_397] : memref<1x4x256xf32, #tpu.memory_space<vmem>>, vector<1x4x256xf32>
    %679 = vector.shape_cast %678 : vector<1x4x256xf32> to vector<4x256xf32>
    %680 = vector.shape_cast %677 : vector<4x256xf32> to vector<1x4x256xf32>
    tpu.vector_store %arg30[%c0_395, %c0_396, %c0_397], %680 {strides = array<i32>} : memref<1x4x256xf32, #tpu.memory_space<vmem>>, vector<1x4x256xf32>,
    return
  }
  func.func @transform_0(%arg0: i32) -> (i32, i32, i32) {
    %c0_i32 = arith.constant 0 : i32
    %c0_i32_0 = arith.constant 0 : i32
    %c0_i32_1 = arith.constant 0 : i32
    return %arg0, %c0_i32, %c0_i32_0 : i32, i32, i32
  }
  func.func @transform_1(%arg0: i32) -> (i32, i32, i32) {
    %c0_i32 = arith.constant 0 : i32
    %c0_i32_0 = arith.constant 0 : i32
    %c0_i32_1 = arith.constant 0 : i32
    %c0_i32_2 = arith.constant 0 : i32
    return %c0_i32, %c0_i32_0, %c0_i32_1 : i32, i32, i32
  }
  func.func @transform_2(%arg0: i32) -> (i32, i32) {
    %c0_i32 = arith.constant 0 : i32
    %c0_i32_0 = arith.constant 0 : i32
    %c0_i32_1 = arith.constant 0 : i32
    return %c0_i32, %c0_i32_0 : i32, i32
  }
  func.func @transform_3(%arg0: i32) -> (i32, i32, i32) {
    %c0_i32 = arith.constant 0 : i32
    %c0_i32_0 = arith.constant 0 : i32
    %c0_i32_1 = arith.constant 0 : i32
    %c0_i32_2 = arith.constant 0 : i32
    return %c0_i32, %c0_i32_0, %c0_i32_1 : i32, i32, i32
  }
  func.func @transform_4(%arg0: i32) -> (i32, i32) {
    %c0_i32 = arith.constant 0 : i32
    %c0_i32_0 = arith.constant 0 : i32
    %c0_i32_1 = arith.constant 0 : i32
    return %c0_i32, %c0_i32_0 : i32, i32
  }
  func.func @transform_5(%arg0: i32) -> (i32, i32, i32) {
    %c0_i32 = arith.constant 0 : i32
    %c0_i32_0 = arith.constant 0 : i32
    %c0_i32_1 = arith.constant 0 : i32
    %c0_i32_2 = arith.constant 0 : i32
    return %c0_i32, %c0_i32_0, %c0_i32_1 : i32, i32, i32
  }
  func.func @transform_6(%arg0: i32) -> (i32, i32) {
    %c0_i32 = arith.constant 0 : i32
    %c0_i32_0 = arith.constant 0 : i32
    %c0_i32_1 = arith.constant 0 : i32
    return %c0_i32, %c0_i32_0 : i32, i32
  }
  func.func @transform_7(%arg0: i32) -> (i32, i32, i32) {
    %c0_i32 = arith.constant 0 : i32
    %c0_i32_0 = arith.constant 0 : i32
    %c0_i32_1 = arith.constant 0 : i32
    %c0_i32_2 = arith.constant 0 : i32
    return %c0_i32, %c0_i32_0, %c0_i32_1 : i32, i32, i32
  }
  func.func @transform_8(%arg0: i32) -> (i32, i32) {
    %c0_i32 = arith.constant 0 : i32
    %c0_i32_0 = arith.constant 0 : i32
    %c0_i32_1 = arith.constant 0 : i32
    return %c0_i32, %c0_i32_0 : i32, i32
  }
  func.func @transform_9(%arg0: i32) -> (i32, i32, i32) {
    %c0_i32 = arith.constant 0 : i32
    %c0_i32_0 = arith.constant 0 : i32
    %c0_i32_1 = arith.constant 0 : i32
    %c0_i32_2 = arith.constant 0 : i32
    return %c0_i32, %c0_i32_0, %c0_i32_1 : i32, i32, i32
  }
  func.func @transform_10(%arg0: i32) -> (i32, i32) {
    %c0_i32 = arith.constant 0 : i32
    %c0_i32_0 = arith.constant 0 : i32
    %c0_i32_1 = arith.constant 0 : i32
    return %c0_i32, %c0_i32_0 : i32, i32
  }
  func.func @transform_11(%arg0: i32) -> (i32, i32, i32) {
    %c0_i32 = arith.constant 0 : i32
    %c0_i32_0 = arith.constant 0 : i32
    %c0_i32_1 = arith.constant 0 : i32
    %c0_i32_2 = arith.constant 0 : i32
    return %c0_i32, %c0_i32_0, %c0_i32_1 : i32, i32, i32
  }
  func.func @transform_12(%arg0: i32) -> (i32, i32) {
    %c0_i32 = arith.constant 0 : i32
    %c0_i32_0 = arith.constant 0 : i32
    %c0_i32_1 = arith.constant 0 : i32
    return %c0_i32, %c0_i32_0 : i32, i32
  }
  func.func @transform_13(%arg0: i32) -> (i32, i32, i32) {
    %c0_i32 = arith.constant 0 : i32
    %c0_i32_0 = arith.constant 0 : i32
    %c0_i32_1 = arith.constant 0 : i32
    %c0_i32_2 = arith.constant 0 : i32
    return %c0_i32, %c0_i32_0, %c0_i32_1 : i32, i32, i32
  }
  func.func @transform_14(%arg0: i32) -> (i32, i32) {
    %c0_i32 = arith.constant 0 : i32
    %c0_i32_0 = arith.constant 0 : i32
    %c0_i32_1 = arith.constant 0 : i32
    return %c0_i32, %c0_i32_0 : i32, i32
  }
  func.func @transform_15(%arg0: i32) -> (i32, i32, i32) {
    %c0_i32 = arith.constant 0 : i32
    %c0_i32_0 = arith.constant 0 : i32
    %c0_i32_1 = arith.constant 0 : i32
    %c0_i32_2 = arith.constant 0 : i32
    return %c0_i32, %c0_i32_0, %c0_i32_1 : i32, i32, i32
  }
  func.func @transform_16(%arg0: i32) -> (i32, i32) {
    %c0_i32 = arith.constant 0 : i32
    %c0_i32_0 = arith.constant 0 : i32
    %c0_i32_1 = arith.constant 0 : i32
    return %c0_i32, %c0_i32_0 : i32, i32
  }
  func.func @transform_17(%arg0: i32) -> (i32, i32) {
    %c0_i32 = arith.constant 0 : i32
    %c0_i32_0 = arith.constant 0 : i32
    %c0_i32_1 = arith.constant 0 : i32
    return %c0_i32, %c0_i32_0 : i32, i32
  }
  func.func @transform_18(%arg0: i32) -> (i32, i32) {
    %c0_i32 = arith.constant 0 : i32
    %c0_i32_0 = arith.constant 0 : i32
    %c0_i32_1 = arith.constant 0 : i32
    return %c0_i32, %c0_i32_0 : i32, i32
  }
  func.func @transform_19(%arg0: i32) -> (i32, i32) {
    %c0_i32 = arith.constant 0 : i32
    %c0_i32_0 = arith.constant 0 : i32
    %c0_i32_1 = arith.constant 0 : i32
    return %c0_i32, %c0_i32_0 : i32, i32
  }
  func.func @transform_20(%arg0: i32) -> (i32, i32) {
    %c0_i32 = arith.constant 0 : i32
    %c0_i32_0 = arith.constant 0 : i32
    %c0_i32_1 = arith.constant 0 : i32
    return %c0_i32, %c0_i32_0 : i32, i32
  }
  func.func @transform_21(%arg0: i32) -> (i32, i32) {
    %c0_i32 = arith.constant 0 : i32
    %c0_i32_0 = arith.constant 0 : i32
    %c0_i32_1 = arith.constant 0 : i32
    return %c0_i32, %c0_i32_0 : i32, i32
  }
  func.func @transform_22(%arg0: i32) -> (i32, i32) {
    %c0_i32 = arith.constant 0 : i32
    %c0_i32_0 = arith.constant 0 : i32
    %c0_i32_1 = arith.constant 0 : i32
    return %c0_i32, %c0_i32_0 : i32, i32
  }
  func.func @transform_23(%arg0: i32) -> (i32, i32) {
    %c0_i32 = arith.constant 0 : i32
    %c0_i32_0 = arith.constant 0 : i32
    %c0_i32_1 = arith.constant 0 : i32
    return %c0_i32, %c0_i32_0 : i32, i32
  }
  func.func @transform_24(%arg0: i32) -> (i32, i32) {
    %c0_i32 = arith.constant 0 : i32
    %c0_i32_0 = arith.constant 0 : i32
    %c0_i32_1 = arith.constant 0 : i32
    return %c0_i32, %c0_i32_0 : i32, i32
  }
  func.func @transform_25(%arg0: i32) -> (i32, i32) {
    %c0_i32 = arith.constant 0 : i32
    %c0_i32_0 = arith.constant 0 : i32
    %c0_i32_1 = arith.constant 0 : i32
    return %c0_i32, %c0_i32_0 : i32, i32
  }
  func.func @transform_26(%arg0: i32) -> (i32, i32) {
    %c0_i32 = arith.constant 0 : i32
    %c0_i32_0 = arith.constant 0 : i32
    %c0_i32_1 = arith.constant 0 : i32
    return %c0_i32, %c0_i32_0 : i32, i32
  }
  func.func @transform_27(%arg0: i32) -> (i32, i32) {
    %c0_i32 = arith.constant 0 : i32
    %c0_i32_0 = arith.constant 0 : i32
    %c0_i32_1 = arith.constant 0 : i32
    return %c0_i32, %c0_i32_0 : i32, i32
  }
  func.func @transform_28(%arg0: i32) -> (i32, i32) {
    %c0_i32 = arith.constant 0 : i32
    %c0_i32_0 = arith.constant 0 : i32
    %c0_i32_1 = arith.constant 0 : i32
    return %c0_i32, %c0_i32_0 : i32, i32
  }
  func.func @transform_29(%arg0: i32) -> (i32, i32, i32) {
    %c0_i32 = arith.constant 0 : i32
    %c0_i32_0 = arith.constant 0 : i32
    %c0_i32_1 = arith.constant 0 : i32
    return %arg0, %c0_i32, %c0_i32_0 : i32, i32, i32
  }
}

</mosaic_0001>

<llo_original>
// kernel: tpu_custom_call.1
$region0: #{tpu_custom_call.1}
  #allocation0 [shape = 'u32[]', space=smem, size = 0x4, offset = 0x4, fixed_abs, tag = 'smem constant byte address 0x4 - core index']
  #allocation1 [shape = 'u32[72,128]{1,0:T(1,128)}', space=vmem, size = 0x9000, scoped, tag = 'internal scratch']
  %s0 = inlined_call_operand.smem [shape: u32[30], index: -1, kind: input, shape index: {}]
  %s1 = sld [smem:[%s0]]
  %s2 = scalar_lea.smem %s0, 1
  %s3 = sld [smem:[%s2]]
  %s4 = scalar_lea.smem %s0, 2
  %s5 = sld [smem:[%s4]]
  %s6 = scalar_lea.smem %s0, 3
  %s7 = sld [smem:[%s6]]
  %s8 = scalar_lea.smem %s0, 4
  %s9 = sld [smem:[%s8]]
  %s10 = scalar_lea.smem %s0, 5
  %s11 = sld [smem:[%s10]]
  %s12 = scalar_lea.smem %s0, 6
  %s13 = sld [smem:[%s12]]
  %s14 = scalar_lea.smem %s0, 7
  %s15 = sld [smem:[%s14]]
  %s16 = scalar_lea.smem %s0, 8
  %s17 = sld [smem:[%s16]]
  %s18 = scalar_lea.smem %s0, 9
  %s19 = sld [smem:[%s18]]
  %s20 = scalar_lea.smem %s0, 10
  %s21 = sld [smem:[%s20]]
  %s22 = scalar_lea.smem %s0, 11
  %s23 = sld [smem:[%s22]]
  %s24 = scalar_lea.smem %s0, 12
  %s25 = sld [smem:[%s24]]
  %s26 = scalar_lea.smem %s0, 13
  %s27 = sld [smem:[%s26]]
  %s28 = scalar_lea.smem %s0, 14
  %s29 = sld [smem:[%s28]]
  %s30 = scalar_lea.smem %s0, 15
  %s31 = sld [smem:[%s30]]
  %s32 = scalar_lea.smem %s0, 16
  %s33 = sld [smem:[%s32]]
  %s34 = scalar_lea.smem %s0, 17
  %s35 = sld [smem:[%s34]]
  %s36 = scalar_lea.smem %s0, 18
  %s37 = sld [smem:[%s36]]
  %s38 = scalar_lea.smem %s0, 19
  %s39 = sld [smem:[%s38]]
  %s40 = scalar_lea.smem %s0, 20
  %s41 = sld [smem:[%s40]]
  %s42 = scalar_lea.smem %s0, 21
  %s43 = sld [smem:[%s42]]
  %s44 = scalar_lea.smem %s0, 22
  %s45 = sld [smem:[%s44]]
  %s46 = scalar_lea.smem %s0, 23
  %s47 = sld [smem:[%s46]]
  %s48 = scalar_lea.smem %s0, 24
  %s49 = sld [smem:[%s48]]
  %s50 = scalar_lea.smem %s0, 25
  %s51 = sld [smem:[%s50]]
  %s52 = scalar_lea.smem %s0, 26
  %s53 = sld [smem:[%s52]]
  %s54 = scalar_lea.smem %s0, 27
  %s55 = sld [smem:[%s54]]
  %s56 = scalar_lea.smem %s0, 28
  %s57 = sld [smem:[%s56]]
  %s58 = scalar_lea.smem %s0, 29
  %s59 = sld [smem:[%s58]]
  %s60 = sld [smem:[#allocation0]]
  $region149: #{tpu_custom_call.1} parent=0
    _
  %s62 = ssub.s32 1, %s60
  %s63 = scalar_select 0, %s62, %s60
  $region1: #{tpu_custom_call.1} parent=0
    #allocation2 [shape = 'u8[8192]{0}', space=vmem, size = 0x2000, scoped, tag = 'output window, operand 0']
    #allocation3 [shape = 's32[2]{0}', space=sflag, size = 0x8, scoped, tag = 'scoped memory for tpu_custom_call.1']
    %64 = vsyncpa [#allocation3], 0
    %s65 = scalar_lea.sflag [#allocation3], 1
    %66 = vsyncpa %s65, 0
    loop: start=0, step=1, limit=4
    $region2: #{tpu_custom_call.1} parent=1 // loop_pre_header
      _
    $region3: #{tpu_custom_call.1} parent=1 // loop_header
      %s68 = sphi 0, %s72
      %p69 = scmp.ge.s32.totalorder %s68, 4
      %s78 = sphi 0, %s80
      %s81 = sphi 0, %s78
      %s82 = sphi 0, %s81
      %s98 = sphi 0, %s82
      %s102 = sphi 0, %s102
      %s104 = sphi 0, %s102
      %s105 = sphi 0, %s104
      %s119 = sphi 0, %s105
      %s123 = sphi 0, %s123
      %s125 = sphi 0, %s123
      %s126 = sphi 0, %s125
      %s140 = sphi 0, %s126
      %s144 = sphi 0, %s144
      %s146 = sphi 0, %s144
      %s147 = sphi 0, %s146
      %s161 = sphi 0, %s147
      %s165 = sphi 0, %s165
      %s167 = sphi 0, %s165
      %s168 = sphi 0, %s167
      %s182 = sphi 0, %s168
      %s186 = sphi 0, %s186
      %s188 = sphi 0, %s186
      %s189 = sphi 0, %s188
      %s203 = sphi 0, %s189
      %s207 = sphi 0, %s207
      %s209 = sphi 0, %s207
      %s210 = sphi 0, %s209
      %s224 = sphi 0, %s210
      %s228 = sphi 0, %s228
      %s230 = sphi 0, %s228
      %s231 = sphi 0, %s230
      %s245 = sphi 0, %s231
      %s249 = sphi 0, %s249
      %s251 = sphi 0, %s249
      %s252 = sphi 0, %s251
      %s266 = sphi 0, %s252
      %s270 = sphi 0, %s270
      %s272 = sphi 0, %s270
      %s273 = sphi 0, %s272
      %s287 = sphi 0, %s273
      %s291 = sphi 0, %s291
      %s293 = sphi 0, %s291
      %s294 = sphi 0, %s293
      %s308 = sphi 0, %s294
      %s312 = sphi 0, %s312
      %s314 = sphi 0, %s312
      %s315 = sphi 0, %s314
      %s329 = sphi 0, %s315
      %s333 = sphi 0, %s333
      %s335 = sphi 0, %s333
      %s336 = sphi 0, %s335
      %s350 = sphi 0, %s336
      %s354 = sphi 0, %s354
      %s356 = sphi 0, %s354
      %s357 = sphi 0, %s356
      %s371 = sphi 0, %s357
      %s375 = sphi 0, %s375
      %s377 = sphi 0, %s375
      %s378 = sphi 0, %s377
      %s392 = sphi 0, %s378
      %s396 = sphi 0, %s396
      %s398 = sphi 0, %s396
      %s399 = sphi 0, %s398
      %s413 = sphi 0, %s399
      %s417 = sphi 0, %s417
      %s419 = sphi 0, %s417
      %s420 = sphi 0, %s419
      %s434 = sphi 0, %s420
      %s438 = sphi 0, %s438
      %s440 = sphi 0, %s438
      %s441 = sphi 0, %s440
      %s455 = sphi 0, %s441
      %s459 = sphi 0, %s459
      %s461 = sphi 0, %s459
      %s462 = sphi 0, %s461
      %s476 = sphi 0, %s462
      %s480 = sphi 0, %s480
      %s482 = sphi 0, %s480
      %s483 = sphi 0, %s482
      %s497 = sphi 0, %s483
      %s501 = sphi 0, %s501
      %s503 = sphi 0, %s501
      %s504 = sphi 0, %s503
      %s518 = sphi 0, %s504
      %s522 = sphi 0, %s522
      %s524 = sphi 0, %s522
      %s525 = sphi 0, %s524
      %s539 = sphi 0, %s525
      %s543 = sphi 0, %s543
      %s545 = sphi 0, %s543
      %s546 = sphi 0, %s545
      %s560 = sphi 0, %s546
      %s564 = sphi 0, %s564
      %s566 = sphi 0, %s564
      %s567 = sphi 0, %s566
      %s581 = sphi 0, %s567
      %s585 = sphi 0, %s585
      %s587 = sphi 0, %s585
      %s588 = sphi 0, %s587
      %s602 = sphi 0, %s588
      %s606 = sphi 0, %s606
      %s608 = sphi 0, %s606
      %s609 = sphi 0, %s608
      %s623 = sphi 0, %s609
      %s627 = sphi 0, %s627
      %s629 = sphi 0, %s627
      %s630 = sphi 0, %s629
      %s644 = sphi 0, %s630
      %s648 = sphi 0, %s648
      %s650 = sphi 0, %s648
      %s651 = sphi 0, %s650
      %s665 = sphi 0, %s651
      %s669 = sphi 0, %s669
      %s671 = sphi 0, %s669
      %s672 = sphi 0, %s671
      %s686 = sphi 0, %s672
      %s692 = sphi 0, %s694
      %s695 = sphi 0, %s692
      %s696 = sphi 0, %s695
      %s712 = sphi 0, %s696
    $region4: #{tpu_custom_call.1} parent=1 // loop_header_branch
      %71 = sbr.rel (%p69) target = $region8
    $region5: #{tpu_custom_call.1} parent=1 // loop_body
      %s73 = ssub.s32 %s68, 1
      %s74 = ssub.s32 %s68, 2
      %s75 = sadd.s32 %s68, 1
      %s76 = ssub.s32 %s68, %s75
      %p77 = scmp.eq.s32.totalorder %s76, 0
      %s79 = sadd.s32 %s78, 1
      %s80 = scalar_select %p77, %s78, %s79
      %p83 = pneg %p77
      %p84 = scmp.eq.s32.totalorder %s68, 1
      %p85 = por %p83, %p84
      %p86 = scmp.ne.s32.totalorder %s78, %s81
      %p87 = scmp.eq.s32.totalorder %s68, 0
      %p88 = por %p86, %p87
      %p89 = scmp.ne.s32.totalorder %s78, %s81
      %p90 = scmp.eq.s32.totalorder %s73, 1
      %p91 = por %p89, %p90
      %p92 = scmp.ne.s32.totalorder %s81, %s82
      %p93 = scmp.eq.s32.totalorder %s73, 0
      %p94 = por %p92, %p93
      %p95 = scmp.ne.s32.totalorder %s81, %s82
      %p96 = scmp.eq.s32.totalorder %s74, 1
      %p97 = por %p95, %p96
      %p99 = scmp.ne.s32.totalorder %s82, %s98
      %p100 = scmp.eq.s32.totalorder %s74, 0
      %p101 = por %p99, %p100
      %s103 = sadd.s32 %s102, 1
      %p106 = scmp.eq.s32.totalorder %s68, 1
      %p107 = scmp.ne.s32.totalorder %s102, %s104
      %p108 = scmp.eq.s32.totalorder %s68, 0
      %p109 = por %p107, %p108
      %p110 = scmp.ne.s32.totalorder %s102, %s104
      %p111 = scmp.eq.s32.totalorder %s73, 1
      %p112 = por %p110, %p111
      %p113 = scmp.ne.s32.totalorder %s104, %s105
      %p114 = scmp.eq.s32.totalorder %s73, 0
      %p115 = por %p113, %p114
      %p116 = scmp.ne.s32.totalorder %s104, %s105
      %p117 = scmp.eq.s32.totalorder %s74, 1
      %p118 = por %p116, %p117
      %p120 = scmp.ne.s32.totalorder %s105, %s119
      %p121 = scmp.eq.s32.totalorder %s74, 0
      %p122 = por %p120, %p121
      %s124 = sadd.s32 %s123, 1
      %p127 = scmp.eq.s32.totalorder %s68, 1
      %p128 = scmp.ne.s32.totalorder %s123, %s125
      %p129 = scmp.eq.s32.totalorder %s68, 0
      %p130 = por %p128, %p129
      %p131 = scmp.ne.s32.totalorder %s123, %s125
      %p132 = scmp.eq.s32.totalorder %s73, 1
      %p133 = por %p131, %p132
      %p134 = scmp.ne.s32.totalorder %s125, %s126
      %p135 = scmp.eq.s32.totalorder %s73, 0
      %p136 = por %p134, %p135
      %p137 = scmp.ne.s32.totalorder %s125, %s126
      %p138 = scmp.eq.s32.totalorder %s74, 1
      %p139 = por %p137, %p138
      %p141 = scmp.ne.s32.totalorder %s126, %s140
      %p142 = scmp.eq.s32.totalorder %s74, 0
      %p143 = por %p141, %p142
      %s145 = sadd.s32 %s144, 1
      %p148 = scmp.eq.s32.totalorder %s68, 1
      %p149 = scmp.ne.s32.totalorder %s144, %s146
      %p150 = scmp.eq.s32.totalorder %s68, 0
      %p151 = por %p149, %p150
      %p152 = scmp.ne.s32.totalorder %s144, %s146
      %p153 = scmp.eq.s32.totalorder %s73, 1
      %p154 = por %p152, %p153
      %p155 = scmp.ne.s32.totalorder %s146, %s147
      %p156 = scmp.eq.s32.totalorder %s73, 0
      %p157 = por %p155, %p156
      %p158 = scmp.ne.s32.totalorder %s146, %s147
      %p159 = scmp.eq.s32.totalorder %s74, 1
      %p160 = por %p158, %p159
      %p162 = scmp.ne.s32.totalorder %s147, %s161
      %p163 = scmp.eq.s32.totalorder %s74, 0
      %p164 = por %p162, %p163
      %s166 = sadd.s32 %s165, 1
      %p169 = scmp.eq.s32.totalorder %s68, 1
      %p170 = scmp.ne.s32.totalorder %s165, %s167
      %p171 = scmp.eq.s32.totalorder %s68, 0
      %p172 = por %p170, %p171
      %p173 = scmp.ne.s32.totalorder %s165, %s167
      %p174 = scmp.eq.s32.totalorder %s73, 1
      %p175 = por %p173, %p174
      %p176 = scmp.ne.s32.totalorder %s167, %s168
      %p177 = scmp.eq.s32.totalorder %s73, 0
      %p178 = por %p176, %p177
      %p179 = scmp.ne.s32.totalorder %s167, %s168
      %p180 = scmp.eq.s32.totalorder %s74, 1
      %p181 = por %p179, %p180
      %p183 = scmp.ne.s32.totalorder %s168, %s182
      %p184 = scmp.eq.s32.totalorder %s74, 0
      %p185 = por %p183, %p184
      %s187 = sadd.s32 %s186, 1
      %p190 = scmp.eq.s32.totalorder %s68, 1
      %p191 = scmp.ne.s32.totalorder %s186, %s188
      %p192 = scmp.eq.s32.totalorder %s68, 0
      %p193 = por %p191, %p192
      %p194 = scmp.ne.s32.totalorder %s186, %s188
      %p195 = scmp.eq.s32.totalorder %s73, 1
      %p196 = por %p194, %p195
      %p197 = scmp.ne.s32.totalorder %s188, %s189
      %p198 = scmp.eq.s32.totalorder %s73, 0
      %p199 = por %p197, %p198
      %p200 = scmp.ne.s32.totalorder %s188, %s189
      %p201 = scmp.eq.s32.totalorder %s74, 1
      %p202 = por %p200, %p201
      %p204 = scmp.ne.s32.totalorder %s189, %s203
      %p205 = scmp.eq.s32.totalorder %s74, 0
      %p206 = por %p204, %p205
      %s208 = sadd.s32 %s207, 1
      %p211 = scmp.eq.s32.totalorder %s68, 1
      %p212 = scmp.ne.s32.totalorder %s207, %s209
      %p213 = scmp.eq.s32.totalorder %s68, 0
      %p214 = por %p212, %p213
      %p215 = scmp.ne.s32.totalorder %s207, %s209
      %p216 = scmp.eq.s32.totalorder %s73, 1
      %p217 = por %p215, %p216
      %p218 = scmp.ne.s32.totalorder %s209, %s210
      %p219 = scmp.eq.s32.totalorder %s73, 0
      %p220 = por %p218, %p219
      %p221 = scmp.ne.s32.totalorder %s209, %s210
      %p222 = scmp.eq.s32.totalorder %s74, 1
      %p223 = por %p221, %p222
      %p225 = scmp.ne.s32.totalorder %s210, %s224
      %p226 = scmp.eq.s32.totalorder %s74, 0
      %p227 = por %p225, %p226
      %s229 = sadd.s32 %s228, 1
      %p232 = scmp.eq.s32.totalorder %s68, 1
      %p233 = scmp.ne.s32.totalorder %s228, %s230
      %p234 = scmp.eq.s32.totalorder %s68, 0
      %p235 = por %p233, %p234
      %p236 = scmp.ne.s32.totalorder %s228, %s230
      %p237 = scmp.eq.s32.totalorder %s73, 1
      %p238 = por %p236, %p237
      %p239 = scmp.ne.s32.totalorder %s230, %s231
      %p240 = scmp.eq.s32.totalorder %s73, 0
      %p241 = por %p239, %p240
      %p242 = scmp.ne.s32.totalorder %s230, %s231
      %p243 = scmp.eq.s32.totalorder %s74, 1
      %p244 = por %p242, %p243
      %p246 = scmp.ne.s32.totalorder %s231, %s245
      %p247 = scmp.eq.s32.totalorder %s74, 0
      %p248 = por %p246, %p247
      %s250 = sadd.s32 %s249, 1
      %p253 = scmp.eq.s32.totalorder %s68, 1
      %p254 = scmp.ne.s32.totalorder %s249, %s251
      %p255 = scmp.eq.s32.totalorder %s68, 0
      %p256 = por %p254, %p255
      %p257 = scmp.ne.s32.totalorder %s249, %s251
      %p258 = scmp.eq.s32.totalorder %s73, 1
      %p259 = por %p257, %p258
      %p260 = scmp.ne.s32.totalorder %s251, %s252
      %p261 = scmp.eq.s32.totalorder %s73, 0
      %p262 = por %p260, %p261
      %p263 = scmp.ne.s32.totalorder %s251, %s252
      %p264 = scmp.eq.s32.totalorder %s74, 1
      %p265 = por %p263, %p264
      %p267 = scmp.ne.s32.totalorder %s252, %s266
      %p268 = scmp.eq.s32.totalorder %s74, 0
      %p269 = por %p267, %p268
      %s271 = sadd.s32 %s270, 1
      %p274 = scmp.eq.s32.totalorder %s68, 1
      %p275 = scmp.ne.s32.totalorder %s270, %s272
      %p276 = scmp.eq.s32.totalorder %s68, 0
      %p277 = por %p275, %p276
      %p278 = scmp.ne.s32.totalorder %s270, %s272
      %p279 = scmp.eq.s32.totalorder %s73, 1
      %p280 = por %p278, %p279
      %p281 = scmp.ne.s32.totalorder %s272, %s273
      %p282 = scmp.eq.s32.totalorder %s73, 0
      %p283 = por %p281, %p282
      %p284 = scmp.ne.s32.totalorder %s272, %s273
      %p285 = scmp.eq.s32.totalorder %s74, 1
      %p286 = por %p284, %p285
      %p288 = scmp.ne.s32.totalorder %s273, %s287
      %p289 = scmp.eq.s32.totalorder %s74, 0
      %p290 = por %p288, %p289
      %s292 = sadd.s32 %s291, 1
      %p295 = scmp.eq.s32.totalorder %s68, 1
      %p296 = scmp.ne.s32.totalorder %s291, %s293
      %p297 = scmp.eq.s32.totalorder %s68, 0
      %p298 = por %p296, %p297
      %p299 = scmp.ne.s32.totalorder %s291, %s293
      %p300 = scmp.eq.s32.totalorder %s73, 1
      %p301 = por %p299, %p300
      %p302 = scmp.ne.s32.totalorder %s293, %s294
      %p303 = scmp.eq.s32.totalorder %s73, 0
      %p304 = por %p302, %p303
      %p305 = scmp.ne.s32.totalorder %s293, %s294
      %p306 = scmp.eq.s32.totalorder %s74, 1
      %p307 = por %p305, %p306
      %p309 = scmp.ne.s32.totalorder %s294, %s308
      %p310 = scmp.eq.s32.totalorder %s74, 0
      %p311 = por %p309, %p310
      %s313 = sadd.s32 %s312, 1
      %p316 = scmp.eq.s32.totalorder %s68, 1
      %p317 = scmp.ne.s32.totalorder %s312, %s314
      %p318 = scmp.eq.s32.totalorder %s68, 0
      %p319 = por %p317, %p318
      %p320 = scmp.ne.s32.totalorder %s312, %s314
      %p321 = scmp.eq.s32.totalorder %s73, 1
      %p322 = por %p320, %p321
      %p323 = scmp.ne.s32.totalorder %s314, %s315
      %p324 = scmp.eq.s32.totalorder %s73, 0
      %p325 = por %p323, %p324
      %p326 = scmp.ne.s32.totalorder %s314, %s315
      %p327 = scmp.eq.s32.totalorder %s74, 1
      %p328 = por %p326, %p327
      %p330 = scmp.ne.s32.totalorder %s315, %s329
      %p331 = scmp.eq.s32.totalorder %s74, 0
      %p332 = por %p330, %p331
      %s334 = sadd.s32 %s333, 1
      %p337 = scmp.eq.s32.totalorder %s68, 1
      %p338 = scmp.ne.s32.totalorder %s333, %s335
      %p339 = scmp.eq.s32.totalorder %s68, 0
      %p340 = por %p338, %p339
      %p341 = scmp.ne.s32.totalorder %s333, %s335
      %p342 = scmp.eq.s32.totalorder %s73, 1
      %p343 = por %p341, %p342
      %p344 = scmp.ne.s32.totalorder %s335, %s336
      %p345 = scmp.eq.s32.totalorder %s73, 0
      %p346 = por %p344, %p345
      %p347 = scmp.ne.s32.totalorder %s335, %s336
      %p348 = scmp.eq.s32.totalorder %s74, 1
      %p349 = por %p347, %p348
      %p351 = scmp.ne.s32.totalorder %s336, %s350
      %p352 = scmp.eq.s32.totalorder %s74, 0
      %p353 = por %p351, %p352
      %s355 = sadd.s32 %s354, 1
      %p358 = scmp.eq.s32.totalorder %s68, 1
      %p359 = scmp.ne.s32.totalorder %s354, %s356
      %p360 = scmp.eq.s32.totalorder %s68, 0
      %p361 = por %p359, %p360
      %p362 = scmp.ne.s32.totalorder %s354, %s356
      %p363 = scmp.eq.s32.totalorder %s73, 1
      %p364 = por %p362, %p363
      %p365 = scmp.ne.s32.totalorder %s356, %s357
      %p366 = scmp.eq.s32.totalorder %s73, 0
      %p367 = por %p365, %p366
      %p368 = scmp.ne.s32.totalorder %s356, %s357
      %p369 = scmp.eq.s32.totalorder %s74, 1
      %p370 = por %p368, %p369
      %p372 = scmp.ne.s32.totalorder %s357, %s371
      %p373 = scmp.eq.s32.totalorder %s74, 0
      %p374 = por %p372, %p373
      %s376 = sadd.s32 %s375, 1
      %p379 = scmp.eq.s32.totalorder %s68, 1
      %p380 = scmp.ne.s32.totalorder %s375, %s377
      %p381 = scmp.eq.s32.totalorder %s68, 0
      %p382 = por %p380, %p381
      %p383 = scmp.ne.s32.totalorder %s375, %s377
      %p384 = scmp.eq.s32.totalorder %s73, 1
      %p385 = por %p383, %p384
      %p386 = scmp.ne.s32.totalorder %s377, %s378
      %p387 = scmp.eq.s32.totalorder %s73, 0
      %p388 = por %p386, %p387
      %p389 = scmp.ne.s32.totalorder %s377, %s378
      %p390 = scmp.eq.s32.totalorder %s74, 1
      %p391 = por %p389, %p390
      %p393 = scmp.ne.s32.totalorder %s378, %s392
      %p394 = scmp.eq.s32.totalorder %s74, 0
      %p395 = por %p393, %p394
      %s397 = sadd.s32 %s396, 1
      %p400 = scmp.eq.s32.totalorder %s68, 1
      %p401 = scmp.ne.s32.totalorder %s396, %s398
      %p402 = scmp.eq.s32.totalorder %s68, 0
      %p403 = por %p401, %p402
      %p404 = scmp.ne.s32.totalorder %s396, %s398
      %p405 = scmp.eq.s32.totalorder %s73, 1
      %p406 = por %p404, %p405
      %p407 = scmp.ne.s32.totalorder %s398, %s399
      %p408 = scmp.eq.s32.totalorder %s73, 0
      %p409 = por %p407, %p408
      %p410 = scmp.ne.s32.totalorder %s398, %s399
      %p411 = scmp.eq.s32.totalorder %s74, 1
      %p412 = por %p410, %p411
      %p414 = scmp.ne.s32.totalorder %s399, %s413
      %p415 = scmp.eq.s32.totalorder %s74, 0
      %p416 = por %p414, %p415
      %s418 = sadd.s32 %s417, 1
      %p421 = scmp.eq.s32.totalorder %s68, 1
      %p422 = scmp.ne.s32.totalorder %s417, %s419
      %p423 = scmp.eq.s32.totalorder %s68, 0
      %p424 = por %p422, %p423
      %p425 = scmp.ne.s32.totalorder %s417, %s419
      %p426 = scmp.eq.s32.totalorder %s73, 1
      %p427 = por %p425, %p426
      %p428 = scmp.ne.s32.totalorder %s419, %s420
      %p429 = scmp.eq.s32.totalorder %s73, 0
      %p430 = por %p428, %p429
      %p431 = scmp.ne.s32.totalorder %s419, %s420
      %p432 = scmp.eq.s32.totalorder %s74, 1
      %p433 = por %p431, %p432
      %p435 = scmp.ne.s32.totalorder %s420, %s434
      %p436 = scmp.eq.s32.totalorder %s74, 0
      %p437 = por %p435, %p436
      %s439 = sadd.s32 %s438, 1
      %p442 = scmp.eq.s32.totalorder %s68, 1
      %p443 = scmp.ne.s32.totalorder %s438, %s440
      %p444 = scmp.eq.s32.totalorder %s68, 0
      %p445 = por %p443, %p444
      %p446 = scmp.ne.s32.totalorder %s438, %s440
      %p447 = scmp.eq.s32.totalorder %s73, 1
      %p448 = por %p446, %p447
      %p449 = scmp.ne.s32.totalorder %s440, %s441
      %p450 = scmp.eq.s32.totalorder %s73, 0
      %p451 = por %p449, %p450
      %p452 = scmp.ne.s32.totalorder %s440, %s441
      %p453 = scmp.eq.s32.totalorder %s74, 1
      %p454 = por %p452, %p453
      %p456 = scmp.ne.s32.totalorder %s441, %s455
      %p457 = scmp.eq.s32.totalorder %s74, 0
      %p458 = por %p456, %p457
      %s460 = sadd.s32 %s459, 1
      %p463 = scmp.eq.s32.totalorder %s68, 1
      %p464 = scmp.ne.s32.totalorder %s459, %s461
      %p465 = scmp.eq.s32.totalorder %s68, 0
      %p466 = por %p464, %p465
      %p467 = scmp.ne.s32.totalorder %s459, %s461
      %p468 = scmp.eq.s32.totalorder %s73, 1
      %p469 = por %p467, %p468
      %p470 = scmp.ne.s32.totalorder %s461, %s462
      %p471 = scmp.eq.s32.totalorder %s73, 0
      %p472 = por %p470, %p471
      %p473 = scmp.ne.s32.totalorder %s461, %s462
      %p474 = scmp.eq.s32.totalorder %s74, 1
      %p475 = por %p473, %p474
      %p477 = scmp.ne.s32.totalorder %s462, %s476
      %p478 = scmp.eq.s32.totalorder %s74, 0
      %p479 = por %p477, %p478
      %s481 = sadd.s32 %s480, 1
      %p484 = scmp.eq.s32.totalorder %s68, 1
      %p485 = scmp.ne.s32.totalorder %s480, %s482
      %p486 = scmp.eq.s32.totalorder %s68, 0
      %p487 = por %p485, %p486
      %p488 = scmp.ne.s32.totalorder %s480, %s482
      %p489 = scmp.eq.s32.totalorder %s73, 1
      %p490 = por %p488, %p489
      %p491 = scmp.ne.s32.totalorder %s482, %s483
      %p492 = scmp.eq.s32.totalorder %s73, 0
      %p493 = por %p491, %p492
      %p494 = scmp.ne.s32.totalorder %s482, %s483
      %p495 = scmp.eq.s32.totalorder %s74, 1
      %p496 = por %p494, %p495
      %p498 = scmp.ne.s32.totalorder %s483, %s497
      %p499 = scmp.eq.s32.totalorder %s74, 0
      %p500 = por %p498, %p499
      %s502 = sadd.s32 %s501, 1
      %p505 = scmp.eq.s32.totalorder %s68, 1
      %p506 = scmp.ne.s32.totalorder %s501, %s503
      %p507 = scmp.eq.s32.totalorder %s68, 0
      %p508 = por %p506, %p507
      %p509 = scmp.ne.s32.totalorder %s501, %s503
      %p510 = scmp.eq.s32.totalorder %s73, 1
      %p511 = por %p509, %p510
      %p512 = scmp.ne.s32.totalorder %s503, %s504
      %p513 = scmp.eq.s32.totalorder %s73, 0
      %p514 = por %p512, %p513
      %p515 = scmp.ne.s32.totalorder %s503, %s504
      %p516 = scmp.eq.s32.totalorder %s74, 1
      %p517 = por %p515, %p516
      %p519 = scmp.ne.s32.totalorder %s504, %s518
      %p520 = scmp.eq.s32.totalorder %s74, 0
      %p521 = por %p519, %p520
      %s523 = sadd.s32 %s522, 1
      %p526 = scmp.eq.s32.totalorder %s68, 1
      %p527 = scmp.ne.s32.totalorder %s522, %s524
      %p528 = scmp.eq.s32.totalorder %s68, 0
      %p529 = por %p527, %p528
      %p530 = scmp.ne.s32.totalorder %s522, %s524
      %p531 = scmp.eq.s32.totalorder %s73, 1
      %p532 = por %p530, %p531
      %p533 = scmp.ne.s32.totalorder %s524, %s525
      %p534 = scmp.eq.s32.totalorder %s73, 0
      %p535 = por %p533, %p534
      %p536 = scmp.ne.s32.totalorder %s524, %s525
      %p537 = scmp.eq.s32.totalorder %s74, 1
      %p538 = por %p536, %p537
      %p540 = scmp.ne.s32.totalorder %s525, %s539
      %p541 = scmp.eq.s32.totalorder %s74, 0
      %p542 = por %p540, %p541
      %s544 = sadd.s32 %s543, 1
      %p547 = scmp.eq.s32.totalorder %s68, 1
      %p548 = scmp.ne.s32.totalorder %s543, %s545
      %p549 = scmp.eq.s32.totalorder %s68, 0
      %p550 = por %p548, %p549
      %p551 = scmp.ne.s32.totalorder %s543, %s545
      %p552 = scmp.eq.s32.totalorder %s73, 1
      %p553 = por %p551, %p552
      %p554 = scmp.ne.s32.totalorder %s545, %s546
      %p555 = scmp.eq.s32.totalorder %s73, 0
      %p556 = por %p554, %p555
      %p557 = scmp.ne.s32.totalorder %s545, %s546
      %p558 = scmp.eq.s32.totalorder %s74, 1
      %p559 = por %p557, %p558
      %p561 = scmp.ne.s32.totalorder %s546, %s560
      %p562 = scmp.eq.s32.totalorder %s74, 0
      %p563 = por %p561, %p562
      %s565 = sadd.s32 %s564, 1
      %p568 = scmp.eq.s32.totalorder %s68, 1
      %p569 = scmp.ne.s32.totalorder %s564, %s566
      %p570 = scmp.eq.s32.totalorder %s68, 0
      %p571 = por %p569, %p570
      %p572 = scmp.ne.s32.totalorder %s564, %s566
      %p573 = scmp.eq.s32.totalorder %s73, 1
      %p574 = por %p572, %p573
      %p575 = scmp.ne.s32.totalorder %s566, %s567
      %p576 = scmp.eq.s32.totalorder %s73, 0
      %p577 = por %p575, %p576
      %p578 = scmp.ne.s32.totalorder %s566, %s567
      %p579 = scmp.eq.s32.totalorder %s74, 1
      %p580 = por %p578, %p579
      %p582 = scmp.ne.s32.totalorder %s567, %s581
      %p583 = scmp.eq.s32.totalorder %s74, 0
      %p584 = por %p582, %p583
      %s586 = sadd.s32 %s585, 1
      %p589 = scmp.eq.s32.totalorder %s68, 1
      %p590 = scmp.ne.s32.totalorder %s585, %s587
      %p591 = scmp.eq.s32.totalorder %s68, 0
      %p592 = por %p590, %p591
      %p593 = scmp.ne.s32.totalorder %s585, %s587
      %p594 = scmp.eq.s32.totalorder %s73, 1
      %p595 = por %p593, %p594
      %p596 = scmp.ne.s32.totalorder %s587, %s588
      %p597 = scmp.eq.s32.totalorder %s73, 0
      %p598 = por %p596, %p597
      %p599 = scmp.ne.s32.totalorder %s587, %s588
      %p600 = scmp.eq.s32.totalorder %s74, 1
      %p601 = por %p599, %p600
      %p603 = scmp.ne.s32.totalorder %s588, %s602
      %p604 = scmp.eq.s32.totalorder %s74, 0
      %p605 = por %p603, %p604
      %s607 = sadd.s32 %s606, 1
      %p610 = scmp.eq.s32.totalorder %s68, 1
      %p611 = scmp.ne.s32.totalorder %s606, %s608
      %p612 = scmp.eq.s32.totalorder %s68, 0
      %p613 = por %p611, %p612
      %p614 = scmp.ne.s32.totalorder %s606, %s608
      %p615 = scmp.eq.s32.totalorder %s73, 1
      %p616 = por %p614, %p615
      %p617 = scmp.ne.s32.totalorder %s608, %s609
      %p618 = scmp.eq.s32.totalorder %s73, 0
      %p619 = por %p617, %p618
      %p620 = scmp.ne.s32.totalorder %s608, %s609
      %p621 = scmp.eq.s32.totalorder %s74, 1
      %p622 = por %p620, %p621
      %p624 = scmp.ne.s32.totalorder %s609, %s623
      %p625 = scmp.eq.s32.totalorder %s74, 0
      %p626 = por %p624, %p625
      %s628 = sadd.s32 %s627, 1
      %p631 = scmp.eq.s32.totalorder %s68, 1
      %p632 = scmp.ne.s32.totalorder %s627, %s629
      %p633 = scmp.eq.s32.totalorder %s68, 0
      %p634 = por %p632, %p633
      %p635 = scmp.ne.s32.totalorder %s627, %s629
      %p636 = scmp.eq.s32.totalorder %s73, 1
      %p637 = por %p635, %p636
      %p638 = scmp.ne.s32.totalorder %s629, %s630
      %p639 = scmp.eq.s32.totalorder %s73, 0
      %p640 = por %p638, %p639
      %p641 = scmp.ne.s32.totalorder %s629, %s630
      %p642 = scmp.eq.s32.totalorder %s74, 1
      %p643 = por %p641, %p642
      %p645 = scmp.ne.s32.totalorder %s630, %s644
      %p646 = scmp.eq.s32.totalorder %s74, 0
      %p647 = por %p645, %p646
      %s649 = sadd.s32 %s648, 1
      %p652 = scmp.eq.s32.totalorder %s68, 1
      %p653 = scmp.ne.s32.totalorder %s648, %s650
      %p654 = scmp.eq.s32.totalorder %s68, 0
      %p655 = por %p653, %p654
      %p656 = scmp.ne.s32.totalorder %s648, %s650
      %p657 = scmp.eq.s32.totalorder %s73, 1
      %p658 = por %p656, %p657
      %p659 = scmp.ne.s32.totalorder %s650, %s651
      %p660 = scmp.eq.s32.totalorder %s73, 0
      %p661 = por %p659, %p660
      %p662 = scmp.ne.s32.totalorder %s650, %s651
      %p663 = scmp.eq.s32.totalorder %s74, 1
      %p664 = por %p662, %p663
      %p666 = scmp.ne.s32.totalorder %s651, %s665
      %p667 = scmp.eq.s32.totalorder %s74, 0
      %p668 = por %p666, %p667
      %s670 = sadd.s32 %s669, 1
      %p673 = scmp.eq.s32.totalorder %s68, 1
      %p674 = scmp.ne.s32.totalorder %s669, %s671
      %p675 = scmp.eq.s32.totalorder %s68, 0
      %p676 = por %p674, %p675
      %p677 = scmp.ne.s32.totalorder %s669, %s671
      %p678 = scmp.eq.s32.totalorder %s73, 1
      %p679 = por %p677, %p678
      %p680 = scmp.ne.s32.totalorder %s671, %s672
      %p681 = scmp.eq.s32.totalorder %s73, 0
      %p682 = por %p680, %p681
      %p683 = scmp.ne.s32.totalorder %s671, %s672
      %p684 = scmp.eq.s32.totalorder %s74, 1
      %p685 = por %p683, %p684
      %p687 = scmp.ne.s32.totalorder %s672, %s686
      %p688 = scmp.eq.s32.totalorder %s74, 0
      %p689 = por %p687, %p688
      %s690 = ssub.s32 %s68, %s75
      %p691 = scmp.eq.s32.totalorder %s690, 0
      %s693 = sadd.s32 %s692, 1
      %s694 = scalar_select %p691, %s692, %s693
      %p697 = pneg %p691
      %p698 = scmp.eq.s32.totalorder %s68, 1
      %p699 = por %p697, %p698
      %p700 = scmp.ne.s32.totalorder %s692, %s695
      %p701 = scmp.eq.s32.totalorder %s68, 0
      %p702 = por %p700, %p701
      %p703 = scmp.ne.s32.totalorder %s692, %s695
      %p704 = scmp.eq.s32.totalorder %s73, 1
      %p705 = por %p703, %p704
      %p706 = scmp.ne.s32.totalorder %s695, %s696
      %p707 = scmp.eq.s32.totalorder %s73, 0
      %p708 = por %p706, %p707
      %p709 = scmp.ne.s32.totalorder %s695, %s696
      %p710 = scmp.eq.s32.totalorder %s74, 1
      %p711 = por %p709, %p710
      %p713 = scmp.ne.s32.totalorder %s696, %s712
      %p714 = scmp.eq.s32.totalorder %s74, 0
      %p715 = por %p713, %p714
      %p716 = scmp.le.s32.totalorder 1, %s68
      %p717 = scmp.lt.s32.totalorder %s68, 3
      %p718 = pnand %p716, %p717
      %p719 = pneg %p718
      // Predicated region
      $region9: #{tpu_custom_call.1} parent=5 // pred_check
        _
      $region10: #{tpu_custom_call.1} parent=5 // pred_check_branch
        %721 = sbr.rel (%p718) target = $region12
      $region11: #{tpu_custom_call.1} parent=5 // pred_region
        %s722 = ssub.s32 %s68, 1
        // Predicated region
        $region13: #{tpu_custom_call.1} parent=11 // pred_check
          %p723 = pneg %p115
        $region14: #{tpu_custom_call.1} parent=11 // pred_check_branch
          %725 = sbr.rel (%p723) target = $region16
        $region15: #{tpu_custom_call.1} parent=11 // pred_region
          _
        $region16: #{tpu_custom_call.1} parent=11 // pred_fallthru
          _
        // Predicated region
        $region17: #{tpu_custom_call.1} parent=11 // pred_check
          %p726 = pneg %p136
        $region18: #{tpu_custom_call.1} parent=11 // pred_check_branch
          %728 = sbr.rel (%p726) target = $region20
        $region19: #{tpu_custom_call.1} parent=11 // pred_region
          _
        $region20: #{tpu_custom_call.1} parent=11 // pred_fallthru
          _
        // Predicated region
        $region21: #{tpu_custom_call.1} parent=11 // pred_check
          %p729 = pneg %p157
        $region22: #{tpu_custom_call.1} parent=11 // pred_check_branch
          %731 = sbr.rel (%p729) target = $region24
        $region23: #{tpu_custom_call.1} parent=11 // pred_region
          _
        $region24: #{tpu_custom_call.1} parent=11 // pred_fallthru
          _
        // Predicated region
        $region25: #{tpu_custom_call.1} parent=11 // pred_check
          %p732 = pneg %p178
        $region26: #{tpu_custom_call.1} parent=11 // pred_check_branch
          %734 = sbr.rel (%p732) target = $region28
        $region27: #{tpu_custom_call.1} parent=11 // pred_region
          _
        $region28: #{tpu_custom_call.1} parent=11 // pred_fallthru
          _
        // Predicated region
        $region29: #{tpu_custom_call.1} parent=11 // pred_check
          %p735 = pneg %p199
        $region30: #{tpu_custom_call.1} parent=11 // pred_check_branch
          %737 = sbr.rel (%p735) target = $region32
        $region31: #{tpu_custom_call.1} parent=11 // pred_region
          _
        $region32: #{tpu_custom_call.1} parent=11 // pred_fallthru
          _
        // Predicated region
        $region33: #{tpu_custom_call.1} parent=11 // pred_check
          %p738 = pneg %p220
        $region34: #{tpu_custom_call.1} parent=11 // pred_check_branch
          %740 = sbr.rel (%p738) target = $region36
        $region35: #{tpu_custom_call.1} parent=11 // pred_region
          _
        $region36: #{tpu_custom_call.1} parent=11 // pred_fallthru
          _
        // Predicated region
        $region37: #{tpu_custom_call.1} parent=11 // pred_check
          %p741 = pneg %p241
        $region38: #{tpu_custom_call.1} parent=11 // pred_check_branch
          %743 = sbr.rel (%p741) target = $region40
        $region39: #{tpu_custom_call.1} parent=11 // pred_region
          _
        $region40: #{tpu_custom_call.1} parent=11 // pred_fallthru
          _
        // Predicated region
        $region41: #{tpu_custom_call.1} parent=11 // pred_check
          %p744 = pneg %p262
        $region42: #{tpu_custom_call.1} parent=11 // pred_check_branch
          %746 = sbr.rel (%p744) target = $region44
        $region43: #{tpu_custom_call.1} parent=11 // pred_region
          _
        $region44: #{tpu_custom_call.1} parent=11 // pred_fallthru
          _
        // Predicated region
        $region45: #{tpu_custom_call.1} parent=11 // pred_check
          %p747 = pneg %p283
        $region46: #{tpu_custom_call.1} parent=11 // pred_check_branch
          %749 = sbr.rel (%p747) target = $region48
        $region47: #{tpu_custom_call.1} parent=11 // pred_region
          _
        $region48: #{tpu_custom_call.1} parent=11 // pred_fallthru
          _
        // Predicated region
        $region49: #{tpu_custom_call.1} parent=11 // pred_check
          %p750 = pneg %p304
        $region50: #{tpu_custom_call.1} parent=11 // pred_check_branch
          %752 = sbr.rel (%p750) target = $region52
        $region51: #{tpu_custom_call.1} parent=11 // pred_region
          _
        $region52: #{tpu_custom_call.1} parent=11 // pred_fallthru
          _
        // Predicated region
        $region53: #{tpu_custom_call.1} parent=11 // pred_check
          %p753 = pneg %p325
        $region54: #{tpu_custom_call.1} parent=11 // pred_check_branch
          %755 = sbr.rel (%p753) target = $region56
        $region55: #{tpu_custom_call.1} parent=11 // pred_region
          _
        $region56: #{tpu_custom_call.1} parent=11 // pred_fallthru
          _
        // Predicated region
        $region57: #{tpu_custom_call.1} parent=11 // pred_check
          %p756 = pneg %p346
        $region58: #{tpu_custom_call.1} parent=11 // pred_check_branch
          %758 = sbr.rel (%p756) target = $region60
        $region59: #{tpu_custom_call.1} parent=11 // pred_region
          _
        $region60: #{tpu_custom_call.1} parent=11 // pred_fallthru
          _
        // Predicated region
        $region61: #{tpu_custom_call.1} parent=11 // pred_check
          %p759 = pneg %p367
        $region62: #{tpu_custom_call.1} parent=11 // pred_check_branch
          %761 = sbr.rel (%p759) target = $region64
        $region63: #{tpu_custom_call.1} parent=11 // pred_region
          _
        $region64: #{tpu_custom_call.1} parent=11 // pred_fallthru
          _
        // Predicated region
        $region65: #{tpu_custom_call.1} parent=11 // pred_check
          %p762 = pneg %p388
        $region66: #{tpu_custom_call.1} parent=11 // pred_check_branch
          %764 = sbr.rel (%p762) target = $region68
        $region67: #{tpu_custom_call.1} parent=11 // pred_region
          _
        $region68: #{tpu_custom_call.1} parent=11 // pred_fallthru
          _
        // Predicated region
        $region69: #{tpu_custom_call.1} parent=11 // pred_check
          %p765 = pneg %p409
        $region70: #{tpu_custom_call.1} parent=11 // pred_check_branch
          %767 = sbr.rel (%p765) target = $region72
        $region71: #{tpu_custom_call.1} parent=11 // pred_region
          _
        $region72: #{tpu_custom_call.1} parent=11 // pred_fallthru
          _
        // Predicated region
        $region73: #{tpu_custom_call.1} parent=11 // pred_check
          %p768 = pneg %p430
        $region74: #{tpu_custom_call.1} parent=11 // pred_check_branch
          %770 = sbr.rel (%p768) target = $region76
        $region75: #{tpu_custom_call.1} parent=11 // pred_region
          _
        $region76: #{tpu_custom_call.1} parent=11 // pred_fallthru
          _
        // Predicated region
        $region77: #{tpu_custom_call.1} parent=11 // pred_check
          %p771 = pneg %p451
        $region78: #{tpu_custom_call.1} parent=11 // pred_check_branch
          %773 = sbr.rel (%p771) target = $region80
        $region79: #{tpu_custom_call.1} parent=11 // pred_region
          _
        $region80: #{tpu_custom_call.1} parent=11 // pred_fallthru
          _
        // Predicated region
        $region81: #{tpu_custom_call.1} parent=11 // pred_check
          %p774 = pneg %p472
        $region82: #{tpu_custom_call.1} parent=11 // pred_check_branch
          %776 = sbr.rel (%p774) target = $region84
        $region83: #{tpu_custom_call.1} parent=11 // pred_region
          _
        $region84: #{tpu_custom_call.1} parent=11 // pred_fallthru
          _
        // Predicated region
        $region85: #{tpu_custom_call.1} parent=11 // pred_check
          %p777 = pneg %p493
        $region86: #{tpu_custom_call.1} parent=11 // pred_check_branch
          %779 = sbr.rel (%p777) target = $region88
        $region87: #{tpu_custom_call.1} parent=11 // pred_region
          _
        $region88: #{tpu_custom_call.1} parent=11 // pred_fallthru
          _
        // Predicated region
        $region89: #{tpu_custom_call.1} parent=11 // pred_check
          %p780 = pneg %p514
        $region90: #{tpu_custom_call.1} parent=11 // pred_check_branch
          %782 = sbr.rel (%p780) target = $region92
        $region91: #{tpu_custom_call.1} parent=11 // pred_region
          _
        $region92: #{tpu_custom_call.1} parent=11 // pred_fallthru
          _
        // Predicated region
        $region93: #{tpu_custom_call.1} parent=11 // pred_check
          %p783 = pneg %p535
        $region94: #{tpu_custom_call.1} parent=11 // pred_check_branch
          %785 = sbr.rel (%p783) target = $region96
        $region95: #{tpu_custom_call.1} parent=11 // pred_region
          _
        $region96: #{tpu_custom_call.1} parent=11 // pred_fallthru
          _
        // Predicated region
        $region97: #{tpu_custom_call.1} parent=11 // pred_check
          %p786 = pneg %p556
        $region98: #{tpu_custom_call.1} parent=11 // pred_check_branch
          %788 = sbr.rel (%p786) target = $region100
        $region99: #{tpu_custom_call.1} parent=11 // pred_region
          _
        $region100: #{tpu_custom_call.1} parent=11 // pred_fallthru
          _
        // Predicated region
        $region101: #{tpu_custom_call.1} parent=11 // pred_check
          %p789 = pneg %p577
        $region102: #{tpu_custom_call.1} parent=11 // pred_check_branch
          %791 = sbr.rel (%p789) target = $region104
        $region103: #{tpu_custom_call.1} parent=11 // pred_region
          _
        $region104: #{tpu_custom_call.1} parent=11 // pred_fallthru
          _
        // Predicated region
        $region105: #{tpu_custom_call.1} parent=11 // pred_check
          %p792 = pneg %p598
        $region106: #{tpu_custom_call.1} parent=11 // pred_check_branch
          %794 = sbr.rel (%p792) target = $region108
        $region107: #{tpu_custom_call.1} parent=11 // pred_region
          _
        $region108: #{tpu_custom_call.1} parent=11 // pred_fallthru
          _
        // Predicated region
        $region109: #{tpu_custom_call.1} parent=11 // pred_check
          %p795 = pneg %p619
        $region110: #{tpu_custom_call.1} parent=11 // pred_check_branch
          %797 = sbr.rel (%p795) target = $region112
        $region111: #{tpu_custom_call.1} parent=11 // pred_region
          _
        $region112: #{tpu_custom_call.1} parent=11 // pred_fallthru
          _
        // Predicated region
        $region113: #{tpu_custom_call.1} parent=11 // pred_check
          %p798 = pneg %p640
        $region114: #{tpu_custom_call.1} parent=11 // pred_check_branch
          %800 = sbr.rel (%p798) target = $region116
        $region115: #{tpu_custom_call.1} parent=11 // pred_region
          _
        $region116: #{tpu_custom_call.1} parent=11 // pred_fallthru
          _
        // Predicated region
        $region117: #{tpu_custom_call.1} parent=11 // pred_check
          %p801 = pneg %p661
        $region118: #{tpu_custom_call.1} parent=11 // pred_check_branch
          %803 = sbr.rel (%p801) target = $region120
        $region119: #{tpu_custom_call.1} parent=11 // pred_region
          _
        $region120: #{tpu_custom_call.1} parent=11 // pred_fallthru
          _
        // Predicated region
        $region121: #{tpu_custom_call.1} parent=11 // pred_check
          %p804 = pneg %p682
        $region122: #{tpu_custom_call.1} parent=11 // pred_check_branch
          %806 = sbr.rel (%p804) target = $region124
        $region123: #{tpu_custom_call.1} parent=11 // pred_region
          _
        $region124: #{tpu_custom_call.1} parent=11 // pred_fallthru
          _
      $region12: #{tpu_custom_call.1} parent=5 // pred_fallthru
        _
      %p807 = scmp.lt.s32.totalorder %s68, 2
      // Predicated region
      $region125: #{tpu_custom_call.1} parent=5 // pred_check
        %p808 = pneg %p807
      $region126: #{tpu_custom_call.1} parent=5 // pred_check_branch
        %810 = sbr.rel (%p808) target = $region128
      $region127: #{tpu_custom_call.1} parent=5 // pred_region
        // Predicated region
        $region129: #{tpu_custom_call.1} parent=127 // pred_check
          %p811 = pneg %p88
        $region130: #{tpu_custom_call.1} parent=127 // pred_check_branch
          %813 = sbr.rel (%p811) target = $region132
        $region131: #{tpu_custom_call.1} parent=127 // pred_region
          %p814 = scmp.lt.s32.totalorder %s68, 1
          %s815 = scalar_select %p814, %s68, 1
          %s816 = smul.addr %s815, 2
          %s817 = smul.addr %s816, 4
          %s818 = scalar_lea.vmem %s1, %s817
        $region132: #{tpu_custom_call.1} parent=127 // pred_fallthru
          _
      $region128: #{tpu_custom_call.1} parent=5 // pred_fallthru
        _
      %p819 = scmp.le.s32.totalorder 1, %s68
      %p820 = scmp.lt.s32.totalorder %s68, 3
      %p821 = pnand %p819, %p820
      %p822 = pneg %p821
      // Predicated region
      $region133: #{tpu_custom_call.1} parent=5 // pred_check
        _
      $region134: #{tpu_custom_call.1} parent=5 // pred_check_branch
        %824 = sbr.rel (%p821) target = $region136
      $region135: #{tpu_custom_call.1} parent=5 // pred_region
        %s825 = ssub.s32 %s68, 1
        %p826 = scmp.lt.s32.totalorder %s73, 1
        %s827 = scalar_select %p826, %s73, 1
        %s828 = smul.addr %s827, 2
        %s829 = smul.addr %s828, 4
        %s830 = scalar_lea.vmem %s1, %s829
        %p831 = pneg %p94
        %p832 = pneg %p91
        %p833 = pneg %p115
        %p834 = pneg %p112
        %p835 = pneg %p136
        %p836 = pneg %p133
        %p837 = pneg %p157
        %p838 = pneg %p154
        %p839 = pneg %p178
        %p840 = pneg %p175
        %p841 = pneg %p199
        %p842 = pneg %p196
        %p843 = pneg %p220
        %p844 = pneg %p217
        %p845 = pneg %p241
        %p846 = pneg %p238
        %p847 = pneg %p262
        %p848 = pneg %p259
        %p849 = pneg %p283
        %p850 = pneg %p280
        %p851 = pneg %p304
        %p852 = pneg %p301
        %p853 = pneg %p325
        %p854 = pneg %p322
        %p855 = pneg %p346
        %p856 = pneg %p343
        %p857 = pneg %p367
        %p858 = pneg %p364
        %p859 = pneg %p388
        %p860 = pneg %p385
        %p861 = pneg %p409
        %p862 = pneg %p406
        %p863 = pneg %p430
        %p864 = pneg %p427
        %p865 = pneg %p451
        %p866 = pneg %p448
        %p867 = pneg %p472
        %p868 = pneg %p469
        %p869 = pneg %p493
        %p870 = pneg %p490
        %p871 = pneg %p514
        %p872 = pneg %p511
        %p873 = pneg %p535
        %p874 = pneg %p532
        %p875 = pneg %p556
        %p876 = pneg %p553
        %p877 = pneg %p577
        %p878 = pneg %p574
        %p879 = pneg %p598
        %p880 = pneg %p595
        %p881 = pneg %p619
        %p882 = pneg %p616
        %p883 = pneg %p640
        %p884 = pneg %p637
        %p885 = pneg %p661
        %p886 = pneg %p658
        %p887 = pneg %p682
        %p888 = pneg %p679
        %p889 = pneg %p708
        %p890 = pneg %p705
        %s891 = sand.u32 %s695, 1
        %s892 = scalar_lea.sflag [#allocation3], %s891
        %s893 = sand.u32 %s695, 1
        %s894 = smul.addr %s893, 8
        %s895 = scalar_lea.vmem [#allocation2], %s894
        %p896 = scmp.lt.s32.totalorder %s73, 1
        %s897 = scalar_select %p896, %s73, 1
        %s898 = smul.addr %s897, 2
        %s899 = smul.addr %s898, 4
        %s900 = scalar_lea.vmem %s1, %s899
        %v902 = vld [vmem:[%s900] sm:$0xff]
        %v903 = vld [vmem:[%s35] sm:$0xff]
        %v904 = vld [vmem:[%s35 + $0x8] sm:$0xff]
        %v905 = vld [vmem:[%s35 + $0x10] sm:$0xff]
        %v906 = vld [vmem:[%s35 + $0x18] sm:$0xff]
        %v907 = vld [vmem:[%s35 + $0x20] sm:$0xff]
        %v908 = vld [vmem:[%s35 + $0x28] sm:$0xff]
        %v909 = vld [vmem:[%s35 + $0x30] sm:$0xff]
        %v910 = vld [vmem:[%s35 + $0x38] sm:$0xff]
        %v911 = vld [vmem:[%s35 + $0x40] sm:$0xff]
        %v912 = vld [vmem:[%s35 + $0x48] sm:$0xff]
        %v913 = vld [vmem:[%s35 + $0x50] sm:$0xff]
        %v914 = vld [vmem:[%s35 + $0x58] sm:$0xff]
        %v915 = vld [vmem:[%s35 + $0x60] sm:$0xff]
        %v916 = vld [vmem:[%s35 + $0x68] sm:$0xff]
        %v917 = vld [vmem:[%s35 + $0x70] sm:$0xff]
        %v918 = vld [vmem:[%s35 + $0x78] sm:$0xff]
        %v919 = vld [vmem:[%s35 + $0x80] sm:$0xff]
        %v920 = vld [vmem:[%s35 + $0x88] sm:$0xff]
        %v921 = vld [vmem:[%s35 + $0x90] sm:$0xff]
        %v922 = vld [vmem:[%s35 + $0x98] sm:$0xff]
        %v923 = vld [vmem:[%s35 + $0xa0] sm:$0xff]
        %v924 = vld [vmem:[%s35 + $0xa8] sm:$0xff]
        %v925 = vld [vmem:[%s35 + $0xb0] sm:$0xff]
        %v926 = vld [vmem:[%s35 + $0xb8] sm:$0xff]
        %v927 = vld [vmem:[%s35 + $0xc0] sm:$0xff]
        %v928 = vld [vmem:[%s35 + $0xc8] sm:$0xff]
        %v929 = vld [vmem:[%s35 + $0xd0] sm:$0xff]
        %v930 = vld [vmem:[%s35 + $0xd8] sm:$0xff]
        %v931 = vld [vmem:[%s35 + $0xe0] sm:$0xff]
        %v932 = vld [vmem:[%s35 + $0xe8] sm:$0xff]
        %v933 = vld [vmem:[%s35 + $0xf0] sm:$0xff]
        %v934 = vld [vmem:[%s35 + $0xf8] sm:$0xff]
        %v935 = vld [vmem:[%s35 + $0x100] sm:$0xff]
        %v936 = vld [vmem:[%s35 + $0x108] sm:$0xff]
        %v937 = vld [vmem:[%s35 + $0x110] sm:$0xff]
        %v938 = vld [vmem:[%s35 + $0x118] sm:$0xff]
        %v939 = vld [vmem:[%s35 + $0x120] sm:$0xff]
        %v940 = vld [vmem:[%s35 + $0x128] sm:$0xff]
        %v941 = vld [vmem:[%s35 + $0x130] sm:$0xff]
        %v942 = vld [vmem:[%s35 + $0x138] sm:$0xff]
        %v943 = vld [vmem:[%s35 + $0x140] sm:$0xff]
        %v944 = vld [vmem:[%s35 + $0x148] sm:$0xff]
        %v945 = vld [vmem:[%s35 + $0x150] sm:$0xff]
        %v946 = vld [vmem:[%s35 + $0x158] sm:$0xff]
        %v947 = vld [vmem:[%s35 + $0x160] sm:$0xff]
        %v948 = vld [vmem:[%s35 + $0x168] sm:$0xff]
        %v949 = vld [vmem:[%s35 + $0x170] sm:$0xff]
        %v950 = vld [vmem:[%s35 + $0x178] sm:$0xff]
        %v951 = vld [vmem:[%s35 + $0x180] sm:$0xff]
        %v952 = vld [vmem:[%s35 + $0x188] sm:$0xff]
        %v953 = vld [vmem:[%s35 + $0x190] sm:$0xff]
        %v954 = vld [vmem:[%s35 + $0x198] sm:$0xff]
        %v955 = vld [vmem:[%s35 + $0x1a0] sm:$0xff]
        %v956 = vld [vmem:[%s35 + $0x1a8] sm:$0xff]
        %v957 = vld [vmem:[%s35 + $0x1b0] sm:$0xff]
        %v958 = vld [vmem:[%s35 + $0x1b8] sm:$0xff]
        %v959 = vld [vmem:[%s35 + $0x1c0] sm:$0xff]
        %v960 = vld [vmem:[%s35 + $0x1c8] sm:$0xff]
        %v961 = vld [vmem:[%s35 + $0x1d0] sm:$0xff]
        %v962 = vld [vmem:[%s35 + $0x1d8] sm:$0xff]
        %v963 = vld [vmem:[%s35 + $0x1e0] sm:$0xff]
        %v964 = vld [vmem:[%s35 + $0x1e8] sm:$0xff]
        %v965 = vld [vmem:[%s35 + $0x1f0] sm:$0xff]
        %v966 = vld [vmem:[%s35 + $0x1f8] sm:$0xff]
        %v967 = vld [vmem:[%s35 + $0x200] sm:$0xff]
        %v968 = vld [vmem:[%s35 + $0x208] sm:$0xff]
        %v969 = vld [vmem:[%s35 + $0x210] sm:$0xff]
        %v970 = vld [vmem:[%s35 + $0x218] sm:$0xff]
        %v971 = vld [vmem:[%s35 + $0x220] sm:$0xff]
        %v972 = vld [vmem:[%s35 + $0x228] sm:$0xff]
        %v973 = vld [vmem:[%s35 + $0x230] sm:$0xff]
        %v974 = vld [vmem:[%s35 + $0x238] sm:$0xff]
        %v975 = vld [vmem:[%s35 + $0x240] sm:$0xff]
        %v976 = vld [vmem:[%s35 + $0x248] sm:$0xff]
        %v977 = vld [vmem:[%s35 + $0x250] sm:$0xff]
        %v978 = vld [vmem:[%s35 + $0x258] sm:$0xff]
        %v979 = vld [vmem:[%s35 + $0x260] sm:$0xff]
        %v980 = vld [vmem:[%s35 + $0x268] sm:$0xff]
        %v981 = vld [vmem:[%s35 + $0x270] sm:$0xff]
        %v982 = vld [vmem:[%s35 + $0x278] sm:$0xff]
        %v983 = vld [vmem:[%s35 + $0x280] sm:$0xff]
        %v984 = vld [vmem:[%s35 + $0x288] sm:$0xff]
        %v985 = vld [vmem:[%s35 + $0x290] sm:$0xff]
        %v986 = vld [vmem:[%s35 + $0x298] sm:$0xff]
        %v987 = vld [vmem:[%s35 + $0x2a0] sm:$0xff]
        %v988 = vld [vmem:[%s35 + $0x2a8] sm:$0xff]
        %v989 = vld [vmem:[%s35 + $0x2b0] sm:$0xff]
        %v990 = vld [vmem:[%s35 + $0x2b8] sm:$0xff]
        %v991 = vld [vmem:[%s35 + $0x2c0] sm:$0xff]
        %v992 = vld [vmem:[%s35 + $0x2c8] sm:$0xff]
        %v993 = vld [vmem:[%s35 + $0x2d0] sm:$0xff]
        %v994 = vld [vmem:[%s35 + $0x2d8] sm:$0xff]
        %v995 = vld [vmem:[%s35 + $0x2e0] sm:$0xff]
        %v996 = vld [vmem:[%s35 + $0x2e8] sm:$0xff]
        %v997 = vld [vmem:[%s35 + $0x2f0] sm:$0xff]
        %v998 = vld [vmem:[%s35 + $0x2f8] sm:$0xff]
        %v999 = vld [vmem:[%s37] sm:$0xff]
        %v1000 = vld [vmem:[%s37 + $0x8] sm:$0xff]
        %v1001 = vld [vmem:[%s37 + $0x10] sm:$0xff]
        %v1002 = vld [vmem:[%s37 + $0x18] sm:$0xff]
        %v1003 = vld [vmem:[%s37 + $0x20] sm:$0xff]
        %v1004 = vld [vmem:[%s37 + $0x28] sm:$0xff]
        %v1005 = vld [vmem:[%s37 + $0x30] sm:$0xff]
        %v1006 = vld [vmem:[%s37 + $0x38] sm:$0xff]
        %v1007 = vld [vmem:[%s37 + $0x40] sm:$0xff]
        %v1008 = vld [vmem:[%s37 + $0x48] sm:$0xff]
        %v1009 = vld [vmem:[%s37 + $0x50] sm:$0xff]
        %v1010 = vld [vmem:[%s37 + $0x58] sm:$0xff]
        %v1011 = vld [vmem:[%s37 + $0x60] sm:$0xff]
        %v1012 = vld [vmem:[%s37 + $0x68] sm:$0xff]
        %v1013 = vld [vmem:[%s37 + $0x70] sm:$0xff]
        %v1014 = vld [vmem:[%s37 + $0x78] sm:$0xff]
        %v1015 = vld [vmem:[%s37 + $0x80] sm:$0xff]
        %v1016 = vld [vmem:[%s37 + $0x88] sm:$0xff]
        %v1017 = vld [vmem:[%s37 + $0x90] sm:$0xff]
        %v1018 = vld [vmem:[%s37 + $0x98] sm:$0xff]
        %v1019 = vld [vmem:[%s37 + $0xa0] sm:$0xff]
        %v1020 = vld [vmem:[%s37 + $0xa8] sm:$0xff]
        %v1021 = vld [vmem:[%s37 + $0xb0] sm:$0xff]
        %v1022 = vld [vmem:[%s37 + $0xb8] sm:$0xff]
        %v1023 = vld [vmem:[%s37 + $0xc0] sm:$0xff]
        %v1024 = vld [vmem:[%s37 + $0xc8] sm:$0xff]
        %v1025 = vld [vmem:[%s37 + $0xd0] sm:$0xff]
        %v1026 = vld [vmem:[%s37 + $0xd8] sm:$0xff]
        %v1027 = vld [vmem:[%s37 + $0xe0] sm:$0xff]
        %v1028 = vld [vmem:[%s37 + $0xe8] sm:$0xff]
        %v1029 = vld [vmem:[%s37 + $0xf0] sm:$0xff]
        %v1030 = vld [vmem:[%s37 + $0xf8] sm:$0xff]
        %v1031 = vld [vmem:[%s37 + $0x100] sm:$0xff]
        %v1032 = vld [vmem:[%s37 + $0x108] sm:$0xff]
        %v1033 = vld [vmem:[%s37 + $0x110] sm:$0xff]
        %v1034 = vld [vmem:[%s37 + $0x118] sm:$0xff]
        %v1035 = vld [vmem:[%s37 + $0x120] sm:$0xff]
        %v1036 = vld [vmem:[%s37 + $0x128] sm:$0xff]
        %v1037 = vld [vmem:[%s37 + $0x130] sm:$0xff]
        %v1038 = vld [vmem:[%s37 + $0x138] sm:$0xff]
        %v1039 = vld [vmem:[%s37 + $0x140] sm:$0xff]
        %v1040 = vld [vmem:[%s37 + $0x148] sm:$0xff]
        %v1041 = vld [vmem:[%s37 + $0x150] sm:$0xff]
        %v1042 = vld [vmem:[%s37 + $0x158] sm:$0xff]
        %v1043 = vld [vmem:[%s37 + $0x160] sm:$0xff]
        %v1044 = vld [vmem:[%s37 + $0x168] sm:$0xff]
        %v1045 = vld [vmem:[%s37 + $0x170] sm:$0xff]
        %v1046 = vld [vmem:[%s37 + $0x178] sm:$0xff]
        %v1047 = vld [vmem:[%s37 + $0x180] sm:$0xff]
        %v1048 = vld [vmem:[%s37 + $0x188] sm:$0xff]
        %v1049 = vld [vmem:[%s37 + $0x190] sm:$0xff]
        %v1050 = vld [vmem:[%s37 + $0x198] sm:$0xff]
        %v1051 = vld [vmem:[%s37 + $0x1a0] sm:$0xff]
        %v1052 = vld [vmem:[%s37 + $0x1a8] sm:$0xff]
        %v1053 = vld [vmem:[%s37 + $0x1b0] sm:$0xff]
        %v1054 = vld [vmem:[%s37 + $0x1b8] sm:$0xff]
        %v1055 = vld [vmem:[%s37 + $0x1c0] sm:$0xff]
        %v1056 = vld [vmem:[%s37 + $0x1c8] sm:$0xff]
        %v1057 = vld [vmem:[%s37 + $0x1d0] sm:$0xff]
        %v1058 = vld [vmem:[%s37 + $0x1d8] sm:$0xff]
        %v1059 = vld [vmem:[%s37 + $0x1e0] sm:$0xff]
        %v1060 = vld [vmem:[%s37 + $0x1e8] sm:$0xff]
        %v1061 = vld [vmem:[%s37 + $0x1f0] sm:$0xff]
        %v1062 = vld [vmem:[%s37 + $0x1f8] sm:$0xff]
        %v1063 = vld [vmem:[%s37 + $0x200] sm:$0xff]
        %v1064 = vld [vmem:[%s37 + $0x208] sm:$0xff]
        %v1065 = vld [vmem:[%s37 + $0x210] sm:$0xff]
        %v1066 = vld [vmem:[%s37 + $0x218] sm:$0xff]
        %v1067 = vld [vmem:[%s37 + $0x220] sm:$0xff]
        %v1068 = vld [vmem:[%s37 + $0x228] sm:$0xff]
        %v1069 = vld [vmem:[%s37 + $0x230] sm:$0xff]
        %v1070 = vld [vmem:[%s37 + $0x238] sm:$0xff]
        %1072 = vst [vmem:[#allocation1] ss:$2 sm:$0xff] %v902
        %v1073 = vld.sshfl [vmem:[#allocation1] sm:$0xff pattern:$0x75316420]
        %v1074 = vld.sshfl [vmem:[#allocation1 + $0x8] sm:$0xff pattern:$0x75316420]
        %1077 = vmatpush.msra.mxu0 %v948
        %1078 = vmatpush.msra.mxu0 %v945
        %1079 = vmatpush.msra.mxu0 %v942
        %1080 = vmatpush.msra.mxu0 %v939
        %1081 = vmatpush.msra.mxu0 %v936
        %1082 = vmatpush.msra.mxu0 %v933
        %1083 = vmatpush.msra.mxu0 %v930
        %1084 = vmatpush.msra.mxu0 %v927
        %1085 = vmatpush.msra.mxu0 %v924
        %1086 = vmatpush.msra.mxu0 %v921
        %1087 = vmatpush.msra.mxu0 %v918
        %1088 = vmatpush.msra.mxu0 %v915
        %1089 = vmatpush.msra.mxu0 %v912
        %1090 = vmatpush.msra.mxu0 %v909
        %1091 = vmatpush.msra.mxu0 %v906
        %1092 = vmatpush.msra.mxu0 %v903
        %1093 = vmatmul.f32.gmra.mxu0 %v1073
        %v1094 = vpop.f32.mrf.mxu0
        %v1095 = vadd.f32 0.0, %v1094
        %1096 = vdwg.mxu0
        %1097 = vmatpush.msra.mxu0 %v996
        %1098 = vmatpush.msra.mxu0 %v993
        %1099 = vmatpush.msra.mxu0 %v990
        %1100 = vmatpush.msra.mxu0 %v987
        %1101 = vmatpush.msra.mxu0 %v984
        %1102 = vmatpush.msra.mxu0 %v981
        %1103 = vmatpush.msra.mxu0 %v978
        %1104 = vmatpush.msra.mxu0 %v975
        %1105 = vmatpush.msra.mxu0 %v972
        %1106 = vmatpush.msra.mxu0 %v969
        %1107 = vmatpush.msra.mxu0 %v966
        %1108 = vmatpush.msra.mxu0 %v963
        %1109 = vmatpush.msra.mxu0 %v960
        %1110 = vmatpush.msra.mxu0 %v957
        %1111 = vmatpush.msra.mxu0 %v954
        %1112 = vmatpush.msra.mxu0 %v951
        %1113 = vmatmul.f32.gmra.mxu0 %v1074
        %v1114 = vpop.f32.mrf.mxu0
        %v1115 = vadd.f32 %v1095, %v1114
        %1116 = vdwg.mxu0
        %1117 = vmatpush.msra.mxu0 %v949
        %1118 = vmatpush.msra.mxu0 %v946
        %1119 = vmatpush.msra.mxu0 %v943
        %1120 = vmatpush.msra.mxu0 %v940
        %1121 = vmatpush.msra.mxu0 %v937
        %1122 = vmatpush.msra.mxu0 %v934
        %1123 = vmatpush.msra.mxu0 %v931
        %1124 = vmatpush.msra.mxu0 %v928
        %1125 = vmatpush.msra.mxu0 %v925
        %1126 = vmatpush.msra.mxu0 %v922
        %1127 = vmatpush.msra.mxu0 %v919
        %1128 = vmatpush.msra.mxu0 %v916
        %1129 = vmatpush.msra.mxu0 %v913
        %1130 = vmatpush.msra.mxu0 %v910
        %1131 = vmatpush.msra.mxu0 %v907
        %1132 = vmatpush.msra.mxu0 %v904
        %1133 = vmatmul.f32.gmra.mxu0 %v1073
        %v1134 = vpop.f32.mrf.mxu0
        %v1135 = vadd.f32 0.0, %v1134
        %1136 = vdwg.mxu0
        %1137 = vmatpush.msra.mxu0 %v997
        %1138 = vmatpush.msra.mxu0 %v994
        %1139 = vmatpush.msra.mxu0 %v991
        %1140 = vmatpush.msra.mxu0 %v988
        %1141 = vmatpush.msra.mxu0 %v985
        %1142 = vmatpush.msra.mxu0 %v982
        %1143 = vmatpush.msra.mxu0 %v979
        %1144 = vmatpush.msra.mxu0 %v976
        %1145 = vmatpush.msra.mxu0 %v973
        %1146 = vmatpush.msra.mxu0 %v970
        %1147 = vmatpush.msra.mxu0 %v967
        %1148 = vmatpush.msra.mxu0 %v964
        %1149 = vmatpush.msra.mxu0 %v961
        %1150 = vmatpush.msra.mxu0 %v958
        %1151 = vmatpush.msra.mxu0 %v955
        %1152 = vmatpush.msra.mxu0 %v952
        %1153 = vmatmul.f32.gmra.mxu0 %v1074
        %v1154 = vpop.f32.mrf.mxu0
        %v1155 = vadd.f32 %v1135, %v1154
        %1156 = vdwg.mxu0
        %1157 = vmatpush.msra.mxu0 %v950
        %1158 = vmatpush.msra.mxu0 %v947
        %1159 = vmatpush.msra.mxu0 %v944
        %1160 = vmatpush.msra.mxu0 %v941
        %1161 = vmatpush.msra.mxu0 %v938
        %1162 = vmatpush.msra.mxu0 %v935
        %1163 = vmatpush.msra.mxu0 %v932
        %1164 = vmatpush.msra.mxu0 %v929
        %1165 = vmatpush.msra.mxu0 %v926
        %1166 = vmatpush.msra.mxu0 %v923
        %1167 = vmatpush.msra.mxu0 %v920
        %1168 = vmatpush.msra.mxu0 %v917
        %1169 = vmatpush.msra.mxu0 %v914
        %1170 = vmatpush.msra.mxu0 %v911
        %1171 = vmatpush.msra.mxu0 %v908
        %1172 = vmatpush.msra.mxu0 %v905
        %1173 = vmatmul.f32.gmra.mxu0 %v1073
        %v1174 = vpop.f32.mrf.mxu0
        %v1175 = vadd.f32 0.0, %v1174
        %1176 = vdwg.mxu0
        %1177 = vmatpush.msra.mxu0 %v998
        %1178 = vmatpush.msra.mxu0 %v995
        %1179 = vmatpush.msra.mxu0 %v992
        %1180 = vmatpush.msra.mxu0 %v989
        %1181 = vmatpush.msra.mxu0 %v986
        %1182 = vmatpush.msra.mxu0 %v983
        %1183 = vmatpush.msra.mxu0 %v980
        %1184 = vmatpush.msra.mxu0 %v977
        %1185 = vmatpush.msra.mxu0 %v974
        %1186 = vmatpush.msra.mxu0 %v971
        %1187 = vmatpush.msra.mxu0 %v968
        %1188 = vmatpush.msra.mxu0 %v965
        %1189 = vmatpush.msra.mxu0 %v962
        %1190 = vmatpush.msra.mxu0 %v959
        %1191 = vmatpush.msra.mxu0 %v956
        %1192 = vmatpush.msra.mxu0 %v953
        %1193 = vmatmul.f32.gmra.mxu0 %v1074
        %v1194 = vpop.f32.mrf.mxu0
        %v1195 = vadd.f32 %v1175, %v1194
        %1196 = vdwg.mxu0
        %v1197 = vpack.c.bf16 %v1155, %v1115
        %v1198 = vpack.c.bf16 %v1195, %v1195
        %v1199 = vld [vmem:[%s5] sm:$0xf]
        %1201 = vset.pattern.permute.xlu0 0
        %1202 = vperm.xlu0 %1201, %v1199
        %v1203 = vpop.permute.xlu0 %1202
        %v1205 = vld [vmem:[%s3] sm:$0xf]
        %v1206 = vpack.c.bf16 %v1205, %v1205
        %v1209 = vunpack.c.l.b16 %v1197
        %v1210 = vunpack.c.h.b16 %v1197
        %v1211 = vunpack.c.l.b16 %v1198
        %v1212 = vpack.c.b16 %v1209, %v1209
        %v1213 = vpack.c.b16 %v1210, %v1210
        %v1214 = vpack.c.b16 %v1211, %v1211
        %vm1215 = vcmask 31744
        %v1217 = vsel %vm1215, %v1206, 0
        %vm1219 = vcmask 1041408
        %v1221 = vsel %vm1219, %v1212, 0
        %v1224 = vsel %vm1219, %v1213, 0
        %v1227 = vsel %vm1219, %v1214, 0
        %1229 = vmatpush.bf16.msra.mxu0 0
        %1230 = vmatpush.bf16.msra.mxu0 0
        %1231 = vmatpush.bf16.msra.mxu0 0
        %1232 = vmatpush.bf16.msra.mxu0 0
        %1233 = vmatpush.bf16.msra.mxu0 0
        %1234 = vmatpush.bf16.msra.mxu0 0
        %1235 = vmatpush.bf16.msra.mxu0 0
        %1236 = vmatpush.bf16.msra.mxu0 %v1221
        %1237 = vmatmul.bf16.gmra.mxu0 %v1217
        %v1238 = vpop.f32.mrf.mxu0
        %v1239 = vadd.f32 0.0, %v1238
        %v1240 = vpop.f32.mrf.mxu0
        %1241 = vdwg.mxu0
        %1242 = vmatpush.bf16.msra.mxu0 0
        %1243 = vmatpush.bf16.msra.mxu0 0
        %1244 = vmatpush.bf16.msra.mxu0 0
        %1245 = vmatpush.bf16.msra.mxu0 0
        %1246 = vmatpush.bf16.msra.mxu0 0
        %1247 = vmatpush.bf16.msra.mxu0 0
        %1248 = vmatpush.bf16.msra.mxu0 0
        %1249 = vmatpush.bf16.msra.mxu0 %v1224
        %1250 = vmatmul.bf16.gmra.mxu0 %v1217
        %v1251 = vpop.f32.mrf.mxu0
        %v1252 = vadd.f32 0.0, %v1251
        %v1253 = vpop.f32.mrf.mxu0
        %1254 = vdwg.mxu0
        %1255 = vmatpush.bf16.msra.mxu0 0
        %1256 = vmatpush.bf16.msra.mxu0 0
        %1257 = vmatpush.bf16.msra.mxu0 0
        %1258 = vmatpush.bf16.msra.mxu0 0
        %1259 = vmatpush.bf16.msra.mxu0 0
        %1260 = vmatpush.bf16.msra.mxu0 0
        %1261 = vmatpush.bf16.msra.mxu0 0
        %1262 = vmatpush.bf16.msra.mxu0 %v1227
        %1263 = vmatmul.bf16.gmra.mxu0 %v1217
        %v1264 = vpop.f32.mrf.mxu0
        %v1265 = vadd.f32 0.0, %v1264
        %v1266 = vpop.f32.mrf.mxu0
        %1267 = vdwg.mxu0
        %v1268 = vadd.f32 %v1203, %v1239
        %v1269 = vadd.f32 %v1203, %v1252
        %v1270 = vadd.f32 %v1203, %v1265
        %s1271 = scalar_lea.vmem %s3, 4
        %v1272 = vld [vmem:[%s1271] sm:$0xf]
        %v1273 = vpack.c.bf16 %v1272, %v1272
        %1274 = vrot.lane.b32.xlu0 %v1212, 127
        %v1275 = vpop.permute.xlu0 %1274
        %1276 = vrot.lane.b32.xlu0 %v1213, 127
        %v1277 = vpop.permute.xlu0 %1276
        %1278 = vrot.lane.b32.xlu0 %v1214, 127
        %v1279 = vpop.permute.xlu0 %1278
        %vm1280 = vcmask 1039360
        %v1281 = vsel %vm1280, %v1275, %v1277
        %v1282 = vsel %vm1280, %v1277, %v1279
        %v1284 = vsel %vm1215, %v1273, 0
        %v1287 = vsel %vm1219, %v1281, 0
        %v1290 = vsel %vm1219, %v1282, 0
        %v1293 = vsel %vm1219, %v1279, 0
        %1295 = vmatpush.bf16.msra.mxu0 0
        %1296 = vmatpush.bf16.msra.mxu0 0
        %1297 = vmatpush.bf16.msra.mxu0 0
        %1298 = vmatpush.bf16.msra.mxu0 0
        %1299 = vmatpush.bf16.msra.mxu0 0
        %1300 = vmatpush.bf16.msra.mxu0 0
        %1301 = vmatpush.bf16.msra.mxu0 0
        %1302 = vmatpush.bf16.msra.mxu0 %v1287
        %1303 = vmatmul.bf16.gmra.mxu0 %v1284
        %v1304 = vpop.f32.mrf.mxu0
        %v1305 = vadd.f32 0.0, %v1304
        %v1306 = vpop.f32.mrf.mxu0
        %1307 = vdwg.mxu0
        %1308 = vmatpush.bf16.msra.mxu0 0
        %1309 = vmatpush.bf16.msra.mxu0 0
        %1310 = vmatpush.bf16.msra.mxu0 0
        %1311 = vmatpush.bf16.msra.mxu0 0
        %1312 = vmatpush.bf16.msra.mxu0 0
        %1313 = vmatpush.bf16.msra.mxu0 0
        %1314 = vmatpush.bf16.msra.mxu0 0
        %1315 = vmatpush.bf16.msra.mxu0 %v1290
        %1316 = vmatmul.bf16.gmra.mxu0 %v1284
        %v1317 = vpop.f32.mrf.mxu0
        %v1318 = vadd.f32 0.0, %v1317
        %v1319 = vpop.f32.mrf.mxu0
        %1320 = vdwg.mxu0
        %1321 = vmatpush.bf16.msra.mxu0 0
        %1322 = vmatpush.bf16.msra.mxu0 0
        %1323 = vmatpush.bf16.msra.mxu0 0
        %1324 = vmatpush.bf16.msra.mxu0 0
        %1325 = vmatpush.bf16.msra.mxu0 0
        %1326 = vmatpush.bf16.msra.mxu0 0
        %1327 = vmatpush.bf16.msra.mxu0 0
        %1328 = vmatpush.bf16.msra.mxu0 %v1293
        %1329 = vmatmul.bf16.gmra.mxu0 %v1284
        %v1330 = vpop.f32.mrf.mxu0
        %v1331 = vadd.f32 0.0, %v1330
        %v1332 = vpop.f32.mrf.mxu0
        %1333 = vdwg.mxu0
        %v1334 = vadd.f32 %v1268, %v1305
        %v1335 = vadd.f32 %v1269, %v1318
        %v1336 = vadd.f32 %v1270, %v1331
        %s1337 = scalar_lea.vmem %s3, 8
        %v1338 = vld [vmem:[%s1337] sm:$0xf]
        %v1339 = vpack.c.bf16 %v1338, %v1338
        %1340 = vrot.lane.b32.xlu0 %v1212, 126
        %v1341 = vpop.permute.xlu0 %1340
        %1342 = vrot.lane.b32.xlu0 %v1213, 126
        %v1343 = vpop.permute.xlu0 %1342
        %1344 = vrot.lane.b32.xlu0 %v1214, 126
        %v1345 = vpop.permute.xlu0 %1344
        %vm1346 = vcmask 1031168
        %v1347 = vsel %vm1346, %v1341, %v1343
        %v1348 = vsel %vm1346, %v1343, %v1345
        %v1350 = vsel %vm1215, %v1339, 0
        %v1353 = vsel %vm1219, %v1347, 0
        %v1356 = vsel %vm1219, %v1348, 0
        %v1359 = vsel %vm1219, %v1345, 0
        %1361 = vmatpush.bf16.msra.mxu0 0
        %1362 = vmatpush.bf16.msra.mxu0 0
        %1363 = vmatpush.bf16.msra.mxu0 0
        %1364 = vmatpush.bf16.msra.mxu0 0
        %1365 = vmatpush.bf16.msra.mxu0 0
        %1366 = vmatpush.bf16.msra.mxu0 0
        %1367 = vmatpush.bf16.msra.mxu0 0
        %1368 = vmatpush.bf16.msra.mxu0 %v1353
        %1369 = vmatmul.bf16.gmra.mxu0 %v1350
        %v1370 = vpop.f32.mrf.mxu0
        %v1371 = vadd.f32 0.0, %v1370
        %v1372 = vpop.f32.mrf.mxu0
        %1373 = vdwg.mxu0
        %1374 = vmatpush.bf16.msra.mxu0 0
        %1375 = vmatpush.bf16.msra.mxu0 0
        %1376 = vmatpush.bf16.msra.mxu0 0
        %1377 = vmatpush.bf16.msra.mxu0 0
        %1378 = vmatpush.bf16.msra.mxu0 0
        %1379 = vmatpush.bf16.msra.mxu0 0
        %1380 = vmatpush.bf16.msra.mxu0 0
        %1381 = vmatpush.bf16.msra.mxu0 %v1356
        %1382 = vmatmul.bf16.gmra.mxu0 %v1350
        %v1383 = vpop.f32.mrf.mxu0
        %v1384 = vadd.f32 0.0, %v1383
        %v1385 = vpop.f32.mrf.mxu0
        %1386 = vdwg.mxu0
        %1387 = vmatpush.bf16.msra.mxu0 0
        %1388 = vmatpush.bf16.msra.mxu0 0
        %1389 = vmatpush.bf16.msra.mxu0 0
        %1390 = vmatpush.bf16.msra.mxu0 0
        %1391 = vmatpush.bf16.msra.mxu0 0
        %1392 = vmatpush.bf16.msra.mxu0 0
        %1393 = vmatpush.bf16.msra.mxu0 0
        %1394 = vmatpush.bf16.msra.mxu0 %v1359
        %1395 = vmatmul.bf16.gmra.mxu0 %v1350
        %v1396 = vpop.f32.mrf.mxu0
        %v1397 = vadd.f32 0.0, %v1396
        %v1398 = vpop.f32.mrf.mxu0
        %1399 = vdwg.mxu0
        %v1400 = vadd.f32 %v1334, %v1371
        %v1401 = vadd.f32 %v1335, %v1384
        %v1402 = vadd.f32 %v1336, %v1397
        %s1403 = scalar_lea.vmem %s3, 12
        %v1404 = vld [vmem:[%s1403] sm:$0xf]
        %v1405 = vpack.c.bf16 %v1404, %v1404
        %1406 = vrot.lane.b32.xlu0 %v1212, 110
        %v1407 = vpop.permute.xlu0 %1406
        %1408 = vrot.lane.b32.xlu0 %v1213, 110
        %v1409 = vpop.permute.xlu0 %1408
        %1410 = vrot.lane.b32.xlu0 %v1214, 110
        %v1411 = vpop.permute.xlu0 %1410
        %vm1412 = vcmask 900096
        %v1413 = vsel %vm1412, %v1407, %v1409
        %v1414 = vsel %vm1412, %v1409, %v1411
        %v1416 = vsel %vm1215, %v1405, 0
        %v1419 = vsel %vm1219, %v1413, 0
        %v1422 = vsel %vm1219, %v1414, 0
        %v1425 = vsel %vm1219, %v1411, 0
        %1427 = vmatpush.bf16.msra.mxu0 0
        %1428 = vmatpush.bf16.msra.mxu0 0
        %1429 = vmatpush.bf16.msra.mxu0 0
        %1430 = vmatpush.bf16.msra.mxu0 0
        %1431 = vmatpush.bf16.msra.mxu0 0
        %1432 = vmatpush.bf16.msra.mxu0 0
        %1433 = vmatpush.bf16.msra.mxu0 0
        %1434 = vmatpush.bf16.msra.mxu0 %v1419
        %1435 = vmatmul.bf16.gmra.mxu0 %v1416
        %v1436 = vpop.f32.mrf.mxu0
        %v1437 = vadd.f32 0.0, %v1436
        %v1438 = vpop.f32.mrf.mxu0
        %1439 = vdwg.mxu0
        %1440 = vmatpush.bf16.msra.mxu0 0
        %1441 = vmatpush.bf16.msra.mxu0 0
        %1442 = vmatpush.bf16.msra.mxu0 0
        %1443 = vmatpush.bf16.msra.mxu0 0
        %1444 = vmatpush.bf16.msra.mxu0 0
        %1445 = vmatpush.bf16.msra.mxu0 0
        %1446 = vmatpush.bf16.msra.mxu0 0
        %1447 = vmatpush.bf16.msra.mxu0 %v1422
        %1448 = vmatmul.bf16.gmra.mxu0 %v1416
        %v1449 = vpop.f32.mrf.mxu0
        %v1450 = vadd.f32 0.0, %v1449
        %v1451 = vpop.f32.mrf.mxu0
        %1452 = vdwg.mxu0
        %1453 = vmatpush.bf16.msra.mxu0 0
        %1454 = vmatpush.bf16.msra.mxu0 0
        %1455 = vmatpush.bf16.msra.mxu0 0
        %1456 = vmatpush.bf16.msra.mxu0 0
        %1457 = vmatpush.bf16.msra.mxu0 0
        %1458 = vmatpush.bf16.msra.mxu0 0
        %1459 = vmatpush.bf16.msra.mxu0 0
        %1460 = vmatpush.bf16.msra.mxu0 %v1425
        %1461 = vmatmul.bf16.gmra.mxu0 %v1416
        %v1462 = vpop.f32.mrf.mxu0
        %v1463 = vadd.f32 0.0, %v1462
        %v1464 = vpop.f32.mrf.mxu0
        %1465 = vdwg.mxu0
        %v1466 = vadd.f32 %v1400, %v1437
        %v1467 = vadd.f32 %v1401, %v1450
        %v1468 = vadd.f32 %v1402, %v1463
        %s1469 = scalar_lea.vmem %s3, 16
        %v1470 = vld [vmem:[%s1469] sm:$0xf]
        %v1471 = vpack.c.bf16 %v1470, %v1470
        %1472 = vrot.lane.b32.xlu0 %v1212, 109
        %v1473 = vpop.permute.xlu0 %1472
        %1474 = vrot.lane.b32.xlu0 %v1213, 109
        %v1475 = vpop.permute.xlu0 %1474
        %1476 = vrot.lane.b32.xlu0 %v1214, 109
        %v1477 = vpop.permute.xlu0 %1476
        %vm1478 = vcmask 891904
        %v1479 = vsel %vm1478, %v1473, %v1475
        %v1480 = vsel %vm1478, %v1475, %v1477
        %v1482 = vsel %vm1215, %v1471, 0
        %v1485 = vsel %vm1219, %v1479, 0
        %v1488 = vsel %vm1219, %v1480, 0
        %v1491 = vsel %vm1219, %v1477, 0
        %1493 = vmatpush.bf16.msra.mxu0 0
        %1494 = vmatpush.bf16.msra.mxu0 0
        %1495 = vmatpush.bf16.msra.mxu0 0
        %1496 = vmatpush.bf16.msra.mxu0 0
        %1497 = vmatpush.bf16.msra.mxu0 0
        %1498 = vmatpush.bf16.msra.mxu0 0
        %1499 = vmatpush.bf16.msra.mxu0 0
        %1500 = vmatpush.bf16.msra.mxu0 %v1485
        %1501 = vmatmul.bf16.gmra.mxu0 %v1482
        %v1502 = vpop.f32.mrf.mxu0
        %v1503 = vadd.f32 0.0, %v1502
        %v1504 = vpop.f32.mrf.mxu0
        %1505 = vdwg.mxu0
        %1506 = vmatpush.bf16.msra.mxu0 0
        %1507 = vmatpush.bf16.msra.mxu0 0
        %1508 = vmatpush.bf16.msra.mxu0 0
        %1509 = vmatpush.bf16.msra.mxu0 0
        %1510 = vmatpush.bf16.msra.mxu0 0
        %1511 = vmatpush.bf16.msra.mxu0 0
        %1512 = vmatpush.bf16.msra.mxu0 0
        %1513 = vmatpush.bf16.msra.mxu0 %v1488
        %1514 = vmatmul.bf16.gmra.mxu0 %v1482
        %v1515 = vpop.f32.mrf.mxu0
        %v1516 = vadd.f32 0.0, %v1515
        %v1517 = vpop.f32.mrf.mxu0
        %1518 = vdwg.mxu0
        %1519 = vmatpush.bf16.msra.mxu0 0
        %1520 = vmatpush.bf16.msra.mxu0 0
        %1521 = vmatpush.bf16.msra.mxu0 0
        %1522 = vmatpush.bf16.msra.mxu0 0
        %1523 = vmatpush.bf16.msra.mxu0 0
        %1524 = vmatpush.bf16.msra.mxu0 0
        %1525 = vmatpush.bf16.msra.mxu0 0
        %1526 = vmatpush.bf16.msra.mxu0 %v1491
        %1527 = vmatmul.bf16.gmra.mxu0 %v1482
        %v1528 = vpop.f32.mrf.mxu0
        %v1529 = vadd.f32 0.0, %v1528
        %v1530 = vpop.f32.mrf.mxu0
        %1531 = vdwg.mxu0
        %v1532 = vadd.f32 %v1466, %v1503
        %v1533 = vadd.f32 %v1467, %v1516
        %v1534 = vadd.f32 %v1468, %v1529
        %s1535 = scalar_lea.vmem %s3, 20
        %v1536 = vld [vmem:[%s1535] sm:$0xf]
        %v1537 = vpack.c.bf16 %v1536, %v1536
        %1538 = vrot.lane.b32.xlu0 %v1212, 108
        %v1539 = vpop.permute.xlu0 %1538
        %1540 = vrot.lane.b32.xlu0 %v1213, 108
        %v1541 = vpop.permute.xlu0 %1540
        %1542 = vrot.lane.b32.xlu0 %v1214, 108
        %v1543 = vpop.permute.xlu0 %1542
        %vm1544 = vcmask 883712
        %v1545 = vsel %vm1544, %v1539, %v1541
        %v1546 = vsel %vm1544, %v1541, %v1543
        %v1548 = vsel %vm1215, %v1537, 0
        %v1551 = vsel %vm1219, %v1545, 0
        %v1554 = vsel %vm1219, %v1546, 0
        %v1557 = vsel %vm1219, %v1543, 0
        %1559 = vmatpush.bf16.msra.mxu0 0
        %1560 = vmatpush.bf16.msra.mxu0 0
        %1561 = vmatpush.bf16.msra.mxu0 0
        %1562 = vmatpush.bf16.msra.mxu0 0
        %1563 = vmatpush.bf16.msra.mxu0 0
        %1564 = vmatpush.bf16.msra.mxu0 0
        %1565 = vmatpush.bf16.msra.mxu0 0
        %1566 = vmatpush.bf16.msra.mxu0 %v1551
        %1567 = vmatmul.bf16.gmra.mxu0 %v1548
        %v1568 = vpop.f32.mrf.mxu0
        %v1569 = vadd.f32 0.0, %v1568
        %v1570 = vpop.f32.mrf.mxu0
        %1571 = vdwg.mxu0
        %1572 = vmatpush.bf16.msra.mxu0 0
        %1573 = vmatpush.bf16.msra.mxu0 0
        %1574 = vmatpush.bf16.msra.mxu0 0
        %1575 = vmatpush.bf16.msra.mxu0 0
        %1576 = vmatpush.bf16.msra.mxu0 0
        %1577 = vmatpush.bf16.msra.mxu0 0
        %1578 = vmatpush.bf16.msra.mxu0 0
        %1579 = vmatpush.bf16.msra.mxu0 %v1554
        %1580 = vmatmul.bf16.gmra.mxu0 %v1548
        %v1581 = vpop.f32.mrf.mxu0
        %v1582 = vadd.f32 0.0, %v1581
        %v1583 = vpop.f32.mrf.mxu0
        %1584 = vdwg.mxu0
        %1585 = vmatpush.bf16.msra.mxu0 0
        %1586 = vmatpush.bf16.msra.mxu0 0
        %1587 = vmatpush.bf16.msra.mxu0 0
        %1588 = vmatpush.bf16.msra.mxu0 0
        %1589 = vmatpush.bf16.msra.mxu0 0
        %1590 = vmatpush.bf16.msra.mxu0 0
        %1591 = vmatpush.bf16.msra.mxu0 0
        %1592 = vmatpush.bf16.msra.mxu0 %v1557
        %1593 = vmatmul.bf16.gmra.mxu0 %v1548
        %v1594 = vpop.f32.mrf.mxu0
        %v1595 = vadd.f32 0.0, %v1594
        %v1596 = vpop.f32.mrf.mxu0
        %1597 = vdwg.mxu0
        %v1598 = vadd.f32 %v1532, %v1569
        %v1599 = vadd.f32 %v1533, %v1582
        %v1600 = vadd.f32 %v1534, %v1595
        %s1601 = scalar_lea.vmem %s3, 24
        %v1602 = vld [vmem:[%s1601] sm:$0xf]
        %v1603 = vpack.c.bf16 %v1602, %v1602
        %1604 = vrot.lane.b32.xlu0 %v1212, 92
        %v1605 = vpop.permute.xlu0 %1604
        %1606 = vrot.lane.b32.xlu0 %v1213, 92
        %v1607 = vpop.permute.xlu0 %1606
        %1608 = vrot.lane.b32.xlu0 %v1214, 92
        %v1609 = vpop.permute.xlu0 %1608
        %vm1610 = vcmask 752640
        %v1611 = vsel %vm1610, %v1605, %v1607
        %v1612 = vsel %vm1610, %v1607, %v1609
        %v1614 = vsel %vm1215, %v1603, 0
        %v1617 = vsel %vm1219, %v1611, 0
        %v1620 = vsel %vm1219, %v1612, 0
        %v1623 = vsel %vm1219, %v1609, 0
        %1625 = vmatpush.bf16.msra.mxu0 0
        %1626 = vmatpush.bf16.msra.mxu0 0
        %1627 = vmatpush.bf16.msra.mxu0 0
        %1628 = vmatpush.bf16.msra.mxu0 0
        %1629 = vmatpush.bf16.msra.mxu0 0
        %1630 = vmatpush.bf16.msra.mxu0 0
        %1631 = vmatpush.bf16.msra.mxu0 0
        %1632 = vmatpush.bf16.msra.mxu0 %v1617
        %1633 = vmatmul.bf16.gmra.mxu0 %v1614
        %v1634 = vpop.f32.mrf.mxu0
        %v1635 = vadd.f32 0.0, %v1634
        %v1636 = vpop.f32.mrf.mxu0
        %1637 = vdwg.mxu0
        %1638 = vmatpush.bf16.msra.mxu0 0
        %1639 = vmatpush.bf16.msra.mxu0 0
        %1640 = vmatpush.bf16.msra.mxu0 0
        %1641 = vmatpush.bf16.msra.mxu0 0
        %1642 = vmatpush.bf16.msra.mxu0 0
        %1643 = vmatpush.bf16.msra.mxu0 0
        %1644 = vmatpush.bf16.msra.mxu0 0
        %1645 = vmatpush.bf16.msra.mxu0 %v1620
        %1646 = vmatmul.bf16.gmra.mxu0 %v1614
        %v1647 = vpop.f32.mrf.mxu0
        %v1648 = vadd.f32 0.0, %v1647
        %v1649 = vpop.f32.mrf.mxu0
        %1650 = vdwg.mxu0
        %1651 = vmatpush.bf16.msra.mxu0 0
        %1652 = vmatpush.bf16.msra.mxu0 0
        %1653 = vmatpush.bf16.msra.mxu0 0
        %1654 = vmatpush.bf16.msra.mxu0 0
        %1655 = vmatpush.bf16.msra.mxu0 0
        %1656 = vmatpush.bf16.msra.mxu0 0
        %1657 = vmatpush.bf16.msra.mxu0 0
        %1658 = vmatpush.bf16.msra.mxu0 %v1623
        %1659 = vmatmul.bf16.gmra.mxu0 %v1614
        %v1660 = vpop.f32.mrf.mxu0
        %v1661 = vadd.f32 0.0, %v1660
        %v1662 = vpop.f32.mrf.mxu0
        %1663 = vdwg.mxu0
        %v1664 = vadd.f32 %v1598, %v1635
        %v1665 = vadd.f32 %v1599, %v1648
        %v1666 = vadd.f32 %v1600, %v1661
        %s1667 = scalar_lea.vmem %s3, 28
        %v1668 = vld [vmem:[%s1667] sm:$0xf]
        %v1669 = vpack.c.bf16 %v1668, %v1668
        %1670 = vrot.lane.b32.xlu0 %v1212, 91
        %v1671 = vpop.permute.xlu0 %1670
        %1672 = vrot.lane.b32.xlu0 %v1213, 91
        %v1673 = vpop.permute.xlu0 %1672
        %1674 = vrot.lane.b32.xlu0 %v1214, 91
        %v1675 = vpop.permute.xlu0 %1674
        %vm1676 = vcmask 744448
        %v1677 = vsel %vm1676, %v1671, %v1673
        %v1678 = vsel %vm1676, %v1673, %v1675
        %v1680 = vsel %vm1215, %v1669, 0
        %v1683 = vsel %vm1219, %v1677, 0
        %v1686 = vsel %vm1219, %v1678, 0
        %v1689 = vsel %vm1219, %v1675, 0
        %1691 = vmatpush.bf16.msra.mxu0 0
        %1692 = vmatpush.bf16.msra.mxu0 0
        %1693 = vmatpush.bf16.msra.mxu0 0
        %1694 = vmatpush.bf16.msra.mxu0 0
        %1695 = vmatpush.bf16.msra.mxu0 0
        %1696 = vmatpush.bf16.msra.mxu0 0
        %1697 = vmatpush.bf16.msra.mxu0 0
        %1698 = vmatpush.bf16.msra.mxu0 %v1683
        %1699 = vmatmul.bf16.gmra.mxu0 %v1680
        %v1700 = vpop.f32.mrf.mxu0
        %v1701 = vadd.f32 0.0, %v1700
        %v1702 = vpop.f32.mrf.mxu0
        %1703 = vdwg.mxu0
        %1704 = vmatpush.bf16.msra.mxu0 0
        %1705 = vmatpush.bf16.msra.mxu0 0
        %1706 = vmatpush.bf16.msra.mxu0 0
        %1707 = vmatpush.bf16.msra.mxu0 0
        %1708 = vmatpush.bf16.msra.mxu0 0
        %1709 = vmatpush.bf16.msra.mxu0 0
        %1710 = vmatpush.bf16.msra.mxu0 0
        %1711 = vmatpush.bf16.msra.mxu0 %v1686
        %1712 = vmatmul.bf16.gmra.mxu0 %v1680
        %v1713 = vpop.f32.mrf.mxu0
        %v1714 = vadd.f32 0.0, %v1713
        %v1715 = vpop.f32.mrf.mxu0
        %1716 = vdwg.mxu0
        %1717 = vmatpush.bf16.msra.mxu0 0
        %1718 = vmatpush.bf16.msra.mxu0 0
        %1719 = vmatpush.bf16.msra.mxu0 0
        %1720 = vmatpush.bf16.msra.mxu0 0
        %1721 = vmatpush.bf16.msra.mxu0 0
        %1722 = vmatpush.bf16.msra.mxu0 0
        %1723 = vmatpush.bf16.msra.mxu0 0
        %1724 = vmatpush.bf16.msra.mxu0 %v1689
        %1725 = vmatmul.bf16.gmra.mxu0 %v1680
        %v1726 = vpop.f32.mrf.mxu0
        %v1727 = vadd.f32 0.0, %v1726
        %v1728 = vpop.f32.mrf.mxu0
        %1729 = vdwg.mxu0
        %v1730 = vadd.f32 %v1664, %v1701
        %v1731 = vadd.f32 %v1665, %v1714
        %v1732 = vadd.f32 %v1666, %v1727
        %s1733 = scalar_lea.vmem %s3, 32
        %v1734 = vld [vmem:[%s1733] sm:$0xf]
        %v1735 = vpack.c.bf16 %v1734, %v1734
        %1736 = vrot.lane.b32.xlu0 %v1212, 90
        %v1737 = vpop.permute.xlu0 %1736
        %1738 = vrot.lane.b32.xlu0 %v1213, 90
        %v1739 = vpop.permute.xlu0 %1738
        %1740 = vrot.lane.b32.xlu0 %v1214, 90
        %v1741 = vpop.permute.xlu0 %1740
        %vm1742 = vcmask 736256
        %v1743 = vsel %vm1742, %v1737, %v1739
        %v1744 = vsel %vm1742, %v1739, %v1741
        %v1746 = vsel %vm1215, %v1735, 0
        %v1749 = vsel %vm1219, %v1743, 0
        %v1752 = vsel %vm1219, %v1744, 0
        %v1755 = vsel %vm1219, %v1741, 0
        %1757 = vmatpush.bf16.msra.mxu0 0
        %1758 = vmatpush.bf16.msra.mxu0 0
        %1759 = vmatpush.bf16.msra.mxu0 0
        %1760 = vmatpush.bf16.msra.mxu0 0
        %1761 = vmatpush.bf16.msra.mxu0 0
        %1762 = vmatpush.bf16.msra.mxu0 0
        %1763 = vmatpush.bf16.msra.mxu0 0
        %1764 = vmatpush.bf16.msra.mxu0 %v1749
        %1765 = vmatmul.bf16.gmra.mxu0 %v1746
        %v1766 = vpop.f32.mrf.mxu0
        %v1767 = vadd.f32 0.0, %v1766
        %v1768 = vpop.f32.mrf.mxu0
        %1769 = vdwg.mxu0
        %1770 = vmatpush.bf16.msra.mxu0 0
        %1771 = vmatpush.bf16.msra.mxu0 0
        %1772 = vmatpush.bf16.msra.mxu0 0
        %1773 = vmatpush.bf16.msra.mxu0 0
        %1774 = vmatpush.bf16.msra.mxu0 0
        %1775 = vmatpush.bf16.msra.mxu0 0
        %1776 = vmatpush.bf16.msra.mxu0 0
        %1777 = vmatpush.bf16.msra.mxu0 %v1752
        %1778 = vmatmul.bf16.gmra.mxu0 %v1746
        %v1779 = vpop.f32.mrf.mxu0
        %v1780 = vadd.f32 0.0, %v1779
        %v1781 = vpop.f32.mrf.mxu0
        %1782 = vdwg.mxu0
        %1783 = vmatpush.bf16.msra.mxu0 0
        %1784 = vmatpush.bf16.msra.mxu0 0
        %1785 = vmatpush.bf16.msra.mxu0 0
        %1786 = vmatpush.bf16.msra.mxu0 0
        %1787 = vmatpush.bf16.msra.mxu0 0
        %1788 = vmatpush.bf16.msra.mxu0 0
        %1789 = vmatpush.bf16.msra.mxu0 0
        %1790 = vmatpush.bf16.msra.mxu0 %v1755
        %1791 = vmatmul.bf16.gmra.mxu0 %v1746
        %v1792 = vpop.f32.mrf.mxu0
        %v1793 = vadd.f32 0.0, %v1792
        %v1794 = vpop.f32.mrf.mxu0
        %1795 = vdwg.mxu0
        %v1796 = vadd.f32 %v1730, %v1767
        %v1797 = vadd.f32 %v1731, %v1780
        %v1798 = vadd.f32 %v1732, %v1793
        %vm1799 = vcmask 261120
        %v1801 = vsel %vm1799, %v1798, 0
        %1803 = vmatpush.msra.mxu0 %v1029
        %1804 = vmatpush.msra.mxu0 %v1027
        %1805 = vmatpush.msra.mxu0 %v1025
        %1806 = vmatpush.msra.mxu0 %v1023
        %1807 = vmatpush.msra.mxu0 %v1021
        %1808 = vmatpush.msra.mxu0 %v1019
        %1809 = vmatpush.msra.mxu0 %v1017
        %1810 = vmatpush.msra.mxu0 %v1015
        %1811 = vmatpush.msra.mxu0 %v1013
        %1812 = vmatpush.msra.mxu0 %v1011
        %1813 = vmatpush.msra.mxu0 %v1009
        %1814 = vmatpush.msra.mxu0 %v1007
        %1815 = vmatpush.msra.mxu0 %v1005
        %1816 = vmatpush.msra.mxu0 %v1003
        %1817 = vmatpush.msra.mxu0 %v1001
        %1818 = vmatpush.msra.mxu0 %v999
        %1819 = vmatmul.f32.gmra.mxu0 %v1796
        %v1820 = vpop.f32.mrf.mxu0
        %v1821 = vadd.f32 0.0, %v1820
        %1822 = vdwg.mxu0
        %1823 = vmatpush.msra.mxu0 %v1061
        %1824 = vmatpush.msra.mxu0 %v1059
        %1825 = vmatpush.msra.mxu0 %v1057
        %1826 = vmatpush.msra.mxu0 %v1055
        %1827 = vmatpush.msra.mxu0 %v1053
        %1828 = vmatpush.msra.mxu0 %v1051
        %1829 = vmatpush.msra.mxu0 %v1049
        %1830 = vmatpush.msra.mxu0 %v1047
        %1831 = vmatpush.msra.mxu0 %v1045
        %1832 = vmatpush.msra.mxu0 %v1043
        %1833 = vmatpush.msra.mxu0 %v1041
        %1834 = vmatpush.msra.mxu0 %v1039
        %1835 = vmatpush.msra.mxu0 %v1037
        %1836 = vmatpush.msra.mxu0 %v1035
        %1837 = vmatpush.msra.mxu0 %v1033
        %1838 = vmatpush.msra.mxu0 %v1031
        %1839 = vmatmul.f32.gmra.mxu0 %v1797
        %v1840 = vpop.f32.mrf.mxu0
        %v1841 = vadd.f32 %v1821, %v1840
        %1842 = vdwg.mxu0
        %1843 = vmatpush.msra.mxu0 0.0
        %1844 = vmatpush.msra.mxu0 0.0
        %1845 = vmatpush.msra.mxu0 0.0
        %1846 = vmatpush.msra.mxu0 0.0
        %1847 = vmatpush.msra.mxu0 0.0
        %1848 = vmatpush.msra.mxu0 0.0
        %1849 = vmatpush.msra.mxu0 0.0
        %1850 = vmatpush.msra.mxu0 0.0
        %1851 = vmatpush.msra.mxu0 0.0
        %1852 = vmatpush.msra.mxu0 0.0
        %1853 = vmatpush.msra.mxu0 0.0
        %1854 = vmatpush.msra.mxu0 0.0
        %1855 = vmatpush.msra.mxu0 %v1069
        %1856 = vmatpush.msra.mxu0 %v1067
        %1857 = vmatpush.msra.mxu0 %v1065
        %1858 = vmatpush.msra.mxu0 %v1063
        %1859 = vmatmul.f32.gmra.mxu0 %v1801
        %v1860 = vpop.f32.mrf.mxu0
        %v1861 = vadd.f32 %v1841, %v1860
        %1862 = vdwg.mxu0
        %1863 = vmatpush.msra.mxu0 %v1030
        %1864 = vmatpush.msra.mxu0 %v1028
        %1865 = vmatpush.msra.mxu0 %v1026
        %1866 = vmatpush.msra.mxu0 %v1024
        %1867 = vmatpush.msra.mxu0 %v1022
        %1868 = vmatpush.msra.mxu0 %v1020
        %1869 = vmatpush.msra.mxu0 %v1018
        %1870 = vmatpush.msra.mxu0 %v1016
        %1871 = vmatpush.msra.mxu0 %v1014
        %1872 = vmatpush.msra.mxu0 %v1012
        %1873 = vmatpush.msra.mxu0 %v1010
        %1874 = vmatpush.msra.mxu0 %v1008
        %1875 = vmatpush.msra.mxu0 %v1006
        %1876 = vmatpush.msra.mxu0 %v1004
        %1877 = vmatpush.msra.mxu0 %v1002
        %1878 = vmatpush.msra.mxu0 %v1000
        %1879 = vmatmul.f32.gmra.mxu0 %v1796
        %v1880 = vpop.f32.mrf.mxu0
        %v1881 = vadd.f32 0.0, %v1880
        %1882 = vdwg.mxu0
        %1883 = vmatpush.msra.mxu0 %v1062
        %1884 = vmatpush.msra.mxu0 %v1060
        %1885 = vmatpush.msra.mxu0 %v1058
        %1886 = vmatpush.msra.mxu0 %v1056
        %1887 = vmatpush.msra.mxu0 %v1054
        %1888 = vmatpush.msra.mxu0 %v1052
        %1889 = vmatpush.msra.mxu0 %v1050
        %1890 = vmatpush.msra.mxu0 %v1048
        %1891 = vmatpush.msra.mxu0 %v1046
        %1892 = vmatpush.msra.mxu0 %v1044
        %1893 = vmatpush.msra.mxu0 %v1042
        %1894 = vmatpush.msra.mxu0 %v1040
        %1895 = vmatpush.msra.mxu0 %v1038
        %1896 = vmatpush.msra.mxu0 %v1036
        %1897 = vmatpush.msra.mxu0 %v1034
        %1898 = vmatpush.msra.mxu0 %v1032
        %1899 = vmatmul.f32.gmra.mxu0 %v1797
        %v1900 = vpop.f32.mrf.mxu0
        %v1901 = vadd.f32 %v1881, %v1900
        %1902 = vdwg.mxu0
        %1903 = vmatpush.msra.mxu0 0.0
        %1904 = vmatpush.msra.mxu0 0.0
        %1905 = vmatpush.msra.mxu0 0.0
        %1906 = vmatpush.msra.mxu0 0.0
        %1907 = vmatpush.msra.mxu0 0.0
        %1908 = vmatpush.msra.mxu0 0.0
        %1909 = vmatpush.msra.mxu0 0.0
        %1910 = vmatpush.msra.mxu0 0.0
        %1911 = vmatpush.msra.mxu0 0.0
        %1912 = vmatpush.msra.mxu0 0.0
        %1913 = vmatpush.msra.mxu0 0.0
        %1914 = vmatpush.msra.mxu0 0.0
        %1915 = vmatpush.msra.mxu0 %v1070
        %1916 = vmatpush.msra.mxu0 %v1068
        %1917 = vmatpush.msra.mxu0 %v1066
        %1918 = vmatpush.msra.mxu0 %v1064
        %1919 = vmatmul.f32.gmra.mxu0 %v1801
        %v1920 = vpop.f32.mrf.mxu0
        %v1921 = vadd.f32 %v1901, %v1920
        %1922 = vdwg.mxu0
        %v1923 = vmax.f32 %v1861, 0.0
        %v1924 = vmax.f32 %v1921, 0.0
        %1925 = vmatpush.msra.mxu0 %v948
        %1926 = vmatpush.msra.mxu0 %v945
        %1927 = vmatpush.msra.mxu0 %v942
        %1928 = vmatpush.msra.mxu0 %v939
        %1929 = vmatpush.msra.mxu0 %v936
        %1930 = vmatpush.msra.mxu0 %v933
        %1931 = vmatpush.msra.mxu0 %v930
        %1932 = vmatpush.msra.mxu0 %v927
        %1933 = vmatpush.msra.mxu0 %v924
        %1934 = vmatpush.msra.mxu0 %v921
        %1935 = vmatpush.msra.mxu0 %v918
        %1936 = vmatpush.msra.mxu0 %v915
        %1937 = vmatpush.msra.mxu0 %v912
        %1938 = vmatpush.msra.mxu0 %v909
        %1939 = vmatpush.msra.mxu0 %v906
        %1940 = vmatpush.msra.mxu0 %v903
        %1941 = vmatmul.f32.gmra.mxu0 %v1923
        %v1942 = vpop.f32.mrf.mxu0
        %v1943 = vadd.f32 0.0, %v1942
        %1944 = vdwg.mxu0
        %1945 = vmatpush.msra.mxu0 %v996
        %1946 = vmatpush.msra.mxu0 %v993
        %1947 = vmatpush.msra.mxu0 %v990
        %1948 = vmatpush.msra.mxu0 %v987
        %1949 = vmatpush.msra.mxu0 %v984
        %1950 = vmatpush.msra.mxu0 %v981
        %1951 = vmatpush.msra.mxu0 %v978
        %1952 = vmatpush.msra.mxu0 %v975
        %1953 = vmatpush.msra.mxu0 %v972
        %1954 = vmatpush.msra.mxu0 %v969
        %1955 = vmatpush.msra.mxu0 %v966
        %1956 = vmatpush.msra.mxu0 %v963
        %1957 = vmatpush.msra.mxu0 %v960
        %1958 = vmatpush.msra.mxu0 %v957
        %1959 = vmatpush.msra.mxu0 %v954
        %1960 = vmatpush.msra.mxu0 %v951
        %1961 = vmatmul.f32.gmra.mxu0 %v1924
        %v1962 = vpop.f32.mrf.mxu0
        %v1963 = vadd.f32 %v1943, %v1962
        %1964 = vdwg.mxu0
        %1965 = vmatpush.msra.mxu0 %v949
        %1966 = vmatpush.msra.mxu0 %v946
        %1967 = vmatpush.msra.mxu0 %v943
        %1968 = vmatpush.msra.mxu0 %v940
        %1969 = vmatpush.msra.mxu0 %v937
        %1970 = vmatpush.msra.mxu0 %v934
        %1971 = vmatpush.msra.mxu0 %v931
        %1972 = vmatpush.msra.mxu0 %v928
        %1973 = vmatpush.msra.mxu0 %v925
        %1974 = vmatpush.msra.mxu0 %v922
        %1975 = vmatpush.msra.mxu0 %v919
        %1976 = vmatpush.msra.mxu0 %v916
        %1977 = vmatpush.msra.mxu0 %v913
        %1978 = vmatpush.msra.mxu0 %v910
        %1979 = vmatpush.msra.mxu0 %v907
        %1980 = vmatpush.msra.mxu0 %v904
        %1981 = vmatmul.f32.gmra.mxu0 %v1923
        %v1982 = vpop.f32.mrf.mxu0
        %v1983 = vadd.f32 0.0, %v1982
        %1984 = vdwg.mxu0
        %1985 = vmatpush.msra.mxu0 %v997
        %1986 = vmatpush.msra.mxu0 %v994
        %1987 = vmatpush.msra.mxu0 %v991
        %1988 = vmatpush.msra.mxu0 %v988
        %1989 = vmatpush.msra.mxu0 %v985
        %1990 = vmatpush.msra.mxu0 %v982
        %1991 = vmatpush.msra.mxu0 %v979
        %1992 = vmatpush.msra.mxu0 %v976
        %1993 = vmatpush.msra.mxu0 %v973
        %1994 = vmatpush.msra.mxu0 %v970
        %1995 = vmatpush.msra.mxu0 %v967
        %1996 = vmatpush.msra.mxu0 %v964
        %1997 = vmatpush.msra.mxu0 %v961
        %1998 = vmatpush.msra.mxu0 %v958
        %1999 = vmatpush.msra.mxu0 %v955
        %2000 = vmatpush.msra.mxu0 %v952
        %2001 = vmatmul.f32.gmra.mxu0 %v1924
        %v2002 = vpop.f32.mrf.mxu0
        %v2003 = vadd.f32 %v1983, %v2002
        %2004 = vdwg.mxu0
        %2005 = vmatpush.msra.mxu0 %v950
        %2006 = vmatpush.msra.mxu0 %v947
        %2007 = vmatpush.msra.mxu0 %v944
        %2008 = vmatpush.msra.mxu0 %v941
        %2009 = vmatpush.msra.mxu0 %v938
        %2010 = vmatpush.msra.mxu0 %v935
        %2011 = vmatpush.msra.mxu0 %v932
        %2012 = vmatpush.msra.mxu0 %v929
        %2013 = vmatpush.msra.mxu0 %v926
        %2014 = vmatpush.msra.mxu0 %v923
        %2015 = vmatpush.msra.mxu0 %v920
        %2016 = vmatpush.msra.mxu0 %v917
        %2017 = vmatpush.msra.mxu0 %v914
        %2018 = vmatpush.msra.mxu0 %v911
        %2019 = vmatpush.msra.mxu0 %v908
        %2020 = vmatpush.msra.mxu0 %v905
        %2021 = vmatmul.f32.gmra.mxu0 %v1923
        %v2022 = vpop.f32.mrf.mxu0
        %v2023 = vadd.f32 0.0, %v2022
        %2024 = vdwg.mxu0
        %2025 = vmatpush.msra.mxu0 %v998
        %2026 = vmatpush.msra.mxu0 %v995
        %2027 = vmatpush.msra.mxu0 %v992
        %2028 = vmatpush.msra.mxu0 %v989
        %2029 = vmatpush.msra.mxu0 %v986
        %2030 = vmatpush.msra.mxu0 %v983
        %2031 = vmatpush.msra.mxu0 %v980
        %2032 = vmatpush.msra.mxu0 %v977
        %2033 = vmatpush.msra.mxu0 %v974
        %2034 = vmatpush.msra.mxu0 %v971
        %2035 = vmatpush.msra.mxu0 %v968
        %2036 = vmatpush.msra.mxu0 %v965
        %2037 = vmatpush.msra.mxu0 %v962
        %2038 = vmatpush.msra.mxu0 %v959
        %2039 = vmatpush.msra.mxu0 %v956
        %2040 = vmatpush.msra.mxu0 %v953
        %2041 = vmatmul.f32.gmra.mxu0 %v1924
        %v2042 = vpop.f32.mrf.mxu0
        %v2043 = vadd.f32 %v2023, %v2042
        %2044 = vdwg.mxu0
        %v2045 = vpack.c.bf16 %v2003, %v1963
        %v2046 = vpack.c.bf16 %v2043, %v2043
        %v2047 = vld [vmem:[%s9] sm:$0xff]
        %2049 = vset.pattern.permute.xlu0 0
        %2050 = vperm.xlu0 %2049, %v2047
        %v2051 = vpop.permute.xlu0 %2050
        %v2053 = vld [vmem:[%s7] sm:$0xff]
        %v2054 = vpack.c.bf16 %v2053, %v2053
        %v2057 = vunpack.c.l.b16 %v2045
        %v2058 = vunpack.c.h.b16 %v2045
        %v2059 = vunpack.c.l.b16 %v2046
        %v2060 = vpack.c.b16 %v2057, %v2057
        %v2061 = vpack.c.b16 %v2058, %v2058
        %v2062 = vpack.c.b16 %v2059, %v2059
        %v2064 = vsel %vm1215, %v2054, 0
        %v2067 = vsel %vm1219, %v2060, 0
        %v2070 = vsel %vm1219, %v2061, 0
        %v2073 = vsel %vm1219, %v2062, 0
        %2075 = vmatpush.bf16.msra.mxu0 0
        %2076 = vmatpush.bf16.msra.mxu0 0
        %2077 = vmatpush.bf16.msra.mxu0 0
        %2078 = vmatpush.bf16.msra.mxu0 0
        %2079 = vmatpush.bf16.msra.mxu0 0
        %2080 = vmatpush.bf16.msra.mxu0 0
        %2081 = vmatpush.bf16.msra.mxu0 0
        %2082 = vmatpush.bf16.msra.mxu0 %v2067
        %2083 = vmatmul.bf16.gmra.mxu0 %v2064
        %v2084 = vpop.f32.mrf.mxu0
        %v2085 = vadd.f32 0.0, %v2084
        %v2086 = vpop.f32.mrf.mxu0
        %2087 = vdwg.mxu0
        %2088 = vmatpush.bf16.msra.mxu0 0
        %2089 = vmatpush.bf16.msra.mxu0 0
        %2090 = vmatpush.bf16.msra.mxu0 0
        %2091 = vmatpush.bf16.msra.mxu0 0
        %2092 = vmatpush.bf16.msra.mxu0 0
        %2093 = vmatpush.bf16.msra.mxu0 0
        %2094 = vmatpush.bf16.msra.mxu0 0
        %2095 = vmatpush.bf16.msra.mxu0 %v2070
        %2096 = vmatmul.bf16.gmra.mxu0 %v2064
        %v2097 = vpop.f32.mrf.mxu0
        %v2098 = vadd.f32 0.0, %v2097
        %v2099 = vpop.f32.mrf.mxu0
        %2100 = vdwg.mxu0
        %2101 = vmatpush.bf16.msra.mxu0 0
        %2102 = vmatpush.bf16.msra.mxu0 0
        %2103 = vmatpush.bf16.msra.mxu0 0
        %2104 = vmatpush.bf16.msra.mxu0 0
        %2105 = vmatpush.bf16.msra.mxu0 0
        %2106 = vmatpush.bf16.msra.mxu0 0
        %2107 = vmatpush.bf16.msra.mxu0 0
        %2108 = vmatpush.bf16.msra.mxu0 %v2073
        %2109 = vmatmul.bf16.gmra.mxu0 %v2064
        %v2110 = vpop.f32.mrf.mxu0
        %v2111 = vadd.f32 0.0, %v2110
        %v2112 = vpop.f32.mrf.mxu0
        %2113 = vdwg.mxu0
        %v2114 = vadd.f32 %v2051, %v2085
        %v2115 = vadd.f32 %v2051, %v2098
        %v2116 = vadd.f32 %v2051, %v2111
        %s2117 = scalar_lea.vmem %s7, 8
        %v2118 = vld [vmem:[%s2117] sm:$0xff]
        %v2119 = vpack.c.bf16 %v2118, %v2118
        %2120 = vrot.lane.b32.xlu0 %v2060, 127
        %v2121 = vpop.permute.xlu0 %2120
        %2122 = vrot.lane.b32.xlu0 %v2061, 127
        %v2123 = vpop.permute.xlu0 %2122
        %2124 = vrot.lane.b32.xlu0 %v2062, 127
        %v2125 = vpop.permute.xlu0 %2124
        %v2126 = vsel %vm1280, %v2121, %v2123
        %v2127 = vsel %vm1280, %v2123, %v2125
        %v2129 = vsel %vm1215, %v2119, 0
        %v2132 = vsel %vm1219, %v2126, 0
        %v2135 = vsel %vm1219, %v2127, 0
        %v2138 = vsel %vm1219, %v2125, 0
        %2140 = vmatpush.bf16.msra.mxu0 0
        %2141 = vmatpush.bf16.msra.mxu0 0
        %2142 = vmatpush.bf16.msra.mxu0 0
        %2143 = vmatpush.bf16.msra.mxu0 0
        %2144 = vmatpush.bf16.msra.mxu0 0
        %2145 = vmatpush.bf16.msra.mxu0 0
        %2146 = vmatpush.bf16.msra.mxu0 0
        %2147 = vmatpush.bf16.msra.mxu0 %v2132
        %2148 = vmatmul.bf16.gmra.mxu0 %v2129
        %v2149 = vpop.f32.mrf.mxu0
        %v2150 = vadd.f32 0.0, %v2149
        %v2151 = vpop.f32.mrf.mxu0
        %2152 = vdwg.mxu0
        %2153 = vmatpush.bf16.msra.mxu0 0
        %2154 = vmatpush.bf16.msra.mxu0 0
        %2155 = vmatpush.bf16.msra.mxu0 0
        %2156 = vmatpush.bf16.msra.mxu0 0
        %2157 = vmatpush.bf16.msra.mxu0 0
        %2158 = vmatpush.bf16.msra.mxu0 0
        %2159 = vmatpush.bf16.msra.mxu0 0
        %2160 = vmatpush.bf16.msra.mxu0 %v2135
        %2161 = vmatmul.bf16.gmra.mxu0 %v2129
        %v2162 = vpop.f32.mrf.mxu0
        %v2163 = vadd.f32 0.0, %v2162
        %v2164 = vpop.f32.mrf.mxu0
        %2165 = vdwg.mxu0
        %2166 = vmatpush.bf16.msra.mxu0 0
        %2167 = vmatpush.bf16.msra.mxu0 0
        %2168 = vmatpush.bf16.msra.mxu0 0
        %2169 = vmatpush.bf16.msra.mxu0 0
        %2170 = vmatpush.bf16.msra.mxu0 0
        %2171 = vmatpush.bf16.msra.mxu0 0
        %2172 = vmatpush.bf16.msra.mxu0 0
        %2173 = vmatpush.bf16.msra.mxu0 %v2138
        %2174 = vmatmul.bf16.gmra.mxu0 %v2129
        %v2175 = vpop.f32.mrf.mxu0
        %v2176 = vadd.f32 0.0, %v2175
        %v2177 = vpop.f32.mrf.mxu0
        %2178 = vdwg.mxu0
        %v2179 = vadd.f32 %v2114, %v2150
        %v2180 = vadd.f32 %v2115, %v2163
        %v2181 = vadd.f32 %v2116, %v2176
        %s2182 = scalar_lea.vmem %s7, 16
        %v2183 = vld [vmem:[%s2182] sm:$0xff]
        %v2184 = vpack.c.bf16 %v2183, %v2183
        %2185 = vrot.lane.b32.xlu0 %v2060, 126
        %v2186 = vpop.permute.xlu0 %2185
        %2187 = vrot.lane.b32.xlu0 %v2061, 126
        %v2188 = vpop.permute.xlu0 %2187
        %2189 = vrot.lane.b32.xlu0 %v2062, 126
        %v2190 = vpop.permute.xlu0 %2189
        %v2191 = vsel %vm1346, %v2186, %v2188
        %v2192 = vsel %vm1346, %v2188, %v2190
        %v2194 = vsel %vm1215, %v2184, 0
        %v2197 = vsel %vm1219, %v2191, 0
        %v2200 = vsel %vm1219, %v2192, 0
        %v2203 = vsel %vm1219, %v2190, 0
        %2205 = vmatpush.bf16.msra.mxu0 0
        %2206 = vmatpush.bf16.msra.mxu0 0
        %2207 = vmatpush.bf16.msra.mxu0 0
        %2208 = vmatpush.bf16.msra.mxu0 0
        %2209 = vmatpush.bf16.msra.mxu0 0
        %2210 = vmatpush.bf16.msra.mxu0 0
        %2211 = vmatpush.bf16.msra.mxu0 0
        %2212 = vmatpush.bf16.msra.mxu0 %v2197
        %2213 = vmatmul.bf16.gmra.mxu0 %v2194
        %v2214 = vpop.f32.mrf.mxu0
        %v2215 = vadd.f32 0.0, %v2214
        %v2216 = vpop.f32.mrf.mxu0
        %2217 = vdwg.mxu0
        %2218 = vmatpush.bf16.msra.mxu0 0
        %2219 = vmatpush.bf16.msra.mxu0 0
        %2220 = vmatpush.bf16.msra.mxu0 0
        %2221 = vmatpush.bf16.msra.mxu0 0
        %2222 = vmatpush.bf16.msra.mxu0 0
        %2223 = vmatpush.bf16.msra.mxu0 0
        %2224 = vmatpush.bf16.msra.mxu0 0
        %2225 = vmatpush.bf16.msra.mxu0 %v2200
        %2226 = vmatmul.bf16.gmra.mxu0 %v2194
        %v2227 = vpop.f32.mrf.mxu0
        %v2228 = vadd.f32 0.0, %v2227
        %v2229 = vpop.f32.mrf.mxu0
        %2230 = vdwg.mxu0
        %2231 = vmatpush.bf16.msra.mxu0 0
        %2232 = vmatpush.bf16.msra.mxu0 0
        %2233 = vmatpush.bf16.msra.mxu0 0
        %2234 = vmatpush.bf16.msra.mxu0 0
        %2235 = vmatpush.bf16.msra.mxu0 0
        %2236 = vmatpush.bf16.msra.mxu0 0
        %2237 = vmatpush.bf16.msra.mxu0 0
        %2238 = vmatpush.bf16.msra.mxu0 %v2203
        %2239 = vmatmul.bf16.gmra.mxu0 %v2194
        %v2240 = vpop.f32.mrf.mxu0
        %v2241 = vadd.f32 0.0, %v2240
        %v2242 = vpop.f32.mrf.mxu0
        %2243 = vdwg.mxu0
        %v2244 = vadd.f32 %v2179, %v2215
        %v2245 = vadd.f32 %v2180, %v2228
        %v2246 = vadd.f32 %v2181, %v2241
        %s2247 = scalar_lea.vmem %s7, 24
        %v2248 = vld [vmem:[%s2247] sm:$0xff]
        %v2249 = vpack.c.bf16 %v2248, %v2248
        %2250 = vrot.lane.b32.xlu0 %v2060, 110
        %v2251 = vpop.permute.xlu0 %2250
        %2252 = vrot.lane.b32.xlu0 %v2061, 110
        %v2253 = vpop.permute.xlu0 %2252
        %2254 = vrot.lane.b32.xlu0 %v2062, 110
        %v2255 = vpop.permute.xlu0 %2254
        %v2256 = vsel %vm1412, %v2251, %v2253
        %v2257 = vsel %vm1412, %v2253, %v2255
        %v2259 = vsel %vm1215, %v2249, 0
        %v2262 = vsel %vm1219, %v2256, 0
        %v2265 = vsel %vm1219, %v2257, 0
        %v2268 = vsel %vm1219, %v2255, 0
        %2270 = vmatpush.bf16.msra.mxu0 0
        %2271 = vmatpush.bf16.msra.mxu0 0
        %2272 = vmatpush.bf16.msra.mxu0 0
        %2273 = vmatpush.bf16.msra.mxu0 0
        %2274 = vmatpush.bf16.msra.mxu0 0
        %2275 = vmatpush.bf16.msra.mxu0 0
        %2276 = vmatpush.bf16.msra.mxu0 0
        %2277 = vmatpush.bf16.msra.mxu0 %v2262
        %2278 = vmatmul.bf16.gmra.mxu0 %v2259
        %v2279 = vpop.f32.mrf.mxu0
        %v2280 = vadd.f32 0.0, %v2279
        %v2281 = vpop.f32.mrf.mxu0
        %2282 = vdwg.mxu0
        %2283 = vmatpush.bf16.msra.mxu0 0
        %2284 = vmatpush.bf16.msra.mxu0 0
        %2285 = vmatpush.bf16.msra.mxu0 0
        %2286 = vmatpush.bf16.msra.mxu0 0
        %2287 = vmatpush.bf16.msra.mxu0 0
        %2288 = vmatpush.bf16.msra.mxu0 0
        %2289 = vmatpush.bf16.msra.mxu0 0
        %2290 = vmatpush.bf16.msra.mxu0 %v2265
        %2291 = vmatmul.bf16.gmra.mxu0 %v2259
        %v2292 = vpop.f32.mrf.mxu0
        %v2293 = vadd.f32 0.0, %v2292
        %v2294 = vpop.f32.mrf.mxu0
        %2295 = vdwg.mxu0
        %2296 = vmatpush.bf16.msra.mxu0 0
        %2297 = vmatpush.bf16.msra.mxu0 0
        %2298 = vmatpush.bf16.msra.mxu0 0
        %2299 = vmatpush.bf16.msra.mxu0 0
        %2300 = vmatpush.bf16.msra.mxu0 0
        %2301 = vmatpush.bf16.msra.mxu0 0
        %2302 = vmatpush.bf16.msra.mxu0 0
        %2303 = vmatpush.bf16.msra.mxu0 %v2268
        %2304 = vmatmul.bf16.gmra.mxu0 %v2259
        %v2305 = vpop.f32.mrf.mxu0
        %v2306 = vadd.f32 0.0, %v2305
        %v2307 = vpop.f32.mrf.mxu0
        %2308 = vdwg.mxu0
        %v2309 = vadd.f32 %v2244, %v2280
        %v2310 = vadd.f32 %v2245, %v2293
        %v2311 = vadd.f32 %v2246, %v2306
        %s2312 = scalar_lea.vmem %s7, 32
        %v2313 = vld [vmem:[%s2312] sm:$0xff]
        %v2314 = vpack.c.bf16 %v2313, %v2313
        %2315 = vrot.lane.b32.xlu0 %v2060, 109
        %v2316 = vpop.permute.xlu0 %2315
        %2317 = vrot.lane.b32.xlu0 %v2061, 109
        %v2318 = vpop.permute.xlu0 %2317
        %2319 = vrot.lane.b32.xlu0 %v2062, 109
        %v2320 = vpop.permute.xlu0 %2319
        %v2321 = vsel %vm1478, %v2316, %v2318
        %v2322 = vsel %vm1478, %v2318, %v2320
        %v2324 = vsel %vm1215, %v2314, 0
        %v2327 = vsel %vm1219, %v2321, 0
        %v2330 = vsel %vm1219, %v2322, 0
        %v2333 = vsel %vm1219, %v2320, 0
        %2335 = vmatpush.bf16.msra.mxu0 0
        %2336 = vmatpush.bf16.msra.mxu0 0
        %2337 = vmatpush.bf16.msra.mxu0 0
        %2338 = vmatpush.bf16.msra.mxu0 0
        %2339 = vmatpush.bf16.msra.mxu0 0
        %2340 = vmatpush.bf16.msra.mxu0 0
        %2341 = vmatpush.bf16.msra.mxu0 0
        %2342 = vmatpush.bf16.msra.mxu0 %v2327
        %2343 = vmatmul.bf16.gmra.mxu0 %v2324
        %v2344 = vpop.f32.mrf.mxu0
        %v2345 = vadd.f32 0.0, %v2344
        %v2346 = vpop.f32.mrf.mxu0
        %2347 = vdwg.mxu0
        %2348 = vmatpush.bf16.msra.mxu0 0
        %2349 = vmatpush.bf16.msra.mxu0 0
        %2350 = vmatpush.bf16.msra.mxu0 0
        %2351 = vmatpush.bf16.msra.mxu0 0
        %2352 = vmatpush.bf16.msra.mxu0 0
        %2353 = vmatpush.bf16.msra.mxu0 0
        %2354 = vmatpush.bf16.msra.mxu0 0
        %2355 = vmatpush.bf16.msra.mxu0 %v2330
        %2356 = vmatmul.bf16.gmra.mxu0 %v2324
        %v2357 = vpop.f32.mrf.mxu0
        %v2358 = vadd.f32 0.0, %v2357
        %v2359 = vpop.f32.mrf.mxu0
        %2360 = vdwg.mxu0
        %2361 = vmatpush.bf16.msra.mxu0 0
        %2362 = vmatpush.bf16.msra.mxu0 0
        %2363 = vmatpush.bf16.msra.mxu0 0
        %2364 = vmatpush.bf16.msra.mxu0 0
        %2365 = vmatpush.bf16.msra.mxu0 0
        %2366 = vmatpush.bf16.msra.mxu0 0
        %2367 = vmatpush.bf16.msra.mxu0 0
        %2368 = vmatpush.bf16.msra.mxu0 %v2333
        %2369 = vmatmul.bf16.gmra.mxu0 %v2324
        %v2370 = vpop.f32.mrf.mxu0
        %v2371 = vadd.f32 0.0, %v2370
        %v2372 = vpop.f32.mrf.mxu0
        %2373 = vdwg.mxu0
        %v2374 = vadd.f32 %v2309, %v2345
        %v2375 = vadd.f32 %v2310, %v2358
        %v2376 = vadd.f32 %v2311, %v2371
        %s2377 = scalar_lea.vmem %s7, 40
        %v2378 = vld [vmem:[%s2377] sm:$0xff]
        %v2379 = vpack.c.bf16 %v2378, %v2378
        %2380 = vrot.lane.b32.xlu0 %v2060, 108
        %v2381 = vpop.permute.xlu0 %2380
        %2382 = vrot.lane.b32.xlu0 %v2061, 108
        %v2383 = vpop.permute.xlu0 %2382
        %2384 = vrot.lane.b32.xlu0 %v2062, 108
        %v2385 = vpop.permute.xlu0 %2384
        %v2386 = vsel %vm1544, %v2381, %v2383
        %v2387 = vsel %vm1544, %v2383, %v2385
        %v2389 = vsel %vm1215, %v2379, 0
        %v2392 = vsel %vm1219, %v2386, 0
        %v2395 = vsel %vm1219, %v2387, 0
        %v2398 = vsel %vm1219, %v2385, 0
        %2400 = vmatpush.bf16.msra.mxu0 0
        %2401 = vmatpush.bf16.msra.mxu0 0
        %2402 = vmatpush.bf16.msra.mxu0 0
        %2403 = vmatpush.bf16.msra.mxu0 0
        %2404 = vmatpush.bf16.msra.mxu0 0
        %2405 = vmatpush.bf16.msra.mxu0 0
        %2406 = vmatpush.bf16.msra.mxu0 0
        %2407 = vmatpush.bf16.msra.mxu0 %v2392
        %2408 = vmatmul.bf16.gmra.mxu0 %v2389
        %v2409 = vpop.f32.mrf.mxu0
        %v2410 = vadd.f32 0.0, %v2409
        %v2411 = vpop.f32.mrf.mxu0
        %2412 = vdwg.mxu0
        %2413 = vmatpush.bf16.msra.mxu0 0
        %2414 = vmatpush.bf16.msra.mxu0 0
        %2415 = vmatpush.bf16.msra.mxu0 0
        %2416 = vmatpush.bf16.msra.mxu0 0
        %2417 = vmatpush.bf16.msra.mxu0 0
        %2418 = vmatpush.bf16.msra.mxu0 0
        %2419 = vmatpush.bf16.msra.mxu0 0
        %2420 = vmatpush.bf16.msra.mxu0 %v2395
        %2421 = vmatmul.bf16.gmra.mxu0 %v2389
        %v2422 = vpop.f32.mrf.mxu0
        %v2423 = vadd.f32 0.0, %v2422
        %v2424 = vpop.f32.mrf.mxu0
        %2425 = vdwg.mxu0
        %2426 = vmatpush.bf16.msra.mxu0 0
        %2427 = vmatpush.bf16.msra.mxu0 0
        %2428 = vmatpush.bf16.msra.mxu0 0
        %2429 = vmatpush.bf16.msra.mxu0 0
        %2430 = vmatpush.bf16.msra.mxu0 0
        %2431 = vmatpush.bf16.msra.mxu0 0
        %2432 = vmatpush.bf16.msra.mxu0 0
        %2433 = vmatpush.bf16.msra.mxu0 %v2398
        %2434 = vmatmul.bf16.gmra.mxu0 %v2389
        %v2435 = vpop.f32.mrf.mxu0
        %v2436 = vadd.f32 0.0, %v2435
        %v2437 = vpop.f32.mrf.mxu0
        %2438 = vdwg.mxu0
        %v2439 = vadd.f32 %v2374, %v2410
        %v2440 = vadd.f32 %v2375, %v2423
        %v2441 = vadd.f32 %v2376, %v2436
        %s2442 = scalar_lea.vmem %s7, 48
        %v2443 = vld [vmem:[%s2442] sm:$0xff]
        %v2444 = vpack.c.bf16 %v2443, %v2443
        %2445 = vrot.lane.b32.xlu0 %v2060, 92
        %v2446 = vpop.permute.xlu0 %2445
        %2447 = vrot.lane.b32.xlu0 %v2061, 92
        %v2448 = vpop.permute.xlu0 %2447
        %2449 = vrot.lane.b32.xlu0 %v2062, 92
        %v2450 = vpop.permute.xlu0 %2449
        %v2451 = vsel %vm1610, %v2446, %v2448
        %v2452 = vsel %vm1610, %v2448, %v2450
        %v2454 = vsel %vm1215, %v2444, 0
        %v2457 = vsel %vm1219, %v2451, 0
        %v2460 = vsel %vm1219, %v2452, 0
        %v2463 = vsel %vm1219, %v2450, 0
        %2465 = vmatpush.bf16.msra.mxu0 0
        %2466 = vmatpush.bf16.msra.mxu0 0
        %2467 = vmatpush.bf16.msra.mxu0 0
        %2468 = vmatpush.bf16.msra.mxu0 0
        %2469 = vmatpush.bf16.msra.mxu0 0
        %2470 = vmatpush.bf16.msra.mxu0 0
        %2471 = vmatpush.bf16.msra.mxu0 0
        %2472 = vmatpush.bf16.msra.mxu0 %v2457
        %2473 = vmatmul.bf16.gmra.mxu0 %v2454
        %v2474 = vpop.f32.mrf.mxu0
        %v2475 = vadd.f32 0.0, %v2474
        %v2476 = vpop.f32.mrf.mxu0
        %2477 = vdwg.mxu0
        %2478 = vmatpush.bf16.msra.mxu0 0
        %2479 = vmatpush.bf16.msra.mxu0 0
        %2480 = vmatpush.bf16.msra.mxu0 0
        %2481 = vmatpush.bf16.msra.mxu0 0
        %2482 = vmatpush.bf16.msra.mxu0 0
        %2483 = vmatpush.bf16.msra.mxu0 0
        %2484 = vmatpush.bf16.msra.mxu0 0
        %2485 = vmatpush.bf16.msra.mxu0 %v2460
        %2486 = vmatmul.bf16.gmra.mxu0 %v2454
        %v2487 = vpop.f32.mrf.mxu0
        %v2488 = vadd.f32 0.0, %v2487
        %v2489 = vpop.f32.mrf.mxu0
        %2490 = vdwg.mxu0
        %2491 = vmatpush.bf16.msra.mxu0 0
        %2492 = vmatpush.bf16.msra.mxu0 0
        %2493 = vmatpush.bf16.msra.mxu0 0
        %2494 = vmatpush.bf16.msra.mxu0 0
        %2495 = vmatpush.bf16.msra.mxu0 0
        %2496 = vmatpush.bf16.msra.mxu0 0
        %2497 = vmatpush.bf16.msra.mxu0 0
        %2498 = vmatpush.bf16.msra.mxu0 %v2463
        %2499 = vmatmul.bf16.gmra.mxu0 %v2454
        %v2500 = vpop.f32.mrf.mxu0
        %v2501 = vadd.f32 0.0, %v2500
        %v2502 = vpop.f32.mrf.mxu0
        %2503 = vdwg.mxu0
        %v2504 = vadd.f32 %v2439, %v2475
        %v2505 = vadd.f32 %v2440, %v2488
        %v2506 = vadd.f32 %v2441, %v2501
        %s2507 = scalar_lea.vmem %s7, 56
        %v2508 = vld [vmem:[%s2507] sm:$0xff]
        %v2509 = vpack.c.bf16 %v2508, %v2508
        %2510 = vrot.lane.b32.xlu0 %v2060, 91
        %v2511 = vpop.permute.xlu0 %2510
        %2512 = vrot.lane.b32.xlu0 %v2061, 91
        %v2513 = vpop.permute.xlu0 %2512
        %2514 = vrot.lane.b32.xlu0 %v2062, 91
        %v2515 = vpop.permute.xlu0 %2514
        %v2516 = vsel %vm1676, %v2511, %v2513
        %v2517 = vsel %vm1676, %v2513, %v2515
        %v2519 = vsel %vm1215, %v2509, 0
        %v2522 = vsel %vm1219, %v2516, 0
        %v2525 = vsel %vm1219, %v2517, 0
        %v2528 = vsel %vm1219, %v2515, 0
        %2530 = vmatpush.bf16.msra.mxu0 0
        %2531 = vmatpush.bf16.msra.mxu0 0
        %2532 = vmatpush.bf16.msra.mxu0 0
        %2533 = vmatpush.bf16.msra.mxu0 0
        %2534 = vmatpush.bf16.msra.mxu0 0
        %2535 = vmatpush.bf16.msra.mxu0 0
        %2536 = vmatpush.bf16.msra.mxu0 0
        %2537 = vmatpush.bf16.msra.mxu0 %v2522
        %2538 = vmatmul.bf16.gmra.mxu0 %v2519
        %v2539 = vpop.f32.mrf.mxu0
        %v2540 = vadd.f32 0.0, %v2539
        %v2541 = vpop.f32.mrf.mxu0
        %2542 = vdwg.mxu0
        %2543 = vmatpush.bf16.msra.mxu0 0
        %2544 = vmatpush.bf16.msra.mxu0 0
        %2545 = vmatpush.bf16.msra.mxu0 0
        %2546 = vmatpush.bf16.msra.mxu0 0
        %2547 = vmatpush.bf16.msra.mxu0 0
        %2548 = vmatpush.bf16.msra.mxu0 0
        %2549 = vmatpush.bf16.msra.mxu0 0
        %2550 = vmatpush.bf16.msra.mxu0 %v2525
        %2551 = vmatmul.bf16.gmra.mxu0 %v2519
        %v2552 = vpop.f32.mrf.mxu0
        %v2553 = vadd.f32 0.0, %v2552
        %v2554 = vpop.f32.mrf.mxu0
        %2555 = vdwg.mxu0
        %2556 = vmatpush.bf16.msra.mxu0 0
        %2557 = vmatpush.bf16.msra.mxu0 0
        %2558 = vmatpush.bf16.msra.mxu0 0
        %2559 = vmatpush.bf16.msra.mxu0 0
        %2560 = vmatpush.bf16.msra.mxu0 0
        %2561 = vmatpush.bf16.msra.mxu0 0
        %2562 = vmatpush.bf16.msra.mxu0 0
        %2563 = vmatpush.bf16.msra.mxu0 %v2528
        %2564 = vmatmul.bf16.gmra.mxu0 %v2519
        %v2565 = vpop.f32.mrf.mxu0
        %v2566 = vadd.f32 0.0, %v2565
        %v2567 = vpop.f32.mrf.mxu0
        %2568 = vdwg.mxu0
        %v2569 = vadd.f32 %v2504, %v2540
        %v2570 = vadd.f32 %v2505, %v2553
        %v2571 = vadd.f32 %v2506, %v2566
        %s2572 = scalar_lea.vmem %s7, 64
        %v2573 = vld [vmem:[%s2572] sm:$0xff]
        %v2574 = vpack.c.bf16 %v2573, %v2573
        %2575 = vrot.lane.b32.xlu0 %v2060, 90
        %v2576 = vpop.permute.xlu0 %2575
        %2577 = vrot.lane.b32.xlu0 %v2061, 90
        %v2578 = vpop.permute.xlu0 %2577
        %2579 = vrot.lane.b32.xlu0 %v2062, 90
        %v2580 = vpop.permute.xlu0 %2579
        %v2581 = vsel %vm1742, %v2576, %v2578
        %v2582 = vsel %vm1742, %v2578, %v2580
        %v2584 = vsel %vm1215, %v2574, 0
        %v2587 = vsel %vm1219, %v2581, 0
        %v2590 = vsel %vm1219, %v2582, 0
        %v2593 = vsel %vm1219, %v2580, 0
        %2595 = vmatpush.bf16.msra.mxu0 0
        %2596 = vmatpush.bf16.msra.mxu0 0
        %2597 = vmatpush.bf16.msra.mxu0 0
        %2598 = vmatpush.bf16.msra.mxu0 0
        %2599 = vmatpush.bf16.msra.mxu0 0
        %2600 = vmatpush.bf16.msra.mxu0 0
        %2601 = vmatpush.bf16.msra.mxu0 0
        %2602 = vmatpush.bf16.msra.mxu0 %v2587
        %2603 = vmatmul.bf16.gmra.mxu0 %v2584
        %v2604 = vpop.f32.mrf.mxu0
        %v2605 = vadd.f32 0.0, %v2604
        %v2606 = vpop.f32.mrf.mxu0
        %2607 = vdwg.mxu0
        %2608 = vmatpush.bf16.msra.mxu0 0
        %2609 = vmatpush.bf16.msra.mxu0 0
        %2610 = vmatpush.bf16.msra.mxu0 0
        %2611 = vmatpush.bf16.msra.mxu0 0
        %2612 = vmatpush.bf16.msra.mxu0 0
        %2613 = vmatpush.bf16.msra.mxu0 0
        %2614 = vmatpush.bf16.msra.mxu0 0
        %2615 = vmatpush.bf16.msra.mxu0 %v2590
        %2616 = vmatmul.bf16.gmra.mxu0 %v2584
        %v2617 = vpop.f32.mrf.mxu0
        %v2618 = vadd.f32 0.0, %v2617
        %v2619 = vpop.f32.mrf.mxu0
        %2620 = vdwg.mxu0
        %2621 = vmatpush.bf16.msra.mxu0 0
        %2622 = vmatpush.bf16.msra.mxu0 0
        %2623 = vmatpush.bf16.msra.mxu0 0
        %2624 = vmatpush.bf16.msra.mxu0 0
        %2625 = vmatpush.bf16.msra.mxu0 0
        %2626 = vmatpush.bf16.msra.mxu0 0
        %2627 = vmatpush.bf16.msra.mxu0 0
        %2628 = vmatpush.bf16.msra.mxu0 %v2593
        %2629 = vmatmul.bf16.gmra.mxu0 %v2584
        %v2630 = vpop.f32.mrf.mxu0
        %v2631 = vadd.f32 0.0, %v2630
        %v2632 = vpop.f32.mrf.mxu0
        %2633 = vdwg.mxu0
        %v2634 = vadd.f32 %v2569, %v2605
        %v2635 = vadd.f32 %v2570, %v2618
        %v2636 = vadd.f32 %v2571, %v2631
        %v2638 = vsel %vm1799, %v2636, 0
        %2640 = vmatpush.msra.mxu0 %v1029
        %2641 = vmatpush.msra.mxu0 %v1027
        %2642 = vmatpush.msra.mxu0 %v1025
        %2643 = vmatpush.msra.mxu0 %v1023
        %2644 = vmatpush.msra.mxu0 %v1021
        %2645 = vmatpush.msra.mxu0 %v1019
        %2646 = vmatpush.msra.mxu0 %v1017
        %2647 = vmatpush.msra.mxu0 %v1015
        %2648 = vmatpush.msra.mxu0 %v1013
        %2649 = vmatpush.msra.mxu0 %v1011
        %2650 = vmatpush.msra.mxu0 %v1009
        %2651 = vmatpush.msra.mxu0 %v1007
        %2652 = vmatpush.msra.mxu0 %v1005
        %2653 = vmatpush.msra.mxu0 %v1003
        %2654 = vmatpush.msra.mxu0 %v1001
        %2655 = vmatpush.msra.mxu0 %v999
        %2656 = vmatmul.f32.gmra.mxu0 %v2634
        %v2657 = vpop.f32.mrf.mxu0
        %v2658 = vadd.f32 0.0, %v2657
        %2659 = vdwg.mxu0
        %2660 = vmatpush.msra.mxu0 %v1061
        %2661 = vmatpush.msra.mxu0 %v1059
        %2662 = vmatpush.msra.mxu0 %v1057
        %2663 = vmatpush.msra.mxu0 %v1055
        %2664 = vmatpush.msra.mxu0 %v1053
        %2665 = vmatpush.msra.mxu0 %v1051
        %2666 = vmatpush.msra.mxu0 %v1049
        %2667 = vmatpush.msra.mxu0 %v1047
        %2668 = vmatpush.msra.mxu0 %v1045
        %2669 = vmatpush.msra.mxu0 %v1043
        %2670 = vmatpush.msra.mxu0 %v1041
        %2671 = vmatpush.msra.mxu0 %v1039
        %2672 = vmatpush.msra.mxu0 %v1037
        %2673 = vmatpush.msra.mxu0 %v1035
        %2674 = vmatpush.msra.mxu0 %v1033
        %2675 = vmatpush.msra.mxu0 %v1031
        %2676 = vmatmul.f32.gmra.mxu0 %v2635
        %v2677 = vpop.f32.mrf.mxu0
        %v2678 = vadd.f32 %v2658, %v2677
        %2679 = vdwg.mxu0
        %2680 = vmatpush.msra.mxu0 0.0
        %2681 = vmatpush.msra.mxu0 0.0
        %2682 = vmatpush.msra.mxu0 0.0
        %2683 = vmatpush.msra.mxu0 0.0
        %2684 = vmatpush.msra.mxu0 0.0
        %2685 = vmatpush.msra.mxu0 0.0
        %2686 = vmatpush.msra.mxu0 0.0
        %2687 = vmatpush.msra.mxu0 0.0
        %2688 = vmatpush.msra.mxu0 0.0
        %2689 = vmatpush.msra.mxu0 0.0
        %2690 = vmatpush.msra.mxu0 0.0
        %2691 = vmatpush.msra.mxu0 0.0
        %2692 = vmatpush.msra.mxu0 %v1069
        %2693 = vmatpush.msra.mxu0 %v1067
        %2694 = vmatpush.msra.mxu0 %v1065
        %2695 = vmatpush.msra.mxu0 %v1063
        %2696 = vmatmul.f32.gmra.mxu0 %v2638
        %v2697 = vpop.f32.mrf.mxu0
        %v2698 = vadd.f32 %v2678, %v2697
        %2699 = vdwg.mxu0
        %2700 = vmatpush.msra.mxu0 %v1030
        %2701 = vmatpush.msra.mxu0 %v1028
        %2702 = vmatpush.msra.mxu0 %v1026
        %2703 = vmatpush.msra.mxu0 %v1024
        %2704 = vmatpush.msra.mxu0 %v1022
        %2705 = vmatpush.msra.mxu0 %v1020
        %2706 = vmatpush.msra.mxu0 %v1018
        %2707 = vmatpush.msra.mxu0 %v1016
        %2708 = vmatpush.msra.mxu0 %v1014
        %2709 = vmatpush.msra.mxu0 %v1012
        %2710 = vmatpush.msra.mxu0 %v1010
        %2711 = vmatpush.msra.mxu0 %v1008
        %2712 = vmatpush.msra.mxu0 %v1006
        %2713 = vmatpush.msra.mxu0 %v1004
        %2714 = vmatpush.msra.mxu0 %v1002
        %2715 = vmatpush.msra.mxu0 %v1000
        %2716 = vmatmul.f32.gmra.mxu0 %v2634
        %v2717 = vpop.f32.mrf.mxu0
        %v2718 = vadd.f32 0.0, %v2717
        %2719 = vdwg.mxu0
        %2720 = vmatpush.msra.mxu0 %v1062
        %2721 = vmatpush.msra.mxu0 %v1060
        %2722 = vmatpush.msra.mxu0 %v1058
        %2723 = vmatpush.msra.mxu0 %v1056
        %2724 = vmatpush.msra.mxu0 %v1054
        %2725 = vmatpush.msra.mxu0 %v1052
        %2726 = vmatpush.msra.mxu0 %v1050
        %2727 = vmatpush.msra.mxu0 %v1048
        %2728 = vmatpush.msra.mxu0 %v1046
        %2729 = vmatpush.msra.mxu0 %v1044
        %2730 = vmatpush.msra.mxu0 %v1042
        %2731 = vmatpush.msra.mxu0 %v1040
        %2732 = vmatpush.msra.mxu0 %v1038
        %2733 = vmatpush.msra.mxu0 %v1036
        %2734 = vmatpush.msra.mxu0 %v1034
        %2735 = vmatpush.msra.mxu0 %v1032
        %2736 = vmatmul.f32.gmra.mxu0 %v2635
        %v2737 = vpop.f32.mrf.mxu0
        %v2738 = vadd.f32 %v2718, %v2737
        %2739 = vdwg.mxu0
        %2740 = vmatpush.msra.mxu0 0.0
        %2741 = vmatpush.msra.mxu0 0.0
        %2742 = vmatpush.msra.mxu0 0.0
        %2743 = vmatpush.msra.mxu0 0.0
        %2744 = vmatpush.msra.mxu0 0.0
        %2745 = vmatpush.msra.mxu0 0.0
        %2746 = vmatpush.msra.mxu0 0.0
        %2747 = vmatpush.msra.mxu0 0.0
        %2748 = vmatpush.msra.mxu0 0.0
        %2749 = vmatpush.msra.mxu0 0.0
        %2750 = vmatpush.msra.mxu0 0.0
        %2751 = vmatpush.msra.mxu0 0.0
        %2752 = vmatpush.msra.mxu0 %v1070
        %2753 = vmatpush.msra.mxu0 %v1068
        %2754 = vmatpush.msra.mxu0 %v1066
        %2755 = vmatpush.msra.mxu0 %v1064
        %2756 = vmatmul.f32.gmra.mxu0 %v2638
        %v2757 = vpop.f32.mrf.mxu0
        %v2758 = vadd.f32 %v2738, %v2757
        %2759 = vdwg.mxu0
        %v2760 = vmax.f32 %v2698, 0.0
        %v2761 = vmax.f32 %v2758, 0.0
        %2764 = vrot.lane.b32.xlu0 %v2760, 127
        %v2765 = vpop.permute.xlu0 %2764
        %2766 = vrot.lane.b32.xlu0 %v2761, 127
        %v2767 = vpop.permute.xlu0 %2766
        %vm2768 = vcmask 1039360
        %v2769 = vsel %vm2768, %v2765, %v2767
        %v2772 = vmax.f32 %v2760, %v2769
        %v2773 = vmax.f32 %v2761, %v2767
        %2776 = vrot.lane.b32.xlu0 %v2772, 112
        %v2777 = vpop.permute.xlu0 %2776
        %2778 = vrot.lane.b32.xlu0 %v2773, 112
        %v2779 = vpop.permute.xlu0 %2778
        %vm2780 = vcmask 916480
        %v2781 = vsel %vm2780, %v2777, %v2779
        %v2784 = vmax.f32 %v2772, %v2781
        %v2785 = vmax.f32 %v2773, %v2779
        %v2786 = vld [vmem:[%s39] sm:$0xff]
        %v2787 = vld [vmem:[%s39 + $0x8] sm:$0xff]
        %v2788 = vld [vmem:[%s39 + $0x10] sm:$0xff]
        %v2789 = vld [vmem:[%s39 + $0x18] sm:$0xff]
        %v2790 = vld [vmem:[%s39 + $0x20] sm:$0xff]
        %v2791 = vld [vmem:[%s39 + $0x28] sm:$0xff]
        %v2792 = vld [vmem:[%s39 + $0x30] sm:$0xff]
        %v2793 = vld [vmem:[%s39 + $0x38] sm:$0xff]
        %v2794 = vld [vmem:[%s39 + $0x40] sm:$0xff]
        %v2795 = vld [vmem:[%s39 + $0x48] sm:$0xff]
        %v2796 = vld [vmem:[%s39 + $0x50] sm:$0xff]
        %v2797 = vld [vmem:[%s39 + $0x58] sm:$0xff]
        %v2798 = vld [vmem:[%s39 + $0x60] sm:$0xff]
        %v2799 = vld [vmem:[%s39 + $0x68] sm:$0xff]
        %v2800 = vld [vmem:[%s39 + $0x70] sm:$0xff]
        %v2801 = vld [vmem:[%s39 + $0x78] sm:$0xff]
        %v2802 = vld [vmem:[%s39 + $0x80] sm:$0xff]
        %v2803 = vld [vmem:[%s39 + $0x88] sm:$0xff]
        %v2804 = vld [vmem:[%s39 + $0x90] sm:$0xff]
        %v2805 = vld [vmem:[%s39 + $0x98] sm:$0xff]
        %v2806 = vld [vmem:[%s39 + $0xa0] sm:$0xff]
        %v2807 = vld [vmem:[%s39 + $0xa8] sm:$0xff]
        %v2808 = vld [vmem:[%s39 + $0xb0] sm:$0xff]
        %v2809 = vld [vmem:[%s39 + $0xb8] sm:$0xff]
        %v2810 = vld [vmem:[%s39 + $0xc0] sm:$0xff]
        %v2811 = vld [vmem:[%s39 + $0xc8] sm:$0xff]
        %v2812 = vld [vmem:[%s39 + $0xd0] sm:$0xff]
        %v2813 = vld [vmem:[%s39 + $0xd8] sm:$0xff]
        %v2814 = vld [vmem:[%s39 + $0xe0] sm:$0xff]
        %v2815 = vld [vmem:[%s39 + $0xe8] sm:$0x7f]
        %vm2816 = vcmask 908288
        %v2818 = vsel %vm2816, %v2785, 0
        %vm2820 = vcmask 1046528
        %v2822 = vsel %vm2820, %v2815, 0
        %2824 = vmatpush.msra.mxu0 %v2801
        %2825 = vmatpush.msra.mxu0 %v2800
        %2826 = vmatpush.msra.mxu0 %v2799
        %2827 = vmatpush.msra.mxu0 %v2798
        %2828 = vmatpush.msra.mxu0 %v2797
        %2829 = vmatpush.msra.mxu0 %v2796
        %2830 = vmatpush.msra.mxu0 %v2795
        %2831 = vmatpush.msra.mxu0 %v2794
        %2832 = vmatpush.msra.mxu0 %v2793
        %2833 = vmatpush.msra.mxu0 %v2792
        %2834 = vmatpush.msra.mxu0 %v2791
        %2835 = vmatpush.msra.mxu0 %v2790
        %2836 = vmatpush.msra.mxu0 %v2789
        %2837 = vmatpush.msra.mxu0 %v2788
        %2838 = vmatpush.msra.mxu0 %v2787
        %2839 = vmatpush.msra.mxu0 %v2786
        %2840 = vmatmul.f32.gmra.mxu0 %v2784
        %v2841 = vpop.f32.mrf.mxu0
        %v2842 = vadd.f32 0.0, %v2841
        %2843 = vdwg.mxu0
        %2844 = vmatpush.msra.mxu0 0.0
        %2845 = vmatpush.msra.mxu0 0.0
        %2846 = vmatpush.msra.mxu0 %v2822
        %2847 = vmatpush.msra.mxu0 %v2814
        %2848 = vmatpush.msra.mxu0 %v2813
        %2849 = vmatpush.msra.mxu0 %v2812
        %2850 = vmatpush.msra.mxu0 %v2811
        %2851 = vmatpush.msra.mxu0 %v2810
        %2852 = vmatpush.msra.mxu0 %v2809
        %2853 = vmatpush.msra.mxu0 %v2808
        %2854 = vmatpush.msra.mxu0 %v2807
        %2855 = vmatpush.msra.mxu0 %v2806
        %2856 = vmatpush.msra.mxu0 %v2805
        %2857 = vmatpush.msra.mxu0 %v2804
        %2858 = vmatpush.msra.mxu0 %v2803
        %2859 = vmatpush.msra.mxu0 %v2802
        %2860 = vmatmul.f32.gmra.mxu0 %v2818
        %v2861 = vpop.f32.mrf.mxu0
        %v2862 = vadd.f32 %v2842, %v2861
        %2863 = vdwg.mxu0
        %v2864 = vld [vmem:[%s41] sm:$0xff]
        %v2865 = vld [vmem:[%s41 + $0x8] sm:$0xff]
        %v2866 = vld [vmem:[%s41 + $0x10] sm:$0xff]
        %v2867 = vld [vmem:[%s41 + $0x18] sm:$0xff]
        %v2868 = vld [vmem:[%s41 + $0x20] sm:$0xff]
        %v2869 = vld [vmem:[%s41 + $0x28] sm:$0xff]
        %v2870 = vld [vmem:[%s41 + $0x30] sm:$0xff]
        %v2871 = vld [vmem:[%s41 + $0x38] sm:$0xff]
        %v2872 = vld [vmem:[%s43] sm:$0xff]
        %v2873 = vld [vmem:[%s43 + $0x8] sm:$0xff]
        %v2874 = vld [vmem:[%s43 + $0x10] sm:$0xff]
        %v2875 = vld [vmem:[%s43 + $0x18] sm:$0xff]
        %v2876 = vld [vmem:[%s43 + $0x20] sm:$0xff]
        %v2877 = vld [vmem:[%s43 + $0x28] sm:$0xff]
        %v2878 = vld [vmem:[%s43 + $0x30] sm:$0xff]
        %v2879 = vld [vmem:[%s43 + $0x38] sm:$0xff]
        %v2880 = vld [vmem:[%s43 + $0x40] sm:$0xff]
        %v2881 = vld [vmem:[%s43 + $0x48] sm:$0xff]
        %vm2882 = vcmask 523264
        %v2884 = vsel %vm2882, %v2862, 0
        %2886 = vmatpush.msra.mxu0 0.0
        %2887 = vmatpush.msra.mxu0 0.0
        %2888 = vmatpush.msra.mxu0 0.0
        %2889 = vmatpush.msra.mxu0 0.0
        %2890 = vmatpush.msra.mxu0 0.0
        %2891 = vmatpush.msra.mxu0 0.0
        %2892 = vmatpush.msra.mxu0 0.0
        %2893 = vmatpush.msra.mxu0 0.0
        %2894 = vmatpush.msra.mxu0 %v2871
        %2895 = vmatpush.msra.mxu0 %v2870
        %2896 = vmatpush.msra.mxu0 %v2869
        %2897 = vmatpush.msra.mxu0 %v2868
        %2898 = vmatpush.msra.mxu0 %v2867
        %2899 = vmatpush.msra.mxu0 %v2866
        %2900 = vmatpush.msra.mxu0 %v2865
        %2901 = vmatpush.msra.mxu0 %v2864
        %2902 = vmatmul.f32.gmra.mxu0 %v2884
        %v2903 = vpop.f32.mrf.mxu0
        %v2904 = vadd.f32 0.0, %v2903
        %2905 = vdwg.mxu0
        %v2906 = vpack.c.bf16 %v2904, %v2904
        %v2907 = vld [vmem:[%s13] sm:$0xff]
        %2909 = vset.pattern.permute.xlu0 0
        %2910 = vperm.xlu0 %2909, %v2907
        %v2911 = vpop.permute.xlu0 %2910
        %v2913 = vld [vmem:[%s11] sm:$0xff]
        %v2914 = vpack.c.bf16 %v2913, %v2913
        %vm2915 = vcmask 64512
        %v2917 = vsel %vm2915, %v2914, 0
        %vm2919 = vcmask 1043456
        %v2921 = vsel %vm2919, %v2906, 0
        %2923 = vmatpush.bf16.msra.mxu0 0
        %2924 = vmatpush.bf16.msra.mxu0 0
        %2925 = vmatpush.bf16.msra.mxu0 0
        %2926 = vmatpush.bf16.msra.mxu0 0
        %2927 = vmatpush.bf16.msra.mxu0 0
        %2928 = vmatpush.bf16.msra.mxu0 0
        %2929 = vmatpush.bf16.msra.mxu0 0
        %2930 = vmatpush.bf16.msra.mxu0 %v2921
        %2931 = vmatmul.bf16.gmra.mxu0 %v2917
        %v2932 = vpop.f32.mrf.mxu0
        %v2933 = vadd.f32 0.0, %v2932
        %v2934 = vpop.f32.mrf.mxu0
        %2935 = vdwg.mxu0
        %v2936 = vadd.f32 %v2911, %v2933
        %s2937 = scalar_lea.vmem %s11, 8
        %v2938 = vld [vmem:[%s2937] sm:$0xff]
        %v2939 = vpack.c.bf16 %v2938, %v2938
        %v2941 = vunpack.c.l.b16 %v2906
        %v2942 = vpack.c.b16 %v2941, %v2941
        %2943 = vrot.lane.b32.xlu0 %v2942, 127
        %v2944 = vpop.permute.xlu0 %2943
        %v2946 = vsel %vm2915, %v2939, 0
        %v2949 = vsel %vm2919, %v2944, 0
        %2951 = vmatpush.bf16.msra.mxu0 0
        %2952 = vmatpush.bf16.msra.mxu0 0
        %2953 = vmatpush.bf16.msra.mxu0 0
        %2954 = vmatpush.bf16.msra.mxu0 0
        %2955 = vmatpush.bf16.msra.mxu0 0
        %2956 = vmatpush.bf16.msra.mxu0 0
        %2957 = vmatpush.bf16.msra.mxu0 0
        %2958 = vmatpush.bf16.msra.mxu0 %v2949
        %2959 = vmatmul.bf16.gmra.mxu0 %v2946
        %v2960 = vpop.f32.mrf.mxu0
        %v2961 = vadd.f32 0.0, %v2960
        %v2962 = vpop.f32.mrf.mxu0
        %2963 = vdwg.mxu0
        %v2964 = vadd.f32 %v2936, %v2961
        %s2965 = scalar_lea.vmem %s11, 16
        %v2966 = vld [vmem:[%s2965] sm:$0xff]
        %v2967 = vpack.c.bf16 %v2966, %v2966
        %2968 = vrot.lane.b32.xlu0 %v2942, 126
        %v2969 = vpop.permute.xlu0 %2968
        %v2971 = vsel %vm2915, %v2967, 0
        %v2974 = vsel %vm2919, %v2969, 0
        %2976 = vmatpush.bf16.msra.mxu0 0
        %2977 = vmatpush.bf16.msra.mxu0 0
        %2978 = vmatpush.bf16.msra.mxu0 0
        %2979 = vmatpush.bf16.msra.mxu0 0
        %2980 = vmatpush.bf16.msra.mxu0 0
        %2981 = vmatpush.bf16.msra.mxu0 0
        %2982 = vmatpush.bf16.msra.mxu0 0
        %2983 = vmatpush.bf16.msra.mxu0 %v2974
        %2984 = vmatmul.bf16.gmra.mxu0 %v2971
        %v2985 = vpop.f32.mrf.mxu0
        %v2986 = vadd.f32 0.0, %v2985
        %v2987 = vpop.f32.mrf.mxu0
        %2988 = vdwg.mxu0
        %v2989 = vadd.f32 %v2964, %v2986
        %s2990 = scalar_lea.vmem %s11, 24
        %v2991 = vld [vmem:[%s2990] sm:$0xff]
        %v2992 = vpack.c.bf16 %v2991, %v2991
        %2993 = vrot.lane.b32.xlu0 %v2942, 118
        %v2994 = vpop.permute.xlu0 %2993
        %v2996 = vsel %vm2915, %v2992, 0
        %v2999 = vsel %vm2919, %v2994, 0
        %3001 = vmatpush.bf16.msra.mxu0 0
        %3002 = vmatpush.bf16.msra.mxu0 0
        %3003 = vmatpush.bf16.msra.mxu0 0
        %3004 = vmatpush.bf16.msra.mxu0 0
        %3005 = vmatpush.bf16.msra.mxu0 0
        %3006 = vmatpush.bf16.msra.mxu0 0
        %3007 = vmatpush.bf16.msra.mxu0 0
        %3008 = vmatpush.bf16.msra.mxu0 %v2999
        %3009 = vmatmul.bf16.gmra.mxu0 %v2996
        %v3010 = vpop.f32.mrf.mxu0
        %v3011 = vadd.f32 0.0, %v3010
        %v3012 = vpop.f32.mrf.mxu0
        %3013 = vdwg.mxu0
        %v3014 = vadd.f32 %v2989, %v3011
        %s3015 = scalar_lea.vmem %s11, 32
        %v3016 = vld [vmem:[%s3015] sm:$0xff]
        %v3017 = vpack.c.bf16 %v3016, %v3016
        %3018 = vrot.lane.b32.xlu0 %v2942, 117
        %v3019 = vpop.permute.xlu0 %3018
        %v3021 = vsel %vm2915, %v3017, 0
        %v3024 = vsel %vm2919, %v3019, 0
        %3026 = vmatpush.bf16.msra.mxu0 0
        %3027 = vmatpush.bf16.msra.mxu0 0
        %3028 = vmatpush.bf16.msra.mxu0 0
        %3029 = vmatpush.bf16.msra.mxu0 0
        %3030 = vmatpush.bf16.msra.mxu0 0
        %3031 = vmatpush.bf16.msra.mxu0 0
        %3032 = vmatpush.bf16.msra.mxu0 0
        %3033 = vmatpush.bf16.msra.mxu0 %v3024
        %3034 = vmatmul.bf16.gmra.mxu0 %v3021
        %v3035 = vpop.f32.mrf.mxu0
        %v3036 = vadd.f32 0.0, %v3035
        %v3037 = vpop.f32.mrf.mxu0
        %3038 = vdwg.mxu0
        %v3039 = vadd.f32 %v3014, %v3036
        %s3040 = scalar_lea.vmem %s11, 40
        %v3041 = vld [vmem:[%s3040] sm:$0xff]
        %v3042 = vpack.c.bf16 %v3041, %v3041
        %3043 = vrot.lane.b32.xlu0 %v2942, 116
        %v3044 = vpop.permute.xlu0 %3043
        %v3046 = vsel %vm2915, %v3042, 0
        %v3049 = vsel %vm2919, %v3044, 0
        %3051 = vmatpush.bf16.msra.mxu0 0
        %3052 = vmatpush.bf16.msra.mxu0 0
        %3053 = vmatpush.bf16.msra.mxu0 0
        %3054 = vmatpush.bf16.msra.mxu0 0
        %3055 = vmatpush.bf16.msra.mxu0 0
        %3056 = vmatpush.bf16.msra.mxu0 0
        %3057 = vmatpush.bf16.msra.mxu0 0
        %3058 = vmatpush.bf16.msra.mxu0 %v3049
        %3059 = vmatmul.bf16.gmra.mxu0 %v3046
        %v3060 = vpop.f32.mrf.mxu0
        %v3061 = vadd.f32 0.0, %v3060
        %v3062 = vpop.f32.mrf.mxu0
        %3063 = vdwg.mxu0
        %v3064 = vadd.f32 %v3039, %v3061
        %s3065 = scalar_lea.vmem %s11, 48
        %v3066 = vld [vmem:[%s3065] sm:$0xff]
        %v3067 = vpack.c.bf16 %v3066, %v3066
        %3068 = vrot.lane.b32.xlu0 %v2942, 108
        %v3069 = vpop.permute.xlu0 %3068
        %v3071 = vsel %vm2915, %v3067, 0
        %v3074 = vsel %vm2919, %v3069, 0
        %3076 = vmatpush.bf16.msra.mxu0 0
        %3077 = vmatpush.bf16.msra.mxu0 0
        %3078 = vmatpush.bf16.msra.mxu0 0
        %3079 = vmatpush.bf16.msra.mxu0 0
        %3080 = vmatpush.bf16.msra.mxu0 0
        %3081 = vmatpush.bf16.msra.mxu0 0
        %3082 = vmatpush.bf16.msra.mxu0 0
        %3083 = vmatpush.bf16.msra.mxu0 %v3074
        %3084 = vmatmul.bf16.gmra.mxu0 %v3071
        %v3085 = vpop.f32.mrf.mxu0
        %v3086 = vadd.f32 0.0, %v3085
        %v3087 = vpop.f32.mrf.mxu0
        %3088 = vdwg.mxu0
        %v3089 = vadd.f32 %v3064, %v3086
        %s3090 = scalar_lea.vmem %s11, 56
        %v3091 = vld [vmem:[%s3090] sm:$0xff]
        %v3092 = vpack.c.bf16 %v3091, %v3091
        %3093 = vrot.lane.b32.xlu0 %v2942, 107
        %v3094 = vpop.permute.xlu0 %3093
        %v3096 = vsel %vm2915, %v3092, 0
        %v3099 = vsel %vm2919, %v3094, 0
        %3101 = vmatpush.bf16.msra.mxu0 0
        %3102 = vmatpush.bf16.msra.mxu0 0
        %3103 = vmatpush.bf16.msra.mxu0 0
        %3104 = vmatpush.bf16.msra.mxu0 0
        %3105 = vmatpush.bf16.msra.mxu0 0
        %3106 = vmatpush.bf16.msra.mxu0 0
        %3107 = vmatpush.bf16.msra.mxu0 0
        %3108 = vmatpush.bf16.msra.mxu0 %v3099
        %3109 = vmatmul.bf16.gmra.mxu0 %v3096
        %v3110 = vpop.f32.mrf.mxu0
        %v3111 = vadd.f32 0.0, %v3110
        %v3112 = vpop.f32.mrf.mxu0
        %3113 = vdwg.mxu0
        %v3114 = vadd.f32 %v3089, %v3111
        %s3115 = scalar_lea.vmem %s11, 64
        %v3116 = vld [vmem:[%s3115] sm:$0xff]
        %v3117 = vpack.c.bf16 %v3116, %v3116
        %3118 = vrot.lane.b32.xlu0 %v2942, 106
        %v3119 = vpop.permute.xlu0 %3118
        %v3121 = vsel %vm2915, %v3117, 0
        %v3124 = vsel %vm2919, %v3119, 0
        %3126 = vmatpush.bf16.msra.mxu0 0
        %3127 = vmatpush.bf16.msra.mxu0 0
        %3128 = vmatpush.bf16.msra.mxu0 0
        %3129 = vmatpush.bf16.msra.mxu0 0
        %3130 = vmatpush.bf16.msra.mxu0 0
        %3131 = vmatpush.bf16.msra.mxu0 0
        %3132 = vmatpush.bf16.msra.mxu0 0
        %3133 = vmatpush.bf16.msra.mxu0 %v3124
        %3134 = vmatmul.bf16.gmra.mxu0 %v3121
        %v3135 = vpop.f32.mrf.mxu0
        %v3136 = vadd.f32 0.0, %v3135
        %v3137 = vpop.f32.mrf.mxu0
        %3138 = vdwg.mxu0
        %v3139 = vadd.f32 %v3114, %v3136
        %vm3140 = vcmask 654336
        %v3142 = vsel %vm3140, %v3139, 0
        %3144 = vmatpush.msra.mxu0 0.0
        %3145 = vmatpush.msra.mxu0 0.0
        %3146 = vmatpush.msra.mxu0 0.0
        %3147 = vmatpush.msra.mxu0 0.0
        %3148 = vmatpush.msra.mxu0 0.0
        %3149 = vmatpush.msra.mxu0 0.0
        %3150 = vmatpush.msra.mxu0 %v2881
        %3151 = vmatpush.msra.mxu0 %v2880
        %3152 = vmatpush.msra.mxu0 %v2879
        %3153 = vmatpush.msra.mxu0 %v2878
        %3154 = vmatpush.msra.mxu0 %v2877
        %3155 = vmatpush.msra.mxu0 %v2876
        %3156 = vmatpush.msra.mxu0 %v2875
        %3157 = vmatpush.msra.mxu0 %v2874
        %3158 = vmatpush.msra.mxu0 %v2873
        %3159 = vmatpush.msra.mxu0 %v2872
        %3160 = vmatmul.f32.gmra.mxu0 %v3142
        %v3161 = vpop.f32.mrf.mxu0
        %v3162 = vadd.f32 0.0, %v3161
        %3163 = vdwg.mxu0
        %v3164 = vmax.f32 %v3162, 0.0
        %3166 = vrot.lane.b32.xlu0 %v3164, 127
        %v3167 = vpop.permute.xlu0 %3166
        %v3169 = vmax.f32 %v3164, %v3167
        %3171 = vrot.lane.b32.xlu0 %v3169, 120
        %v3172 = vpop.permute.xlu0 %3171
        %v3174 = vmax.f32 %v3169, %v3172
        %v3175 = vld [vmem:[%s45] sm:$0xff]
        %v3176 = vld [vmem:[%s45 + $0x8] sm:$0xff]
        %v3177 = vld [vmem:[%s45 + $0x10] sm:$0xff]
        %v3178 = vld [vmem:[%s45 + $0x18] sm:$0xff]
        %v3179 = vld [vmem:[%s45 + $0x20] sm:$0xff]
        %v3180 = vld [vmem:[%s45 + $0x28] sm:$0xff]
        %v3181 = vld [vmem:[%s45 + $0x30] sm:$0x7f]
        %vm3182 = vcmask 449536
        %v3184 = vsel %vm3182, %v3174, 0
        %v3187 = vsel %vm2820, %v3181, 0
        %3189 = vmatpush.msra.mxu0 0.0
        %3190 = vmatpush.msra.mxu0 0.0
        %3191 = vmatpush.msra.mxu0 0.0
        %3192 = vmatpush.msra.mxu0 0.0
        %3193 = vmatpush.msra.mxu0 0.0
        %3194 = vmatpush.msra.mxu0 0.0
        %3195 = vmatpush.msra.mxu0 0.0
        %3196 = vmatpush.msra.mxu0 0.0
        %3197 = vmatpush.msra.mxu0 0.0
        %3198 = vmatpush.msra.mxu0 %v3187
        %3199 = vmatpush.msra.mxu0 %v3180
        %3200 = vmatpush.msra.mxu0 %v3179
        %3201 = vmatpush.msra.mxu0 %v3178
        %3202 = vmatpush.msra.mxu0 %v3177
        %3203 = vmatpush.msra.mxu0 %v3176
        %3204 = vmatpush.msra.mxu0 %v3175
        %3205 = vmatmul.f32.gmra.mxu0 %v3184
        %v3206 = vpop.f32.mrf.mxu0
        %v3207 = vadd.f32 0.0, %v3206
        %3208 = vdwg.mxu0
        %v3209 = vld [vmem:[%s47] sm:$0xff]
        %v3210 = vld [vmem:[%s47 + $0x8] sm:$0xff]
        %v3211 = vld [vmem:[%s49] sm:$0xff]
        %v3212 = vld [vmem:[%s49 + $0x8] sm:$0xff]
        %v3213 = vld [vmem:[%s49 + $0x10] sm:$0xff]
        %vm3214 = vcmask 130048
        %v3216 = vsel %vm3214, %v3207, 0
        %3218 = vmatpush.msra.mxu0 0.0
        %3219 = vmatpush.msra.mxu0 0.0
        %3220 = vmatpush.msra.mxu0 0.0
        %3221 = vmatpush.msra.mxu0 0.0
        %3222 = vmatpush.msra.mxu0 0.0
        %3223 = vmatpush.msra.mxu0 0.0
        %3224 = vmatpush.msra.mxu0 0.0
        %3225 = vmatpush.msra.mxu0 0.0
        %3226 = vmatpush.msra.mxu0 0.0
        %3227 = vmatpush.msra.mxu0 0.0
        %3228 = vmatpush.msra.mxu0 0.0
        %3229 = vmatpush.msra.mxu0 0.0
        %3230 = vmatpush.msra.mxu0 0.0
        %3231 = vmatpush.msra.mxu0 0.0
        %3232 = vmatpush.msra.mxu0 %v3210
        %3233 = vmatpush.msra.mxu0 %v3209
        %3234 = vmatmul.f32.gmra.mxu0 %v3216
        %v3235 = vpop.f32.mrf.mxu0
        %v3236 = vadd.f32 0.0, %v3235
        %3237 = vdwg.mxu0
        %v3238 = vpack.c.bf16 %v3236, %v3236
        %v3239 = vld [vmem:[%s17] sm:$0xff]
        %3241 = vset.pattern.permute.xlu0 0
        %3242 = vperm.xlu0 %3241, %v3239
        %v3243 = vpop.permute.xlu0 %3242
        %v3245 = vld [vmem:[%s15] sm:$0xff]
        %v3246 = vpack.c.bf16 %v3245, %v3245
        %v3248 = vsel %vm2915, %v3246, 0
        %v3251 = vsel %vm2919, %v3238, 0
        %3253 = vmatpush.bf16.msra.mxu0 0
        %3254 = vmatpush.bf16.msra.mxu0 0
        %3255 = vmatpush.bf16.msra.mxu0 0
        %3256 = vmatpush.bf16.msra.mxu0 0
        %3257 = vmatpush.bf16.msra.mxu0 0
        %3258 = vmatpush.bf16.msra.mxu0 0
        %3259 = vmatpush.bf16.msra.mxu0 0
        %3260 = vmatpush.bf16.msra.mxu0 %v3251
        %3261 = vmatmul.bf16.gmra.mxu0 %v3248
        %v3262 = vpop.f32.mrf.mxu0
        %v3263 = vadd.f32 0.0, %v3262
        %v3264 = vpop.f32.mrf.mxu0
        %3265 = vdwg.mxu0
        %v3266 = vadd.f32 %v3243, %v3263
        %s3267 = scalar_lea.vmem %s15, 8
        %v3268 = vld [vmem:[%s3267] sm:$0xff]
        %v3269 = vpack.c.bf16 %v3268, %v3268
        %v3271 = vunpack.c.l.b16 %v3238
        %v3272 = vpack.c.b16 %v3271, %v3271
        %3273 = vrot.lane.b32.xlu0 %v3272, 127
        %v3274 = vpop.permute.xlu0 %3273
        %v3276 = vsel %vm2915, %v3269, 0
        %v3279 = vsel %vm2919, %v3274, 0
        %3281 = vmatpush.bf16.msra.mxu0 0
        %3282 = vmatpush.bf16.msra.mxu0 0
        %3283 = vmatpush.bf16.msra.mxu0 0
        %3284 = vmatpush.bf16.msra.mxu0 0
        %3285 = vmatpush.bf16.msra.mxu0 0
        %3286 = vmatpush.bf16.msra.mxu0 0
        %3287 = vmatpush.bf16.msra.mxu0 0
        %3288 = vmatpush.bf16.msra.mxu0 %v3279
        %3289 = vmatmul.bf16.gmra.mxu0 %v3276
        %v3290 = vpop.f32.mrf.mxu0
        %v3291 = vadd.f32 0.0, %v3290
        %v3292 = vpop.f32.mrf.mxu0
        %3293 = vdwg.mxu0
        %v3294 = vadd.f32 %v3266, %v3291
        %s3295 = scalar_lea.vmem %s15, 16
        %v3296 = vld [vmem:[%s3295] sm:$0xff]
        %v3297 = vpack.c.bf16 %v3296, %v3296
        %3298 = vrot.lane.b32.xlu0 %v3272, 126
        %v3299 = vpop.permute.xlu0 %3298
        %v3301 = vsel %vm2915, %v3297, 0
        %v3304 = vsel %vm2919, %v3299, 0
        %3306 = vmatpush.bf16.msra.mxu0 0
        %3307 = vmatpush.bf16.msra.mxu0 0
        %3308 = vmatpush.bf16.msra.mxu0 0
        %3309 = vmatpush.bf16.msra.mxu0 0
        %3310 = vmatpush.bf16.msra.mxu0 0
        %3311 = vmatpush.bf16.msra.mxu0 0
        %3312 = vmatpush.bf16.msra.mxu0 0
        %3313 = vmatpush.bf16.msra.mxu0 %v3304
        %3314 = vmatmul.bf16.gmra.mxu0 %v3301
        %v3315 = vpop.f32.mrf.mxu0
        %v3316 = vadd.f32 0.0, %v3315
        %v3317 = vpop.f32.mrf.mxu0
        %3318 = vdwg.mxu0
        %v3319 = vadd.f32 %v3294, %v3316
        %s3320 = scalar_lea.vmem %s15, 24
        %v3321 = vld [vmem:[%s3320] sm:$0xff]
        %v3322 = vpack.c.bf16 %v3321, %v3321
        %3323 = vrot.lane.b32.xlu0 %v3272, 122
        %v3324 = vpop.permute.xlu0 %3323
        %v3326 = vsel %vm2915, %v3322, 0
        %v3329 = vsel %vm2919, %v3324, 0
        %3331 = vmatpush.bf16.msra.mxu0 0
        %3332 = vmatpush.bf16.msra.mxu0 0
        %3333 = vmatpush.bf16.msra.mxu0 0
        %3334 = vmatpush.bf16.msra.mxu0 0
        %3335 = vmatpush.bf16.msra.mxu0 0
        %3336 = vmatpush.bf16.msra.mxu0 0
        %3337 = vmatpush.bf16.msra.mxu0 0
        %3338 = vmatpush.bf16.msra.mxu0 %v3329
        %3339 = vmatmul.bf16.gmra.mxu0 %v3326
        %v3340 = vpop.f32.mrf.mxu0
        %v3341 = vadd.f32 0.0, %v3340
        %v3342 = vpop.f32.mrf.mxu0
        %3343 = vdwg.mxu0
        %v3344 = vadd.f32 %v3319, %v3341
        %s3345 = scalar_lea.vmem %s15, 32
        %v3346 = vld [vmem:[%s3345] sm:$0xff]
        %v3347 = vpack.c.bf16 %v3346, %v3346
        %3348 = vrot.lane.b32.xlu0 %v3272, 121
        %v3349 = vpop.permute.xlu0 %3348
        %v3351 = vsel %vm2915, %v3347, 0
        %v3354 = vsel %vm2919, %v3349, 0
        %3356 = vmatpush.bf16.msra.mxu0 0
        %3357 = vmatpush.bf16.msra.mxu0 0
        %3358 = vmatpush.bf16.msra.mxu0 0
        %3359 = vmatpush.bf16.msra.mxu0 0
        %3360 = vmatpush.bf16.msra.mxu0 0
        %3361 = vmatpush.bf16.msra.mxu0 0
        %3362 = vmatpush.bf16.msra.mxu0 0
        %3363 = vmatpush.bf16.msra.mxu0 %v3354
        %3364 = vmatmul.bf16.gmra.mxu0 %v3351
        %v3365 = vpop.f32.mrf.mxu0
        %v3366 = vadd.f32 0.0, %v3365
        %v3367 = vpop.f32.mrf.mxu0
        %3368 = vdwg.mxu0
        %v3369 = vadd.f32 %v3344, %v3366
        %s3370 = scalar_lea.vmem %s15, 40
        %v3371 = vld [vmem:[%s3370] sm:$0xff]
        %v3372 = vpack.c.bf16 %v3371, %v3371
        %3373 = vrot.lane.b32.xlu0 %v3272, 120
        %v3374 = vpop.permute.xlu0 %3373
        %v3376 = vsel %vm2915, %v3372, 0
        %v3379 = vsel %vm2919, %v3374, 0
        %3381 = vmatpush.bf16.msra.mxu0 0
        %3382 = vmatpush.bf16.msra.mxu0 0
        %3383 = vmatpush.bf16.msra.mxu0 0
        %3384 = vmatpush.bf16.msra.mxu0 0
        %3385 = vmatpush.bf16.msra.mxu0 0
        %3386 = vmatpush.bf16.msra.mxu0 0
        %3387 = vmatpush.bf16.msra.mxu0 0
        %3388 = vmatpush.bf16.msra.mxu0 %v3379
        %3389 = vmatmul.bf16.gmra.mxu0 %v3376
        %v3390 = vpop.f32.mrf.mxu0
        %v3391 = vadd.f32 0.0, %v3390
        %v3392 = vpop.f32.mrf.mxu0
        %3393 = vdwg.mxu0
        %v3394 = vadd.f32 %v3369, %v3391
        %s3395 = scalar_lea.vmem %s15, 48
        %v3396 = vld [vmem:[%s3395] sm:$0xff]
        %v3397 = vpack.c.bf16 %v3396, %v3396
        %3398 = vrot.lane.b32.xlu0 %v3272, 116
        %v3399 = vpop.permute.xlu0 %3398
        %v3401 = vsel %vm2915, %v3397, 0
        %v3404 = vsel %vm2919, %v3399, 0
        %3406 = vmatpush.bf16.msra.mxu0 0
        %3407 = vmatpush.bf16.msra.mxu0 0
        %3408 = vmatpush.bf16.msra.mxu0 0
        %3409 = vmatpush.bf16.msra.mxu0 0
        %3410 = vmatpush.bf16.msra.mxu0 0
        %3411 = vmatpush.bf16.msra.mxu0 0
        %3412 = vmatpush.bf16.msra.mxu0 0
        %3413 = vmatpush.bf16.msra.mxu0 %v3404
        %3414 = vmatmul.bf16.gmra.mxu0 %v3401
        %v3415 = vpop.f32.mrf.mxu0
        %v3416 = vadd.f32 0.0, %v3415
        %v3417 = vpop.f32.mrf.mxu0
        %3418 = vdwg.mxu0
        %v3419 = vadd.f32 %v3394, %v3416
        %s3420 = scalar_lea.vmem %s15, 56
        %v3421 = vld [vmem:[%s3420] sm:$0xff]
        %v3422 = vpack.c.bf16 %v3421, %v3421
        %3423 = vrot.lane.b32.xlu0 %v3272, 115
        %v3424 = vpop.permute.xlu0 %3423
        %v3426 = vsel %vm2915, %v3422, 0
        %v3429 = vsel %vm2919, %v3424, 0
        %3431 = vmatpush.bf16.msra.mxu0 0
        %3432 = vmatpush.bf16.msra.mxu0 0
        %3433 = vmatpush.bf16.msra.mxu0 0
        %3434 = vmatpush.bf16.msra.mxu0 0
        %3435 = vmatpush.bf16.msra.mxu0 0
        %3436 = vmatpush.bf16.msra.mxu0 0
        %3437 = vmatpush.bf16.msra.mxu0 0
        %3438 = vmatpush.bf16.msra.mxu0 %v3429
        %3439 = vmatmul.bf16.gmra.mxu0 %v3426
        %v3440 = vpop.f32.mrf.mxu0
        %v3441 = vadd.f32 0.0, %v3440
        %v3442 = vpop.f32.mrf.mxu0
        %3443 = vdwg.mxu0
        %v3444 = vadd.f32 %v3419, %v3441
        %s3445 = scalar_lea.vmem %s15, 64
        %v3446 = vld [vmem:[%s3445] sm:$0xff]
        %v3447 = vpack.c.bf16 %v3446, %v3446
        %3448 = vrot.lane.b32.xlu0 %v3272, 114
        %v3449 = vpop.permute.xlu0 %3448
        %v3451 = vsel %vm2915, %v3447, 0
        %v3454 = vsel %vm2919, %v3449, 0
        %3456 = vmatpush.bf16.msra.mxu0 0
        %3457 = vmatpush.bf16.msra.mxu0 0
        %3458 = vmatpush.bf16.msra.mxu0 0
        %3459 = vmatpush.bf16.msra.mxu0 0
        %3460 = vmatpush.bf16.msra.mxu0 0
        %3461 = vmatpush.bf16.msra.mxu0 0
        %3462 = vmatpush.bf16.msra.mxu0 0
        %3463 = vmatpush.bf16.msra.mxu0 %v3454
        %3464 = vmatmul.bf16.gmra.mxu0 %v3451
        %v3465 = vpop.f32.mrf.mxu0
        %v3466 = vadd.f32 0.0, %v3465
        %v3467 = vpop.f32.mrf.mxu0
        %3468 = vdwg.mxu0
        %v3469 = vadd.f32 %v3444, %v3466
        %vm3470 = vcmask 195584
        %v3472 = vsel %vm3470, %v3469, 0
        %3474 = vmatpush.msra.mxu0 0.0
        %3475 = vmatpush.msra.mxu0 0.0
        %3476 = vmatpush.msra.mxu0 0.0
        %3477 = vmatpush.msra.mxu0 0.0
        %3478 = vmatpush.msra.mxu0 0.0
        %3479 = vmatpush.msra.mxu0 0.0
        %3480 = vmatpush.msra.mxu0 0.0
        %3481 = vmatpush.msra.mxu0 0.0
        %3482 = vmatpush.msra.mxu0 0.0
        %3483 = vmatpush.msra.mxu0 0.0
        %3484 = vmatpush.msra.mxu0 0.0
        %3485 = vmatpush.msra.mxu0 0.0
        %3486 = vmatpush.msra.mxu0 0.0
        %3487 = vmatpush.msra.mxu0 %v3213
        %3488 = vmatpush.msra.mxu0 %v3212
        %3489 = vmatpush.msra.mxu0 %v3211
        %3490 = vmatmul.f32.gmra.mxu0 %v3472
        %v3491 = vpop.f32.mrf.mxu0
        %v3492 = vadd.f32 0.0, %v3491
        %3493 = vdwg.mxu0
        %v3494 = vmax.f32 %v3492, 0.0
        %v3495 = vld [vmem:[%s51] sm:$0xff]
        %v3496 = vld [vmem:[%s51 + $0x8] sm:$0xff]
        %v3497 = vld [vmem:[%s53] sm:$0xff]
        %v3498 = vld [vmem:[%s53 + $0x8] sm:$0xff]
        %v3499 = vld [vmem:[%s53 + $0x10] sm:$0xff]
        %v3500 = vld [vmem:[%s53 + $0x18] sm:$0xff]
        %v3502 = vsel %vm3214, %v3494, 0
        %3504 = vmatpush.msra.mxu0 0.0
        %3505 = vmatpush.msra.mxu0 0.0
        %3506 = vmatpush.msra.mxu0 0.0
        %3507 = vmatpush.msra.mxu0 0.0
        %3508 = vmatpush.msra.mxu0 0.0
        %3509 = vmatpush.msra.mxu0 0.0
        %3510 = vmatpush.msra.mxu0 0.0
        %3511 = vmatpush.msra.mxu0 0.0
        %3512 = vmatpush.msra.mxu0 0.0
        %3513 = vmatpush.msra.mxu0 0.0
        %3514 = vmatpush.msra.mxu0 0.0
        %3515 = vmatpush.msra.mxu0 0.0
        %3516 = vmatpush.msra.mxu0 0.0
        %3517 = vmatpush.msra.mxu0 0.0
        %3518 = vmatpush.msra.mxu0 %v3496
        %3519 = vmatpush.msra.mxu0 %v3495
        %3520 = vmatmul.f32.gmra.mxu0 %v3502
        %v3521 = vpop.f32.mrf.mxu0
        %v3522 = vadd.f32 0.0, %v3521
        %3523 = vdwg.mxu0
        %v3524 = vpack.c.bf16 %v3522, %v3522
        %v3525 = vld [vmem:[%s21] sm:$0xff]
        %3527 = vset.pattern.permute.xlu0 0
        %3528 = vperm.xlu0 %3527, %v3525
        %v3529 = vpop.permute.xlu0 %3528
        %v3531 = vld [vmem:[%s19] sm:$0xff]
        %v3532 = vpack.c.bf16 %v3531, %v3531
        %v3534 = vsel %vm2915, %v3532, 0
        %v3537 = vsel %vm2919, %v3524, 0
        %3539 = vmatpush.bf16.msra.mxu0 0
        %3540 = vmatpush.bf16.msra.mxu0 0
        %3541 = vmatpush.bf16.msra.mxu0 0
        %3542 = vmatpush.bf16.msra.mxu0 0
        %3543 = vmatpush.bf16.msra.mxu0 0
        %3544 = vmatpush.bf16.msra.mxu0 0
        %3545 = vmatpush.bf16.msra.mxu0 0
        %3546 = vmatpush.bf16.msra.mxu0 %v3537
        %3547 = vmatmul.bf16.gmra.mxu0 %v3534
        %v3548 = vpop.f32.mrf.mxu0
        %v3549 = vadd.f32 0.0, %v3548
        %v3550 = vpop.f32.mrf.mxu0
        %3551 = vdwg.mxu0
        %v3552 = vadd.f32 %v3529, %v3549
        %s3553 = scalar_lea.vmem %s19, 8
        %v3554 = vld [vmem:[%s3553] sm:$0xff]
        %v3555 = vpack.c.bf16 %v3554, %v3554
        %v3557 = vunpack.c.l.b16 %v3524
        %v3558 = vpack.c.b16 %v3557, %v3557
        %3559 = vrot.lane.b32.xlu0 %v3558, 126
        %v3560 = vpop.permute.xlu0 %3559
        %v3562 = vsel %vm2915, %v3555, 0
        %v3565 = vsel %vm2919, %v3560, 0
        %3567 = vmatpush.bf16.msra.mxu0 0
        %3568 = vmatpush.bf16.msra.mxu0 0
        %3569 = vmatpush.bf16.msra.mxu0 0
        %3570 = vmatpush.bf16.msra.mxu0 0
        %3571 = vmatpush.bf16.msra.mxu0 0
        %3572 = vmatpush.bf16.msra.mxu0 0
        %3573 = vmatpush.bf16.msra.mxu0 0
        %3574 = vmatpush.bf16.msra.mxu0 %v3565
        %3575 = vmatmul.bf16.gmra.mxu0 %v3562
        %v3576 = vpop.f32.mrf.mxu0
        %v3577 = vadd.f32 0.0, %v3576
        %v3578 = vpop.f32.mrf.mxu0
        %3579 = vdwg.mxu0
        %v3580 = vadd.f32 %v3552, %v3577
        %s3581 = scalar_lea.vmem %s19, 16
        %v3582 = vld [vmem:[%s3581] sm:$0xff]
        %v3583 = vpack.c.bf16 %v3582, %v3582
        %3584 = vrot.lane.b32.xlu0 %v3558, 124
        %v3585 = vpop.permute.xlu0 %3584
        %v3587 = vsel %vm2915, %v3583, 0
        %v3590 = vsel %vm2919, %v3585, 0
        %3592 = vmatpush.bf16.msra.mxu0 0
        %3593 = vmatpush.bf16.msra.mxu0 0
        %3594 = vmatpush.bf16.msra.mxu0 0
        %3595 = vmatpush.bf16.msra.mxu0 0
        %3596 = vmatpush.bf16.msra.mxu0 0
        %3597 = vmatpush.bf16.msra.mxu0 0
        %3598 = vmatpush.bf16.msra.mxu0 0
        %3599 = vmatpush.bf16.msra.mxu0 %v3590
        %3600 = vmatmul.bf16.gmra.mxu0 %v3587
        %v3601 = vpop.f32.mrf.mxu0
        %v3602 = vadd.f32 0.0, %v3601
        %v3603 = vpop.f32.mrf.mxu0
        %3604 = vdwg.mxu0
        %v3605 = vadd.f32 %v3580, %v3602
        %s3606 = scalar_lea.vmem %s19, 24
        %v3607 = vld [vmem:[%s3606] sm:$0xff]
        %v3608 = vpack.c.bf16 %v3607, %v3607
        %3609 = vrot.lane.b32.xlu0 %v3558, 112
        %v3610 = vpop.permute.xlu0 %3609
        %v3612 = vsel %vm2915, %v3608, 0
        %v3615 = vsel %vm2919, %v3610, 0
        %3617 = vmatpush.bf16.msra.mxu0 0
        %3618 = vmatpush.bf16.msra.mxu0 0
        %3619 = vmatpush.bf16.msra.mxu0 0
        %3620 = vmatpush.bf16.msra.mxu0 0
        %3621 = vmatpush.bf16.msra.mxu0 0
        %3622 = vmatpush.bf16.msra.mxu0 0
        %3623 = vmatpush.bf16.msra.mxu0 0
        %3624 = vmatpush.bf16.msra.mxu0 %v3615
        %3625 = vmatmul.bf16.gmra.mxu0 %v3612
        %v3626 = vpop.f32.mrf.mxu0
        %v3627 = vadd.f32 0.0, %v3626
        %v3628 = vpop.f32.mrf.mxu0
        %3629 = vdwg.mxu0
        %v3630 = vadd.f32 %v3605, %v3627
        %s3631 = scalar_lea.vmem %s19, 32
        %v3632 = vld [vmem:[%s3631] sm:$0xff]
        %v3633 = vpack.c.bf16 %v3632, %v3632
        %3634 = vrot.lane.b32.xlu0 %v3558, 110
        %v3635 = vpop.permute.xlu0 %3634
        %v3637 = vsel %vm2915, %v3633, 0
        %v3640 = vsel %vm2919, %v3635, 0
        %3642 = vmatpush.bf16.msra.mxu0 0
        %3643 = vmatpush.bf16.msra.mxu0 0
        %3644 = vmatpush.bf16.msra.mxu0 0
        %3645 = vmatpush.bf16.msra.mxu0 0
        %3646 = vmatpush.bf16.msra.mxu0 0
        %3647 = vmatpush.bf16.msra.mxu0 0
        %3648 = vmatpush.bf16.msra.mxu0 0
        %3649 = vmatpush.bf16.msra.mxu0 %v3640
        %3650 = vmatmul.bf16.gmra.mxu0 %v3637
        %v3651 = vpop.f32.mrf.mxu0
        %v3652 = vadd.f32 0.0, %v3651
        %v3653 = vpop.f32.mrf.mxu0
        %3654 = vdwg.mxu0
        %v3655 = vadd.f32 %v3630, %v3652
        %s3656 = scalar_lea.vmem %s19, 40
        %v3657 = vld [vmem:[%s3656] sm:$0xff]
        %v3658 = vpack.c.bf16 %v3657, %v3657
        %3659 = vrot.lane.b32.xlu0 %v3558, 108
        %v3660 = vpop.permute.xlu0 %3659
        %v3662 = vsel %vm2915, %v3658, 0
        %v3665 = vsel %vm2919, %v3660, 0
        %3667 = vmatpush.bf16.msra.mxu0 0
        %3668 = vmatpush.bf16.msra.mxu0 0
        %3669 = vmatpush.bf16.msra.mxu0 0
        %3670 = vmatpush.bf16.msra.mxu0 0
        %3671 = vmatpush.bf16.msra.mxu0 0
        %3672 = vmatpush.bf16.msra.mxu0 0
        %3673 = vmatpush.bf16.msra.mxu0 0
        %3674 = vmatpush.bf16.msra.mxu0 %v3665
        %3675 = vmatmul.bf16.gmra.mxu0 %v3662
        %v3676 = vpop.f32.mrf.mxu0
        %v3677 = vadd.f32 0.0, %v3676
        %v3678 = vpop.f32.mrf.mxu0
        %3679 = vdwg.mxu0
        %v3680 = vadd.f32 %v3655, %v3677
        %s3681 = scalar_lea.vmem %s19, 48
        %v3682 = vld [vmem:[%s3681] sm:$0xff]
        %v3683 = vpack.c.bf16 %v3682, %v3682
        %3684 = vrot.lane.b32.xlu0 %v3558, 96
        %v3685 = vpop.permute.xlu0 %3684
        %v3687 = vsel %vm2915, %v3683, 0
        %v3690 = vsel %vm2919, %v3685, 0
        %3692 = vmatpush.bf16.msra.mxu0 0
        %3693 = vmatpush.bf16.msra.mxu0 0
        %3694 = vmatpush.bf16.msra.mxu0 0
        %3695 = vmatpush.bf16.msra.mxu0 0
        %3696 = vmatpush.bf16.msra.mxu0 0
        %3697 = vmatpush.bf16.msra.mxu0 0
        %3698 = vmatpush.bf16.msra.mxu0 0
        %3699 = vmatpush.bf16.msra.mxu0 %v3690
        %3700 = vmatmul.bf16.gmra.mxu0 %v3687
        %v3701 = vpop.f32.mrf.mxu0
        %v3702 = vadd.f32 0.0, %v3701
        %v3703 = vpop.f32.mrf.mxu0
        %3704 = vdwg.mxu0
        %v3705 = vadd.f32 %v3680, %v3702
        %s3706 = scalar_lea.vmem %s19, 56
        %v3707 = vld [vmem:[%s3706] sm:$0xff]
        %v3708 = vpack.c.bf16 %v3707, %v3707
        %3709 = vrot.lane.b32.xlu0 %v3558, 94
        %v3710 = vpop.permute.xlu0 %3709
        %v3712 = vsel %vm2915, %v3708, 0
        %v3715 = vsel %vm2919, %v3710, 0
        %3717 = vmatpush.bf16.msra.mxu0 0
        %3718 = vmatpush.bf16.msra.mxu0 0
        %3719 = vmatpush.bf16.msra.mxu0 0
        %3720 = vmatpush.bf16.msra.mxu0 0
        %3721 = vmatpush.bf16.msra.mxu0 0
        %3722 = vmatpush.bf16.msra.mxu0 0
        %3723 = vmatpush.bf16.msra.mxu0 0
        %3724 = vmatpush.bf16.msra.mxu0 %v3715
        %3725 = vmatmul.bf16.gmra.mxu0 %v3712
        %v3726 = vpop.f32.mrf.mxu0
        %v3727 = vadd.f32 0.0, %v3726
        %v3728 = vpop.f32.mrf.mxu0
        %3729 = vdwg.mxu0
        %v3730 = vadd.f32 %v3705, %v3727
        %s3731 = scalar_lea.vmem %s19, 64
        %v3732 = vld [vmem:[%s3731] sm:$0xff]
        %v3733 = vpack.c.bf16 %v3732, %v3732
        %3734 = vrot.lane.b32.xlu0 %v3558, 92
        %v3735 = vpop.permute.xlu0 %3734
        %v3737 = vsel %vm2915, %v3733, 0
        %v3740 = vsel %vm2919, %v3735, 0
        %3742 = vmatpush.bf16.msra.mxu0 0
        %3743 = vmatpush.bf16.msra.mxu0 0
        %3744 = vmatpush.bf16.msra.mxu0 0
        %3745 = vmatpush.bf16.msra.mxu0 0
        %3746 = vmatpush.bf16.msra.mxu0 0
        %3747 = vmatpush.bf16.msra.mxu0 0
        %3748 = vmatpush.bf16.msra.mxu0 0
        %3749 = vmatpush.bf16.msra.mxu0 %v3740
        %3750 = vmatmul.bf16.gmra.mxu0 %v3737
        %v3751 = vpop.f32.mrf.mxu0
        %v3752 = vadd.f32 0.0, %v3751
        %v3753 = vpop.f32.mrf.mxu0
        %3754 = vdwg.mxu0
        %v3755 = vadd.f32 %v3730, %v3752
        %v3757 = vsel %vm1799, %v3755, 0
        %3759 = vmatpush.msra.mxu0 0.0
        %3760 = vmatpush.msra.mxu0 0.0
        %3761 = vmatpush.msra.mxu0 0.0
        %3762 = vmatpush.msra.mxu0 0.0
        %3763 = vmatpush.msra.mxu0 0.0
        %3764 = vmatpush.msra.mxu0 0.0
        %3765 = vmatpush.msra.mxu0 0.0
        %3766 = vmatpush.msra.mxu0 0.0
        %3767 = vmatpush.msra.mxu0 0.0
        %3768 = vmatpush.msra.mxu0 0.0
        %3769 = vmatpush.msra.mxu0 0.0
        %3770 = vmatpush.msra.mxu0 0.0
        %3771 = vmatpush.msra.mxu0 %v3500
        %3772 = vmatpush.msra.mxu0 %v3499
        %3773 = vmatpush.msra.mxu0 %v3498
        %3774 = vmatpush.msra.mxu0 %v3497
        %3775 = vmatmul.f32.gmra.mxu0 %v3757
        %v3776 = vpop.f32.mrf.mxu0
        %v3777 = vadd.f32 0.0, %v3776
        %3778 = vdwg.mxu0
        %v3779 = vmax.f32 %v3777, 0.0
        %3780 = vmatpush.msra.mxu0 0.0
        %3781 = vmatpush.msra.mxu0 0.0
        %3782 = vmatpush.msra.mxu0 0.0
        %3783 = vmatpush.msra.mxu0 0.0
        %3784 = vmatpush.msra.mxu0 0.0
        %3785 = vmatpush.msra.mxu0 0.0
        %3786 = vmatpush.msra.mxu0 0.0
        %3787 = vmatpush.msra.mxu0 0.0
        %3788 = vmatpush.msra.mxu0 0.0
        %3789 = vmatpush.msra.mxu0 0.0
        %3790 = vmatpush.msra.mxu0 0.0
        %3791 = vmatpush.msra.mxu0 0.0
        %3792 = vmatpush.msra.mxu0 0.0
        %3793 = vmatpush.msra.mxu0 0.0
        %3794 = vmatpush.msra.mxu0 %v3210
        %3795 = vmatpush.msra.mxu0 %v3209
        %3796 = vmatmul.f32.gmra.mxu0 %v3502
        %v3797 = vpop.f32.mrf.mxu0
        %v3798 = vadd.f32 0.0, %v3797
        %3799 = vdwg.mxu0
        %v3800 = vpack.c.bf16 %v3798, %v3798
        %v3802 = vsel %vm3214, %v3779, 0
        %3804 = vmatpush.msra.mxu0 0.0
        %3805 = vmatpush.msra.mxu0 0.0
        %3806 = vmatpush.msra.mxu0 0.0
        %3807 = vmatpush.msra.mxu0 0.0
        %3808 = vmatpush.msra.mxu0 0.0
        %3809 = vmatpush.msra.mxu0 0.0
        %3810 = vmatpush.msra.mxu0 0.0
        %3811 = vmatpush.msra.mxu0 0.0
        %3812 = vmatpush.msra.mxu0 0.0
        %3813 = vmatpush.msra.mxu0 0.0
        %3814 = vmatpush.msra.mxu0 0.0
        %3815 = vmatpush.msra.mxu0 0.0
        %3816 = vmatpush.msra.mxu0 0.0
        %3817 = vmatpush.msra.mxu0 0.0
        %3818 = vmatpush.msra.mxu0 %v3210
        %3819 = vmatpush.msra.mxu0 %v3209
        %3820 = vmatmul.f32.gmra.mxu0 %v3802
        %v3821 = vpop.f32.mrf.mxu0
        %v3822 = vadd.f32 0.0, %v3821
        %3823 = vdwg.mxu0
        %v3824 = vpack.c.bf16 %v3822, %v3822
        %v3825 = vld [vmem:[%s25] sm:$0xff]
        %3827 = vset.pattern.permute.xlu0 0
        %3828 = vperm.xlu0 %3827, %v3825
        %v3829 = vpop.permute.xlu0 %3828
        %v3831 = vld [vmem:[%s23] sm:$0xff]
        %v3832 = vpack.c.bf16 %v3831, %v3831
        %v3834 = vsel %vm2915, %v3832, 0
        %v3837 = vsel %vm2919, %v3800, 0
        %3839 = vmatpush.bf16.msra.mxu0 0
        %3840 = vmatpush.bf16.msra.mxu0 0
        %3841 = vmatpush.bf16.msra.mxu0 0
        %3842 = vmatpush.bf16.msra.mxu0 0
        %3843 = vmatpush.bf16.msra.mxu0 0
        %3844 = vmatpush.bf16.msra.mxu0 0
        %3845 = vmatpush.bf16.msra.mxu0 0
        %3846 = vmatpush.bf16.msra.mxu0 %v3837
        %3847 = vmatmul.bf16.gmra.mxu0 %v3834
        %v3848 = vpop.f32.mrf.mxu0
        %v3849 = vadd.f32 0.0, %v3848
        %v3850 = vpop.f32.mrf.mxu0
        %3851 = vdwg.mxu0
        %v3852 = vadd.f32 %v3829, %v3849
        %v3854 = vunpack.c.l.b16 %v3832
        %v3855 = vpack.c.b16 %v3854, %v3854
        %3856 = vrot.lane.b32.xlu0 %v3855, 120
        %v3857 = vpop.permute.xlu0 %3856
        %v3859 = vsel %vm2915, %v3857, 0
        %v3862 = vsel %vm2919, %v3824, 0
        %3864 = vmatpush.bf16.msra.mxu0 0
        %3865 = vmatpush.bf16.msra.mxu0 0
        %3866 = vmatpush.bf16.msra.mxu0 0
        %3867 = vmatpush.bf16.msra.mxu0 0
        %3868 = vmatpush.bf16.msra.mxu0 0
        %3869 = vmatpush.bf16.msra.mxu0 0
        %3870 = vmatpush.bf16.msra.mxu0 0
        %3871 = vmatpush.bf16.msra.mxu0 %v3862
        %3872 = vmatmul.bf16.gmra.mxu0 %v3859
        %v3873 = vpop.f32.mrf.mxu0
        %v3874 = vadd.f32 0.0, %v3873
        %v3875 = vpop.f32.mrf.mxu0
        %3876 = vdwg.mxu0
        %v3877 = vadd.f32 %v3852, %v3874
        %s3878 = scalar_lea.vmem %s23, 8
        %v3879 = vld [vmem:[%s3878] sm:$0xff]
        %v3880 = vpack.c.bf16 %v3879, %v3879
        %v3882 = vunpack.c.l.b16 %v3800
        %v3883 = vpack.c.b16 %v3882, %v3882
        %3884 = vrot.lane.b32.xlu0 %v3883, 127
        %v3885 = vpop.permute.xlu0 %3884
        %v3887 = vsel %vm2915, %v3880, 0
        %v3890 = vsel %vm2919, %v3885, 0
        %3892 = vmatpush.bf16.msra.mxu0 0
        %3893 = vmatpush.bf16.msra.mxu0 0
        %3894 = vmatpush.bf16.msra.mxu0 0
        %3895 = vmatpush.bf16.msra.mxu0 0
        %3896 = vmatpush.bf16.msra.mxu0 0
        %3897 = vmatpush.bf16.msra.mxu0 0
        %3898 = vmatpush.bf16.msra.mxu0 0
        %3899 = vmatpush.bf16.msra.mxu0 %v3890
        %3900 = vmatmul.bf16.gmra.mxu0 %v3887
        %v3901 = vpop.f32.mrf.mxu0
        %v3902 = vadd.f32 0.0, %v3901
        %v3903 = vpop.f32.mrf.mxu0
        %3904 = vdwg.mxu0
        %v3905 = vadd.f32 %v3877, %v3902
        %v3907 = vunpack.c.l.b16 %v3880
        %v3908 = vpack.c.b16 %v3907, %v3907
        %3909 = vrot.lane.b32.xlu0 %v3908, 120
        %v3910 = vpop.permute.xlu0 %3909
        %v3912 = vunpack.c.l.b16 %v3824
        %v3913 = vpack.c.b16 %v3912, %v3912
        %3914 = vrot.lane.b32.xlu0 %v3913, 127
        %v3915 = vpop.permute.xlu0 %3914
        %v3917 = vsel %vm2915, %v3910, 0
        %v3920 = vsel %vm2919, %v3915, 0
        %3922 = vmatpush.bf16.msra.mxu0 0
        %3923 = vmatpush.bf16.msra.mxu0 0
        %3924 = vmatpush.bf16.msra.mxu0 0
        %3925 = vmatpush.bf16.msra.mxu0 0
        %3926 = vmatpush.bf16.msra.mxu0 0
        %3927 = vmatpush.bf16.msra.mxu0 0
        %3928 = vmatpush.bf16.msra.mxu0 0
        %3929 = vmatpush.bf16.msra.mxu0 %v3920
        %3930 = vmatmul.bf16.gmra.mxu0 %v3917
        %v3931 = vpop.f32.mrf.mxu0
        %v3932 = vadd.f32 0.0, %v3931
        %v3933 = vpop.f32.mrf.mxu0
        %3934 = vdwg.mxu0
        %v3935 = vadd.f32 %v3905, %v3932
        %s3936 = scalar_lea.vmem %s23, 16
        %v3937 = vld [vmem:[%s3936] sm:$0xff]
        %v3938 = vpack.c.bf16 %v3937, %v3937
        %3939 = vrot.lane.b32.xlu0 %v3883, 126
        %v3940 = vpop.permute.xlu0 %3939
        %v3942 = vsel %vm2915, %v3938, 0
        %v3945 = vsel %vm2919, %v3940, 0
        %3947 = vmatpush.bf16.msra.mxu0 0
        %3948 = vmatpush.bf16.msra.mxu0 0
        %3949 = vmatpush.bf16.msra.mxu0 0
        %3950 = vmatpush.bf16.msra.mxu0 0
        %3951 = vmatpush.bf16.msra.mxu0 0
        %3952 = vmatpush.bf16.msra.mxu0 0
        %3953 = vmatpush.bf16.msra.mxu0 0
        %3954 = vmatpush.bf16.msra.mxu0 %v3945
        %3955 = vmatmul.bf16.gmra.mxu0 %v3942
        %v3956 = vpop.f32.mrf.mxu0
        %v3957 = vadd.f32 0.0, %v3956
        %v3958 = vpop.f32.mrf.mxu0
        %3959 = vdwg.mxu0
        %v3960 = vadd.f32 %v3935, %v3957
        %v3962 = vunpack.c.l.b16 %v3938
        %v3963 = vpack.c.b16 %v3962, %v3962
        %3964 = vrot.lane.b32.xlu0 %v3963, 120
        %v3965 = vpop.permute.xlu0 %3964
        %3966 = vrot.lane.b32.xlu0 %v3913, 126
        %v3967 = vpop.permute.xlu0 %3966
        %v3969 = vsel %vm2915, %v3965, 0
        %v3972 = vsel %vm2919, %v3967, 0
        %3974 = vmatpush.bf16.msra.mxu0 0
        %3975 = vmatpush.bf16.msra.mxu0 0
        %3976 = vmatpush.bf16.msra.mxu0 0
        %3977 = vmatpush.bf16.msra.mxu0 0
        %3978 = vmatpush.bf16.msra.mxu0 0
        %3979 = vmatpush.bf16.msra.mxu0 0
        %3980 = vmatpush.bf16.msra.mxu0 0
        %3981 = vmatpush.bf16.msra.mxu0 %v3972
        %3982 = vmatmul.bf16.gmra.mxu0 %v3969
        %v3983 = vpop.f32.mrf.mxu0
        %v3984 = vadd.f32 0.0, %v3983
        %v3985 = vpop.f32.mrf.mxu0
        %3986 = vdwg.mxu0
        %v3987 = vadd.f32 %v3960, %v3984
        %s3988 = scalar_lea.vmem %s23, 24
        %v3989 = vld [vmem:[%s3988] sm:$0xff]
        %v3990 = vpack.c.bf16 %v3989, %v3989
        %3991 = vrot.lane.b32.xlu0 %v3883, 122
        %v3992 = vpop.permute.xlu0 %3991
        %v3994 = vsel %vm2915, %v3990, 0
        %v3997 = vsel %vm2919, %v3992, 0
        %3999 = vmatpush.bf16.msra.mxu0 0
        %4000 = vmatpush.bf16.msra.mxu0 0
        %4001 = vmatpush.bf16.msra.mxu0 0
        %4002 = vmatpush.bf16.msra.mxu0 0
        %4003 = vmatpush.bf16.msra.mxu0 0
        %4004 = vmatpush.bf16.msra.mxu0 0
        %4005 = vmatpush.bf16.msra.mxu0 0
        %4006 = vmatpush.bf16.msra.mxu0 %v3997
        %4007 = vmatmul.bf16.gmra.mxu0 %v3994
        %v4008 = vpop.f32.mrf.mxu0
        %v4009 = vadd.f32 0.0, %v4008
        %v4010 = vpop.f32.mrf.mxu0
        %4011 = vdwg.mxu0
        %v4012 = vadd.f32 %v3987, %v4009
        %v4014 = vunpack.c.l.b16 %v3990
        %v4015 = vpack.c.b16 %v4014, %v4014
        %4016 = vrot.lane.b32.xlu0 %v4015, 120
        %v4017 = vpop.permute.xlu0 %4016
        %4018 = vrot.lane.b32.xlu0 %v3913, 122
        %v4019 = vpop.permute.xlu0 %4018
        %v4021 = vsel %vm2915, %v4017, 0
        %v4024 = vsel %vm2919, %v4019, 0
        %4026 = vmatpush.bf16.msra.mxu0 0
        %4027 = vmatpush.bf16.msra.mxu0 0
        %4028 = vmatpush.bf16.msra.mxu0 0
        %4029 = vmatpush.bf16.msra.mxu0 0
        %4030 = vmatpush.bf16.msra.mxu0 0
        %4031 = vmatpush.bf16.msra.mxu0 0
        %4032 = vmatpush.bf16.msra.mxu0 0
        %4033 = vmatpush.bf16.msra.mxu0 %v4024
        %4034 = vmatmul.bf16.gmra.mxu0 %v4021
        %v4035 = vpop.f32.mrf.mxu0
        %v4036 = vadd.f32 0.0, %v4035
        %v4037 = vpop.f32.mrf.mxu0
        %4038 = vdwg.mxu0
        %v4039 = vadd.f32 %v4012, %v4036
        %s4040 = scalar_lea.vmem %s23, 32
        %v4041 = vld [vmem:[%s4040] sm:$0xff]
        %v4042 = vpack.c.bf16 %v4041, %v4041
        %4043 = vrot.lane.b32.xlu0 %v3883, 121
        %v4044 = vpop.permute.xlu0 %4043
        %v4046 = vsel %vm2915, %v4042, 0
        %v4049 = vsel %vm2919, %v4044, 0
        %4051 = vmatpush.bf16.msra.mxu0 0
        %4052 = vmatpush.bf16.msra.mxu0 0
        %4053 = vmatpush.bf16.msra.mxu0 0
        %4054 = vmatpush.bf16.msra.mxu0 0
        %4055 = vmatpush.bf16.msra.mxu0 0
        %4056 = vmatpush.bf16.msra.mxu0 0
        %4057 = vmatpush.bf16.msra.mxu0 0
        %4058 = vmatpush.bf16.msra.mxu0 %v4049
        %4059 = vmatmul.bf16.gmra.mxu0 %v4046
        %v4060 = vpop.f32.mrf.mxu0
        %v4061 = vadd.f32 0.0, %v4060
        %v4062 = vpop.f32.mrf.mxu0
        %4063 = vdwg.mxu0
        %v4064 = vadd.f32 %v4039, %v4061
        %v4066 = vunpack.c.l.b16 %v4042
        %v4067 = vpack.c.b16 %v4066, %v4066
        %4068 = vrot.lane.b32.xlu0 %v4067, 120
        %v4069 = vpop.permute.xlu0 %4068
        %4070 = vrot.lane.b32.xlu0 %v3913, 121
        %v4071 = vpop.permute.xlu0 %4070
        %v4073 = vsel %vm2915, %v4069, 0
        %v4076 = vsel %vm2919, %v4071, 0
        %4078 = vmatpush.bf16.msra.mxu0 0
        %4079 = vmatpush.bf16.msra.mxu0 0
        %4080 = vmatpush.bf16.msra.mxu0 0
        %4081 = vmatpush.bf16.msra.mxu0 0
        %4082 = vmatpush.bf16.msra.mxu0 0
        %4083 = vmatpush.bf16.msra.mxu0 0
        %4084 = vmatpush.bf16.msra.mxu0 0
        %4085 = vmatpush.bf16.msra.mxu0 %v4076
        %4086 = vmatmul.bf16.gmra.mxu0 %v4073
        %v4087 = vpop.f32.mrf.mxu0
        %v4088 = vadd.f32 0.0, %v4087
        %v4089 = vpop.f32.mrf.mxu0
        %4090 = vdwg.mxu0
        %v4091 = vadd.f32 %v4064, %v4088
        %s4092 = scalar_lea.vmem %s23, 40
        %v4093 = vld [vmem:[%s4092] sm:$0xff]
        %v4094 = vpack.c.bf16 %v4093, %v4093
        %4095 = vrot.lane.b32.xlu0 %v3883, 120
        %v4096 = vpop.permute.xlu0 %4095
        %v4098 = vsel %vm2915, %v4094, 0
        %v4101 = vsel %vm2919, %v4096, 0
        %4103 = vmatpush.bf16.msra.mxu0 0
        %4104 = vmatpush.bf16.msra.mxu0 0
        %4105 = vmatpush.bf16.msra.mxu0 0
        %4106 = vmatpush.bf16.msra.mxu0 0
        %4107 = vmatpush.bf16.msra.mxu0 0
        %4108 = vmatpush.bf16.msra.mxu0 0
        %4109 = vmatpush.bf16.msra.mxu0 0
        %4110 = vmatpush.bf16.msra.mxu0 %v4101
        %4111 = vmatmul.bf16.gmra.mxu0 %v4098
        %v4112 = vpop.f32.mrf.mxu0
        %v4113 = vadd.f32 0.0, %v4112
        %v4114 = vpop.f32.mrf.mxu0
        %4115 = vdwg.mxu0
        %v4116 = vadd.f32 %v4091, %v4113
        %v4118 = vunpack.c.l.b16 %v4094
        %v4119 = vpack.c.b16 %v4118, %v4118
        %4120 = vrot.lane.b32.xlu0 %v4119, 120
        %v4121 = vpop.permute.xlu0 %4120
        %4122 = vrot.lane.b32.xlu0 %v3913, 120
        %v4123 = vpop.permute.xlu0 %4122
        %v4125 = vsel %vm2915, %v4121, 0
        %v4128 = vsel %vm2919, %v4123, 0
        %4130 = vmatpush.bf16.msra.mxu0 0
        %4131 = vmatpush.bf16.msra.mxu0 0
        %4132 = vmatpush.bf16.msra.mxu0 0
        %4133 = vmatpush.bf16.msra.mxu0 0
        %4134 = vmatpush.bf16.msra.mxu0 0
        %4135 = vmatpush.bf16.msra.mxu0 0
        %4136 = vmatpush.bf16.msra.mxu0 0
        %4137 = vmatpush.bf16.msra.mxu0 %v4128
        %4138 = vmatmul.bf16.gmra.mxu0 %v4125
        %v4139 = vpop.f32.mrf.mxu0
        %v4140 = vadd.f32 0.0, %v4139
        %v4141 = vpop.f32.mrf.mxu0
        %4142 = vdwg.mxu0
        %v4143 = vadd.f32 %v4116, %v4140
        %s4144 = scalar_lea.vmem %s23, 48
        %v4145 = vld [vmem:[%s4144] sm:$0xff]
        %v4146 = vpack.c.bf16 %v4145, %v4145
        %4147 = vrot.lane.b32.xlu0 %v3883, 116
        %v4148 = vpop.permute.xlu0 %4147
        %v4150 = vsel %vm2915, %v4146, 0
        %v4153 = vsel %vm2919, %v4148, 0
        %4155 = vmatpush.bf16.msra.mxu0 0
        %4156 = vmatpush.bf16.msra.mxu0 0
        %4157 = vmatpush.bf16.msra.mxu0 0
        %4158 = vmatpush.bf16.msra.mxu0 0
        %4159 = vmatpush.bf16.msra.mxu0 0
        %4160 = vmatpush.bf16.msra.mxu0 0
        %4161 = vmatpush.bf16.msra.mxu0 0
        %4162 = vmatpush.bf16.msra.mxu0 %v4153
        %4163 = vmatmul.bf16.gmra.mxu0 %v4150
        %v4164 = vpop.f32.mrf.mxu0
        %v4165 = vadd.f32 0.0, %v4164
        %v4166 = vpop.f32.mrf.mxu0
        %4167 = vdwg.mxu0
        %v4168 = vadd.f32 %v4143, %v4165
        %v4170 = vunpack.c.l.b16 %v4146
        %v4171 = vpack.c.b16 %v4170, %v4170
        %4172 = vrot.lane.b32.xlu0 %v4171, 120
        %v4173 = vpop.permute.xlu0 %4172
        %4174 = vrot.lane.b32.xlu0 %v3913, 116
        %v4175 = vpop.permute.xlu0 %4174
        %v4177 = vsel %vm2915, %v4173, 0
        %v4180 = vsel %vm2919, %v4175, 0
        %4182 = vmatpush.bf16.msra.mxu0 0
        %4183 = vmatpush.bf16.msra.mxu0 0
        %4184 = vmatpush.bf16.msra.mxu0 0
        %4185 = vmatpush.bf16.msra.mxu0 0
        %4186 = vmatpush.bf16.msra.mxu0 0
        %4187 = vmatpush.bf16.msra.mxu0 0
        %4188 = vmatpush.bf16.msra.mxu0 0
        %4189 = vmatpush.bf16.msra.mxu0 %v4180
        %4190 = vmatmul.bf16.gmra.mxu0 %v4177
        %v4191 = vpop.f32.mrf.mxu0
        %v4192 = vadd.f32 0.0, %v4191
        %v4193 = vpop.f32.mrf.mxu0
        %4194 = vdwg.mxu0
        %v4195 = vadd.f32 %v4168, %v4192
        %s4196 = scalar_lea.vmem %s23, 56
        %v4197 = vld [vmem:[%s4196] sm:$0xff]
        %v4198 = vpack.c.bf16 %v4197, %v4197
        %4199 = vrot.lane.b32.xlu0 %v3883, 115
        %v4200 = vpop.permute.xlu0 %4199
        %v4202 = vsel %vm2915, %v4198, 0
        %v4205 = vsel %vm2919, %v4200, 0
        %4207 = vmatpush.bf16.msra.mxu0 0
        %4208 = vmatpush.bf16.msra.mxu0 0
        %4209 = vmatpush.bf16.msra.mxu0 0
        %4210 = vmatpush.bf16.msra.mxu0 0
        %4211 = vmatpush.bf16.msra.mxu0 0
        %4212 = vmatpush.bf16.msra.mxu0 0
        %4213 = vmatpush.bf16.msra.mxu0 0
        %4214 = vmatpush.bf16.msra.mxu0 %v4205
        %4215 = vmatmul.bf16.gmra.mxu0 %v4202
        %v4216 = vpop.f32.mrf.mxu0
        %v4217 = vadd.f32 0.0, %v4216
        %v4218 = vpop.f32.mrf.mxu0
        %4219 = vdwg.mxu0
        %v4220 = vadd.f32 %v4195, %v4217
        %v4222 = vunpack.c.l.b16 %v4198
        %v4223 = vpack.c.b16 %v4222, %v4222
        %4224 = vrot.lane.b32.xlu0 %v4223, 120
        %v4225 = vpop.permute.xlu0 %4224
        %4226 = vrot.lane.b32.xlu0 %v3913, 115
        %v4227 = vpop.permute.xlu0 %4226
        %v4229 = vsel %vm2915, %v4225, 0
        %v4232 = vsel %vm2919, %v4227, 0
        %4234 = vmatpush.bf16.msra.mxu0 0
        %4235 = vmatpush.bf16.msra.mxu0 0
        %4236 = vmatpush.bf16.msra.mxu0 0
        %4237 = vmatpush.bf16.msra.mxu0 0
        %4238 = vmatpush.bf16.msra.mxu0 0
        %4239 = vmatpush.bf16.msra.mxu0 0
        %4240 = vmatpush.bf16.msra.mxu0 0
        %4241 = vmatpush.bf16.msra.mxu0 %v4232
        %4242 = vmatmul.bf16.gmra.mxu0 %v4229
        %v4243 = vpop.f32.mrf.mxu0
        %v4244 = vadd.f32 0.0, %v4243
        %v4245 = vpop.f32.mrf.mxu0
        %4246 = vdwg.mxu0
        %v4247 = vadd.f32 %v4220, %v4244
        %s4248 = scalar_lea.vmem %s23, 64
        %v4249 = vld [vmem:[%s4248] sm:$0xff]
        %v4250 = vpack.c.bf16 %v4249, %v4249
        %4251 = vrot.lane.b32.xlu0 %v3883, 114
        %v4252 = vpop.permute.xlu0 %4251
        %v4254 = vsel %vm2915, %v4250, 0
        %v4257 = vsel %vm2919, %v4252, 0
        %4259 = vmatpush.bf16.msra.mxu0 0
        %4260 = vmatpush.bf16.msra.mxu0 0
        %4261 = vmatpush.bf16.msra.mxu0 0
        %4262 = vmatpush.bf16.msra.mxu0 0
        %4263 = vmatpush.bf16.msra.mxu0 0
        %4264 = vmatpush.bf16.msra.mxu0 0
        %4265 = vmatpush.bf16.msra.mxu0 0
        %4266 = vmatpush.bf16.msra.mxu0 %v4257
        %4267 = vmatmul.bf16.gmra.mxu0 %v4254
        %v4268 = vpop.f32.mrf.mxu0
        %v4269 = vadd.f32 0.0, %v4268
        %v4270 = vpop.f32.mrf.mxu0
        %4271 = vdwg.mxu0
        %v4272 = vadd.f32 %v4247, %v4269
        %v4274 = vunpack.c.l.b16 %v4250
        %v4275 = vpack.c.b16 %v4274, %v4274
        %4276 = vrot.lane.b32.xlu0 %v4275, 120
        %v4277 = vpop.permute.xlu0 %4276
        %4278 = vrot.lane.b32.xlu0 %v3913, 114
        %v4279 = vpop.permute.xlu0 %4278
        %v4281 = vsel %vm2915, %v4277, 0
        %v4284 = vsel %vm2919, %v4279, 0
        %4286 = vmatpush.bf16.msra.mxu0 0
        %4287 = vmatpush.bf16.msra.mxu0 0
        %4288 = vmatpush.bf16.msra.mxu0 0
        %4289 = vmatpush.bf16.msra.mxu0 0
        %4290 = vmatpush.bf16.msra.mxu0 0
        %4291 = vmatpush.bf16.msra.mxu0 0
        %4292 = vmatpush.bf16.msra.mxu0 0
        %4293 = vmatpush.bf16.msra.mxu0 %v4284
        %4294 = vmatmul.bf16.gmra.mxu0 %v4281
        %v4295 = vpop.f32.mrf.mxu0
        %v4296 = vadd.f32 0.0, %v4295
        %v4297 = vpop.f32.mrf.mxu0
        %4298 = vdwg.mxu0
        %v4299 = vadd.f32 %v4272, %v4296
        %v4301 = vsel %vm3470, %v4299, 0
        %4303 = vmatpush.msra.mxu0 0.0
        %4304 = vmatpush.msra.mxu0 0.0
        %4305 = vmatpush.msra.mxu0 0.0
        %4306 = vmatpush.msra.mxu0 0.0
        %4307 = vmatpush.msra.mxu0 0.0
        %4308 = vmatpush.msra.mxu0 0.0
        %4309 = vmatpush.msra.mxu0 0.0
        %4310 = vmatpush.msra.mxu0 0.0
        %4311 = vmatpush.msra.mxu0 0.0
        %4312 = vmatpush.msra.mxu0 0.0
        %4313 = vmatpush.msra.mxu0 0.0
        %4314 = vmatpush.msra.mxu0 0.0
        %4315 = vmatpush.msra.mxu0 0.0
        %4316 = vmatpush.msra.mxu0 %v3213
        %4317 = vmatpush.msra.mxu0 %v3212
        %4318 = vmatpush.msra.mxu0 %v3211
        %4319 = vmatmul.f32.gmra.mxu0 %v4301
        %v4320 = vpop.f32.mrf.mxu0
        %v4321 = vadd.f32 0.0, %v4320
        %4322 = vdwg.mxu0
        %v4323 = vmax.f32 %v4321, 0.0
        %v4324 = vld [vmem:[%s55] sm:$0xff]
        %v4325 = vld [vmem:[%s55 + $0x8] sm:$0xff]
        %v4327 = vsel %vm3214, %v4323, 0
        %4329 = vmatpush.msra.mxu0 0.0
        %4330 = vmatpush.msra.mxu0 0.0
        %4331 = vmatpush.msra.mxu0 0.0
        %4332 = vmatpush.msra.mxu0 0.0
        %4333 = vmatpush.msra.mxu0 0.0
        %4334 = vmatpush.msra.mxu0 0.0
        %4335 = vmatpush.msra.mxu0 0.0
        %4336 = vmatpush.msra.mxu0 0.0
        %4337 = vmatpush.msra.mxu0 0.0
        %4338 = vmatpush.msra.mxu0 0.0
        %4339 = vmatpush.msra.mxu0 0.0
        %4340 = vmatpush.msra.mxu0 0.0
        %4341 = vmatpush.msra.mxu0 0.0
        %4342 = vmatpush.msra.mxu0 0.0
        %4343 = vmatpush.msra.mxu0 %v4325
        %4344 = vmatpush.msra.mxu0 %v4324
        %4345 = vmatmul.f32.gmra.mxu0 %v4327
        %v4346 = vpop.f32.mrf.mxu0
        %v4347 = vadd.f32 0.0, %v4346
        %4348 = vdwg.mxu0
        %v4350 = vsel %vm2882, %v4347, 0
        %4352 = vmatpush.msra.mxu0 0.0
        %4353 = vmatpush.msra.mxu0 0.0
        %4354 = vmatpush.msra.mxu0 0.0
        %4355 = vmatpush.msra.mxu0 0.0
        %4356 = vmatpush.msra.mxu0 0.0
        %4357 = vmatpush.msra.mxu0 0.0
        %4358 = vmatpush.msra.mxu0 0.0
        %4359 = vmatpush.msra.mxu0 0.0
        %4360 = vmatpush.msra.mxu0 %v2871
        %4361 = vmatpush.msra.mxu0 %v2870
        %4362 = vmatpush.msra.mxu0 %v2869
        %4363 = vmatpush.msra.mxu0 %v2868
        %4364 = vmatpush.msra.mxu0 %v2867
        %4365 = vmatpush.msra.mxu0 %v2866
        %4366 = vmatpush.msra.mxu0 %v2865
        %4367 = vmatpush.msra.mxu0 %v2864
        %4368 = vmatmul.f32.gmra.mxu0 %v4350
        %v4369 = vpop.f32.mrf.mxu0
        %v4370 = vadd.f32 0.0, %v4369
        %4371 = vdwg.mxu0
        %v4372 = vpack.c.bf16 %v4370, %v4370
        %v4373 = vsel %vm2882, %v3164, 0
        %4375 = vmatpush.msra.mxu0 0.0
        %4376 = vmatpush.msra.mxu0 0.0
        %4377 = vmatpush.msra.mxu0 0.0
        %4378 = vmatpush.msra.mxu0 0.0
        %4379 = vmatpush.msra.mxu0 0.0
        %4380 = vmatpush.msra.mxu0 0.0
        %4381 = vmatpush.msra.mxu0 0.0
        %4382 = vmatpush.msra.mxu0 0.0
        %4383 = vmatpush.msra.mxu0 %v2871
        %4384 = vmatpush.msra.mxu0 %v2870
        %4385 = vmatpush.msra.mxu0 %v2869
        %4386 = vmatpush.msra.mxu0 %v2868
        %4387 = vmatpush.msra.mxu0 %v2867
        %4388 = vmatpush.msra.mxu0 %v2866
        %4389 = vmatpush.msra.mxu0 %v2865
        %4390 = vmatpush.msra.mxu0 %v2864
        %4391 = vmatmul.f32.gmra.mxu0 %v4373
        %v4392 = vpop.f32.mrf.mxu0
        %v4393 = vadd.f32 0.0, %v4392
        %4394 = vdwg.mxu0
        %v4395 = vpack.c.bf16 %v4393, %v4393
        %v4396 = vld [vmem:[%s29] sm:$0xff]
        %4398 = vset.pattern.permute.xlu0 0
        %4399 = vperm.xlu0 %4398, %v4396
        %v4400 = vpop.permute.xlu0 %4399
        %v4402 = vld [vmem:[%s27] sm:$0xff]
        %v4403 = vpack.c.bf16 %v4402, %v4402
        %v4405 = vsel %vm2915, %v4403, 0
        %v4408 = vsel %vm2919, %v4372, 0
        %4410 = vmatpush.bf16.msra.mxu0 0
        %4411 = vmatpush.bf16.msra.mxu0 0
        %4412 = vmatpush.bf16.msra.mxu0 0
        %4413 = vmatpush.bf16.msra.mxu0 0
        %4414 = vmatpush.bf16.msra.mxu0 0
        %4415 = vmatpush.bf16.msra.mxu0 0
        %4416 = vmatpush.bf16.msra.mxu0 0
        %4417 = vmatpush.bf16.msra.mxu0 %v4408
        %4418 = vmatmul.bf16.gmra.mxu0 %v4405
        %v4419 = vpop.f32.mrf.mxu0
        %v4420 = vadd.f32 0.0, %v4419
        %v4421 = vpop.f32.mrf.mxu0
        %4422 = vdwg.mxu0
        %v4423 = vadd.f32 %v4400, %v4420
        %v4425 = vunpack.c.l.b16 %v4403
        %v4426 = vpack.c.b16 %v4425, %v4425
        %4427 = vrot.lane.b32.xlu0 %v4426, 120
        %v4428 = vpop.permute.xlu0 %4427
        %v4430 = vsel %vm2915, %v4428, 0
        %v4433 = vsel %vm2919, %v4395, 0
        %4435 = vmatpush.bf16.msra.mxu0 0
        %4436 = vmatpush.bf16.msra.mxu0 0
        %4437 = vmatpush.bf16.msra.mxu0 0
        %4438 = vmatpush.bf16.msra.mxu0 0
        %4439 = vmatpush.bf16.msra.mxu0 0
        %4440 = vmatpush.bf16.msra.mxu0 0
        %4441 = vmatpush.bf16.msra.mxu0 0
        %4442 = vmatpush.bf16.msra.mxu0 %v4433
        %4443 = vmatmul.bf16.gmra.mxu0 %v4430
        %v4444 = vpop.f32.mrf.mxu0
        %v4445 = vadd.f32 0.0, %v4444
        %v4446 = vpop.f32.mrf.mxu0
        %4447 = vdwg.mxu0
        %v4448 = vadd.f32 %v4423, %v4445
        %s4449 = scalar_lea.vmem %s27, 8
        %v4450 = vld [vmem:[%s4449] sm:$0xff]
        %v4451 = vpack.c.bf16 %v4450, %v4450
        %v4453 = vunpack.c.l.b16 %v4372
        %v4454 = vpack.c.b16 %v4453, %v4453
        %4455 = vrot.lane.b32.xlu0 %v4454, 127
        %v4456 = vpop.permute.xlu0 %4455
        %v4458 = vsel %vm2915, %v4451, 0
        %v4461 = vsel %vm2919, %v4456, 0
        %4463 = vmatpush.bf16.msra.mxu0 0
        %4464 = vmatpush.bf16.msra.mxu0 0
        %4465 = vmatpush.bf16.msra.mxu0 0
        %4466 = vmatpush.bf16.msra.mxu0 0
        %4467 = vmatpush.bf16.msra.mxu0 0
        %4468 = vmatpush.bf16.msra.mxu0 0
        %4469 = vmatpush.bf16.msra.mxu0 0
        %4470 = vmatpush.bf16.msra.mxu0 %v4461
        %4471 = vmatmul.bf16.gmra.mxu0 %v4458
        %v4472 = vpop.f32.mrf.mxu0
        %v4473 = vadd.f32 0.0, %v4472
        %v4474 = vpop.f32.mrf.mxu0
        %4475 = vdwg.mxu0
        %v4476 = vadd.f32 %v4448, %v4473
        %v4478 = vunpack.c.l.b16 %v4451
        %v4479 = vpack.c.b16 %v4478, %v4478
        %4480 = vrot.lane.b32.xlu0 %v4479, 120
        %v4481 = vpop.permute.xlu0 %4480
        %v4483 = vunpack.c.l.b16 %v4395
        %v4484 = vpack.c.b16 %v4483, %v4483
        %4485 = vrot.lane.b32.xlu0 %v4484, 127
        %v4486 = vpop.permute.xlu0 %4485
        %v4488 = vsel %vm2915, %v4481, 0
        %v4491 = vsel %vm2919, %v4486, 0
        %4493 = vmatpush.bf16.msra.mxu0 0
        %4494 = vmatpush.bf16.msra.mxu0 0
        %4495 = vmatpush.bf16.msra.mxu0 0
        %4496 = vmatpush.bf16.msra.mxu0 0
        %4497 = vmatpush.bf16.msra.mxu0 0
        %4498 = vmatpush.bf16.msra.mxu0 0
        %4499 = vmatpush.bf16.msra.mxu0 0
        %4500 = vmatpush.bf16.msra.mxu0 %v4491
        %4501 = vmatmul.bf16.gmra.mxu0 %v4488
        %v4502 = vpop.f32.mrf.mxu0
        %v4503 = vadd.f32 0.0, %v4502
        %v4504 = vpop.f32.mrf.mxu0
        %4505 = vdwg.mxu0
        %v4506 = vadd.f32 %v4476, %v4503
        %s4507 = scalar_lea.vmem %s27, 16
        %v4508 = vld [vmem:[%s4507] sm:$0xff]
        %v4509 = vpack.c.bf16 %v4508, %v4508
        %4510 = vrot.lane.b32.xlu0 %v4454, 126
        %v4511 = vpop.permute.xlu0 %4510
        %v4513 = vsel %vm2915, %v4509, 0
        %v4516 = vsel %vm2919, %v4511, 0
        %4518 = vmatpush.bf16.msra.mxu0 0
        %4519 = vmatpush.bf16.msra.mxu0 0
        %4520 = vmatpush.bf16.msra.mxu0 0
        %4521 = vmatpush.bf16.msra.mxu0 0
        %4522 = vmatpush.bf16.msra.mxu0 0
        %4523 = vmatpush.bf16.msra.mxu0 0
        %4524 = vmatpush.bf16.msra.mxu0 0
        %4525 = vmatpush.bf16.msra.mxu0 %v4516
        %4526 = vmatmul.bf16.gmra.mxu0 %v4513
        %v4527 = vpop.f32.mrf.mxu0
        %v4528 = vadd.f32 0.0, %v4527
        %v4529 = vpop.f32.mrf.mxu0
        %4530 = vdwg.mxu0
        %v4531 = vadd.f32 %v4506, %v4528
        %v4533 = vunpack.c.l.b16 %v4509
        %v4534 = vpack.c.b16 %v4533, %v4533
        %4535 = vrot.lane.b32.xlu0 %v4534, 120
        %v4536 = vpop.permute.xlu0 %4535
        %4537 = vrot.lane.b32.xlu0 %v4484, 126
        %v4538 = vpop.permute.xlu0 %4537
        %v4540 = vsel %vm2915, %v4536, 0
        %v4543 = vsel %vm2919, %v4538, 0
        %4545 = vmatpush.bf16.msra.mxu0 0
        %4546 = vmatpush.bf16.msra.mxu0 0
        %4547 = vmatpush.bf16.msra.mxu0 0
        %4548 = vmatpush.bf16.msra.mxu0 0
        %4549 = vmatpush.bf16.msra.mxu0 0
        %4550 = vmatpush.bf16.msra.mxu0 0
        %4551 = vmatpush.bf16.msra.mxu0 0
        %4552 = vmatpush.bf16.msra.mxu0 %v4543
        %4553 = vmatmul.bf16.gmra.mxu0 %v4540
        %v4554 = vpop.f32.mrf.mxu0
        %v4555 = vadd.f32 0.0, %v4554
        %v4556 = vpop.f32.mrf.mxu0
        %4557 = vdwg.mxu0
        %v4558 = vadd.f32 %v4531, %v4555
        %s4559 = scalar_lea.vmem %s27, 24
        %v4560 = vld [vmem:[%s4559] sm:$0xff]
        %v4561 = vpack.c.bf16 %v4560, %v4560
        %4562 = vrot.lane.b32.xlu0 %v4454, 118
        %v4563 = vpop.permute.xlu0 %4562
        %v4565 = vsel %vm2915, %v4561, 0
        %v4568 = vsel %vm2919, %v4563, 0
        %4570 = vmatpush.bf16.msra.mxu0 0
        %4571 = vmatpush.bf16.msra.mxu0 0
        %4572 = vmatpush.bf16.msra.mxu0 0
        %4573 = vmatpush.bf16.msra.mxu0 0
        %4574 = vmatpush.bf16.msra.mxu0 0
        %4575 = vmatpush.bf16.msra.mxu0 0
        %4576 = vmatpush.bf16.msra.mxu0 0
        %4577 = vmatpush.bf16.msra.mxu0 %v4568
        %4578 = vmatmul.bf16.gmra.mxu0 %v4565
        %v4579 = vpop.f32.mrf.mxu0
        %v4580 = vadd.f32 0.0, %v4579
        %v4581 = vpop.f32.mrf.mxu0
        %4582 = vdwg.mxu0
        %v4583 = vadd.f32 %v4558, %v4580
        %v4585 = vunpack.c.l.b16 %v4561
        %v4586 = vpack.c.b16 %v4585, %v4585
        %4587 = vrot.lane.b32.xlu0 %v4586, 120
        %v4588 = vpop.permute.xlu0 %4587
        %4589 = vrot.lane.b32.xlu0 %v4484, 118
        %v4590 = vpop.permute.xlu0 %4589
        %v4592 = vsel %vm2915, %v4588, 0
        %v4595 = vsel %vm2919, %v4590, 0
        %4597 = vmatpush.bf16.msra.mxu0 0
        %4598 = vmatpush.bf16.msra.mxu0 0
        %4599 = vmatpush.bf16.msra.mxu0 0
        %4600 = vmatpush.bf16.msra.mxu0 0
        %4601 = vmatpush.bf16.msra.mxu0 0
        %4602 = vmatpush.bf16.msra.mxu0 0
        %4603 = vmatpush.bf16.msra.mxu0 0
        %4604 = vmatpush.bf16.msra.mxu0 %v4595
        %4605 = vmatmul.bf16.gmra.mxu0 %v4592
        %v4606 = vpop.f32.mrf.mxu0
        %v4607 = vadd.f32 0.0, %v4606
        %v4608 = vpop.f32.mrf.mxu0
        %4609 = vdwg.mxu0
        %v4610 = vadd.f32 %v4583, %v4607
        %s4611 = scalar_lea.vmem %s27, 32
        %v4612 = vld [vmem:[%s4611] sm:$0xff]
        %v4613 = vpack.c.bf16 %v4612, %v4612
        %4614 = vrot.lane.b32.xlu0 %v4454, 117
        %v4615 = vpop.permute.xlu0 %4614
        %v4617 = vsel %vm2915, %v4613, 0
        %v4620 = vsel %vm2919, %v4615, 0
        %4622 = vmatpush.bf16.msra.mxu0 0
        %4623 = vmatpush.bf16.msra.mxu0 0
        %4624 = vmatpush.bf16.msra.mxu0 0
        %4625 = vmatpush.bf16.msra.mxu0 0
        %4626 = vmatpush.bf16.msra.mxu0 0
        %4627 = vmatpush.bf16.msra.mxu0 0
        %4628 = vmatpush.bf16.msra.mxu0 0
        %4629 = vmatpush.bf16.msra.mxu0 %v4620
        %4630 = vmatmul.bf16.gmra.mxu0 %v4617
        %v4631 = vpop.f32.mrf.mxu0
        %v4632 = vadd.f32 0.0, %v4631
        %v4633 = vpop.f32.mrf.mxu0
        %4634 = vdwg.mxu0
        %v4635 = vadd.f32 %v4610, %v4632
        %v4637 = vunpack.c.l.b16 %v4613
        %v4638 = vpack.c.b16 %v4637, %v4637
        %4639 = vrot.lane.b32.xlu0 %v4638, 120
        %v4640 = vpop.permute.xlu0 %4639
        %4641 = vrot.lane.b32.xlu0 %v4484, 117
        %v4642 = vpop.permute.xlu0 %4641
        %v4644 = vsel %vm2915, %v4640, 0
        %v4647 = vsel %vm2919, %v4642, 0
        %4649 = vmatpush.bf16.msra.mxu0 0
        %4650 = vmatpush.bf16.msra.mxu0 0
        %4651 = vmatpush.bf16.msra.mxu0 0
        %4652 = vmatpush.bf16.msra.mxu0 0
        %4653 = vmatpush.bf16.msra.mxu0 0
        %4654 = vmatpush.bf16.msra.mxu0 0
        %4655 = vmatpush.bf16.msra.mxu0 0
        %4656 = vmatpush.bf16.msra.mxu0 %v4647
        %4657 = vmatmul.bf16.gmra.mxu0 %v4644
        %v4658 = vpop.f32.mrf.mxu0
        %v4659 = vadd.f32 0.0, %v4658
        %v4660 = vpop.f32.mrf.mxu0
        %4661 = vdwg.mxu0
        %v4662 = vadd.f32 %v4635, %v4659
        %s4663 = scalar_lea.vmem %s27, 40
        %v4664 = vld [vmem:[%s4663] sm:$0xff]
        %v4665 = vpack.c.bf16 %v4664, %v4664
        %4666 = vrot.lane.b32.xlu0 %v4454, 116
        %v4667 = vpop.permute.xlu0 %4666
        %v4669 = vsel %vm2915, %v4665, 0
        %v4672 = vsel %vm2919, %v4667, 0
        %4674 = vmatpush.bf16.msra.mxu0 0
        %4675 = vmatpush.bf16.msra.mxu0 0
        %4676 = vmatpush.bf16.msra.mxu0 0
        %4677 = vmatpush.bf16.msra.mxu0 0
        %4678 = vmatpush.bf16.msra.mxu0 0
        %4679 = vmatpush.bf16.msra.mxu0 0
        %4680 = vmatpush.bf16.msra.mxu0 0
        %4681 = vmatpush.bf16.msra.mxu0 %v4672
        %4682 = vmatmul.bf16.gmra.mxu0 %v4669
        %v4683 = vpop.f32.mrf.mxu0
        %v4684 = vadd.f32 0.0, %v4683
        %v4685 = vpop.f32.mrf.mxu0
        %4686 = vdwg.mxu0
        %v4687 = vadd.f32 %v4662, %v4684
        %v4689 = vunpack.c.l.b16 %v4665
        %v4690 = vpack.c.b16 %v4689, %v4689
        %4691 = vrot.lane.b32.xlu0 %v4690, 120
        %v4692 = vpop.permute.xlu0 %4691
        %4693 = vrot.lane.b32.xlu0 %v4484, 116
        %v4694 = vpop.permute.xlu0 %4693
        %v4696 = vsel %vm2915, %v4692, 0
        %v4699 = vsel %vm2919, %v4694, 0
        %4701 = vmatpush.bf16.msra.mxu0 0
        %4702 = vmatpush.bf16.msra.mxu0 0
        %4703 = vmatpush.bf16.msra.mxu0 0
        %4704 = vmatpush.bf16.msra.mxu0 0
        %4705 = vmatpush.bf16.msra.mxu0 0
        %4706 = vmatpush.bf16.msra.mxu0 0
        %4707 = vmatpush.bf16.msra.mxu0 0
        %4708 = vmatpush.bf16.msra.mxu0 %v4699
        %4709 = vmatmul.bf16.gmra.mxu0 %v4696
        %v4710 = vpop.f32.mrf.mxu0
        %v4711 = vadd.f32 0.0, %v4710
        %v4712 = vpop.f32.mrf.mxu0
        %4713 = vdwg.mxu0
        %v4714 = vadd.f32 %v4687, %v4711
        %s4715 = scalar_lea.vmem %s27, 48
        %v4716 = vld [vmem:[%s4715] sm:$0xff]
        %v4717 = vpack.c.bf16 %v4716, %v4716
        %4718 = vrot.lane.b32.xlu0 %v4454, 108
        %v4719 = vpop.permute.xlu0 %4718
        %v4721 = vsel %vm2915, %v4717, 0
        %v4724 = vsel %vm2919, %v4719, 0
        %4726 = vmatpush.bf16.msra.mxu0 0
        %4727 = vmatpush.bf16.msra.mxu0 0
        %4728 = vmatpush.bf16.msra.mxu0 0
        %4729 = vmatpush.bf16.msra.mxu0 0
        %4730 = vmatpush.bf16.msra.mxu0 0
        %4731 = vmatpush.bf16.msra.mxu0 0
        %4732 = vmatpush.bf16.msra.mxu0 0
        %4733 = vmatpush.bf16.msra.mxu0 %v4724
        %4734 = vmatmul.bf16.gmra.mxu0 %v4721
        %v4735 = vpop.f32.mrf.mxu0
        %v4736 = vadd.f32 0.0, %v4735
        %v4737 = vpop.f32.mrf.mxu0
        %4738 = vdwg.mxu0
        %v4739 = vadd.f32 %v4714, %v4736
        %v4741 = vunpack.c.l.b16 %v4717
        %v4742 = vpack.c.b16 %v4741, %v4741
        %4743 = vrot.lane.b32.xlu0 %v4742, 120
        %v4744 = vpop.permute.xlu0 %4743
        %4745 = vrot.lane.b32.xlu0 %v4484, 108
        %v4746 = vpop.permute.xlu0 %4745
        %v4748 = vsel %vm2915, %v4744, 0
        %v4751 = vsel %vm2919, %v4746, 0
        %4753 = vmatpush.bf16.msra.mxu0 0
        %4754 = vmatpush.bf16.msra.mxu0 0
        %4755 = vmatpush.bf16.msra.mxu0 0
        %4756 = vmatpush.bf16.msra.mxu0 0
        %4757 = vmatpush.bf16.msra.mxu0 0
        %4758 = vmatpush.bf16.msra.mxu0 0
        %4759 = vmatpush.bf16.msra.mxu0 0
        %4760 = vmatpush.bf16.msra.mxu0 %v4751
        %4761 = vmatmul.bf16.gmra.mxu0 %v4748
        %v4762 = vpop.f32.mrf.mxu0
        %v4763 = vadd.f32 0.0, %v4762
        %v4764 = vpop.f32.mrf.mxu0
        %4765 = vdwg.mxu0
        %v4766 = vadd.f32 %v4739, %v4763
        %s4767 = scalar_lea.vmem %s27, 56
        %v4768 = vld [vmem:[%s4767] sm:$0xff]
        %v4769 = vpack.c.bf16 %v4768, %v4768
        %4770 = vrot.lane.b32.xlu0 %v4454, 107
        %v4771 = vpop.permute.xlu0 %4770
        %v4773 = vsel %vm2915, %v4769, 0
        %v4776 = vsel %vm2919, %v4771, 0
        %4778 = vmatpush.bf16.msra.mxu0 0
        %4779 = vmatpush.bf16.msra.mxu0 0
        %4780 = vmatpush.bf16.msra.mxu0 0
        %4781 = vmatpush.bf16.msra.mxu0 0
        %4782 = vmatpush.bf16.msra.mxu0 0
        %4783 = vmatpush.bf16.msra.mxu0 0
        %4784 = vmatpush.bf16.msra.mxu0 0
        %4785 = vmatpush.bf16.msra.mxu0 %v4776
        %4786 = vmatmul.bf16.gmra.mxu0 %v4773
        %v4787 = vpop.f32.mrf.mxu0
        %v4788 = vadd.f32 0.0, %v4787
        %v4789 = vpop.f32.mrf.mxu0
        %4790 = vdwg.mxu0
        %v4791 = vadd.f32 %v4766, %v4788
        %v4793 = vunpack.c.l.b16 %v4769
        %v4794 = vpack.c.b16 %v4793, %v4793
        %4795 = vrot.lane.b32.xlu0 %v4794, 120
        %v4796 = vpop.permute.xlu0 %4795
        %4797 = vrot.lane.b32.xlu0 %v4484, 107
        %v4798 = vpop.permute.xlu0 %4797
        %v4800 = vsel %vm2915, %v4796, 0
        %v4803 = vsel %vm2919, %v4798, 0
        %4805 = vmatpush.bf16.msra.mxu0 0
        %4806 = vmatpush.bf16.msra.mxu0 0
        %4807 = vmatpush.bf16.msra.mxu0 0
        %4808 = vmatpush.bf16.msra.mxu0 0
        %4809 = vmatpush.bf16.msra.mxu0 0
        %4810 = vmatpush.bf16.msra.mxu0 0
        %4811 = vmatpush.bf16.msra.mxu0 0
        %4812 = vmatpush.bf16.msra.mxu0 %v4803
        %4813 = vmatmul.bf16.gmra.mxu0 %v4800
        %v4814 = vpop.f32.mrf.mxu0
        %v4815 = vadd.f32 0.0, %v4814
        %v4816 = vpop.f32.mrf.mxu0
        %4817 = vdwg.mxu0
        %v4818 = vadd.f32 %v4791, %v4815
        %s4819 = scalar_lea.vmem %s27, 64
        %v4820 = vld [vmem:[%s4819] sm:$0xff]
        %v4821 = vpack.c.bf16 %v4820, %v4820
        %4822 = vrot.lane.b32.xlu0 %v4454, 106
        %v4823 = vpop.permute.xlu0 %4822
        %v4825 = vsel %vm2915, %v4821, 0
        %v4828 = vsel %vm2919, %v4823, 0
        %4830 = vmatpush.bf16.msra.mxu0 0
        %4831 = vmatpush.bf16.msra.mxu0 0
        %4832 = vmatpush.bf16.msra.mxu0 0
        %4833 = vmatpush.bf16.msra.mxu0 0
        %4834 = vmatpush.bf16.msra.mxu0 0
        %4835 = vmatpush.bf16.msra.mxu0 0
        %4836 = vmatpush.bf16.msra.mxu0 0
        %4837 = vmatpush.bf16.msra.mxu0 %v4828
        %4838 = vmatmul.bf16.gmra.mxu0 %v4825
        %v4839 = vpop.f32.mrf.mxu0
        %v4840 = vadd.f32 0.0, %v4839
        %v4841 = vpop.f32.mrf.mxu0
        %4842 = vdwg.mxu0
        %v4843 = vadd.f32 %v4818, %v4840
        %v4845 = vunpack.c.l.b16 %v4821
        %v4846 = vpack.c.b16 %v4845, %v4845
        %4847 = vrot.lane.b32.xlu0 %v4846, 120
        %v4848 = vpop.permute.xlu0 %4847
        %4849 = vrot.lane.b32.xlu0 %v4484, 106
        %v4850 = vpop.permute.xlu0 %4849
        %v4852 = vsel %vm2915, %v4848, 0
        %v4855 = vsel %vm2919, %v4850, 0
        %4857 = vmatpush.bf16.msra.mxu0 0
        %4858 = vmatpush.bf16.msra.mxu0 0
        %4859 = vmatpush.bf16.msra.mxu0 0
        %4860 = vmatpush.bf16.msra.mxu0 0
        %4861 = vmatpush.bf16.msra.mxu0 0
        %4862 = vmatpush.bf16.msra.mxu0 0
        %4863 = vmatpush.bf16.msra.mxu0 0
        %4864 = vmatpush.bf16.msra.mxu0 %v4855
        %4865 = vmatmul.bf16.gmra.mxu0 %v4852
        %v4866 = vpop.f32.mrf.mxu0
        %v4867 = vadd.f32 0.0, %v4866
        %v4868 = vpop.f32.mrf.mxu0
        %4869 = vdwg.mxu0
        %v4870 = vadd.f32 %v4843, %v4867
        %v4872 = vsel %vm3140, %v4870, 0
        %4874 = vmatpush.msra.mxu0 0.0
        %4875 = vmatpush.msra.mxu0 0.0
        %4876 = vmatpush.msra.mxu0 0.0
        %4877 = vmatpush.msra.mxu0 0.0
        %4878 = vmatpush.msra.mxu0 0.0
        %4879 = vmatpush.msra.mxu0 0.0
        %4880 = vmatpush.msra.mxu0 %v2881
        %4881 = vmatpush.msra.mxu0 %v2880
        %4882 = vmatpush.msra.mxu0 %v2879
        %4883 = vmatpush.msra.mxu0 %v2878
        %4884 = vmatpush.msra.mxu0 %v2877
        %4885 = vmatpush.msra.mxu0 %v2876
        %4886 = vmatpush.msra.mxu0 %v2875
        %4887 = vmatpush.msra.mxu0 %v2874
        %4888 = vmatpush.msra.mxu0 %v2873
        %4889 = vmatpush.msra.mxu0 %v2872
        %4890 = vmatmul.f32.gmra.mxu0 %v4872
        %v4891 = vpop.f32.mrf.mxu0
        %v4892 = vadd.f32 0.0, %v4891
        %4893 = vdwg.mxu0
        %v4894 = vmax.f32 %v4892, 0.0
        %v4895 = vld [vmem:[%s57] sm:$0xff]
        %v4896 = vld [vmem:[%s57 + $0x8] sm:$0xff]
        %v4897 = vld [vmem:[%s57 + $0x10] sm:$0xff]
        %v4898 = vld [vmem:[%s57 + $0x18] sm:$0xff]
        %v4899 = vld [vmem:[%s57 + $0x20] sm:$0xff]
        %v4900 = vld [vmem:[%s57 + $0x28] sm:$0xff]
        %v4901 = vld [vmem:[%s57 + $0x30] sm:$0xff]
        %v4902 = vld [vmem:[%s57 + $0x38] sm:$0xff]
        %v4903 = vld [vmem:[%s57 + $0x40] sm:$0xff]
        %v4904 = vld [vmem:[%s57 + $0x48] sm:$0xff]
        %v4905 = vld [vmem:[%s57 + $0x50] sm:$0xff]
        %v4906 = vld [vmem:[%s57 + $0x58] sm:$0xff]
        %v4907 = vld [vmem:[%s57 + $0x60] sm:$0xff]
        %v4908 = vld [vmem:[%s57 + $0x68] sm:$0xff]
        %v4909 = vld [vmem:[%s57 + $0x70] sm:$0xff]
        %v4910 = vld [vmem:[%s57 + $0x78] sm:$0xff]
        %v4912 = vsel %vm2882, %v4894, 0
        %4914 = vmatpush.msra.mxu0 0.0
        %4915 = vmatpush.msra.mxu0 0.0
        %4916 = vmatpush.msra.mxu0 0.0
        %4917 = vmatpush.msra.mxu0 0.0
        %4918 = vmatpush.msra.mxu0 0.0
        %4919 = vmatpush.msra.mxu0 0.0
        %4920 = vmatpush.msra.mxu0 0.0
        %4921 = vmatpush.msra.mxu0 0.0
        %4922 = vmatpush.msra.mxu0 %v4909
        %4923 = vmatpush.msra.mxu0 %v4907
        %4924 = vmatpush.msra.mxu0 %v4905
        %4925 = vmatpush.msra.mxu0 %v4903
        %4926 = vmatpush.msra.mxu0 %v4901
        %4927 = vmatpush.msra.mxu0 %v4899
        %4928 = vmatpush.msra.mxu0 %v4897
        %4929 = vmatpush.msra.mxu0 %v4895
        %4930 = vmatmul.f32.gmra.mxu0 %v4912
        %v4931 = vpop.f32.mrf.mxu0
        %v4932 = vadd.f32 0.0, %v4931
        %4933 = vdwg.mxu0
        %4934 = vmatpush.msra.mxu0 0.0
        %4935 = vmatpush.msra.mxu0 0.0
        %4936 = vmatpush.msra.mxu0 0.0
        %4937 = vmatpush.msra.mxu0 0.0
        %4938 = vmatpush.msra.mxu0 0.0
        %4939 = vmatpush.msra.mxu0 0.0
        %4940 = vmatpush.msra.mxu0 0.0
        %4941 = vmatpush.msra.mxu0 0.0
        %4942 = vmatpush.msra.mxu0 %v4910
        %4943 = vmatpush.msra.mxu0 %v4908
        %4944 = vmatpush.msra.mxu0 %v4906
        %4945 = vmatpush.msra.mxu0 %v4904
        %4946 = vmatpush.msra.mxu0 %v4902
        %4947 = vmatpush.msra.mxu0 %v4900
        %4948 = vmatpush.msra.mxu0 %v4898
        %4949 = vmatpush.msra.mxu0 %v4896
        %4950 = vmatmul.f32.gmra.mxu0 %v4912
        %v4951 = vpop.f32.mrf.mxu0
        %v4952 = vadd.f32 0.0, %v4951
        %4953 = vdwg.mxu0
        %4954 = vmatpush.msra.mxu0 %v948
        %4955 = vmatpush.msra.mxu0 %v945
        %4956 = vmatpush.msra.mxu0 %v942
        %4957 = vmatpush.msra.mxu0 %v939
        %4958 = vmatpush.msra.mxu0 %v936
        %4959 = vmatpush.msra.mxu0 %v933
        %4960 = vmatpush.msra.mxu0 %v930
        %4961 = vmatpush.msra.mxu0 %v927
        %4962 = vmatpush.msra.mxu0 %v924
        %4963 = vmatpush.msra.mxu0 %v921
        %4964 = vmatpush.msra.mxu0 %v918
        %4965 = vmatpush.msra.mxu0 %v915
        %4966 = vmatpush.msra.mxu0 %v912
        %4967 = vmatpush.msra.mxu0 %v909
        %4968 = vmatpush.msra.mxu0 %v906
        %4969 = vmatpush.msra.mxu0 %v903
        %4970 = vmatmul.f32.gmra.mxu0 %v4932
        %v4971 = vpop.f32.mrf.mxu0
        %v4972 = vadd.f32 0.0, %v4971
        %4973 = vdwg.mxu0
        %4974 = vmatpush.msra.mxu0 %v996
        %4975 = vmatpush.msra.mxu0 %v993
        %4976 = vmatpush.msra.mxu0 %v990
        %4977 = vmatpush.msra.mxu0 %v987
        %4978 = vmatpush.msra.mxu0 %v984
        %4979 = vmatpush.msra.mxu0 %v981
        %4980 = vmatpush.msra.mxu0 %v978
        %4981 = vmatpush.msra.mxu0 %v975
        %4982 = vmatpush.msra.mxu0 %v972
        %4983 = vmatpush.msra.mxu0 %v969
        %4984 = vmatpush.msra.mxu0 %v966
        %4985 = vmatpush.msra.mxu0 %v963
        %4986 = vmatpush.msra.mxu0 %v960
        %4987 = vmatpush.msra.mxu0 %v957
        %4988 = vmatpush.msra.mxu0 %v954
        %4989 = vmatpush.msra.mxu0 %v951
        %4990 = vmatmul.f32.gmra.mxu0 %v4952
        %v4991 = vpop.f32.mrf.mxu0
        %v4992 = vadd.f32 %v4972, %v4991
        %4993 = vdwg.mxu0
        %4994 = vmatpush.msra.mxu0 %v949
        %4995 = vmatpush.msra.mxu0 %v946
        %4996 = vmatpush.msra.mxu0 %v943
        %4997 = vmatpush.msra.mxu0 %v940
        %4998 = vmatpush.msra.mxu0 %v937
        %4999 = vmatpush.msra.mxu0 %v934
        %5000 = vmatpush.msra.mxu0 %v931
        %5001 = vmatpush.msra.mxu0 %v928
        %5002 = vmatpush.msra.mxu0 %v925
        %5003 = vmatpush.msra.mxu0 %v922
        %5004 = vmatpush.msra.mxu0 %v919
        %5005 = vmatpush.msra.mxu0 %v916
        %5006 = vmatpush.msra.mxu0 %v913
        %5007 = vmatpush.msra.mxu0 %v910
        %5008 = vmatpush.msra.mxu0 %v907
        %5009 = vmatpush.msra.mxu0 %v904
        %5010 = vmatmul.f32.gmra.mxu0 %v4932
        %v5011 = vpop.f32.mrf.mxu0
        %v5012 = vadd.f32 0.0, %v5011
        %5013 = vdwg.mxu0
        %5014 = vmatpush.msra.mxu0 %v997
        %5015 = vmatpush.msra.mxu0 %v994
        %5016 = vmatpush.msra.mxu0 %v991
        %5017 = vmatpush.msra.mxu0 %v988
        %5018 = vmatpush.msra.mxu0 %v985
        %5019 = vmatpush.msra.mxu0 %v982
        %5020 = vmatpush.msra.mxu0 %v979
        %5021 = vmatpush.msra.mxu0 %v976
        %5022 = vmatpush.msra.mxu0 %v973
        %5023 = vmatpush.msra.mxu0 %v970
        %5024 = vmatpush.msra.mxu0 %v967
        %5025 = vmatpush.msra.mxu0 %v964
        %5026 = vmatpush.msra.mxu0 %v961
        %5027 = vmatpush.msra.mxu0 %v958
        %5028 = vmatpush.msra.mxu0 %v955
        %5029 = vmatpush.msra.mxu0 %v952
        %5030 = vmatmul.f32.gmra.mxu0 %v4952
        %v5031 = vpop.f32.mrf.mxu0
        %v5032 = vadd.f32 %v5012, %v5031
        %5033 = vdwg.mxu0
        %5034 = vmatpush.msra.mxu0 %v950
        %5035 = vmatpush.msra.mxu0 %v947
        %5036 = vmatpush.msra.mxu0 %v944
        %5037 = vmatpush.msra.mxu0 %v941
        %5038 = vmatpush.msra.mxu0 %v938
        %5039 = vmatpush.msra.mxu0 %v935
        %5040 = vmatpush.msra.mxu0 %v932
        %5041 = vmatpush.msra.mxu0 %v929
        %5042 = vmatpush.msra.mxu0 %v926
        %5043 = vmatpush.msra.mxu0 %v923
        %5044 = vmatpush.msra.mxu0 %v920
        %5045 = vmatpush.msra.mxu0 %v917
        %5046 = vmatpush.msra.mxu0 %v914
        %5047 = vmatpush.msra.mxu0 %v911
        %5048 = vmatpush.msra.mxu0 %v908
        %5049 = vmatpush.msra.mxu0 %v905
        %5050 = vmatmul.f32.gmra.mxu0 %v4932
        %v5051 = vpop.f32.mrf.mxu0
        %v5052 = vadd.f32 0.0, %v5051
        %5053 = vdwg.mxu0
        %5054 = vmatpush.msra.mxu0 %v998
        %5055 = vmatpush.msra.mxu0 %v995
        %5056 = vmatpush.msra.mxu0 %v992
        %5057 = vmatpush.msra.mxu0 %v989
        %5058 = vmatpush.msra.mxu0 %v986
        %5059 = vmatpush.msra.mxu0 %v983
        %5060 = vmatpush.msra.mxu0 %v980
        %5061 = vmatpush.msra.mxu0 %v977
        %5062 = vmatpush.msra.mxu0 %v974
        %5063 = vmatpush.msra.mxu0 %v971
        %5064 = vmatpush.msra.mxu0 %v968
        %5065 = vmatpush.msra.mxu0 %v965
        %5066 = vmatpush.msra.mxu0 %v962
        %5067 = vmatpush.msra.mxu0 %v959
        %5068 = vmatpush.msra.mxu0 %v956
        %5069 = vmatpush.msra.mxu0 %v953
        %5070 = vmatmul.f32.gmra.mxu0 %v4952
        %v5071 = vpop.f32.mrf.mxu0
        %v5072 = vadd.f32 %v5052, %v5071
        %5073 = vdwg.mxu0
        %v5074 = vpack.c.bf16 %v5032, %v4992
        %v5075 = vpack.c.bf16 %v5072, %v5072
        %5076 = vmatpush.msra.mxu0 %v948
        %5077 = vmatpush.msra.mxu0 %v945
        %5078 = vmatpush.msra.mxu0 %v942
        %5079 = vmatpush.msra.mxu0 %v939
        %5080 = vmatpush.msra.mxu0 %v936
        %5081 = vmatpush.msra.mxu0 %v933
        %5082 = vmatpush.msra.mxu0 %v930
        %5083 = vmatpush.msra.mxu0 %v927
        %5084 = vmatpush.msra.mxu0 %v924
        %5085 = vmatpush.msra.mxu0 %v921
        %5086 = vmatpush.msra.mxu0 %v918
        %5087 = vmatpush.msra.mxu0 %v915
        %5088 = vmatpush.msra.mxu0 %v912
        %5089 = vmatpush.msra.mxu0 %v909
        %5090 = vmatpush.msra.mxu0 %v906
        %5091 = vmatpush.msra.mxu0 %v903
        %5092 = vmatmul.f32.gmra.mxu0 %v2760
        %v5093 = vpop.f32.mrf.mxu0
        %v5094 = vadd.f32 0.0, %v5093
        %5095 = vdwg.mxu0
        %5096 = vmatpush.msra.mxu0 %v996
        %5097 = vmatpush.msra.mxu0 %v993
        %5098 = vmatpush.msra.mxu0 %v990
        %5099 = vmatpush.msra.mxu0 %v987
        %5100 = vmatpush.msra.mxu0 %v984
        %5101 = vmatpush.msra.mxu0 %v981
        %5102 = vmatpush.msra.mxu0 %v978
        %5103 = vmatpush.msra.mxu0 %v975
        %5104 = vmatpush.msra.mxu0 %v972
        %5105 = vmatpush.msra.mxu0 %v969
        %5106 = vmatpush.msra.mxu0 %v966
        %5107 = vmatpush.msra.mxu0 %v963
        %5108 = vmatpush.msra.mxu0 %v960
        %5109 = vmatpush.msra.mxu0 %v957
        %5110 = vmatpush.msra.mxu0 %v954
        %5111 = vmatpush.msra.mxu0 %v951
        %5112 = vmatmul.f32.gmra.mxu0 %v2761
        %v5113 = vpop.f32.mrf.mxu0
        %v5114 = vadd.f32 %v5094, %v5113
        %5115 = vdwg.mxu0
        %5116 = vmatpush.msra.mxu0 %v949
        %5117 = vmatpush.msra.mxu0 %v946
        %5118 = vmatpush.msra.mxu0 %v943
        %5119 = vmatpush.msra.mxu0 %v940
        %5120 = vmatpush.msra.mxu0 %v937
        %5121 = vmatpush.msra.mxu0 %v934
        %5122 = vmatpush.msra.mxu0 %v931
        %5123 = vmatpush.msra.mxu0 %v928
        %5124 = vmatpush.msra.mxu0 %v925
        %5125 = vmatpush.msra.mxu0 %v922
        %5126 = vmatpush.msra.mxu0 %v919
        %5127 = vmatpush.msra.mxu0 %v916
        %5128 = vmatpush.msra.mxu0 %v913
        %5129 = vmatpush.msra.mxu0 %v910
        %5130 = vmatpush.msra.mxu0 %v907
        %5131 = vmatpush.msra.mxu0 %v904
        %5132 = vmatmul.f32.gmra.mxu0 %v2760
        %v5133 = vpop.f32.mrf.mxu0
        %v5134 = vadd.f32 0.0, %v5133
        %5135 = vdwg.mxu0
        %5136 = vmatpush.msra.mxu0 %v997
        %5137 = vmatpush.msra.mxu0 %v994
        %5138 = vmatpush.msra.mxu0 %v991
        %5139 = vmatpush.msra.mxu0 %v988
        %5140 = vmatpush.msra.mxu0 %v985
        %5141 = vmatpush.msra.mxu0 %v982
        %5142 = vmatpush.msra.mxu0 %v979
        %5143 = vmatpush.msra.mxu0 %v976
        %5144 = vmatpush.msra.mxu0 %v973
        %5145 = vmatpush.msra.mxu0 %v970
        %5146 = vmatpush.msra.mxu0 %v967
        %5147 = vmatpush.msra.mxu0 %v964
        %5148 = vmatpush.msra.mxu0 %v961
        %5149 = vmatpush.msra.mxu0 %v958
        %5150 = vmatpush.msra.mxu0 %v955
        %5151 = vmatpush.msra.mxu0 %v952
        %5152 = vmatmul.f32.gmra.mxu0 %v2761
        %v5153 = vpop.f32.mrf.mxu0
        %v5154 = vadd.f32 %v5134, %v5153
        %5155 = vdwg.mxu0
        %5156 = vmatpush.msra.mxu0 %v950
        %5157 = vmatpush.msra.mxu0 %v947
        %5158 = vmatpush.msra.mxu0 %v944
        %5159 = vmatpush.msra.mxu0 %v941
        %5160 = vmatpush.msra.mxu0 %v938
        %5161 = vmatpush.msra.mxu0 %v935
        %5162 = vmatpush.msra.mxu0 %v932
        %5163 = vmatpush.msra.mxu0 %v929
        %5164 = vmatpush.msra.mxu0 %v926
        %5165 = vmatpush.msra.mxu0 %v923
        %5166 = vmatpush.msra.mxu0 %v920
        %5167 = vmatpush.msra.mxu0 %v917
        %5168 = vmatpush.msra.mxu0 %v914
        %5169 = vmatpush.msra.mxu0 %v911
        %5170 = vmatpush.msra.mxu0 %v908
        %5171 = vmatpush.msra.mxu0 %v905
        %5172 = vmatmul.f32.gmra.mxu0 %v2760
        %v5173 = vpop.f32.mrf.mxu0
        %v5174 = vadd.f32 0.0, %v5173
        %5175 = vdwg.mxu0
        %5176 = vmatpush.msra.mxu0 %v998
        %5177 = vmatpush.msra.mxu0 %v995
        %5178 = vmatpush.msra.mxu0 %v992
        %5179 = vmatpush.msra.mxu0 %v989
        %5180 = vmatpush.msra.mxu0 %v986
        %5181 = vmatpush.msra.mxu0 %v983
        %5182 = vmatpush.msra.mxu0 %v980
        %5183 = vmatpush.msra.mxu0 %v977
        %5184 = vmatpush.msra.mxu0 %v974
        %5185 = vmatpush.msra.mxu0 %v971
        %5186 = vmatpush.msra.mxu0 %v968
        %5187 = vmatpush.msra.mxu0 %v965
        %5188 = vmatpush.msra.mxu0 %v962
        %5189 = vmatpush.msra.mxu0 %v959
        %5190 = vmatpush.msra.mxu0 %v956
        %5191 = vmatpush.msra.mxu0 %v953
        %5192 = vmatmul.f32.gmra.mxu0 %v2761
        %v5193 = vpop.f32.mrf.mxu0
        %v5194 = vadd.f32 %v5174, %v5193
        %5195 = vdwg.mxu0
        %v5196 = vpack.c.bf16 %v5154, %v5114
        %v5197 = vpack.c.bf16 %v5194, %v5194
        %v5198 = vld [vmem:[%s33] sm:$0xf]
        %5200 = vset.pattern.permute.xlu0 0
        %5201 = vperm.xlu0 %5200, %v5198
        %v5202 = vpop.permute.xlu0 %5201
        %v5204 = vld [vmem:[%s31] sm:$0xf]
        %v5205 = vpack.c.bf16 %v5204, %v5204
        %v5208 = vunpack.c.l.b16 %v5074
        %v5209 = vunpack.c.h.b16 %v5074
        %v5210 = vunpack.c.l.b16 %v5075
        %v5211 = vpack.c.b16 %v5208, %v5208
        %v5212 = vpack.c.b16 %v5209, %v5209
        %v5213 = vpack.c.b16 %v5210, %v5210
        %v5215 = vsel %vm2915, %v5205, 0
        %v5218 = vsel %vm2919, %v5211, 0
        %v5221 = vsel %vm2919, %v5212, 0
        %v5224 = vsel %vm2919, %v5213, 0
        %5226 = vmatpush.bf16.msra.mxu0 0
        %5227 = vmatpush.bf16.msra.mxu0 0
        %5228 = vmatpush.bf16.msra.mxu0 0
        %5229 = vmatpush.bf16.msra.mxu0 0
        %5230 = vmatpush.bf16.msra.mxu0 0
        %5231 = vmatpush.bf16.msra.mxu0 0
        %5232 = vmatpush.bf16.msra.mxu0 0
        %5233 = vmatpush.bf16.msra.mxu0 %v5218
        %5234 = vmatmul.bf16.gmra.mxu0 %v5215
        %v5235 = vpop.f32.mrf.mxu0
        %v5236 = vadd.f32 0.0, %v5235
        %v5237 = vpop.f32.mrf.mxu0
        %5238 = vdwg.mxu0
        %5239 = vmatpush.bf16.msra.mxu0 0
        %5240 = vmatpush.bf16.msra.mxu0 0
        %5241 = vmatpush.bf16.msra.mxu0 0
        %5242 = vmatpush.bf16.msra.mxu0 0
        %5243 = vmatpush.bf16.msra.mxu0 0
        %5244 = vmatpush.bf16.msra.mxu0 0
        %5245 = vmatpush.bf16.msra.mxu0 0
        %5246 = vmatpush.bf16.msra.mxu0 %v5221
        %5247 = vmatmul.bf16.gmra.mxu0 %v5215
        %v5248 = vpop.f32.mrf.mxu0
        %v5249 = vadd.f32 0.0, %v5248
        %v5250 = vpop.f32.mrf.mxu0
        %5251 = vdwg.mxu0
        %5252 = vmatpush.bf16.msra.mxu0 0
        %5253 = vmatpush.bf16.msra.mxu0 0
        %5254 = vmatpush.bf16.msra.mxu0 0
        %5255 = vmatpush.bf16.msra.mxu0 0
        %5256 = vmatpush.bf16.msra.mxu0 0
        %5257 = vmatpush.bf16.msra.mxu0 0
        %5258 = vmatpush.bf16.msra.mxu0 0
        %5259 = vmatpush.bf16.msra.mxu0 %v5224
        %5260 = vmatmul.bf16.gmra.mxu0 %v5215
        %v5261 = vpop.f32.mrf.mxu0
        %v5262 = vadd.f32 0.0, %v5261
        %v5263 = vpop.f32.mrf.mxu0
        %5264 = vdwg.mxu0
        %v5265 = vadd.f32 %v5202, %v5236
        %v5266 = vadd.f32 %v5202, %v5249
        %v5267 = vadd.f32 %v5202, %v5262
        %v5269 = vunpack.c.l.b16 %v5205
        %v5270 = vpack.c.b16 %v5269, %v5269
        %5271 = vrot.lane.b32.xlu0 %v5270, 120
        %v5272 = vpop.permute.xlu0 %5271
        %v5275 = vunpack.c.l.b16 %v5196
        %v5276 = vunpack.c.h.b16 %v5196
        %v5277 = vunpack.c.l.b16 %v5197
        %v5278 = vpack.c.b16 %v5275, %v5275
        %v5279 = vpack.c.b16 %v5276, %v5276
        %v5280 = vpack.c.b16 %v5277, %v5277
        %v5282 = vsel %vm2915, %v5272, 0
        %v5285 = vsel %vm2919, %v5278, 0
        %v5288 = vsel %vm2919, %v5279, 0
        %v5291 = vsel %vm2919, %v5280, 0
        %5293 = vmatpush.bf16.msra.mxu0 0
        %5294 = vmatpush.bf16.msra.mxu0 0
        %5295 = vmatpush.bf16.msra.mxu0 0
        %5296 = vmatpush.bf16.msra.mxu0 0
        %5297 = vmatpush.bf16.msra.mxu0 0
        %5298 = vmatpush.bf16.msra.mxu0 0
        %5299 = vmatpush.bf16.msra.mxu0 0
        %5300 = vmatpush.bf16.msra.mxu0 %v5285
        %5301 = vmatmul.bf16.gmra.mxu0 %v5282
        %v5302 = vpop.f32.mrf.mxu0
        %v5303 = vadd.f32 0.0, %v5302
        %v5304 = vpop.f32.mrf.mxu0
        %5305 = vdwg.mxu0
        %5306 = vmatpush.bf16.msra.mxu0 0
        %5307 = vmatpush.bf16.msra.mxu0 0
        %5308 = vmatpush.bf16.msra.mxu0 0
        %5309 = vmatpush.bf16.msra.mxu0 0
        %5310 = vmatpush.bf16.msra.mxu0 0
        %5311 = vmatpush.bf16.msra.mxu0 0
        %5312 = vmatpush.bf16.msra.mxu0 0
        %5313 = vmatpush.bf16.msra.mxu0 %v5288
        %5314 = vmatmul.bf16.gmra.mxu0 %v5282
        %v5315 = vpop.f32.mrf.mxu0
        %v5316 = vadd.f32 0.0, %v5315
        %v5317 = vpop.f32.mrf.mxu0
        %5318 = vdwg.mxu0
        %5319 = vmatpush.bf16.msra.mxu0 0
        %5320 = vmatpush.bf16.msra.mxu0 0
        %5321 = vmatpush.bf16.msra.mxu0 0
        %5322 = vmatpush.bf16.msra.mxu0 0
        %5323 = vmatpush.bf16.msra.mxu0 0
        %5324 = vmatpush.bf16.msra.mxu0 0
        %5325 = vmatpush.bf16.msra.mxu0 0
        %5326 = vmatpush.bf16.msra.mxu0 %v5291
        %5327 = vmatmul.bf16.gmra.mxu0 %v5282
        %v5328 = vpop.f32.mrf.mxu0
        %v5329 = vadd.f32 0.0, %v5328
        %v5330 = vpop.f32.mrf.mxu0
        %5331 = vdwg.mxu0
        %v5332 = vadd.f32 %v5265, %v5303
        %v5333 = vadd.f32 %v5266, %v5316
        %v5334 = vadd.f32 %v5267, %v5329
        %s5335 = scalar_lea.vmem %s31, 4
        %v5336 = vld [vmem:[%s5335] sm:$0xf]
        %v5337 = vpack.c.bf16 %v5336, %v5336
        %5338 = vrot.lane.b32.xlu0 %v5211, 127
        %v5339 = vpop.permute.xlu0 %5338
        %5340 = vrot.lane.b32.xlu0 %v5212, 127
        %v5341 = vpop.permute.xlu0 %5340
        %5342 = vrot.lane.b32.xlu0 %v5213, 127
        %v5343 = vpop.permute.xlu0 %5342
        %v5344 = vsel %vm1280, %v5339, %v5341
        %v5345 = vsel %vm1280, %v5341, %v5343
        %v5347 = vsel %vm2915, %v5337, 0
        %v5350 = vsel %vm2919, %v5344, 0
        %v5353 = vsel %vm2919, %v5345, 0
        %v5356 = vsel %vm2919, %v5343, 0
        %5358 = vmatpush.bf16.msra.mxu0 0
        %5359 = vmatpush.bf16.msra.mxu0 0
        %5360 = vmatpush.bf16.msra.mxu0 0
        %5361 = vmatpush.bf16.msra.mxu0 0
        %5362 = vmatpush.bf16.msra.mxu0 0
        %5363 = vmatpush.bf16.msra.mxu0 0
        %5364 = vmatpush.bf16.msra.mxu0 0
        %5365 = vmatpush.bf16.msra.mxu0 %v5350
        %5366 = vmatmul.bf16.gmra.mxu0 %v5347
        %v5367 = vpop.f32.mrf.mxu0
        %v5368 = vadd.f32 0.0, %v5367
        %v5369 = vpop.f32.mrf.mxu0
        %5370 = vdwg.mxu0
        %5371 = vmatpush.bf16.msra.mxu0 0
        %5372 = vmatpush.bf16.msra.mxu0 0
        %5373 = vmatpush.bf16.msra.mxu0 0
        %5374 = vmatpush.bf16.msra.mxu0 0
        %5375 = vmatpush.bf16.msra.mxu0 0
        %5376 = vmatpush.bf16.msra.mxu0 0
        %5377 = vmatpush.bf16.msra.mxu0 0
        %5378 = vmatpush.bf16.msra.mxu0 %v5353
        %5379 = vmatmul.bf16.gmra.mxu0 %v5347
        %v5380 = vpop.f32.mrf.mxu0
        %v5381 = vadd.f32 0.0, %v5380
        %v5382 = vpop.f32.mrf.mxu0
        %5383 = vdwg.mxu0
        %5384 = vmatpush.bf16.msra.mxu0 0
        %5385 = vmatpush.bf16.msra.mxu0 0
        %5386 = vmatpush.bf16.msra.mxu0 0
        %5387 = vmatpush.bf16.msra.mxu0 0
        %5388 = vmatpush.bf16.msra.mxu0 0
        %5389 = vmatpush.bf16.msra.mxu0 0
        %5390 = vmatpush.bf16.msra.mxu0 0
        %5391 = vmatpush.bf16.msra.mxu0 %v5356
        %5392 = vmatmul.bf16.gmra.mxu0 %v5347
        %v5393 = vpop.f32.mrf.mxu0
        %v5394 = vadd.f32 0.0, %v5393
        %v5395 = vpop.f32.mrf.mxu0
        %5396 = vdwg.mxu0
        %v5397 = vadd.f32 %v5332, %v5368
        %v5398 = vadd.f32 %v5333, %v5381
        %v5399 = vadd.f32 %v5334, %v5394
        %v5401 = vunpack.c.l.b16 %v5337
        %v5402 = vpack.c.b16 %v5401, %v5401
        %5403 = vrot.lane.b32.xlu0 %v5402, 120
        %v5404 = vpop.permute.xlu0 %5403
        %5405 = vrot.lane.b32.xlu0 %v5278, 127
        %v5406 = vpop.permute.xlu0 %5405
        %5407 = vrot.lane.b32.xlu0 %v5279, 127
        %v5408 = vpop.permute.xlu0 %5407
        %5409 = vrot.lane.b32.xlu0 %v5280, 127
        %v5410 = vpop.permute.xlu0 %5409
        %v5411 = vsel %vm1280, %v5406, %v5408
        %v5412 = vsel %vm1280, %v5408, %v5410
        %v5414 = vsel %vm2915, %v5404, 0
        %v5417 = vsel %vm2919, %v5411, 0
        %v5420 = vsel %vm2919, %v5412, 0
        %v5423 = vsel %vm2919, %v5410, 0
        %5425 = vmatpush.bf16.msra.mxu0 0
        %5426 = vmatpush.bf16.msra.mxu0 0
        %5427 = vmatpush.bf16.msra.mxu0 0
        %5428 = vmatpush.bf16.msra.mxu0 0
        %5429 = vmatpush.bf16.msra.mxu0 0
        %5430 = vmatpush.bf16.msra.mxu0 0
        %5431 = vmatpush.bf16.msra.mxu0 0
        %5432 = vmatpush.bf16.msra.mxu0 %v5417
        %5433 = vmatmul.bf16.gmra.mxu0 %v5414
        %v5434 = vpop.f32.mrf.mxu0
        %v5435 = vadd.f32 0.0, %v5434
        %v5436 = vpop.f32.mrf.mxu0
        %5437 = vdwg.mxu0
        %5438 = vmatpush.bf16.msra.mxu0 0
        %5439 = vmatpush.bf16.msra.mxu0 0
        %5440 = vmatpush.bf16.msra.mxu0 0
        %5441 = vmatpush.bf16.msra.mxu0 0
        %5442 = vmatpush.bf16.msra.mxu0 0
        %5443 = vmatpush.bf16.msra.mxu0 0
        %5444 = vmatpush.bf16.msra.mxu0 0
        %5445 = vmatpush.bf16.msra.mxu0 %v5420
        %5446 = vmatmul.bf16.gmra.mxu0 %v5414
        %v5447 = vpop.f32.mrf.mxu0
        %v5448 = vadd.f32 0.0, %v5447
        %v5449 = vpop.f32.mrf.mxu0
        %5450 = vdwg.mxu0
        %5451 = vmatpush.bf16.msra.mxu0 0
        %5452 = vmatpush.bf16.msra.mxu0 0
        %5453 = vmatpush.bf16.msra.mxu0 0
        %5454 = vmatpush.bf16.msra.mxu0 0
        %5455 = vmatpush.bf16.msra.mxu0 0
        %5456 = vmatpush.bf16.msra.mxu0 0
        %5457 = vmatpush.bf16.msra.mxu0 0
        %5458 = vmatpush.bf16.msra.mxu0 %v5423
        %5459 = vmatmul.bf16.gmra.mxu0 %v5414
        %v5460 = vpop.f32.mrf.mxu0
        %v5461 = vadd.f32 0.0, %v5460
        %v5462 = vpop.f32.mrf.mxu0
        %5463 = vdwg.mxu0
        %v5464 = vadd.f32 %v5397, %v5435
        %v5465 = vadd.f32 %v5398, %v5448
        %v5466 = vadd.f32 %v5399, %v5461
        %s5467 = scalar_lea.vmem %s31, 8
        %v5468 = vld [vmem:[%s5467] sm:$0xf]
        %v5469 = vpack.c.bf16 %v5468, %v5468
        %5470 = vrot.lane.b32.xlu0 %v5211, 126
        %v5471 = vpop.permute.xlu0 %5470
        %5472 = vrot.lane.b32.xlu0 %v5212, 126
        %v5473 = vpop.permute.xlu0 %5472
        %5474 = vrot.lane.b32.xlu0 %v5213, 126
        %v5475 = vpop.permute.xlu0 %5474
        %v5476 = vsel %vm1346, %v5471, %v5473
        %v5477 = vsel %vm1346, %v5473, %v5475
        %v5479 = vsel %vm2915, %v5469, 0
        %v5482 = vsel %vm2919, %v5476, 0
        %v5485 = vsel %vm2919, %v5477, 0
        %v5488 = vsel %vm2919, %v5475, 0
        %5490 = vmatpush.bf16.msra.mxu0 0
        %5491 = vmatpush.bf16.msra.mxu0 0
        %5492 = vmatpush.bf16.msra.mxu0 0
        %5493 = vmatpush.bf16.msra.mxu0 0
        %5494 = vmatpush.bf16.msra.mxu0 0
        %5495 = vmatpush.bf16.msra.mxu0 0
        %5496 = vmatpush.bf16.msra.mxu0 0
        %5497 = vmatpush.bf16.msra.mxu0 %v5482
        %5498 = vmatmul.bf16.gmra.mxu0 %v5479
        %v5499 = vpop.f32.mrf.mxu0
        %v5500 = vadd.f32 0.0, %v5499
        %v5501 = vpop.f32.mrf.mxu0
        %5502 = vdwg.mxu0
        %5503 = vmatpush.bf16.msra.mxu0 0
        %5504 = vmatpush.bf16.msra.mxu0 0
        %5505 = vmatpush.bf16.msra.mxu0 0
        %5506 = vmatpush.bf16.msra.mxu0 0
        %5507 = vmatpush.bf16.msra.mxu0 0
        %5508 = vmatpush.bf16.msra.mxu0 0
        %5509 = vmatpush.bf16.msra.mxu0 0
        %5510 = vmatpush.bf16.msra.mxu0 %v5485
        %5511 = vmatmul.bf16.gmra.mxu0 %v5479
        %v5512 = vpop.f32.mrf.mxu0
        %v5513 = vadd.f32 0.0, %v5512
        %v5514 = vpop.f32.mrf.mxu0
        %5515 = vdwg.mxu0
        %5516 = vmatpush.bf16.msra.mxu0 0
        %5517 = vmatpush.bf16.msra.mxu0 0
        %5518 = vmatpush.bf16.msra.mxu0 0
        %5519 = vmatpush.bf16.msra.mxu0 0
        %5520 = vmatpush.bf16.msra.mxu0 0
        %5521 = vmatpush.bf16.msra.mxu0 0
        %5522 = vmatpush.bf16.msra.mxu0 0
        %5523 = vmatpush.bf16.msra.mxu0 %v5488
        %5524 = vmatmul.bf16.gmra.mxu0 %v5479
        %v5525 = vpop.f32.mrf.mxu0
        %v5526 = vadd.f32 0.0, %v5525
        %v5527 = vpop.f32.mrf.mxu0
        %5528 = vdwg.mxu0
        %v5529 = vadd.f32 %v5464, %v5500
        %v5530 = vadd.f32 %v5465, %v5513
        %v5531 = vadd.f32 %v5466, %v5526
        %v5533 = vunpack.c.l.b16 %v5469
        %v5534 = vpack.c.b16 %v5533, %v5533
        %5535 = vrot.lane.b32.xlu0 %v5534, 120
        %v5536 = vpop.permute.xlu0 %5535
        %5537 = vrot.lane.b32.xlu0 %v5278, 126
        %v5538 = vpop.permute.xlu0 %5537
        %5539 = vrot.lane.b32.xlu0 %v5279, 126
        %v5540 = vpop.permute.xlu0 %5539
        %5541 = vrot.lane.b32.xlu0 %v5280, 126
        %v5542 = vpop.permute.xlu0 %5541
        %v5543 = vsel %vm1346, %v5538, %v5540
        %v5544 = vsel %vm1346, %v5540, %v5542
        %v5546 = vsel %vm2915, %v5536, 0
        %v5549 = vsel %vm2919, %v5543, 0
        %v5552 = vsel %vm2919, %v5544, 0
        %v5555 = vsel %vm2919, %v5542, 0
        %5557 = vmatpush.bf16.msra.mxu0 0
        %5558 = vmatpush.bf16.msra.mxu0 0
        %5559 = vmatpush.bf16.msra.mxu0 0
        %5560 = vmatpush.bf16.msra.mxu0 0
        %5561 = vmatpush.bf16.msra.mxu0 0
        %5562 = vmatpush.bf16.msra.mxu0 0
        %5563 = vmatpush.bf16.msra.mxu0 0
        %5564 = vmatpush.bf16.msra.mxu0 %v5549
        %5565 = vmatmul.bf16.gmra.mxu0 %v5546
        %v5566 = vpop.f32.mrf.mxu0
        %v5567 = vadd.f32 0.0, %v5566
        %v5568 = vpop.f32.mrf.mxu0
        %5569 = vdwg.mxu0
        %5570 = vmatpush.bf16.msra.mxu0 0
        %5571 = vmatpush.bf16.msra.mxu0 0
        %5572 = vmatpush.bf16.msra.mxu0 0
        %5573 = vmatpush.bf16.msra.mxu0 0
        %5574 = vmatpush.bf16.msra.mxu0 0
        %5575 = vmatpush.bf16.msra.mxu0 0
        %5576 = vmatpush.bf16.msra.mxu0 0
        %5577 = vmatpush.bf16.msra.mxu0 %v5552
        %5578 = vmatmul.bf16.gmra.mxu0 %v5546
        %v5579 = vpop.f32.mrf.mxu0
        %v5580 = vadd.f32 0.0, %v5579
        %v5581 = vpop.f32.mrf.mxu0
        %5582 = vdwg.mxu0
        %5583 = vmatpush.bf16.msra.mxu0 0
        %5584 = vmatpush.bf16.msra.mxu0 0
        %5585 = vmatpush.bf16.msra.mxu0 0
        %5586 = vmatpush.bf16.msra.mxu0 0
        %5587 = vmatpush.bf16.msra.mxu0 0
        %5588 = vmatpush.bf16.msra.mxu0 0
        %5589 = vmatpush.bf16.msra.mxu0 0
        %5590 = vmatpush.bf16.msra.mxu0 %v5555
        %5591 = vmatmul.bf16.gmra.mxu0 %v5546
        %v5592 = vpop.f32.mrf.mxu0
        %v5593 = vadd.f32 0.0, %v5592
        %v5594 = vpop.f32.mrf.mxu0
        %5595 = vdwg.mxu0
        %v5596 = vadd.f32 %v5529, %v5567
        %v5597 = vadd.f32 %v5530, %v5580
        %v5598 = vadd.f32 %v5531, %v5593
        %s5599 = scalar_lea.vmem %s31, 12
        %v5600 = vld [vmem:[%s5599] sm:$0xf]
        %v5601 = vpack.c.bf16 %v5600, %v5600
        %5602 = vrot.lane.b32.xlu0 %v5211, 110
        %v5603 = vpop.permute.xlu0 %5602
        %5604 = vrot.lane.b32.xlu0 %v5212, 110
        %v5605 = vpop.permute.xlu0 %5604
        %5606 = vrot.lane.b32.xlu0 %v5213, 110
        %v5607 = vpop.permute.xlu0 %5606
        %v5608 = vsel %vm1412, %v5603, %v5605
        %v5609 = vsel %vm1412, %v5605, %v5607
        %v5611 = vsel %vm2915, %v5601, 0
        %v5614 = vsel %vm2919, %v5608, 0
        %v5617 = vsel %vm2919, %v5609, 0
        %v5620 = vsel %vm2919, %v5607, 0
        %5622 = vmatpush.bf16.msra.mxu0 0
        %5623 = vmatpush.bf16.msra.mxu0 0
        %5624 = vmatpush.bf16.msra.mxu0 0
        %5625 = vmatpush.bf16.msra.mxu0 0
        %5626 = vmatpush.bf16.msra.mxu0 0
        %5627 = vmatpush.bf16.msra.mxu0 0
        %5628 = vmatpush.bf16.msra.mxu0 0
        %5629 = vmatpush.bf16.msra.mxu0 %v5614
        %5630 = vmatmul.bf16.gmra.mxu0 %v5611
        %v5631 = vpop.f32.mrf.mxu0
        %v5632 = vadd.f32 0.0, %v5631
        %v5633 = vpop.f32.mrf.mxu0
        %5634 = vdwg.mxu0
        %5635 = vmatpush.bf16.msra.mxu0 0
        %5636 = vmatpush.bf16.msra.mxu0 0
        %5637 = vmatpush.bf16.msra.mxu0 0
        %5638 = vmatpush.bf16.msra.mxu0 0
        %5639 = vmatpush.bf16.msra.mxu0 0
        %5640 = vmatpush.bf16.msra.mxu0 0
        %5641 = vmatpush.bf16.msra.mxu0 0
        %5642 = vmatpush.bf16.msra.mxu0 %v5617
        %5643 = vmatmul.bf16.gmra.mxu0 %v5611
        %v5644 = vpop.f32.mrf.mxu0
        %v5645 = vadd.f32 0.0, %v5644
        %v5646 = vpop.f32.mrf.mxu0
        %5647 = vdwg.mxu0
        %5648 = vmatpush.bf16.msra.mxu0 0
        %5649 = vmatpush.bf16.msra.mxu0 0
        %5650 = vmatpush.bf16.msra.mxu0 0
        %5651 = vmatpush.bf16.msra.mxu0 0
        %5652 = vmatpush.bf16.msra.mxu0 0
        %5653 = vmatpush.bf16.msra.mxu0 0
        %5654 = vmatpush.bf16.msra.mxu0 0
        %5655 = vmatpush.bf16.msra.mxu0 %v5620
        %5656 = vmatmul.bf16.gmra.mxu0 %v5611
        %v5657 = vpop.f32.mrf.mxu0
        %v5658 = vadd.f32 0.0, %v5657
        %v5659 = vpop.f32.mrf.mxu0
        %5660 = vdwg.mxu0
        %v5661 = vadd.f32 %v5596, %v5632
        %v5662 = vadd.f32 %v5597, %v5645
        %v5663 = vadd.f32 %v5598, %v5658
        %v5665 = vunpack.c.l.b16 %v5601
        %v5666 = vpack.c.b16 %v5665, %v5665
        %5667 = vrot.lane.b32.xlu0 %v5666, 120
        %v5668 = vpop.permute.xlu0 %5667
        %5669 = vrot.lane.b32.xlu0 %v5278, 110
        %v5670 = vpop.permute.xlu0 %5669
        %5671 = vrot.lane.b32.xlu0 %v5279, 110
        %v5672 = vpop.permute.xlu0 %5671
        %5673 = vrot.lane.b32.xlu0 %v5280, 110
        %v5674 = vpop.permute.xlu0 %5673
        %v5675 = vsel %vm1412, %v5670, %v5672
        %v5676 = vsel %vm1412, %v5672, %v5674
        %v5678 = vsel %vm2915, %v5668, 0
        %v5681 = vsel %vm2919, %v5675, 0
        %v5684 = vsel %vm2919, %v5676, 0
        %v5687 = vsel %vm2919, %v5674, 0
        %5689 = vmatpush.bf16.msra.mxu0 0
        %5690 = vmatpush.bf16.msra.mxu0 0
        %5691 = vmatpush.bf16.msra.mxu0 0
        %5692 = vmatpush.bf16.msra.mxu0 0
        %5693 = vmatpush.bf16.msra.mxu0 0
        %5694 = vmatpush.bf16.msra.mxu0 0
        %5695 = vmatpush.bf16.msra.mxu0 0
        %5696 = vmatpush.bf16.msra.mxu0 %v5681
        %5697 = vmatmul.bf16.gmra.mxu0 %v5678
        %v5698 = vpop.f32.mrf.mxu0
        %v5699 = vadd.f32 0.0, %v5698
        %v5700 = vpop.f32.mrf.mxu0
        %5701 = vdwg.mxu0
        %5702 = vmatpush.bf16.msra.mxu0 0
        %5703 = vmatpush.bf16.msra.mxu0 0
        %5704 = vmatpush.bf16.msra.mxu0 0
        %5705 = vmatpush.bf16.msra.mxu0 0
        %5706 = vmatpush.bf16.msra.mxu0 0
        %5707 = vmatpush.bf16.msra.mxu0 0
        %5708 = vmatpush.bf16.msra.mxu0 0
        %5709 = vmatpush.bf16.msra.mxu0 %v5684
        %5710 = vmatmul.bf16.gmra.mxu0 %v5678
        %v5711 = vpop.f32.mrf.mxu0
        %v5712 = vadd.f32 0.0, %v5711
        %v5713 = vpop.f32.mrf.mxu0
        %5714 = vdwg.mxu0
        %5715 = vmatpush.bf16.msra.mxu0 0
        %5716 = vmatpush.bf16.msra.mxu0 0
        %5717 = vmatpush.bf16.msra.mxu0 0
        %5718 = vmatpush.bf16.msra.mxu0 0
        %5719 = vmatpush.bf16.msra.mxu0 0
        %5720 = vmatpush.bf16.msra.mxu0 0
        %5721 = vmatpush.bf16.msra.mxu0 0
        %5722 = vmatpush.bf16.msra.mxu0 %v5687
        %5723 = vmatmul.bf16.gmra.mxu0 %v5678
        %v5724 = vpop.f32.mrf.mxu0
        %v5725 = vadd.f32 0.0, %v5724
        %v5726 = vpop.f32.mrf.mxu0
        %5727 = vdwg.mxu0
        %v5728 = vadd.f32 %v5661, %v5699
        %v5729 = vadd.f32 %v5662, %v5712
        %v5730 = vadd.f32 %v5663, %v5725
        %s5731 = scalar_lea.vmem %s31, 16
        %v5732 = vld [vmem:[%s5731] sm:$0xf]
        %v5733 = vpack.c.bf16 %v5732, %v5732
        %5734 = vrot.lane.b32.xlu0 %v5211, 109
        %v5735 = vpop.permute.xlu0 %5734
        %5736 = vrot.lane.b32.xlu0 %v5212, 109
        %v5737 = vpop.permute.xlu0 %5736
        %5738 = vrot.lane.b32.xlu0 %v5213, 109
        %v5739 = vpop.permute.xlu0 %5738
        %v5740 = vsel %vm1478, %v5735, %v5737
        %v5741 = vsel %vm1478, %v5737, %v5739
        %v5743 = vsel %vm2915, %v5733, 0
        %v5746 = vsel %vm2919, %v5740, 0
        %v5749 = vsel %vm2919, %v5741, 0
        %v5752 = vsel %vm2919, %v5739, 0
        %5754 = vmatpush.bf16.msra.mxu0 0
        %5755 = vmatpush.bf16.msra.mxu0 0
        %5756 = vmatpush.bf16.msra.mxu0 0
        %5757 = vmatpush.bf16.msra.mxu0 0
        %5758 = vmatpush.bf16.msra.mxu0 0
        %5759 = vmatpush.bf16.msra.mxu0 0
        %5760 = vmatpush.bf16.msra.mxu0 0
        %5761 = vmatpush.bf16.msra.mxu0 %v5746
        %5762 = vmatmul.bf16.gmra.mxu0 %v5743
        %v5763 = vpop.f32.mrf.mxu0
        %v5764 = vadd.f32 0.0, %v5763
        %v5765 = vpop.f32.mrf.mxu0
        %5766 = vdwg.mxu0
        %5767 = vmatpush.bf16.msra.mxu0 0
        %5768 = vmatpush.bf16.msra.mxu0 0
        %5769 = vmatpush.bf16.msra.mxu0 0
        %5770 = vmatpush.bf16.msra.mxu0 0
        %5771 = vmatpush.bf16.msra.mxu0 0
        %5772 = vmatpush.bf16.msra.mxu0 0
        %5773 = vmatpush.bf16.msra.mxu0 0
        %5774 = vmatpush.bf16.msra.mxu0 %v5749
        %5775 = vmatmul.bf16.gmra.mxu0 %v5743
        %v5776 = vpop.f32.mrf.mxu0
        %v5777 = vadd.f32 0.0, %v5776
        %v5778 = vpop.f32.mrf.mxu0
        %5779 = vdwg.mxu0
        %5780 = vmatpush.bf16.msra.mxu0 0
        %5781 = vmatpush.bf16.msra.mxu0 0
        %5782 = vmatpush.bf16.msra.mxu0 0
        %5783 = vmatpush.bf16.msra.mxu0 0
        %5784 = vmatpush.bf16.msra.mxu0 0
        %5785 = vmatpush.bf16.msra.mxu0 0
        %5786 = vmatpush.bf16.msra.mxu0 0
        %5787 = vmatpush.bf16.msra.mxu0 %v5752
        %5788 = vmatmul.bf16.gmra.mxu0 %v5743
        %v5789 = vpop.f32.mrf.mxu0
        %v5790 = vadd.f32 0.0, %v5789
        %v5791 = vpop.f32.mrf.mxu0
        %5792 = vdwg.mxu0
        %v5793 = vadd.f32 %v5728, %v5764
        %v5794 = vadd.f32 %v5729, %v5777
        %v5795 = vadd.f32 %v5730, %v5790
        %v5797 = vunpack.c.l.b16 %v5733
        %v5798 = vpack.c.b16 %v5797, %v5797
        %5799 = vrot.lane.b32.xlu0 %v5798, 120
        %v5800 = vpop.permute.xlu0 %5799
        %5801 = vrot.lane.b32.xlu0 %v5278, 109
        %v5802 = vpop.permute.xlu0 %5801
        %5803 = vrot.lane.b32.xlu0 %v5279, 109
        %v5804 = vpop.permute.xlu0 %5803
        %5805 = vrot.lane.b32.xlu0 %v5280, 109
        %v5806 = vpop.permute.xlu0 %5805
        %v5807 = vsel %vm1478, %v5802, %v5804
        %v5808 = vsel %vm1478, %v5804, %v5806
        %v5810 = vsel %vm2915, %v5800, 0
        %v5813 = vsel %vm2919, %v5807, 0
        %v5816 = vsel %vm2919, %v5808, 0
        %v5819 = vsel %vm2919, %v5806, 0
        %5821 = vmatpush.bf16.msra.mxu0 0
        %5822 = vmatpush.bf16.msra.mxu0 0
        %5823 = vmatpush.bf16.msra.mxu0 0
        %5824 = vmatpush.bf16.msra.mxu0 0
        %5825 = vmatpush.bf16.msra.mxu0 0
        %5826 = vmatpush.bf16.msra.mxu0 0
        %5827 = vmatpush.bf16.msra.mxu0 0
        %5828 = vmatpush.bf16.msra.mxu0 %v5813
        %5829 = vmatmul.bf16.gmra.mxu0 %v5810
        %v5830 = vpop.f32.mrf.mxu0
        %v5831 = vadd.f32 0.0, %v5830
        %v5832 = vpop.f32.mrf.mxu0
        %5833 = vdwg.mxu0
        %5834 = vmatpush.bf16.msra.mxu0 0
        %5835 = vmatpush.bf16.msra.mxu0 0
        %5836 = vmatpush.bf16.msra.mxu0 0
        %5837 = vmatpush.bf16.msra.mxu0 0
        %5838 = vmatpush.bf16.msra.mxu0 0
        %5839 = vmatpush.bf16.msra.mxu0 0
        %5840 = vmatpush.bf16.msra.mxu0 0
        %5841 = vmatpush.bf16.msra.mxu0 %v5816
        %5842 = vmatmul.bf16.gmra.mxu0 %v5810
        %v5843 = vpop.f32.mrf.mxu0
        %v5844 = vadd.f32 0.0, %v5843
        %v5845 = vpop.f32.mrf.mxu0
        %5846 = vdwg.mxu0
        %5847 = vmatpush.bf16.msra.mxu0 0
        %5848 = vmatpush.bf16.msra.mxu0 0
        %5849 = vmatpush.bf16.msra.mxu0 0
        %5850 = vmatpush.bf16.msra.mxu0 0
        %5851 = vmatpush.bf16.msra.mxu0 0
        %5852 = vmatpush.bf16.msra.mxu0 0
        %5853 = vmatpush.bf16.msra.mxu0 0
        %5854 = vmatpush.bf16.msra.mxu0 %v5819
        %5855 = vmatmul.bf16.gmra.mxu0 %v5810
        %v5856 = vpop.f32.mrf.mxu0
        %v5857 = vadd.f32 0.0, %v5856
        %v5858 = vpop.f32.mrf.mxu0
        %5859 = vdwg.mxu0
        %v5860 = vadd.f32 %v5793, %v5831
        %v5861 = vadd.f32 %v5794, %v5844
        %v5862 = vadd.f32 %v5795, %v5857
        %s5863 = scalar_lea.vmem %s31, 20
        %v5864 = vld [vmem:[%s5863] sm:$0xf]
        %v5865 = vpack.c.bf16 %v5864, %v5864
        %5866 = vrot.lane.b32.xlu0 %v5211, 108
        %v5867 = vpop.permute.xlu0 %5866
        %5868 = vrot.lane.b32.xlu0 %v5212, 108
        %v5869 = vpop.permute.xlu0 %5868
        %5870 = vrot.lane.b32.xlu0 %v5213, 108
        %v5871 = vpop.permute.xlu0 %5870
        %v5872 = vsel %vm1544, %v5867, %v5869
        %v5873 = vsel %vm1544, %v5869, %v5871
        %v5875 = vsel %vm2915, %v5865, 0
        %v5878 = vsel %vm2919, %v5872, 0
        %v5881 = vsel %vm2919, %v5873, 0
        %v5884 = vsel %vm2919, %v5871, 0
        %5886 = vmatpush.bf16.msra.mxu0 0
        %5887 = vmatpush.bf16.msra.mxu0 0
        %5888 = vmatpush.bf16.msra.mxu0 0
        %5889 = vmatpush.bf16.msra.mxu0 0
        %5890 = vmatpush.bf16.msra.mxu0 0
        %5891 = vmatpush.bf16.msra.mxu0 0
        %5892 = vmatpush.bf16.msra.mxu0 0
        %5893 = vmatpush.bf16.msra.mxu0 %v5878
        %5894 = vmatmul.bf16.gmra.mxu0 %v5875
        %v5895 = vpop.f32.mrf.mxu0
        %v5896 = vadd.f32 0.0, %v5895
        %v5897 = vpop.f32.mrf.mxu0
        %5898 = vdwg.mxu0
        %5899 = vmatpush.bf16.msra.mxu0 0
        %5900 = vmatpush.bf16.msra.mxu0 0
        %5901 = vmatpush.bf16.msra.mxu0 0
        %5902 = vmatpush.bf16.msra.mxu0 0
        %5903 = vmatpush.bf16.msra.mxu0 0
        %5904 = vmatpush.bf16.msra.mxu0 0
        %5905 = vmatpush.bf16.msra.mxu0 0
        %5906 = vmatpush.bf16.msra.mxu0 %v5881
        %5907 = vmatmul.bf16.gmra.mxu0 %v5875
        %v5908 = vpop.f32.mrf.mxu0
        %v5909 = vadd.f32 0.0, %v5908
        %v5910 = vpop.f32.mrf.mxu0
        %5911 = vdwg.mxu0
        %5912 = vmatpush.bf16.msra.mxu0 0
        %5913 = vmatpush.bf16.msra.mxu0 0
        %5914 = vmatpush.bf16.msra.mxu0 0
        %5915 = vmatpush.bf16.msra.mxu0 0
        %5916 = vmatpush.bf16.msra.mxu0 0
        %5917 = vmatpush.bf16.msra.mxu0 0
        %5918 = vmatpush.bf16.msra.mxu0 0
        %5919 = vmatpush.bf16.msra.mxu0 %v5884
        %5920 = vmatmul.bf16.gmra.mxu0 %v5875
        %v5921 = vpop.f32.mrf.mxu0
        %v5922 = vadd.f32 0.0, %v5921
        %v5923 = vpop.f32.mrf.mxu0
        %5924 = vdwg.mxu0
        %v5925 = vadd.f32 %v5860, %v5896
        %v5926 = vadd.f32 %v5861, %v5909
        %v5927 = vadd.f32 %v5862, %v5922
        %v5929 = vunpack.c.l.b16 %v5865
        %v5930 = vpack.c.b16 %v5929, %v5929
        %5931 = vrot.lane.b32.xlu0 %v5930, 120
        %v5932 = vpop.permute.xlu0 %5931
        %5933 = vrot.lane.b32.xlu0 %v5278, 108
        %v5934 = vpop.permute.xlu0 %5933
        %5935 = vrot.lane.b32.xlu0 %v5279, 108
        %v5936 = vpop.permute.xlu0 %5935
        %5937 = vrot.lane.b32.xlu0 %v5280, 108
        %v5938 = vpop.permute.xlu0 %5937
        %v5939 = vsel %vm1544, %v5934, %v5936
        %v5940 = vsel %vm1544, %v5936, %v5938
        %v5942 = vsel %vm2915, %v5932, 0
        %v5945 = vsel %vm2919, %v5939, 0
        %v5948 = vsel %vm2919, %v5940, 0
        %v5951 = vsel %vm2919, %v5938, 0
        %5953 = vmatpush.bf16.msra.mxu0 0
        %5954 = vmatpush.bf16.msra.mxu0 0
        %5955 = vmatpush.bf16.msra.mxu0 0
        %5956 = vmatpush.bf16.msra.mxu0 0
        %5957 = vmatpush.bf16.msra.mxu0 0
        %5958 = vmatpush.bf16.msra.mxu0 0
        %5959 = vmatpush.bf16.msra.mxu0 0
        %5960 = vmatpush.bf16.msra.mxu0 %v5945
        %5961 = vmatmul.bf16.gmra.mxu0 %v5942
        %v5962 = vpop.f32.mrf.mxu0
        %v5963 = vadd.f32 0.0, %v5962
        %v5964 = vpop.f32.mrf.mxu0
        %5965 = vdwg.mxu0
        %5966 = vmatpush.bf16.msra.mxu0 0
        %5967 = vmatpush.bf16.msra.mxu0 0
        %5968 = vmatpush.bf16.msra.mxu0 0
        %5969 = vmatpush.bf16.msra.mxu0 0
        %5970 = vmatpush.bf16.msra.mxu0 0
        %5971 = vmatpush.bf16.msra.mxu0 0
        %5972 = vmatpush.bf16.msra.mxu0 0
        %5973 = vmatpush.bf16.msra.mxu0 %v5948
        %5974 = vmatmul.bf16.gmra.mxu0 %v5942
        %v5975 = vpop.f32.mrf.mxu0
        %v5976 = vadd.f32 0.0, %v5975
        %v5977 = vpop.f32.mrf.mxu0
        %5978 = vdwg.mxu0
        %5979 = vmatpush.bf16.msra.mxu0 0
        %5980 = vmatpush.bf16.msra.mxu0 0
        %5981 = vmatpush.bf16.msra.mxu0 0
        %5982 = vmatpush.bf16.msra.mxu0 0
        %5983 = vmatpush.bf16.msra.mxu0 0
        %5984 = vmatpush.bf16.msra.mxu0 0
        %5985 = vmatpush.bf16.msra.mxu0 0
        %5986 = vmatpush.bf16.msra.mxu0 %v5951
        %5987 = vmatmul.bf16.gmra.mxu0 %v5942
        %v5988 = vpop.f32.mrf.mxu0
        %v5989 = vadd.f32 0.0, %v5988
        %v5990 = vpop.f32.mrf.mxu0
        %5991 = vdwg.mxu0
        %v5992 = vadd.f32 %v5925, %v5963
        %v5993 = vadd.f32 %v5926, %v5976
        %v5994 = vadd.f32 %v5927, %v5989
        %s5995 = scalar_lea.vmem %s31, 24
        %v5996 = vld [vmem:[%s5995] sm:$0xf]
        %v5997 = vpack.c.bf16 %v5996, %v5996
        %5998 = vrot.lane.b32.xlu0 %v5211, 92
        %v5999 = vpop.permute.xlu0 %5998
        %6000 = vrot.lane.b32.xlu0 %v5212, 92
        %v6001 = vpop.permute.xlu0 %6000
        %6002 = vrot.lane.b32.xlu0 %v5213, 92
        %v6003 = vpop.permute.xlu0 %6002
        %v6004 = vsel %vm1610, %v5999, %v6001
        %v6005 = vsel %vm1610, %v6001, %v6003
        %v6007 = vsel %vm2915, %v5997, 0
        %v6010 = vsel %vm2919, %v6004, 0
        %v6013 = vsel %vm2919, %v6005, 0
        %v6016 = vsel %vm2919, %v6003, 0
        %6018 = vmatpush.bf16.msra.mxu0 0
        %6019 = vmatpush.bf16.msra.mxu0 0
        %6020 = vmatpush.bf16.msra.mxu0 0
        %6021 = vmatpush.bf16.msra.mxu0 0
        %6022 = vmatpush.bf16.msra.mxu0 0
        %6023 = vmatpush.bf16.msra.mxu0 0
        %6024 = vmatpush.bf16.msra.mxu0 0
        %6025 = vmatpush.bf16.msra.mxu0 %v6010
        %6026 = vmatmul.bf16.gmra.mxu0 %v6007
        %v6027 = vpop.f32.mrf.mxu0
        %v6028 = vadd.f32 0.0, %v6027
        %v6029 = vpop.f32.mrf.mxu0
        %6030 = vdwg.mxu0
        %6031 = vmatpush.bf16.msra.mxu0 0
        %6032 = vmatpush.bf16.msra.mxu0 0
        %6033 = vmatpush.bf16.msra.mxu0 0
        %6034 = vmatpush.bf16.msra.mxu0 0
        %6035 = vmatpush.bf16.msra.mxu0 0
        %6036 = vmatpush.bf16.msra.mxu0 0
        %6037 = vmatpush.bf16.msra.mxu0 0
        %6038 = vmatpush.bf16.msra.mxu0 %v6013
        %6039 = vmatmul.bf16.gmra.mxu0 %v6007
        %v6040 = vpop.f32.mrf.mxu0
        %v6041 = vadd.f32 0.0, %v6040
        %v6042 = vpop.f32.mrf.mxu0
        %6043 = vdwg.mxu0
        %6044 = vmatpush.bf16.msra.mxu0 0
        %6045 = vmatpush.bf16.msra.mxu0 0
        %6046 = vmatpush.bf16.msra.mxu0 0
        %6047 = vmatpush.bf16.msra.mxu0 0
        %6048 = vmatpush.bf16.msra.mxu0 0
        %6049 = vmatpush.bf16.msra.mxu0 0
        %6050 = vmatpush.bf16.msra.mxu0 0
        %6051 = vmatpush.bf16.msra.mxu0 %v6016
        %6052 = vmatmul.bf16.gmra.mxu0 %v6007
        %v6053 = vpop.f32.mrf.mxu0
        %v6054 = vadd.f32 0.0, %v6053
        %v6055 = vpop.f32.mrf.mxu0
        %6056 = vdwg.mxu0
        %v6057 = vadd.f32 %v5992, %v6028
        %v6058 = vadd.f32 %v5993, %v6041
        %v6059 = vadd.f32 %v5994, %v6054
        %v6061 = vunpack.c.l.b16 %v5997
        %v6062 = vpack.c.b16 %v6061, %v6061
        %6063 = vrot.lane.b32.xlu0 %v6062, 120
        %v6064 = vpop.permute.xlu0 %6063
        %6065 = vrot.lane.b32.xlu0 %v5278, 92
        %v6066 = vpop.permute.xlu0 %6065
        %6067 = vrot.lane.b32.xlu0 %v5279, 92
        %v6068 = vpop.permute.xlu0 %6067
        %6069 = vrot.lane.b32.xlu0 %v5280, 92
        %v6070 = vpop.permute.xlu0 %6069
        %v6071 = vsel %vm1610, %v6066, %v6068
        %v6072 = vsel %vm1610, %v6068, %v6070
        %v6074 = vsel %vm2915, %v6064, 0
        %v6077 = vsel %vm2919, %v6071, 0
        %v6080 = vsel %vm2919, %v6072, 0
        %v6083 = vsel %vm2919, %v6070, 0
        %6085 = vmatpush.bf16.msra.mxu0 0
        %6086 = vmatpush.bf16.msra.mxu0 0
        %6087 = vmatpush.bf16.msra.mxu0 0
        %6088 = vmatpush.bf16.msra.mxu0 0
        %6089 = vmatpush.bf16.msra.mxu0 0
        %6090 = vmatpush.bf16.msra.mxu0 0
        %6091 = vmatpush.bf16.msra.mxu0 0
        %6092 = vmatpush.bf16.msra.mxu0 %v6077
        %6093 = vmatmul.bf16.gmra.mxu0 %v6074
        %v6094 = vpop.f32.mrf.mxu0
        %v6095 = vadd.f32 0.0, %v6094
        %v6096 = vpop.f32.mrf.mxu0
        %6097 = vdwg.mxu0
        %6098 = vmatpush.bf16.msra.mxu0 0
        %6099 = vmatpush.bf16.msra.mxu0 0
        %6100 = vmatpush.bf16.msra.mxu0 0
        %6101 = vmatpush.bf16.msra.mxu0 0
        %6102 = vmatpush.bf16.msra.mxu0 0
        %6103 = vmatpush.bf16.msra.mxu0 0
        %6104 = vmatpush.bf16.msra.mxu0 0
        %6105 = vmatpush.bf16.msra.mxu0 %v6080
        %6106 = vmatmul.bf16.gmra.mxu0 %v6074
        %v6107 = vpop.f32.mrf.mxu0
        %v6108 = vadd.f32 0.0, %v6107
        %v6109 = vpop.f32.mrf.mxu0
        %6110 = vdwg.mxu0
        %6111 = vmatpush.bf16.msra.mxu0 0
        %6112 = vmatpush.bf16.msra.mxu0 0
        %6113 = vmatpush.bf16.msra.mxu0 0
        %6114 = vmatpush.bf16.msra.mxu0 0
        %6115 = vmatpush.bf16.msra.mxu0 0
        %6116 = vmatpush.bf16.msra.mxu0 0
        %6117 = vmatpush.bf16.msra.mxu0 0
        %6118 = vmatpush.bf16.msra.mxu0 %v6083
        %6119 = vmatmul.bf16.gmra.mxu0 %v6074
        %v6120 = vpop.f32.mrf.mxu0
        %v6121 = vadd.f32 0.0, %v6120
        %v6122 = vpop.f32.mrf.mxu0
        %6123 = vdwg.mxu0
        %v6124 = vadd.f32 %v6057, %v6095
        %v6125 = vadd.f32 %v6058, %v6108
        %v6126 = vadd.f32 %v6059, %v6121
        %s6127 = scalar_lea.vmem %s31, 28
        %v6128 = vld [vmem:[%s6127] sm:$0xf]
        %v6129 = vpack.c.bf16 %v6128, %v6128
        %6130 = vrot.lane.b32.xlu0 %v5211, 91
        %v6131 = vpop.permute.xlu0 %6130
        %6132 = vrot.lane.b32.xlu0 %v5212, 91
        %v6133 = vpop.permute.xlu0 %6132
        %6134 = vrot.lane.b32.xlu0 %v5213, 91
        %v6135 = vpop.permute.xlu0 %6134
        %v6136 = vsel %vm1676, %v6131, %v6133
        %v6137 = vsel %vm1676, %v6133, %v6135
        %v6139 = vsel %vm2915, %v6129, 0
        %v6142 = vsel %vm2919, %v6136, 0
        %v6145 = vsel %vm2919, %v6137, 0
        %v6148 = vsel %vm2919, %v6135, 0
        %6150 = vmatpush.bf16.msra.mxu0 0
        %6151 = vmatpush.bf16.msra.mxu0 0
        %6152 = vmatpush.bf16.msra.mxu0 0
        %6153 = vmatpush.bf16.msra.mxu0 0
        %6154 = vmatpush.bf16.msra.mxu0 0
        %6155 = vmatpush.bf16.msra.mxu0 0
        %6156 = vmatpush.bf16.msra.mxu0 0
        %6157 = vmatpush.bf16.msra.mxu0 %v6142
        %6158 = vmatmul.bf16.gmra.mxu0 %v6139
        %v6159 = vpop.f32.mrf.mxu0
        %v6160 = vadd.f32 0.0, %v6159
        %v6161 = vpop.f32.mrf.mxu0
        %6162 = vdwg.mxu0
        %6163 = vmatpush.bf16.msra.mxu0 0
        %6164 = vmatpush.bf16.msra.mxu0 0
        %6165 = vmatpush.bf16.msra.mxu0 0
        %6166 = vmatpush.bf16.msra.mxu0 0
        %6167 = vmatpush.bf16.msra.mxu0 0
        %6168 = vmatpush.bf16.msra.mxu0 0
        %6169 = vmatpush.bf16.msra.mxu0 0
        %6170 = vmatpush.bf16.msra.mxu0 %v6145
        %6171 = vmatmul.bf16.gmra.mxu0 %v6139
        %v6172 = vpop.f32.mrf.mxu0
        %v6173 = vadd.f32 0.0, %v6172
        %v6174 = vpop.f32.mrf.mxu0
        %6175 = vdwg.mxu0
        %6176 = vmatpush.bf16.msra.mxu0 0
        %6177 = vmatpush.bf16.msra.mxu0 0
        %6178 = vmatpush.bf16.msra.mxu0 0
        %6179 = vmatpush.bf16.msra.mxu0 0
        %6180 = vmatpush.bf16.msra.mxu0 0
        %6181 = vmatpush.bf16.msra.mxu0 0
        %6182 = vmatpush.bf16.msra.mxu0 0
        %6183 = vmatpush.bf16.msra.mxu0 %v6148
        %6184 = vmatmul.bf16.gmra.mxu0 %v6139
        %v6185 = vpop.f32.mrf.mxu0
        %v6186 = vadd.f32 0.0, %v6185
        %v6187 = vpop.f32.mrf.mxu0
        %6188 = vdwg.mxu0
        %v6189 = vadd.f32 %v6124, %v6160
        %v6190 = vadd.f32 %v6125, %v6173
        %v6191 = vadd.f32 %v6126, %v6186
        %v6193 = vunpack.c.l.b16 %v6129
        %v6194 = vpack.c.b16 %v6193, %v6193
        %6195 = vrot.lane.b32.xlu0 %v6194, 120
        %v6196 = vpop.permute.xlu0 %6195
        %6197 = vrot.lane.b32.xlu0 %v5278, 91
        %v6198 = vpop.permute.xlu0 %6197
        %6199 = vrot.lane.b32.xlu0 %v5279, 91
        %v6200 = vpop.permute.xlu0 %6199
        %6201 = vrot.lane.b32.xlu0 %v5280, 91
        %v6202 = vpop.permute.xlu0 %6201
        %v6203 = vsel %vm1676, %v6198, %v6200
        %v6204 = vsel %vm1676, %v6200, %v6202
        %v6206 = vsel %vm2915, %v6196, 0
        %v6209 = vsel %vm2919, %v6203, 0
        %v6212 = vsel %vm2919, %v6204, 0
        %v6215 = vsel %vm2919, %v6202, 0
        %6217 = vmatpush.bf16.msra.mxu0 0
        %6218 = vmatpush.bf16.msra.mxu0 0
        %6219 = vmatpush.bf16.msra.mxu0 0
        %6220 = vmatpush.bf16.msra.mxu0 0
        %6221 = vmatpush.bf16.msra.mxu0 0
        %6222 = vmatpush.bf16.msra.mxu0 0
        %6223 = vmatpush.bf16.msra.mxu0 0
        %6224 = vmatpush.bf16.msra.mxu0 %v6209
        %6225 = vmatmul.bf16.gmra.mxu0 %v6206
        %v6226 = vpop.f32.mrf.mxu0
        %v6227 = vadd.f32 0.0, %v6226
        %v6228 = vpop.f32.mrf.mxu0
        %6229 = vdwg.mxu0
        %6230 = vmatpush.bf16.msra.mxu0 0
        %6231 = vmatpush.bf16.msra.mxu0 0
        %6232 = vmatpush.bf16.msra.mxu0 0
        %6233 = vmatpush.bf16.msra.mxu0 0
        %6234 = vmatpush.bf16.msra.mxu0 0
        %6235 = vmatpush.bf16.msra.mxu0 0
        %6236 = vmatpush.bf16.msra.mxu0 0
        %6237 = vmatpush.bf16.msra.mxu0 %v6212
        %6238 = vmatmul.bf16.gmra.mxu0 %v6206
        %v6239 = vpop.f32.mrf.mxu0
        %v6240 = vadd.f32 0.0, %v6239
        %v6241 = vpop.f32.mrf.mxu0
        %6242 = vdwg.mxu0
        %6243 = vmatpush.bf16.msra.mxu0 0
        %6244 = vmatpush.bf16.msra.mxu0 0
        %6245 = vmatpush.bf16.msra.mxu0 0
        %6246 = vmatpush.bf16.msra.mxu0 0
        %6247 = vmatpush.bf16.msra.mxu0 0
        %6248 = vmatpush.bf16.msra.mxu0 0
        %6249 = vmatpush.bf16.msra.mxu0 0
        %6250 = vmatpush.bf16.msra.mxu0 %v6215
        %6251 = vmatmul.bf16.gmra.mxu0 %v6206
        %v6252 = vpop.f32.mrf.mxu0
        %v6253 = vadd.f32 0.0, %v6252
        %v6254 = vpop.f32.mrf.mxu0
        %6255 = vdwg.mxu0
        %v6256 = vadd.f32 %v6189, %v6227
        %v6257 = vadd.f32 %v6190, %v6240
        %v6258 = vadd.f32 %v6191, %v6253
        %s6259 = scalar_lea.vmem %s31, 32
        %v6260 = vld [vmem:[%s6259] sm:$0xf]
        %v6261 = vpack.c.bf16 %v6260, %v6260
        %6262 = vrot.lane.b32.xlu0 %v5211, 90
        %v6263 = vpop.permute.xlu0 %6262
        %6264 = vrot.lane.b32.xlu0 %v5212, 90
        %v6265 = vpop.permute.xlu0 %6264
        %6266 = vrot.lane.b32.xlu0 %v5213, 90
        %v6267 = vpop.permute.xlu0 %6266
        %v6268 = vsel %vm1742, %v6263, %v6265
        %v6269 = vsel %vm1742, %v6265, %v6267
        %v6271 = vsel %vm2915, %v6261, 0
        %v6274 = vsel %vm2919, %v6268, 0
        %v6277 = vsel %vm2919, %v6269, 0
        %v6280 = vsel %vm2919, %v6267, 0
        %6282 = vmatpush.bf16.msra.mxu0 0
        %6283 = vmatpush.bf16.msra.mxu0 0
        %6284 = vmatpush.bf16.msra.mxu0 0
        %6285 = vmatpush.bf16.msra.mxu0 0
        %6286 = vmatpush.bf16.msra.mxu0 0
        %6287 = vmatpush.bf16.msra.mxu0 0
        %6288 = vmatpush.bf16.msra.mxu0 0
        %6289 = vmatpush.bf16.msra.mxu0 %v6274
        %6290 = vmatmul.bf16.gmra.mxu0 %v6271
        %v6291 = vpop.f32.mrf.mxu0
        %v6292 = vadd.f32 0.0, %v6291
        %v6293 = vpop.f32.mrf.mxu0
        %6294 = vdwg.mxu0
        %6295 = vmatpush.bf16.msra.mxu0 0
        %6296 = vmatpush.bf16.msra.mxu0 0
        %6297 = vmatpush.bf16.msra.mxu0 0
        %6298 = vmatpush.bf16.msra.mxu0 0
        %6299 = vmatpush.bf16.msra.mxu0 0
        %6300 = vmatpush.bf16.msra.mxu0 0
        %6301 = vmatpush.bf16.msra.mxu0 0
        %6302 = vmatpush.bf16.msra.mxu0 %v6277
        %6303 = vmatmul.bf16.gmra.mxu0 %v6271
        %v6304 = vpop.f32.mrf.mxu0
        %v6305 = vadd.f32 0.0, %v6304
        %v6306 = vpop.f32.mrf.mxu0
        %6307 = vdwg.mxu0
        %6308 = vmatpush.bf16.msra.mxu0 0
        %6309 = vmatpush.bf16.msra.mxu0 0
        %6310 = vmatpush.bf16.msra.mxu0 0
        %6311 = vmatpush.bf16.msra.mxu0 0
        %6312 = vmatpush.bf16.msra.mxu0 0
        %6313 = vmatpush.bf16.msra.mxu0 0
        %6314 = vmatpush.bf16.msra.mxu0 0
        %6315 = vmatpush.bf16.msra.mxu0 %v6280
        %6316 = vmatmul.bf16.gmra.mxu0 %v6271
        %v6317 = vpop.f32.mrf.mxu0
        %v6318 = vadd.f32 0.0, %v6317
        %v6319 = vpop.f32.mrf.mxu0
        %6320 = vdwg.mxu0
        %v6321 = vadd.f32 %v6256, %v6292
        %v6322 = vadd.f32 %v6257, %v6305
        %v6323 = vadd.f32 %v6258, %v6318
        %v6325 = vunpack.c.l.b16 %v6261
        %v6326 = vpack.c.b16 %v6325, %v6325
        %6327 = vrot.lane.b32.xlu0 %v6326, 120
        %v6328 = vpop.permute.xlu0 %6327
        %6329 = vrot.lane.b32.xlu0 %v5278, 90
        %v6330 = vpop.permute.xlu0 %6329
        %6331 = vrot.lane.b32.xlu0 %v5279, 90
        %v6332 = vpop.permute.xlu0 %6331
        %6333 = vrot.lane.b32.xlu0 %v5280, 90
        %v6334 = vpop.permute.xlu0 %6333
        %v6335 = vsel %vm1742, %v6330, %v6332
        %v6336 = vsel %vm1742, %v6332, %v6334
        %v6338 = vsel %vm2915, %v6328, 0
        %v6341 = vsel %vm2919, %v6335, 0
        %v6344 = vsel %vm2919, %v6336, 0
        %v6347 = vsel %vm2919, %v6334, 0
        %6349 = vmatpush.bf16.msra.mxu0 0
        %6350 = vmatpush.bf16.msra.mxu0 0
        %6351 = vmatpush.bf16.msra.mxu0 0
        %6352 = vmatpush.bf16.msra.mxu0 0
        %6353 = vmatpush.bf16.msra.mxu0 0
        %6354 = vmatpush.bf16.msra.mxu0 0
        %6355 = vmatpush.bf16.msra.mxu0 0
        %6356 = vmatpush.bf16.msra.mxu0 %v6341
        %6357 = vmatmul.bf16.gmra.mxu0 %v6338
        %v6358 = vpop.f32.mrf.mxu0
        %v6359 = vadd.f32 0.0, %v6358
        %v6360 = vpop.f32.mrf.mxu0
        %6361 = vdwg.mxu0
        %6362 = vmatpush.bf16.msra.mxu0 0
        %6363 = vmatpush.bf16.msra.mxu0 0
        %6364 = vmatpush.bf16.msra.mxu0 0
        %6365 = vmatpush.bf16.msra.mxu0 0
        %6366 = vmatpush.bf16.msra.mxu0 0
        %6367 = vmatpush.bf16.msra.mxu0 0
        %6368 = vmatpush.bf16.msra.mxu0 0
        %6369 = vmatpush.bf16.msra.mxu0 %v6344
        %6370 = vmatmul.bf16.gmra.mxu0 %v6338
        %v6371 = vpop.f32.mrf.mxu0
        %v6372 = vadd.f32 0.0, %v6371
        %v6373 = vpop.f32.mrf.mxu0
        %6374 = vdwg.mxu0
        %6375 = vmatpush.bf16.msra.mxu0 0
        %6376 = vmatpush.bf16.msra.mxu0 0
        %6377 = vmatpush.bf16.msra.mxu0 0
        %6378 = vmatpush.bf16.msra.mxu0 0
        %6379 = vmatpush.bf16.msra.mxu0 0
        %6380 = vmatpush.bf16.msra.mxu0 0
        %6381 = vmatpush.bf16.msra.mxu0 0
        %6382 = vmatpush.bf16.msra.mxu0 %v6347
        %6383 = vmatmul.bf16.gmra.mxu0 %v6338
        %v6384 = vpop.f32.mrf.mxu0
        %v6385 = vadd.f32 0.0, %v6384
        %v6386 = vpop.f32.mrf.mxu0
        %6387 = vdwg.mxu0
        %v6388 = vadd.f32 %v6321, %v6359
        %v6389 = vadd.f32 %v6322, %v6372
        %v6390 = vadd.f32 %v6323, %v6385
        %v6392 = vsel %vm1799, %v6390, 0
        %6394 = vmatpush.msra.mxu0 %v1029
        %6395 = vmatpush.msra.mxu0 %v1027
        %6396 = vmatpush.msra.mxu0 %v1025
        %6397 = vmatpush.msra.mxu0 %v1023
        %6398 = vmatpush.msra.mxu0 %v1021
        %6399 = vmatpush.msra.mxu0 %v1019
        %6400 = vmatpush.msra.mxu0 %v1017
        %6401 = vmatpush.msra.mxu0 %v1015
        %6402 = vmatpush.msra.mxu0 %v1013
        %6403 = vmatpush.msra.mxu0 %v1011
        %6404 = vmatpush.msra.mxu0 %v1009
        %6405 = vmatpush.msra.mxu0 %v1007
        %6406 = vmatpush.msra.mxu0 %v1005
        %6407 = vmatpush.msra.mxu0 %v1003
        %6408 = vmatpush.msra.mxu0 %v1001
        %6409 = vmatpush.msra.mxu0 %v999
        %6410 = vmatmul.f32.gmra.mxu0 %v6388
        %v6411 = vpop.f32.mrf.mxu0
        %v6412 = vadd.f32 0.0, %v6411
        %6413 = vdwg.mxu0
        %6414 = vmatpush.msra.mxu0 %v1061
        %6415 = vmatpush.msra.mxu0 %v1059
        %6416 = vmatpush.msra.mxu0 %v1057
        %6417 = vmatpush.msra.mxu0 %v1055
        %6418 = vmatpush.msra.mxu0 %v1053
        %6419 = vmatpush.msra.mxu0 %v1051
        %6420 = vmatpush.msra.mxu0 %v1049
        %6421 = vmatpush.msra.mxu0 %v1047
        %6422 = vmatpush.msra.mxu0 %v1045
        %6423 = vmatpush.msra.mxu0 %v1043
        %6424 = vmatpush.msra.mxu0 %v1041
        %6425 = vmatpush.msra.mxu0 %v1039
        %6426 = vmatpush.msra.mxu0 %v1037
        %6427 = vmatpush.msra.mxu0 %v1035
        %6428 = vmatpush.msra.mxu0 %v1033
        %6429 = vmatpush.msra.mxu0 %v1031
        %6430 = vmatmul.f32.gmra.mxu0 %v6389
        %v6431 = vpop.f32.mrf.mxu0
        %v6432 = vadd.f32 %v6412, %v6431
        %6433 = vdwg.mxu0
        %6434 = vmatpush.msra.mxu0 0.0
        %6435 = vmatpush.msra.mxu0 0.0
        %6436 = vmatpush.msra.mxu0 0.0
        %6437 = vmatpush.msra.mxu0 0.0
        %6438 = vmatpush.msra.mxu0 0.0
        %6439 = vmatpush.msra.mxu0 0.0
        %6440 = vmatpush.msra.mxu0 0.0
        %6441 = vmatpush.msra.mxu0 0.0
        %6442 = vmatpush.msra.mxu0 0.0
        %6443 = vmatpush.msra.mxu0 0.0
        %6444 = vmatpush.msra.mxu0 0.0
        %6445 = vmatpush.msra.mxu0 0.0
        %6446 = vmatpush.msra.mxu0 %v1069
        %6447 = vmatpush.msra.mxu0 %v1067
        %6448 = vmatpush.msra.mxu0 %v1065
        %6449 = vmatpush.msra.mxu0 %v1063
        %6450 = vmatmul.f32.gmra.mxu0 %v6392
        %v6451 = vpop.f32.mrf.mxu0
        %v6452 = vadd.f32 %v6432, %v6451
        %6453 = vdwg.mxu0
        %6454 = vmatpush.msra.mxu0 %v1030
        %6455 = vmatpush.msra.mxu0 %v1028
        %6456 = vmatpush.msra.mxu0 %v1026
        %6457 = vmatpush.msra.mxu0 %v1024
        %6458 = vmatpush.msra.mxu0 %v1022
        %6459 = vmatpush.msra.mxu0 %v1020
        %6460 = vmatpush.msra.mxu0 %v1018
        %6461 = vmatpush.msra.mxu0 %v1016
        %6462 = vmatpush.msra.mxu0 %v1014
        %6463 = vmatpush.msra.mxu0 %v1012
        %6464 = vmatpush.msra.mxu0 %v1010
        %6465 = vmatpush.msra.mxu0 %v1008
        %6466 = vmatpush.msra.mxu0 %v1006
        %6467 = vmatpush.msra.mxu0 %v1004
        %6468 = vmatpush.msra.mxu0 %v1002
        %6469 = vmatpush.msra.mxu0 %v1000
        %6470 = vmatmul.f32.gmra.mxu0 %v6388
        %v6471 = vpop.f32.mrf.mxu0
        %v6472 = vadd.f32 0.0, %v6471
        %6473 = vdwg.mxu0
        %6474 = vmatpush.msra.mxu0 %v1062
        %6475 = vmatpush.msra.mxu0 %v1060
        %6476 = vmatpush.msra.mxu0 %v1058
        %6477 = vmatpush.msra.mxu0 %v1056
        %6478 = vmatpush.msra.mxu0 %v1054
        %6479 = vmatpush.msra.mxu0 %v1052
        %6480 = vmatpush.msra.mxu0 %v1050
        %6481 = vmatpush.msra.mxu0 %v1048
        %6482 = vmatpush.msra.mxu0 %v1046
        %6483 = vmatpush.msra.mxu0 %v1044
        %6484 = vmatpush.msra.mxu0 %v1042
        %6485 = vmatpush.msra.mxu0 %v1040
        %6486 = vmatpush.msra.mxu0 %v1038
        %6487 = vmatpush.msra.mxu0 %v1036
        %6488 = vmatpush.msra.mxu0 %v1034
        %6489 = vmatpush.msra.mxu0 %v1032
        %6490 = vmatmul.f32.gmra.mxu0 %v6389
        %v6491 = vpop.f32.mrf.mxu0
        %v6492 = vadd.f32 %v6472, %v6491
        %6493 = vdwg.mxu0
        %6494 = vmatpush.msra.mxu0 0.0
        %6495 = vmatpush.msra.mxu0 0.0
        %6496 = vmatpush.msra.mxu0 0.0
        %6497 = vmatpush.msra.mxu0 0.0
        %6498 = vmatpush.msra.mxu0 0.0
        %6499 = vmatpush.msra.mxu0 0.0
        %6500 = vmatpush.msra.mxu0 0.0
        %6501 = vmatpush.msra.mxu0 0.0
        %6502 = vmatpush.msra.mxu0 0.0
        %6503 = vmatpush.msra.mxu0 0.0
        %6504 = vmatpush.msra.mxu0 0.0
        %6505 = vmatpush.msra.mxu0 0.0
        %6506 = vmatpush.msra.mxu0 %v1070
        %6507 = vmatpush.msra.mxu0 %v1068
        %6508 = vmatpush.msra.mxu0 %v1066
        %6509 = vmatpush.msra.mxu0 %v1064
        %6510 = vmatmul.f32.gmra.mxu0 %v6392
        %v6511 = vpop.f32.mrf.mxu0
        %v6512 = vadd.f32 %v6492, %v6511
        %6513 = vdwg.mxu0
        %v6514 = vmax.f32 %v6452, 0.0
        %v6515 = vmax.f32 %v6512, 0.0
        %v6516 = vadd.f32 %v1923, %v6514
        %v6517 = vadd.f32 %v1924, %v6515
        %v6520 = vrot.slane %v6517, 4
        %v6521 = vsel %vm2919, %v6516, %v6520
        %6523 = vst [vmem:[%s895] sm:$0xff] %v6521
        %s6524 = sand.u32 %s695, 1
        %s6525 = scalar_lea.sflag [#allocation3], %s6524
        %s6526 = sand.u32 %s695, 1
        %s6527 = smul.addr %s6526, 8
        %s6528 = scalar_lea.vmem [#allocation2], %s6527
        // Predicated region
        $region137: #{tpu_custom_call.1} parent=135 // pred_check
          %p6529 = pneg %p705
        $region138: #{tpu_custom_call.1} parent=135 // pred_check_branch
          %6531 = sbr.rel (%p6529) target = $region140
        $region139: #{tpu_custom_call.1} parent=135 // pred_region
          %6533 = vsyncadd %s6525, 0
          %s6534 = smul.addr %s73, 2
          %s6535 = smul.addr %s6534, 4
          %s6536 = scalar_lea.hbm %s59, %s6535
          %s6538 = sshll.u32 %s6528, 4
          %s6539 = int_to_ptr.vmem [resolvable:$true] %s6538
          %s6540 = sshll.u32 %s6536, 4
          %s6541 = int_to_ptr.hbm [resolvable:$true] %s6540
          %6543 = dma.vmem_to_hbm [thread:$0]  %s6539, 128, %s6541, %s6525
        $region140: #{tpu_custom_call.1} parent=135 // pred_fallthru
          _
      $region136: #{tpu_custom_call.1} parent=5 // pred_fallthru
        _
      %p6544 = scmp.le.s32.totalorder 2, %s68
      // Predicated region
      $region141: #{tpu_custom_call.1} parent=5 // pred_check
        %p6545 = pneg %p6544
      $region142: #{tpu_custom_call.1} parent=5 // pred_check_branch
        %6547 = sbr.rel (%p6545) target = $region144
      $region143: #{tpu_custom_call.1} parent=5 // pred_region
        %s6548 = ssub.s32 %s68, 2
        // Predicated region
        $region145: #{tpu_custom_call.1} parent=143 // pred_check
          %p6549 = pneg %p711
        $region146: #{tpu_custom_call.1} parent=143 // pred_check_branch
          %6551 = sbr.rel (%p6549) target = $region148
        $region147: #{tpu_custom_call.1} parent=143 // pred_region
          %s6552 = sand.u32 %s696, 1
          %s6553 = scalar_lea.sflag [#allocation3], %s6552
          %s6554 = sand.u32 %s696, 1
          %s6555 = smul.addr %s6554, 8
          %s6556 = scalar_lea.vmem [#allocation2], %s6555
          %6558 = dma.done %s6553, 128
        $region148: #{tpu_custom_call.1} parent=143 // pred_fallthru
          _
      $region144: #{tpu_custom_call.1} parent=5 // pred_fallthru
        _
    $region6: #{tpu_custom_call.1} parent=1 // loop_footer
      %s72 = sadd.s32 1, %s68
    $region7: #{tpu_custom_call.1} parent=1 // loop_footer_branch
      %67 = sbr.rel target = $region3
    $region8: #{tpu_custom_call.1} parent=1 // loop_exit
      _
    %6559 = vsyncpa [#allocation3], 1
    %s6560 = scalar_lea.sflag [#allocation3], 1
    %6561 = vsyncpa %s6560, 1

</llo_original>
